<compile_context>
chip_gen: v7x
topology: tpu7x:2x2x1
jax: 0.10.0
libtpu: 0.0.40
codegen_flags: <defaults>
</compile_context>

<pallas_src>
import jax
import jax.numpy as jnp
from jax.experimental import pallas as pl
from jax.experimental.pallas import tpu as pltpu


# ----------------------------------------------------------------------------
# Pallas kernel: fused conv3x3 -> ReLU -> conv3x3 for one batch element.
# ----------------------------------------------------------------------------
def _flowhead_kernel(x_ref, w1_ref, b1_ref, w2_ref, b2_ref, o_ref):
    H, W, Cin = x_ref.shape[1], x_ref.shape[2], x_ref.shape[3]
    Ch = w1_ref.shape[2]
    Co = w2_ref.shape[2]

    def pad_hw(a, C):
        # zero-pad by 1 on both spatial axes of an (H, W, C) f32 array.
        zrow = jnp.zeros((1, W, C), jnp.float32)
        a = jnp.concatenate([zrow, a, zrow], axis=0)        # (H+2, W,   C)
        zcol = jnp.zeros((H + 2, 1, C), jnp.float32)
        return jnp.concatenate([zcol, a, zcol], axis=1)     # (H+2, W+2, C)

    def conv3x3(apad, w_ref, b_ref, C_in, C_out):
        # apad: (H+2, W+2, C_in) zero-padded activation (built once).
        # Cross-correlation: tap (ky, kx) reads apad[ky:ky+H, kx:kx+W].
        acc = jnp.zeros((H * W, C_out), jnp.float32)
        for ky in range(3):                                 # static unroll
            for kx in range(3):
                slab = apad[ky:ky + H, kx:kx + W, :].reshape(H * W, C_in)
                acc = acc + jnp.dot(slab, w_ref[3 * ky + kx],
                                    preferred_element_type=jnp.float32)
        return acc + b_ref[...]                             # bias (1, C_out)

    x = x_ref[0].astype(jnp.float32)                        # (H, W, Cin)

    # conv1 + ReLU (hidden stays in VMEM/vregs, never written to HBM)
    h = conv3x3(pad_hw(x, Cin), w1_ref, b1_ref, Cin, Ch)
    h = jnp.maximum(h, 0.0).reshape(H, W, Ch)

    # conv2
    out = conv3x3(pad_hw(h, Ch), w2_ref, b2_ref, Ch, Co)
    o_ref[0] = out.reshape(H, W, Co).astype(o_ref.dtype)


# ----------------------------------------------------------------------------
# Wrapper: PyTorch-style NCHW I/O, OIHW weights.
# ----------------------------------------------------------------------------
def _taps(w_oihw):
    # (Cout, Cin, 3, 3) -> (9, Cin, Cout), tap index = 3*ky + kx.
    o, i = w_oihw.shape[0], w_oihw.shape[1]
    return jnp.transpose(w_oihw, (2, 3, 1, 0)).reshape(9, i, o)


def flow_head(x_nchw, params):
    """Pallas implementation of FlowHead.forward. I/O in NCHW like PyTorch."""
    N, Cin, H, W = x_nchw.shape
    x = jnp.transpose(x_nchw, (0, 2, 3, 1))                 # NCHW -> NHWC

    w1 = _taps(params['w1'])                                # (9, Cin, Ch)
    b1 = params['b1'].reshape(1, -1)
    w2 = _taps(params['w2'])                                # (9, Ch, 2)
    b2 = params['b2'].reshape(1, -1)
    Ch, Co = w1.shape[2], w2.shape[2]

    out = pl.pallas_call(
        _flowhead_kernel,
        out_shape=jax.ShapeDtypeStruct((N, H, W, Co), x_nchw.dtype),
        grid=(N,),
        in_specs=[
            pl.BlockSpec((1, H, W, Cin), lambda n: (n, 0, 0, 0)),   # x
            pl.BlockSpec((9, Cin, Ch), lambda n: (0, 0, 0)),        # conv1 taps
            pl.BlockSpec((1, Ch), lambda n: (0, 0)),                # conv1 bias
            pl.BlockSpec((9, Ch, Co), lambda n: (0, 0, 0)),         # conv2 taps
            pl.BlockSpec((1, Co), lambda n: (0, 0)),                # conv2 bias
        ],
        out_specs=pl.BlockSpec((1, H, W, Co), lambda n: (n, 0, 0, 0)),
        compiler_params=pltpu.CompilerParams(
            dimension_semantics=("parallel",)),
    )(x, w1, b1, w2, b2)

    return jnp.transpose(out, (0, 3, 1, 2))                 # NHWC -> NCHW (2ch)


# ----------------------------------------------------------------------------
# Pure-JAX reference (mirrors the PyTorch module) for checking.
# ----------------------------------------------------------------------------
def flow_head_ref(x, p):
    def conv(a, w, b):
        out = jax.lax.conv_general_dilated(
            a, w, window_strides=(1, 1), padding=((1, 1), (1, 1)),
            dimension_numbers=('NCHW', 'OIHW', 'NCHW'))
        return out + b[None, :, None, None]
    return conv(jnp.maximum(conv(x, p['w1'], p['b1']), 0.0), p['w2'], p['b2'])


# ----------------------------------------------------------------------------
if __name__ == "__main__":
    # Module defaults (input_dim=128, hidden_dim=256) at a small spatial size.
    N, CIN, CH, H, W = 2, 128, 256, 16, 16

    key = jax.random.PRNGKey(0)
    ks = jax.random.split(key, 5)

    params = {
        'w1': (0.05 * jax.random.normal(ks[0], (CH, CIN, 3, 3))).astype(jnp.float32),
        'b1': (0.05 * jax.random.normal(ks[1], (CH,))).astype(jnp.float32),
        'w2': (0.05 * jax.random.normal(ks[2], (2, CH, 3, 3))).astype(jnp.float32),
        'b2': (0.05 * jax.random.normal(ks[3], (2,))).astype(jnp.float32),
    }
    x = jax.random.normal(ks[4], (N, CIN, H, W), dtype=jnp.float32)

    out = jax.block_until_ready(jax.jit(flow_head)(x, params))
    ref = jax.block_until_ready(flow_head_ref(x, params))

    assert out.shape == (N, 2, H, W)
    assert jnp.allclose(out, ref, atol=2e-3, rtol=2e-3), \
        f"max abs err {jnp.max(jnp.abs(out - ref))}"

    print("KERNEL_OK")
</pallas_src>

<mosaic_0001>
module attributes {stable_mosaic.version = 11 : i64} {
  func.func @_flowhead_kernel(%arg0: i32, %arg1: memref<1x16x16x128xf32, #tpu.memory_space<vmem>>, %arg2: memref<9x128x256xf32, #tpu.memory_space<vmem>>, %arg3: memref<1x256xf32, #tpu.memory_space<vmem>>, %arg4: memref<9x256x2xf32, #tpu.memory_space<vmem>>, %arg5: memref<1x2xf32, #tpu.memory_space<vmem>>, %arg6: memref<1x16x16x2xf32, #tpu.memory_space<vmem>>) attributes {dimension_semantics = [#tpu.dimension_semantics<parallel>], iteration_bounds = array<i64: 2>, scalar_prefetch = 0 : i64, scratch_operands = 0 : i64, tpu.core_type = #tpu.core_type<tc>, window_params = [{transform_indices = @transform_0, window_bounds = array<i64: 1, 16, 16, 128>}, {pipeline_mode = #tpu.pipeline_mode<synchronous>, transform_indices = @transform_1, window_bounds = array<i64: 9, 128, 256>}, {pipeline_mode = #tpu.pipeline_mode<synchronous>, transform_indices = @transform_2, window_bounds = array<i64: 1, 256>}, {pipeline_mode = #tpu.pipeline_mode<synchronous>, transform_indices = @transform_3, window_bounds = array<i64: 9, 256, 2>}, {pipeline_mode = #tpu.pipeline_mode<synchronous>, transform_indices = @transform_4, window_bounds = array<i64: 1, 2>}, {transform_indices = @transform_5, window_bounds = array<i64: 1, 16, 16, 2>}]} {
    %c0 = arith.constant 0 : index
    %c0_0 = arith.constant 0 : index
    %c0_1 = arith.constant 0 : index
    %c0_2 = arith.constant 0 : index
    %0 = vector.load %arg1[%c0, %c0_0, %c0_1, %c0_2] : memref<1x16x16x128xf32, #tpu.memory_space<vmem>>, vector<1x16x16x128xf32>
    %1 = vector.shape_cast %0 : vector<1x16x16x128xf32> to vector<16x16x128xf32>
    %cst = arith.constant 0.000000e+00 : f32
    %2 = vector.broadcast %cst : f32 to vector<1x16x128xf32>
    %3 = tpu.concatenate %2, %1, %2 in 0 : vector<1x16x128xf32>, vector<16x16x128xf32>, vector<1x16x128xf32> -> vector<18x16x128xf32>
    %cst_3 = arith.constant 0.000000e+00 : f32
    %4 = vector.broadcast %cst_3 : f32 to vector<18x1x128xf32>
    %5 = tpu.concatenate %4, %3, %4 in 1 : vector<18x1x128xf32>, vector<18x16x128xf32>, vector<18x1x128xf32> -> vector<18x18x128xf32>
    %cst_4 = arith.constant 0.000000e+00 : f32
    %6 = vector.broadcast %cst_4 : f32 to vector<256x256xf32>
    %7 = vector.extract_strided_slice %5 {offsets = [0, 0, 0], sizes = [16, 16, 128], strides = [1, 1, 1]} : vector<18x18x128xf32> to vector<16x16x128xf32>
    %8 = vector.shape_cast %7 : vector<16x16x128xf32> to vector<256x128xf32>
    %c0_5 = arith.constant 0 : index
    %c0_6 = arith.constant 0 : index
    %c0_7 = arith.constant 0 : index
    %9 = vector.load %arg2[%c0_5, %c0_6, %c0_7] : memref<9x128x256xf32, #tpu.memory_space<vmem>>, vector<1x128x256xf32>
    %10 = vector.shape_cast %9 : vector<1x128x256xf32> to vector<128x256xf32>
    %cst_8 = arith.constant dense<0.000000e+00> : vector<256x256xf32>
    %11 = tpu.matmul %8, %10, %cst_8 {dimension_numbers = #tpu.dot_dimension_numbers<[1], [0], [0], [1], [0, 0, 1, 1], [], []>} : vector<256x128xf32>, vector<128x256xf32>, vector<256x256xf32> -> vector<256x256xf32>
    %12 = arith.addf %6, %11 : vector<256x256xf32>
    %13 = vector.extract_strided_slice %5 {offsets = [0, 1, 0], sizes = [16, 16, 128], strides = [1, 1, 1]} : vector<18x18x128xf32> to vector<16x16x128xf32>
    %14 = vector.shape_cast %13 : vector<16x16x128xf32> to vector<256x128xf32>
    %c1 = arith.constant 1 : index
    %c0_9 = arith.constant 0 : index
    %c0_10 = arith.constant 0 : index
    %15 = vector.load %arg2[%c1, %c0_9, %c0_10] : memref<9x128x256xf32, #tpu.memory_space<vmem>>, vector<1x128x256xf32>
    %16 = vector.shape_cast %15 : vector<1x128x256xf32> to vector<128x256xf32>
    %cst_11 = arith.constant dense<0.000000e+00> : vector<256x256xf32>
    %17 = tpu.matmul %14, %16, %cst_11 {dimension_numbers = #tpu.dot_dimension_numbers<[1], [0], [0], [1], [0, 0, 1, 1], [], []>} : vector<256x128xf32>, vector<128x256xf32>, vector<256x256xf32> -> vector<256x256xf32>
    %18 = arith.addf %12, %17 : vector<256x256xf32>
    %19 = vector.extract_strided_slice %5 {offsets = [0, 2, 0], sizes = [16, 16, 128], strides = [1, 1, 1]} : vector<18x18x128xf32> to vector<16x16x128xf32>
    %20 = vector.shape_cast %19 : vector<16x16x128xf32> to vector<256x128xf32>
    %c2 = arith.constant 2 : index
    %c0_12 = arith.constant 0 : index
    %c0_13 = arith.constant 0 : index
    %21 = vector.load %arg2[%c2, %c0_12, %c0_13] : memref<9x128x256xf32, #tpu.memory_space<vmem>>, vector<1x128x256xf32>
    %22 = vector.shape_cast %21 : vector<1x128x256xf32> to vector<128x256xf32>
    %cst_14 = arith.constant dense<0.000000e+00> : vector<256x256xf32>
    %23 = tpu.matmul %20, %22, %cst_14 {dimension_numbers = #tpu.dot_dimension_numbers<[1], [0], [0], [1], [0, 0, 1, 1], [], []>} : vector<256x128xf32>, vector<128x256xf32>, vector<256x256xf32> -> vector<256x256xf32>
    %24 = arith.addf %18, %23 : vector<256x256xf32>
    %25 = vector.extract_strided_slice %5 {offsets = [1, 0, 0], sizes = [16, 16, 128], strides = [1, 1, 1]} : vector<18x18x128xf32> to vector<16x16x128xf32>
    %26 = vector.shape_cast %25 : vector<16x16x128xf32> to vector<256x128xf32>
    %c3 = arith.constant 3 : index
    %c0_15 = arith.constant 0 : index
    %c0_16 = arith.constant 0 : index
    %27 = vector.load %arg2[%c3, %c0_15, %c0_16] : memref<9x128x256xf32, #tpu.memory_space<vmem>>, vector<1x128x256xf32>
    %28 = vector.shape_cast %27 : vector<1x128x256xf32> to vector<128x256xf32>
    %cst_17 = arith.constant dense<0.000000e+00> : vector<256x256xf32>
    %29 = tpu.matmul %26, %28, %cst_17 {dimension_numbers = #tpu.dot_dimension_numbers<[1], [0], [0], [1], [0, 0, 1, 1], [], []>} : vector<256x128xf32>, vector<128x256xf32>, vector<256x256xf32> -> vector<256x256xf32>
    %30 = arith.addf %24, %29 : vector<256x256xf32>
    %31 = vector.extract_strided_slice %5 {offsets = [1, 1, 0], sizes = [16, 16, 128], strides = [1, 1, 1]} : vector<18x18x128xf32> to vector<16x16x128xf32>
    %32 = vector.shape_cast %31 : vector<16x16x128xf32> to vector<256x128xf32>
    %c4 = arith.constant 4 : index
    %c0_18 = arith.constant 0 : index
    %c0_19 = arith.constant 0 : index
    %33 = vector.load %arg2[%c4, %c0_18, %c0_19] : memref<9x128x256xf32, #tpu.memory_space<vmem>>, vector<1x128x256xf32>
    %34 = vector.shape_cast %33 : vector<1x128x256xf32> to vector<128x256xf32>
    %cst_20 = arith.constant dense<0.000000e+00> : vector<256x256xf32>
    %35 = tpu.matmul %32, %34, %cst_20 {dimension_numbers = #tpu.dot_dimension_numbers<[1], [0], [0], [1], [0, 0, 1, 1], [], []>} : vector<256x128xf32>, vector<128x256xf32>, vector<256x256xf32> -> vector<256x256xf32>
    %36 = arith.addf %30, %35 : vector<256x256xf32>
    %37 = vector.extract_strided_slice %5 {offsets = [1, 2, 0], sizes = [16, 16, 128], strides = [1, 1, 1]} : vector<18x18x128xf32> to vector<16x16x128xf32>
    %38 = vector.shape_cast %37 : vector<16x16x128xf32> to vector<256x128xf32>
    %c5 = arith.constant 5 : index
    %c0_21 = arith.constant 0 : index
    %c0_22 = arith.constant 0 : index
    %39 = vector.load %arg2[%c5, %c0_21, %c0_22] : memref<9x128x256xf32, #tpu.memory_space<vmem>>, vector<1x128x256xf32>
    %40 = vector.shape_cast %39 : vector<1x128x256xf32> to vector<128x256xf32>
    %cst_23 = arith.constant dense<0.000000e+00> : vector<256x256xf32>
    %41 = tpu.matmul %38, %40, %cst_23 {dimension_numbers = #tpu.dot_dimension_numbers<[1], [0], [0], [1], [0, 0, 1, 1], [], []>} : vector<256x128xf32>, vector<128x256xf32>, vector<256x256xf32> -> vector<256x256xf32>
    %42 = arith.addf %36, %41 : vector<256x256xf32>
    %43 = vector.extract_strided_slice %5 {offsets = [2, 0, 0], sizes = [16, 16, 128], strides = [1, 1, 1]} : vector<18x18x128xf32> to vector<16x16x128xf32>
    %44 = vector.shape_cast %43 : vector<16x16x128xf32> to vector<256x128xf32>
    %c6 = arith.constant 6 : index
    %c0_24 = arith.constant 0 : index
    %c0_25 = arith.constant 0 : index
    %45 = vector.load %arg2[%c6, %c0_24, %c0_25] : memref<9x128x256xf32, #tpu.memory_space<vmem>>, vector<1x128x256xf32>
    %46 = vector.shape_cast %45 : vector<1x128x256xf32> to vector<128x256xf32>
    %cst_26 = arith.constant dense<0.000000e+00> : vector<256x256xf32>
    %47 = tpu.matmul %44, %46, %cst_26 {dimension_numbers = #tpu.dot_dimension_numbers<[1], [0], [0], [1], [0, 0, 1, 1], [], []>} : vector<256x128xf32>, vector<128x256xf32>, vector<256x256xf32> -> vector<256x256xf32>
    %48 = arith.addf %42, %47 : vector<256x256xf32>
    %49 = vector.extract_strided_slice %5 {offsets = [2, 1, 0], sizes = [16, 16, 128], strides = [1, 1, 1]} : vector<18x18x128xf32> to vector<16x16x128xf32>
    %50 = vector.shape_cast %49 : vector<16x16x128xf32> to vector<256x128xf32>
    %c7 = arith.constant 7 : index
    %c0_27 = arith.constant 0 : index
    %c0_28 = arith.constant 0 : index
    %51 = vector.load %arg2[%c7, %c0_27, %c0_28] : memref<9x128x256xf32, #tpu.memory_space<vmem>>, vector<1x128x256xf32>
    %52 = vector.shape_cast %51 : vector<1x128x256xf32> to vector<128x256xf32>
    %cst_29 = arith.constant dense<0.000000e+00> : vector<256x256xf32>
    %53 = tpu.matmul %50, %52, %cst_29 {dimension_numbers = #tpu.dot_dimension_numbers<[1], [0], [0], [1], [0, 0, 1, 1], [], []>} : vector<256x128xf32>, vector<128x256xf32>, vector<256x256xf32> -> vector<256x256xf32>
    %54 = arith.addf %48, %53 : vector<256x256xf32>
    %55 = vector.extract_strided_slice %5 {offsets = [2, 2, 0], sizes = [16, 16, 128], strides = [1, 1, 1]} : vector<18x18x128xf32> to vector<16x16x128xf32>
    %56 = vector.shape_cast %55 : vector<16x16x128xf32> to vector<256x128xf32>
    %c8 = arith.constant 8 : index
    %c0_30 = arith.constant 0 : index
    %c0_31 = arith.constant 0 : index
    %57 = vector.load %arg2[%c8, %c0_30, %c0_31] : memref<9x128x256xf32, #tpu.memory_space<vmem>>, vector<1x128x256xf32>
    %58 = vector.shape_cast %57 : vector<1x128x256xf32> to vector<128x256xf32>
    %cst_32 = arith.constant dense<0.000000e+00> : vector<256x256xf32>
    %59 = tpu.matmul %56, %58, %cst_32 {dimension_numbers = #tpu.dot_dimension_numbers<[1], [0], [0], [1], [0, 0, 1, 1], [], []>} : vector<256x128xf32>, vector<128x256xf32>, vector<256x256xf32> -> vector<256x256xf32>
    %60 = arith.addf %54, %59 : vector<256x256xf32>
    %c0_33 = arith.constant 0 : index
    %c0_34 = arith.constant 0 : index
    %61 = vector.load %arg3[%c0_33, %c0_34] : memref<1x256xf32, #tpu.memory_space<vmem>>, vector<1x256xf32>
    %62 = vector.broadcast %61 : vector<1x256xf32> to vector<256x256xf32>
    %63 = arith.addf %60, %62 : vector<256x256xf32>
    %cst_35 = arith.constant 0.000000e+00 : f32
    %64 = vector.broadcast %cst_35 : f32 to vector<256x256xf32>
    %65 = arith.maximumf %63, %64 : vector<256x256xf32>
    %66 = vector.shape_cast %65 : vector<256x256xf32> to vector<16x16x256xf32>
    %cst_36 = arith.constant 0.000000e+00 : f32
    %67 = vector.broadcast %cst_36 : f32 to vector<1x16x256xf32>
    %68 = tpu.concatenate %67, %66, %67 in 0 : vector<1x16x256xf32>, vector<16x16x256xf32>, vector<1x16x256xf32> -> vector<18x16x256xf32>
    %cst_37 = arith.constant 0.000000e+00 : f32
    %69 = vector.broadcast %cst_37 : f32 to vector<18x1x256xf32>
    %70 = tpu.concatenate %69, %68, %69 in 1 : vector<18x1x256xf32>, vector<18x16x256xf32>, vector<18x1x256xf32> -> vector<18x18x256xf32>
    %cst_38 = arith.constant 0.000000e+00 : f32
    %71 = vector.broadcast %cst_38 : f32 to vector<256x2xf32>
    %72 = vector.extract_strided_slice %70 {offsets = [0, 0, 0], sizes = [16, 16, 256], strides = [1, 1, 1]} : vector<18x18x256xf32> to vector<16x16x256xf32>
    %73 = vector.shape_cast %72 : vector<16x16x256xf32> to vector<256x256xf32>
    %c0_39 = arith.constant 0 : index
    %c0_40 = arith.constant 0 : index
    %c0_41 = arith.constant 0 : index
    %74 = vector.load %arg4[%c0_39, %c0_40, %c0_41] : memref<9x256x2xf32, #tpu.memory_space<vmem>>, vector<1x256x2xf32>
    %75 = vector.shape_cast %74 : vector<1x256x2xf32> to vector<256x2xf32>
    %cst_42 = arith.constant dense<0.000000e+00> : vector<256x2xf32>
    %76 = tpu.matmul %73, %75, %cst_42 {dimension_numbers = #tpu.dot_dimension_numbers<[1], [0], [0], [1], [0, 0, 1, 1], [], []>} : vector<256x256xf32>, vector<256x2xf32>, vector<256x2xf32> -> vector<256x2xf32>
    %77 = arith.addf %71, %76 : vector<256x2xf32>
    %78 = vector.extract_strided_slice %70 {offsets = [0, 1, 0], sizes = [16, 16, 256], strides = [1, 1, 1]} : vector<18x18x256xf32> to vector<16x16x256xf32>
    %79 = vector.shape_cast %78 : vector<16x16x256xf32> to vector<256x256xf32>
    %c1_43 = arith.constant 1 : index
    %c0_44 = arith.constant 0 : index
    %c0_45 = arith.constant 0 : index
    %80 = vector.load %arg4[%c1_43, %c0_44, %c0_45] : memref<9x256x2xf32, #tpu.memory_space<vmem>>, vector<1x256x2xf32>
    %81 = vector.shape_cast %80 : vector<1x256x2xf32> to vector<256x2xf32>
    %cst_46 = arith.constant dense<0.000000e+00> : vector<256x2xf32>
    %82 = tpu.matmul %79, %81, %cst_46 {dimension_numbers = #tpu.dot_dimension_numbers<[1], [0], [0], [1], [0, 0, 1, 1], [], []>} : vector<256x256xf32>, vector<256x2xf32>, vector<256x2xf32> -> vector<256x2xf32>
    %83 = arith.addf %77, %82 : vector<256x2xf32>
    %84 = vector.extract_strided_slice %70 {offsets = [0, 2, 0], sizes = [16, 16, 256], strides = [1, 1, 1]} : vector<18x18x256xf32> to vector<16x16x256xf32>
    %85 = vector.shape_cast %84 : vector<16x16x256xf32> to vector<256x256xf32>
    %c2_47 = arith.constant 2 : index
    %c0_48 = arith.constant 0 : index
    %c0_49 = arith.constant 0 : index
    %86 = vector.load %arg4[%c2_47, %c0_48, %c0_49] : memref<9x256x2xf32, #tpu.memory_space<vmem>>, vector<1x256x2xf32>
    %87 = vector.shape_cast %86 : vector<1x256x2xf32> to vector<256x2xf32>
    %cst_50 = arith.constant dense<0.000000e+00> : vector<256x2xf32>
    %88 = tpu.matmul %85, %87, %cst_50 {dimension_numbers = #tpu.dot_dimension_numbers<[1], [0], [0], [1], [0, 0, 1, 1], [], []>} : vector<256x256xf32>, vector<256x2xf32>, vector<256x2xf32> -> vector<256x2xf32>
    %89 = arith.addf %83, %88 : vector<256x2xf32>
    %90 = vector.extract_strided_slice %70 {offsets = [1, 0, 0], sizes = [16, 16, 256], strides = [1, 1, 1]} : vector<18x18x256xf32> to vector<16x16x256xf32>
    %91 = vector.shape_cast %90 : vector<16x16x256xf32> to vector<256x256xf32>
    %c3_51 = arith.constant 3 : index
    %c0_52 = arith.constant 0 : index
    %c0_53 = arith.constant 0 : index
    %92 = vector.load %arg4[%c3_51, %c0_52, %c0_53] : memref<9x256x2xf32, #tpu.memory_space<vmem>>, vector<1x256x2xf32>
    %93 = vector.shape_cast %92 : vector<1x256x2xf32> to vector<256x2xf32>
    %cst_54 = arith.constant dense<0.000000e+00> : vector<256x2xf32>
    %94 = tpu.matmul %91, %93, %cst_54 {dimension_numbers = #tpu.dot_dimension_numbers<[1], [0], [0], [1], [0, 0, 1, 1], [], []>} : vector<256x256xf32>, vector<256x2xf32>, vector<256x2xf32> -> vector<256x2xf32>
    %95 = arith.addf %89, %94 : vector<256x2xf32>
    %96 = vector.extract_strided_slice %70 {offsets = [1, 1, 0], sizes = [16, 16, 256], strides = [1, 1, 1]} : vector<18x18x256xf32> to vector<16x16x256xf32>
    %97 = vector.shape_cast %96 : vector<16x16x256xf32> to vector<256x256xf32>
    %c4_55 = arith.constant 4 : index
    %c0_56 = arith.constant 0 : index
    %c0_57 = arith.constant 0 : index
    %98 = vector.load %arg4[%c4_55, %c0_56, %c0_57] : memref<9x256x2xf32, #tpu.memory_space<vmem>>, vector<1x256x2xf32>
    %99 = vector.shape_cast %98 : vector<1x256x2xf32> to vector<256x2xf32>
    %cst_58 = arith.constant dense<0.000000e+00> : vector<256x2xf32>
    %100 = tpu.matmul %97, %99, %cst_58 {dimension_numbers = #tpu.dot_dimension_numbers<[1], [0], [0], [1], [0, 0, 1, 1], [], []>} : vector<256x256xf32>, vector<256x2xf32>, vector<256x2xf32> -> vector<256x2xf32>
    %101 = arith.addf %95, %100 : vector<256x2xf32>
    %102 = vector.extract_strided_slice %70 {offsets = [1, 2, 0], sizes = [16, 16, 256], strides = [1, 1, 1]} : vector<18x18x256xf32> to vector<16x16x256xf32>
    %103 = vector.shape_cast %102 : vector<16x16x256xf32> to vector<256x256xf32>
    %c5_59 = arith.constant 5 : index
    %c0_60 = arith.constant 0 : index
    %c0_61 = arith.constant 0 : index
    %104 = vector.load %arg4[%c5_59, %c0_60, %c0_61] : memref<9x256x2xf32, #tpu.memory_space<vmem>>, vector<1x256x2xf32>
    %105 = vector.shape_cast %104 : vector<1x256x2xf32> to vector<256x2xf32>
    %cst_62 = arith.constant dense<0.000000e+00> : vector<256x2xf32>
    %106 = tpu.matmul %103, %105, %cst_62 {dimension_numbers = #tpu.dot_dimension_numbers<[1], [0], [0], [1], [0, 0, 1, 1], [], []>} : vector<256x256xf32>, vector<256x2xf32>, vector<256x2xf32> -> vector<256x2xf32>
    %107 = arith.addf %101, %106 : vector<256x2xf32>
    %108 = vector.extract_strided_slice %70 {offsets = [2, 0, 0], sizes = [16, 16, 256], strides = [1, 1, 1]} : vector<18x18x256xf32> to vector<16x16x256xf32>
    %109 = vector.shape_cast %108 : vector<16x16x256xf32> to vector<256x256xf32>
    %c6_63 = arith.constant 6 : index
    %c0_64 = arith.constant 0 : index
    %c0_65 = arith.constant 0 : index
    %110 = vector.load %arg4[%c6_63, %c0_64, %c0_65] : memref<9x256x2xf32, #tpu.memory_space<vmem>>, vector<1x256x2xf32>
    %111 = vector.shape_cast %110 : vector<1x256x2xf32> to vector<256x2xf32>
    %cst_66 = arith.constant dense<0.000000e+00> : vector<256x2xf32>
    %112 = tpu.matmul %109, %111, %cst_66 {dimension_numbers = #tpu.dot_dimension_numbers<[1], [0], [0], [1], [0, 0, 1, 1], [], []>} : vector<256x256xf32>, vector<256x2xf32>, vector<256x2xf32> -> vector<256x2xf32>
    %113 = arith.addf %107, %112 : vector<256x2xf32>
    %114 = vector.extract_strided_slice %70 {offsets = [2, 1, 0], sizes = [16, 16, 256], strides = [1, 1, 1]} : vector<18x18x256xf32> to vector<16x16x256xf32>
    %115 = vector.shape_cast %114 : vector<16x16x256xf32> to vector<256x256xf32>
    %c7_67 = arith.constant 7 : index
    %c0_68 = arith.constant 0 : index
    %c0_69 = arith.constant 0 : index
    %116 = vector.load %arg4[%c7_67, %c0_68, %c0_69] : memref<9x256x2xf32, #tpu.memory_space<vmem>>, vector<1x256x2xf32>
    %117 = vector.shape_cast %116 : vector<1x256x2xf32> to vector<256x2xf32>
    %cst_70 = arith.constant dense<0.000000e+00> : vector<256x2xf32>
    %118 = tpu.matmul %115, %117, %cst_70 {dimension_numbers = #tpu.dot_dimension_numbers<[1], [0], [0], [1], [0, 0, 1, 1], [], []>} : vector<256x256xf32>, vector<256x2xf32>, vector<256x2xf32> -> vector<256x2xf32>
    %119 = arith.addf %113, %118 : vector<256x2xf32>
    %120 = vector.extract_strided_slice %70 {offsets = [2, 2, 0], sizes = [16, 16, 256], strides = [1, 1, 1]} : vector<18x18x256xf32> to vector<16x16x256xf32>
    %121 = vector.shape_cast %120 : vector<16x16x256xf32> to vector<256x256xf32>
    %c8_71 = arith.constant 8 : index
    %c0_72 = arith.constant 0 : index
    %c0_73 = arith.constant 0 : index
    %122 = vector.load %arg4[%c8_71, %c0_72, %c0_73] : memref<9x256x2xf32, #tpu.memory_space<vmem>>, vector<1x256x2xf32>
    %123 = vector.shape_cast %122 : vector<1x256x2xf32> to vector<256x2xf32>
    %cst_74 = arith.constant dense<0.000000e+00> : vector<256x2xf32>
    %124 = tpu.matmul %121, %123, %cst_74 {dimension_numbers = #tpu.dot_dimension_numbers<[1], [0], [0], [1], [0, 0, 1, 1], [], []>} : vector<256x256xf32>, vector<256x2xf32>, vector<256x2xf32> -> vector<256x2xf32>
    %125 = arith.addf %119, %124 : vector<256x2xf32>
    %c0_75 = arith.constant 0 : index
    %c0_76 = arith.constant 0 : index
    %126 = vector.load %arg5[%c0_75, %c0_76] : memref<1x2xf32, #tpu.memory_space<vmem>>, vector<1x2xf32>
    %127 = vector.broadcast %126 : vector<1x2xf32> to vector<256x2xf32>
    %128 = arith.addf %125, %127 : vector<256x2xf32>
    %129 = vector.shape_cast %128 : vector<256x2xf32> to vector<16x16x2xf32>
    %c0_77 = arith.constant 0 : index
    %c0_78 = arith.constant 0 : index
    %c0_79 = arith.constant 0 : index
    %c0_80 = arith.constant 0 : index
    %130 = vector.load %arg6[%c0_77, %c0_78, %c0_79, %c0_80] : memref<1x16x16x2xf32, #tpu.memory_space<vmem>>, vector<1x16x16x2xf32>
    %131 = vector.shape_cast %130 : vector<1x16x16x2xf32> to vector<16x16x2xf32>
    %132 = vector.shape_cast %129 : vector<16x16x2xf32> to vector<1x16x16x2xf32>
    tpu.vector_store %arg6[%c0_77, %c0_78, %c0_79, %c0_80], %132 {strides = array<i32>} : memref<1x16x16x2xf32, #tpu.memory_space<vmem>>, vector<1x16x16x2xf32>,
    return
  }
  func.func @transform_0(%arg0: i32) -> (i32, i32, i32, i32) {
    %c0_i32 = arith.constant 0 : i32
    %c0_i32_0 = arith.constant 0 : i32
    %c0_i32_1 = arith.constant 0 : i32
    %c0_i32_2 = arith.constant 0 : i32
    return %arg0, %c0_i32, %c0_i32_0, %c0_i32_1 : i32, i32, i32, i32
  }
  func.func @transform_1(%arg0: i32) -> (i32, i32, i32) {
    %c0_i32 = arith.constant 0 : i32
    %c0_i32_0 = arith.constant 0 : i32
    %c0_i32_1 = arith.constant 0 : i32
    %c0_i32_2 = arith.constant 0 : i32
    return %c0_i32, %c0_i32_0, %c0_i32_1 : i32, i32, i32
  }
  func.func @transform_2(%arg0: i32) -> (i32, i32) {
    %c0_i32 = arith.constant 0 : i32
    %c0_i32_0 = arith.constant 0 : i32
    %c0_i32_1 = arith.constant 0 : i32
    return %c0_i32, %c0_i32_0 : i32, i32
  }
  func.func @transform_3(%arg0: i32) -> (i32, i32, i32) {
    %c0_i32 = arith.constant 0 : i32
    %c0_i32_0 = arith.constant 0 : i32
    %c0_i32_1 = arith.constant 0 : i32
    %c0_i32_2 = arith.constant 0 : i32
    return %c0_i32, %c0_i32_0, %c0_i32_1 : i32, i32, i32
  }
  func.func @transform_4(%arg0: i32) -> (i32, i32) {
    %c0_i32 = arith.constant 0 : i32
    %c0_i32_0 = arith.constant 0 : i32
    %c0_i32_1 = arith.constant 0 : i32
    return %c0_i32, %c0_i32_0 : i32, i32
  }
  func.func @transform_5(%arg0: i32) -> (i32, i32, i32, i32) {
    %c0_i32 = arith.constant 0 : i32
    %c0_i32_0 = arith.constant 0 : i32
    %c0_i32_1 = arith.constant 0 : i32
    %c0_i32_2 = arith.constant 0 : i32
    return %arg0, %c0_i32, %c0_i32_0, %c0_i32_1 : i32, i32, i32, i32
  }
}

</mosaic_0001>

<llo_original>
// kernel: flow_head.1
$region0: #{flow_head.1}
  #allocation0 [shape = 'u32[]', space=smem, size = 0x4, offset = 0x4, fixed_abs, tag = 'smem constant byte address 0x4 - core index']
  #allocation1 [shape = 'u32[144,128]{1,0:T(1,128)}', space=vmem, size = 0x12000, scoped, tag = 'internal scratch']
  %s0 = inlined_call_operand.vmem [shape: f32[2,16,16,128], index: 0, kind: input, shape index: {}]
  %s1 = inlined_call_operand.vmem [shape: f32[9,128,256], index: 1, kind: input, shape index: {}]
  %s2 = inlined_call_operand.vmem [shape: f32[1,256], index: 2, kind: input, shape index: {}]
  %s3 = inlined_call_operand.vmem [shape: f32[9,256,2], index: 3, kind: input, shape index: {}]
  %s4 = inlined_call_operand.vmem [shape: f32[1,2], index: 4, kind: input, shape index: {}]
  %s5 = inlined_call_operand.vmem [shape: f32[2,16,16,2], index: 5, kind: output, shape index: {}]
  %s6 = sld [smem:[#allocation0]]
  $region53: #{flow_head.1} parent=0
    _
  %s8 = ssub.s32 1, %s6
  %s9 = scalar_select 0, %s8, %s6
  loop: start=0, step=1, limit=4
  $region2: #{flow_head.1} parent=0 // loop_pre_header
    _
  $region3: #{flow_head.1} parent=0 // loop_header
    %s11 = sphi 0, %s15
    %p12 = scmp.ge.s32.totalorder %s11, 4
    %s21 = sphi 0, %s23
    %s24 = sphi 0, %s21
    %s25 = sphi 0, %s24
    %s41 = sphi 0, %s25
    %s45 = sphi 0, %s45
    %s47 = sphi 0, %s45
    %s48 = sphi 0, %s47
    %s62 = sphi 0, %s48
    %s66 = sphi 0, %s66
    %s68 = sphi 0, %s66
    %s69 = sphi 0, %s68
    %s83 = sphi 0, %s69
    %s87 = sphi 0, %s87
    %s89 = sphi 0, %s87
    %s90 = sphi 0, %s89
    %s104 = sphi 0, %s90
    %s108 = sphi 0, %s108
    %s110 = sphi 0, %s108
    %s111 = sphi 0, %s110
    %s125 = sphi 0, %s111
    %s131 = sphi 0, %s133
    %s134 = sphi 0, %s131
    %s135 = sphi 0, %s134
    %s151 = sphi 0, %s135
  $region4: #{flow_head.1} parent=0 // loop_header_branch
    %14 = sbr.rel (%p12) target = $region8
  $region5: #{flow_head.1} parent=0 // loop_body
    %s16 = ssub.s32 %s11, 1
    %s17 = ssub.s32 %s11, 2
    %s18 = sadd.s32 %s11, 1
    %s19 = ssub.s32 %s11, %s18
    %p20 = scmp.eq.s32.totalorder %s19, 0
    %s22 = sadd.s32 %s21, 1
    %s23 = scalar_select %p20, %s21, %s22
    %p26 = pneg %p20
    %p27 = scmp.eq.s32.totalorder %s11, 1
    %p28 = por %p26, %p27
    %p29 = scmp.ne.s32.totalorder %s21, %s24
    %p30 = scmp.eq.s32.totalorder %s11, 0
    %p31 = por %p29, %p30
    %p32 = scmp.ne.s32.totalorder %s21, %s24
    %p33 = scmp.eq.s32.totalorder %s16, 1
    %p34 = por %p32, %p33
    %p35 = scmp.ne.s32.totalorder %s24, %s25
    %p36 = scmp.eq.s32.totalorder %s16, 0
    %p37 = por %p35, %p36
    %p38 = scmp.ne.s32.totalorder %s24, %s25
    %p39 = scmp.eq.s32.totalorder %s17, 1
    %p40 = por %p38, %p39
    %p42 = scmp.ne.s32.totalorder %s25, %s41
    %p43 = scmp.eq.s32.totalorder %s17, 0
    %p44 = por %p42, %p43
    %s46 = sadd.s32 %s45, 1
    %p49 = scmp.eq.s32.totalorder %s11, 1
    %p50 = scmp.ne.s32.totalorder %s45, %s47
    %p51 = scmp.eq.s32.totalorder %s11, 0
    %p52 = por %p50, %p51
    %p53 = scmp.ne.s32.totalorder %s45, %s47
    %p54 = scmp.eq.s32.totalorder %s16, 1
    %p55 = por %p53, %p54
    %p56 = scmp.ne.s32.totalorder %s47, %s48
    %p57 = scmp.eq.s32.totalorder %s16, 0
    %p58 = por %p56, %p57
    %p59 = scmp.ne.s32.totalorder %s47, %s48
    %p60 = scmp.eq.s32.totalorder %s17, 1
    %p61 = por %p59, %p60
    %p63 = scmp.ne.s32.totalorder %s48, %s62
    %p64 = scmp.eq.s32.totalorder %s17, 0
    %p65 = por %p63, %p64
    %s67 = sadd.s32 %s66, 1
    %p70 = scmp.eq.s32.totalorder %s11, 1
    %p71 = scmp.ne.s32.totalorder %s66, %s68
    %p72 = scmp.eq.s32.totalorder %s11, 0
    %p73 = por %p71, %p72
    %p74 = scmp.ne.s32.totalorder %s66, %s68
    %p75 = scmp.eq.s32.totalorder %s16, 1
    %p76 = por %p74, %p75
    %p77 = scmp.ne.s32.totalorder %s68, %s69
    %p78 = scmp.eq.s32.totalorder %s16, 0
    %p79 = por %p77, %p78
    %p80 = scmp.ne.s32.totalorder %s68, %s69
    %p81 = scmp.eq.s32.totalorder %s17, 1
    %p82 = por %p80, %p81
    %p84 = scmp.ne.s32.totalorder %s69, %s83
    %p85 = scmp.eq.s32.totalorder %s17, 0
    %p86 = por %p84, %p85
    %s88 = sadd.s32 %s87, 1
    %p91 = scmp.eq.s32.totalorder %s11, 1
    %p92 = scmp.ne.s32.totalorder %s87, %s89
    %p93 = scmp.eq.s32.totalorder %s11, 0
    %p94 = por %p92, %p93
    %p95 = scmp.ne.s32.totalorder %s87, %s89
    %p96 = scmp.eq.s32.totalorder %s16, 1
    %p97 = por %p95, %p96
    %p98 = scmp.ne.s32.totalorder %s89, %s90
    %p99 = scmp.eq.s32.totalorder %s16, 0
    %p100 = por %p98, %p99
    %p101 = scmp.ne.s32.totalorder %s89, %s90
    %p102 = scmp.eq.s32.totalorder %s17, 1
    %p103 = por %p101, %p102
    %p105 = scmp.ne.s32.totalorder %s90, %s104
    %p106 = scmp.eq.s32.totalorder %s17, 0
    %p107 = por %p105, %p106
    %s109 = sadd.s32 %s108, 1
    %p112 = scmp.eq.s32.totalorder %s11, 1
    %p113 = scmp.ne.s32.totalorder %s108, %s110
    %p114 = scmp.eq.s32.totalorder %s11, 0
    %p115 = por %p113, %p114
    %p116 = scmp.ne.s32.totalorder %s108, %s110
    %p117 = scmp.eq.s32.totalorder %s16, 1
    %p118 = por %p116, %p117
    %p119 = scmp.ne.s32.totalorder %s110, %s111
    %p120 = scmp.eq.s32.totalorder %s16, 0
    %p121 = por %p119, %p120
    %p122 = scmp.ne.s32.totalorder %s110, %s111
    %p123 = scmp.eq.s32.totalorder %s17, 1
    %p124 = por %p122, %p123
    %p126 = scmp.ne.s32.totalorder %s111, %s125
    %p127 = scmp.eq.s32.totalorder %s17, 0
    %p128 = por %p126, %p127
    %s129 = ssub.s32 %s11, %s18
    %p130 = scmp.eq.s32.totalorder %s129, 0
    %s132 = sadd.s32 %s131, 1
    %s133 = scalar_select %p130, %s131, %s132
    %p136 = pneg %p130
    %p137 = scmp.eq.s32.totalorder %s11, 1
    %p138 = por %p136, %p137
    %p139 = scmp.ne.s32.totalorder %s131, %s134
    %p140 = scmp.eq.s32.totalorder %s11, 0
    %p141 = por %p139, %p140
    %p142 = scmp.ne.s32.totalorder %s131, %s134
    %p143 = scmp.eq.s32.totalorder %s16, 1
    %p144 = por %p142, %p143
    %p145 = scmp.ne.s32.totalorder %s134, %s135
    %p146 = scmp.eq.s32.totalorder %s16, 0
    %p147 = por %p145, %p146
    %p148 = scmp.ne.s32.totalorder %s134, %s135
    %p149 = scmp.eq.s32.totalorder %s17, 1
    %p150 = por %p148, %p149
    %p152 = scmp.ne.s32.totalorder %s135, %s151
    %p153 = scmp.eq.s32.totalorder %s17, 0
    %p154 = por %p152, %p153
    %p155 = scmp.le.s32.totalorder 1, %s11
    %p156 = scmp.lt.s32.totalorder %s11, 3
    %p157 = pnand %p155, %p156
    %p158 = pneg %p157
    // Predicated region
    $region9: #{flow_head.1} parent=5 // pred_check
      _
    $region10: #{flow_head.1} parent=5 // pred_check_branch
      %160 = sbr.rel (%p157) target = $region12
    $region11: #{flow_head.1} parent=5 // pred_region
      %s161 = ssub.s32 %s11, 1
      // Predicated region
      $region13: #{flow_head.1} parent=11 // pred_check
        %p162 = pneg %p58
      $region14: #{flow_head.1} parent=11 // pred_check_branch
        %164 = sbr.rel (%p162) target = $region16
      $region15: #{flow_head.1} parent=11 // pred_region
        _
      $region16: #{flow_head.1} parent=11 // pred_fallthru
        _
      // Predicated region
      $region17: #{flow_head.1} parent=11 // pred_check
        %p165 = pneg %p79
      $region18: #{flow_head.1} parent=11 // pred_check_branch
        %167 = sbr.rel (%p165) target = $region20
      $region19: #{flow_head.1} parent=11 // pred_region
        _
      $region20: #{flow_head.1} parent=11 // pred_fallthru
        _
      // Predicated region
      $region21: #{flow_head.1} parent=11 // pred_check
        %p168 = pneg %p100
      $region22: #{flow_head.1} parent=11 // pred_check_branch
        %170 = sbr.rel (%p168) target = $region24
      $region23: #{flow_head.1} parent=11 // pred_region
        _
      $region24: #{flow_head.1} parent=11 // pred_fallthru
        _
      // Predicated region
      $region25: #{flow_head.1} parent=11 // pred_check
        %p171 = pneg %p121
      $region26: #{flow_head.1} parent=11 // pred_check_branch
        %173 = sbr.rel (%p171) target = $region28
      $region27: #{flow_head.1} parent=11 // pred_region
        _
      $region28: #{flow_head.1} parent=11 // pred_fallthru
        _
    $region12: #{flow_head.1} parent=5 // pred_fallthru
      _
    %p174 = scmp.lt.s32.totalorder %s11, 2
    // Predicated region
    $region29: #{flow_head.1} parent=5 // pred_check
      %p175 = pneg %p174
    $region30: #{flow_head.1} parent=5 // pred_check_branch
      %177 = sbr.rel (%p175) target = $region32
    $region31: #{flow_head.1} parent=5 // pred_region
      // Predicated region
      $region33: #{flow_head.1} parent=31 // pred_check
        %p178 = pneg %p31
      $region34: #{flow_head.1} parent=31 // pred_check_branch
        %180 = sbr.rel (%p178) target = $region36
      $region35: #{flow_head.1} parent=31 // pred_region
        %p181 = scmp.lt.s32.totalorder %s11, 1
        %s182 = scalar_select %p181, %s11, 1
        %s183 = smul.addr %s182, 32
        %s184 = smul.addr %s183, 8
        %s185 = scalar_lea.vmem %s0, %s184
      $region36: #{flow_head.1} parent=31 // pred_fallthru
        _
    $region32: #{flow_head.1} parent=5 // pred_fallthru
      _
    %p186 = scmp.le.s32.totalorder 1, %s11
    %p187 = scmp.lt.s32.totalorder %s11, 3
    %p188 = pnand %p186, %p187
    %p189 = pneg %p188
    // Predicated region
    $region37: #{flow_head.1} parent=5 // pred_check
      _
    $region38: #{flow_head.1} parent=5 // pred_check_branch
      %191 = sbr.rel (%p188) target = $region40
    $region39: #{flow_head.1} parent=5 // pred_region
      %s192 = ssub.s32 %s11, 1
      %p193 = scmp.lt.s32.totalorder %s16, 1
      %s194 = scalar_select %p193, %s16, 1
      %s195 = smul.addr %s194, 32
      %s196 = smul.addr %s195, 8
      %s197 = scalar_lea.vmem %s0, %s196
      %p198 = pneg %p37
      %p199 = pneg %p34
      %p200 = pneg %p58
      %p201 = pneg %p55
      %p202 = pneg %p79
      %p203 = pneg %p76
      %p204 = pneg %p100
      %p205 = pneg %p97
      %p206 = pneg %p121
      %p207 = pneg %p118
      %p208 = pneg %p147
      %p209 = pneg %p144
      %p210 = scmp.lt.s32.totalorder %s16, 1
      %s211 = scalar_select %p210, %s16, 1
      %s212 = smul.addr %s211, 32
      %s213 = smul.addr %s212, 8
      %s214 = scalar_lea.vmem %s5, %s213
      %p215 = scmp.lt.s32.totalorder %s16, 1
      %s216 = scalar_select %p215, %s16, 1
      %s217 = smul.addr %s216, 32
      %s218 = smul.addr %s217, 8
      %s219 = scalar_lea.vmem %s0, %s218
      %p220 = scmp.lt.s32.totalorder %s16, 1
      %s221 = scalar_select %p220, %s16, 1
      %s222 = smul.addr %s221, 32
      %s223 = smul.addr %s222, 8
      %s224 = scalar_lea.vmem %s5, %s223
      %v225 = vld [vmem:[%s219] sm:$0xff]
      %v226 = vld [vmem:[%s219 + $0x8] sm:$0xff]
      %v227 = vld [vmem:[%s219 + $0x10] sm:$0xff]
      %v228 = vld [vmem:[%s219 + $0x18] sm:$0xff]
      %v229 = vld [vmem:[%s219 + $0x20] sm:$0xff]
      %v230 = vld [vmem:[%s219 + $0x28] sm:$0xff]
      %v231 = vld [vmem:[%s219 + $0x30] sm:$0xff]
      %v232 = vld [vmem:[%s219 + $0x38] sm:$0xff]
      %v233 = vld [vmem:[%s219 + $0x40] sm:$0xff]
      %v234 = vld [vmem:[%s219 + $0x48] sm:$0xff]
      %v235 = vld [vmem:[%s219 + $0x50] sm:$0xff]
      %v236 = vld [vmem:[%s219 + $0x58] sm:$0xff]
      %v237 = vld [vmem:[%s219 + $0x60] sm:$0xff]
      %v238 = vld [vmem:[%s219 + $0x68] sm:$0xff]
      %v239 = vld [vmem:[%s219 + $0x70] sm:$0xff]
      %v240 = vld [vmem:[%s219 + $0x78] sm:$0xff]
      %v241 = vld [vmem:[%s219 + $0x80] sm:$0xff]
      %v242 = vld [vmem:[%s219 + $0x88] sm:$0xff]
      %v243 = vld [vmem:[%s219 + $0x90] sm:$0xff]
      %v244 = vld [vmem:[%s219 + $0x98] sm:$0xff]
      %v245 = vld [vmem:[%s219 + $0xa0] sm:$0xff]
      %v246 = vld [vmem:[%s219 + $0xa8] sm:$0xff]
      %v247 = vld [vmem:[%s219 + $0xb0] sm:$0xff]
      %v248 = vld [vmem:[%s219 + $0xb8] sm:$0xff]
      %v249 = vld [vmem:[%s219 + $0xc0] sm:$0xff]
      %v250 = vld [vmem:[%s219 + $0xc8] sm:$0xff]
      %v251 = vld [vmem:[%s219 + $0xd0] sm:$0xff]
      %v252 = vld [vmem:[%s219 + $0xd8] sm:$0xff]
      %v253 = vld [vmem:[%s219 + $0xe0] sm:$0xff]
      %v254 = vld [vmem:[%s219 + $0xe8] sm:$0xff]
      %v255 = vld [vmem:[%s219 + $0xf0] sm:$0xff]
      %v256 = vld [vmem:[%s219 + $0xf8] sm:$0xff]
      %vm290 = vcmask 1040384
      %v291 = vrot.slane 0.0, 7
      %v292 = vsel %vm290, %v291, %v291
      %v293 = vrot.slane %v225, 7
      %v294 = vrot.slane %v226, 7
      %v295 = vsel %vm290, %v293, %v294
      %v296 = vrot.slane %v227, 7
      %v297 = vrot.slane %v228, 7
      %v298 = vsel %vm290, %v296, %v297
      %v299 = vrot.slane %v229, 7
      %v300 = vrot.slane %v230, 7
      %v301 = vsel %vm290, %v299, %v300
      %v302 = vrot.slane %v231, 7
      %v303 = vrot.slane %v232, 7
      %v304 = vsel %vm290, %v302, %v303
      %v305 = vrot.slane %v233, 7
      %v306 = vrot.slane %v234, 7
      %v307 = vsel %vm290, %v305, %v306
      %v308 = vrot.slane %v235, 7
      %v309 = vrot.slane %v236, 7
      %v310 = vsel %vm290, %v308, %v309
      %v311 = vrot.slane %v237, 7
      %v312 = vrot.slane %v238, 7
      %v313 = vsel %vm290, %v311, %v312
      %v314 = vrot.slane %v239, 7
      %v315 = vrot.slane %v240, 7
      %v316 = vsel %vm290, %v314, %v315
      %v317 = vrot.slane %v241, 7
      %v318 = vrot.slane %v242, 7
      %v319 = vsel %vm290, %v317, %v318
      %v320 = vrot.slane %v243, 7
      %v321 = vrot.slane %v244, 7
      %v322 = vsel %vm290, %v320, %v321
      %v323 = vrot.slane %v245, 7
      %v324 = vrot.slane %v246, 7
      %v325 = vsel %vm290, %v323, %v324
      %v326 = vrot.slane %v247, 7
      %v327 = vrot.slane %v248, 7
      %v328 = vsel %vm290, %v326, %v327
      %v329 = vrot.slane %v249, 7
      %v330 = vrot.slane %v250, 7
      %v331 = vsel %vm290, %v329, %v330
      %v332 = vrot.slane %v251, 7
      %v333 = vrot.slane %v252, 7
      %v334 = vsel %vm290, %v332, %v333
      %v335 = vrot.slane %v253, 7
      %v336 = vrot.slane %v254, 7
      %v337 = vsel %vm290, %v335, %v336
      %v338 = vrot.slane %v255, 7
      %v339 = vrot.slane %v256, 7
      %v340 = vsel %vm290, %v338, %v339
      %v391 = vsel %vm290, 0.0, %v291
      %v392 = vsel %vm290, 0.0, %v293
      %v393 = vsel %vm290, 0.0, %v296
      %v394 = vsel %vm290, 0.0, %v299
      %v395 = vsel %vm290, 0.0, %v302
      %v396 = vsel %vm290, 0.0, %v305
      %v397 = vsel %vm290, 0.0, %v308
      %v398 = vsel %vm290, 0.0, %v311
      %v399 = vsel %vm290, 0.0, %v314
      %v400 = vsel %vm290, 0.0, %v317
      %v401 = vsel %vm290, 0.0, %v320
      %v402 = vsel %vm290, 0.0, %v323
      %v403 = vsel %vm290, 0.0, %v326
      %v404 = vsel %vm290, 0.0, %v329
      %v405 = vsel %vm290, 0.0, %v332
      %v406 = vsel %vm290, 0.0, %v335
      %v407 = vsel %vm290, 0.0, %v338
      %v408 = vsel %vm290, %v291, 0.0
      %v409 = vsel %vm290, %v294, 0.0
      %v410 = vsel %vm290, %v297, 0.0
      %v411 = vsel %vm290, %v300, 0.0
      %v412 = vsel %vm290, %v303, 0.0
      %v413 = vsel %vm290, %v306, 0.0
      %v414 = vsel %vm290, %v309, 0.0
      %v415 = vsel %vm290, %v312, 0.0
      %v416 = vsel %vm290, %v315, 0.0
      %v417 = vsel %vm290, %v318, 0.0
      %v418 = vsel %vm290, %v321, 0.0
      %v419 = vsel %vm290, %v324, 0.0
      %v420 = vsel %vm290, %v327, 0.0
      %v421 = vsel %vm290, %v330, 0.0
      %v422 = vsel %vm290, %v333, 0.0
      %v423 = vsel %vm290, %v336, 0.0
      %v424 = vsel %vm290, %v339, 0.0
      %v425 = vld [vmem:[%s1] sm:$0xff]
      %v426 = vld [vmem:[%s1 + $0x8] sm:$0xff]
      %v427 = vld [vmem:[%s1 + $0x10] sm:$0xff]
      %v428 = vld [vmem:[%s1 + $0x18] sm:$0xff]
      %v429 = vld [vmem:[%s1 + $0x20] sm:$0xff]
      %v430 = vld [vmem:[%s1 + $0x28] sm:$0xff]
      %v431 = vld [vmem:[%s1 + $0x30] sm:$0xff]
      %v432 = vld [vmem:[%s1 + $0x38] sm:$0xff]
      %v433 = vld [vmem:[%s1 + $0x40] sm:$0xff]
      %v434 = vld [vmem:[%s1 + $0x48] sm:$0xff]
      %v435 = vld [vmem:[%s1 + $0x50] sm:$0xff]
      %v436 = vld [vmem:[%s1 + $0x58] sm:$0xff]
      %v437 = vld [vmem:[%s1 + $0x60] sm:$0xff]
      %v438 = vld [vmem:[%s1 + $0x68] sm:$0xff]
      %v439 = vld [vmem:[%s1 + $0x70] sm:$0xff]
      %v440 = vld [vmem:[%s1 + $0x78] sm:$0xff]
      %v441 = vld [vmem:[%s1 + $0x80] sm:$0xff]
      %v442 = vld [vmem:[%s1 + $0x88] sm:$0xff]
      %v443 = vld [vmem:[%s1 + $0x90] sm:$0xff]
      %v444 = vld [vmem:[%s1 + $0x98] sm:$0xff]
      %v445 = vld [vmem:[%s1 + $0xa0] sm:$0xff]
      %v446 = vld [vmem:[%s1 + $0xa8] sm:$0xff]
      %v447 = vld [vmem:[%s1 + $0xb0] sm:$0xff]
      %v448 = vld [vmem:[%s1 + $0xb8] sm:$0xff]
      %v449 = vld [vmem:[%s1 + $0xc0] sm:$0xff]
      %v450 = vld [vmem:[%s1 + $0xc8] sm:$0xff]
      %v451 = vld [vmem:[%s1 + $0xd0] sm:$0xff]
      %v452 = vld [vmem:[%s1 + $0xd8] sm:$0xff]
      %v453 = vld [vmem:[%s1 + $0xe0] sm:$0xff]
      %v454 = vld [vmem:[%s1 + $0xe8] sm:$0xff]
      %v455 = vld [vmem:[%s1 + $0xf0] sm:$0xff]
      %v456 = vld [vmem:[%s1 + $0xf8] sm:$0xff]
      %vm489 = vcmask 1046528
      %v490 = vrot.slane %v391, 1
      %v491 = vrot.slane %v292, 1
      %v492 = vsel %vm489, %v490, %v491
      %v493 = vrot.slane %v408, 1
      %v494 = vsel %vm489, %v491, %v493
      %v495 = vrot.slane %v392, 1
      %v496 = vrot.slane %v295, 1
      %v497 = vsel %vm489, %v495, %v496
      %v498 = vrot.slane %v409, 1
      %v499 = vsel %vm489, %v496, %v498
      %v500 = vrot.slane %v393, 1
      %v501 = vrot.slane %v298, 1
      %v502 = vsel %vm489, %v500, %v501
      %v503 = vrot.slane %v410, 1
      %v504 = vsel %vm489, %v501, %v503
      %v505 = vrot.slane %v394, 1
      %v506 = vrot.slane %v301, 1
      %v507 = vsel %vm489, %v505, %v506
      %v508 = vrot.slane %v411, 1
      %v509 = vsel %vm489, %v506, %v508
      %v510 = vrot.slane %v395, 1
      %v511 = vrot.slane %v304, 1
      %v512 = vsel %vm489, %v510, %v511
      %v513 = vrot.slane %v412, 1
      %v514 = vsel %vm489, %v511, %v513
      %v515 = vrot.slane %v396, 1
      %v516 = vrot.slane %v307, 1
      %v517 = vsel %vm489, %v515, %v516
      %v518 = vrot.slane %v413, 1
      %v519 = vsel %vm489, %v516, %v518
      %v520 = vrot.slane %v397, 1
      %v521 = vrot.slane %v310, 1
      %v522 = vsel %vm489, %v520, %v521
      %v523 = vrot.slane %v414, 1
      %v524 = vsel %vm489, %v521, %v523
      %v525 = vrot.slane %v398, 1
      %v526 = vrot.slane %v313, 1
      %v527 = vsel %vm489, %v525, %v526
      %v528 = vrot.slane %v415, 1
      %v529 = vsel %vm489, %v526, %v528
      %v530 = vrot.slane %v399, 1
      %v531 = vrot.slane %v316, 1
      %v532 = vsel %vm489, %v530, %v531
      %v533 = vrot.slane %v416, 1
      %v534 = vsel %vm489, %v531, %v533
      %v535 = vrot.slane %v400, 1
      %v536 = vrot.slane %v319, 1
      %v537 = vsel %vm489, %v535, %v536
      %v538 = vrot.slane %v417, 1
      %v539 = vsel %vm489, %v536, %v538
      %v540 = vrot.slane %v401, 1
      %v541 = vrot.slane %v322, 1
      %v542 = vsel %vm489, %v540, %v541
      %v543 = vrot.slane %v418, 1
      %v544 = vsel %vm489, %v541, %v543
      %v545 = vrot.slane %v402, 1
      %v546 = vrot.slane %v325, 1
      %v547 = vsel %vm489, %v545, %v546
      %v548 = vrot.slane %v419, 1
      %v549 = vsel %vm489, %v546, %v548
      %v550 = vrot.slane %v403, 1
      %v551 = vrot.slane %v328, 1
      %v552 = vsel %vm489, %v550, %v551
      %v553 = vrot.slane %v420, 1
      %v554 = vsel %vm489, %v551, %v553
      %v555 = vrot.slane %v404, 1
      %v556 = vrot.slane %v331, 1
      %v557 = vsel %vm489, %v555, %v556
      %v558 = vrot.slane %v421, 1
      %v559 = vsel %vm489, %v556, %v558
      %v560 = vrot.slane %v405, 1
      %v561 = vrot.slane %v334, 1
      %v562 = vsel %vm489, %v560, %v561
      %v563 = vrot.slane %v422, 1
      %v564 = vsel %vm489, %v561, %v563
      %v565 = vrot.slane %v406, 1
      %v566 = vrot.slane %v337, 1
      %v567 = vsel %vm489, %v565, %v566
      %v568 = vrot.slane %v423, 1
      %v569 = vsel %vm489, %v566, %v568
      %s602 = scalar_lea.vmem %s1, 256
      %v603 = vld [vmem:[%s602] sm:$0xff]
      %v604 = vld [vmem:[%s602 + $0x8] sm:$0xff]
      %v605 = vld [vmem:[%s602 + $0x10] sm:$0xff]
      %v606 = vld [vmem:[%s602 + $0x18] sm:$0xff]
      %v607 = vld [vmem:[%s602 + $0x20] sm:$0xff]
      %v608 = vld [vmem:[%s602 + $0x28] sm:$0xff]
      %v609 = vld [vmem:[%s602 + $0x30] sm:$0xff]
      %v610 = vld [vmem:[%s602 + $0x38] sm:$0xff]
      %v611 = vld [vmem:[%s602 + $0x40] sm:$0xff]
      %v612 = vld [vmem:[%s602 + $0x48] sm:$0xff]
      %v613 = vld [vmem:[%s602 + $0x50] sm:$0xff]
      %v614 = vld [vmem:[%s602 + $0x58] sm:$0xff]
      %v615 = vld [vmem:[%s602 + $0x60] sm:$0xff]
      %v616 = vld [vmem:[%s602 + $0x68] sm:$0xff]
      %v617 = vld [vmem:[%s602 + $0x70] sm:$0xff]
      %v618 = vld [vmem:[%s602 + $0x78] sm:$0xff]
      %v619 = vld [vmem:[%s602 + $0x80] sm:$0xff]
      %v620 = vld [vmem:[%s602 + $0x88] sm:$0xff]
      %v621 = vld [vmem:[%s602 + $0x90] sm:$0xff]
      %v622 = vld [vmem:[%s602 + $0x98] sm:$0xff]
      %v623 = vld [vmem:[%s602 + $0xa0] sm:$0xff]
      %v624 = vld [vmem:[%s602 + $0xa8] sm:$0xff]
      %v625 = vld [vmem:[%s602 + $0xb0] sm:$0xff]
      %v626 = vld [vmem:[%s602 + $0xb8] sm:$0xff]
      %v627 = vld [vmem:[%s602 + $0xc0] sm:$0xff]
      %v628 = vld [vmem:[%s602 + $0xc8] sm:$0xff]
      %v629 = vld [vmem:[%s602 + $0xd0] sm:$0xff]
      %v630 = vld [vmem:[%s602 + $0xd8] sm:$0xff]
      %v631 = vld [vmem:[%s602 + $0xe0] sm:$0xff]
      %v632 = vld [vmem:[%s602 + $0xe8] sm:$0xff]
      %v633 = vld [vmem:[%s602 + $0xf0] sm:$0xff]
      %v634 = vld [vmem:[%s602 + $0xf8] sm:$0xff]
      %635 = vmatprep.subr.mxu0 %v604
      %636 = vmatpush1.msra.mxu0 %v603
      %637 = vmatprep.subr.mxu0 %v606
      %638 = vmatpush1.msra.mxu0 %v605
      %639 = vmatprep.subr.mxu0 %v608
      %640 = vmatpush1.msra.mxu0 %v607
      %641 = vmatprep.subr.mxu0 %v610
      %642 = vmatpush1.msra.mxu0 %v609
      %643 = vmatprep.subr.mxu0 %v612
      %644 = vmatpush1.msra.mxu0 %v611
      %645 = vmatprep.subr.mxu0 %v614
      %646 = vmatpush1.msra.mxu0 %v613
      %647 = vmatprep.subr.mxu0 %v616
      %648 = vmatpush1.msra.mxu0 %v615
      %649 = vmatprep.subr.mxu0 %v618
      %650 = vmatpush1.msra.mxu0 %v617
      %651 = vmatprep.subr.mxu0 %v620
      %652 = vmatpush1.msra.mxu0 %v619
      %653 = vmatprep.subr.mxu0 %v622
      %654 = vmatpush1.msra.mxu0 %v621
      %655 = vmatprep.subr.mxu0 %v624
      %656 = vmatpush1.msra.mxu0 %v623
      %657 = vmatprep.subr.mxu0 %v626
      %658 = vmatpush1.msra.mxu0 %v625
      %659 = vmatprep.subr.mxu0 %v628
      %660 = vmatpush1.msra.mxu0 %v627
      %661 = vmatprep.subr.mxu0 %v630
      %662 = vmatpush1.msra.mxu0 %v629
      %663 = vmatprep.subr.mxu0 %v632
      %664 = vmatpush1.msra.mxu0 %v631
      %665 = vmatprep.subr.mxu0 %v634
      %666 = vmatpush1.msra.mxu0 %v633
      %667 = vmatprep.subr.mxu0 0.0
      %668 = vmatpush1.msra.mxu0 0.0
      %669 = vmatprep.subr.mxu0 0.0
      %670 = vmatpush1.msra.mxu0 0.0
      %671 = vmatprep.subr.mxu0 0.0
      %672 = vmatpush1.msra.mxu0 0.0
      %673 = vmatprep.subr.mxu0 0.0
      %674 = vmatpush1.msra.mxu0 0.0
      %675 = vmatprep.subr.mxu0 0.0
      %676 = vmatpush1.msra.mxu0 0.0
      %677 = vmatprep.subr.mxu0 0.0
      %678 = vmatpush1.msra.mxu0 0.0
      %679 = vmatprep.subr.mxu0 0.0
      %680 = vmatpush1.msra.mxu0 0.0
      %681 = vmatprep.subr.mxu0 0.0
      %682 = vmatpush1.msra.mxu0 0.0
      %683 = vmatprep.subr.mxu0 0.0
      %684 = vmatpush1.msra.mxu0 0.0
      %685 = vmatprep.subr.mxu0 0.0
      %686 = vmatpush1.msra.mxu0 0.0
      %687 = vmatprep.subr.mxu0 0.0
      %688 = vmatpush1.msra.mxu0 0.0
      %689 = vmatprep.subr.mxu0 0.0
      %690 = vmatpush1.msra.mxu0 0.0
      %691 = vmatprep.subr.mxu0 0.0
      %692 = vmatpush1.msra.mxu0 0.0
      %693 = vmatprep.subr.mxu0 0.0
      %694 = vmatpush1.msra.mxu0 0.0
      %695 = vmatprep.subr.mxu0 0.0
      %696 = vmatpush1.msra.mxu0 0.0
      %697 = vmatprep.subr.mxu0 0.0
      %698 = vmatpush1.msra.mxu0 0.0
      %699 = vmatprep.mubr.f32.mxu0 0.0
      %700 = vmatmul.mubr.f32.gmra.mrb[0].mxu0 %v492
      %v701 = vpop.f32.mrb[0].mxu0
      %v702 = vadd.f32 0.0, %v701
      %v703 = vpop.f32.mrb[0].mxu0
      %v704 = vadd.f32 0.0, %v703
      %705 = vmatprep.mubr.f32.mxu0 0.0
      %706 = vmatmul.mubr.f32.gmra.mrb[0].mxu0 %v494
      %v707 = vpop.f32.mrb[0].mxu0
      %v708 = vadd.f32 0.0, %v707
      %v709 = vpop.f32.mrb[0].mxu0
      %v710 = vadd.f32 0.0, %v709
      %711 = vmatprep.mubr.f32.mxu0 0.0
      %712 = vmatmul.mubr.f32.gmra.mrb[0].mxu0 %v497
      %v713 = vpop.f32.mrb[0].mxu0
      %v714 = vadd.f32 0.0, %v713
      %v715 = vpop.f32.mrb[0].mxu0
      %v716 = vadd.f32 0.0, %v715
      %717 = vmatprep.mubr.f32.mxu0 0.0
      %718 = vmatmul.mubr.f32.gmra.mrb[0].mxu0 %v499
      %v719 = vpop.f32.mrb[0].mxu0
      %v720 = vadd.f32 0.0, %v719
      %v721 = vpop.f32.mrb[0].mxu0
      %v722 = vadd.f32 0.0, %v721
      %723 = vmatprep.mubr.f32.mxu0 0.0
      %724 = vmatmul.mubr.f32.gmra.mrb[0].mxu0 %v502
      %v725 = vpop.f32.mrb[0].mxu0
      %v726 = vadd.f32 0.0, %v725
      %v727 = vpop.f32.mrb[0].mxu0
      %v728 = vadd.f32 0.0, %v727
      %729 = vmatprep.mubr.f32.mxu0 0.0
      %730 = vmatmul.mubr.f32.gmra.mrb[0].mxu0 %v504
      %v731 = vpop.f32.mrb[0].mxu0
      %v732 = vadd.f32 0.0, %v731
      %v733 = vpop.f32.mrb[0].mxu0
      %v734 = vadd.f32 0.0, %v733
      %735 = vmatprep.mubr.f32.mxu0 0.0
      %736 = vmatmul.mubr.f32.gmra.mrb[0].mxu0 %v507
      %v737 = vpop.f32.mrb[0].mxu0
      %v738 = vadd.f32 0.0, %v737
      %v739 = vpop.f32.mrb[0].mxu0
      %v740 = vadd.f32 0.0, %v739
      %741 = vmatprep.mubr.f32.mxu0 0.0
      %742 = vmatmul.mubr.f32.gmra.mrb[0].mxu0 %v509
      %v743 = vpop.f32.mrb[0].mxu0
      %v744 = vadd.f32 0.0, %v743
      %v745 = vpop.f32.mrb[0].mxu0
      %v746 = vadd.f32 0.0, %v745
      %747 = vmatprep.mubr.f32.mxu0 0.0
      %748 = vmatmul.mubr.f32.gmra.mrb[0].mxu0 %v512
      %v749 = vpop.f32.mrb[0].mxu0
      %v750 = vadd.f32 0.0, %v749
      %v751 = vpop.f32.mrb[0].mxu0
      %v752 = vadd.f32 0.0, %v751
      %753 = vmatprep.mubr.f32.mxu0 0.0
      %754 = vmatmul.mubr.f32.gmra.mrb[0].mxu0 %v514
      %v755 = vpop.f32.mrb[0].mxu0
      %v756 = vadd.f32 0.0, %v755
      %v757 = vpop.f32.mrb[0].mxu0
      %v758 = vadd.f32 0.0, %v757
      %759 = vmatprep.mubr.f32.mxu0 0.0
      %760 = vmatmul.mubr.f32.gmra.mrb[0].mxu0 %v517
      %v761 = vpop.f32.mrb[0].mxu0
      %v762 = vadd.f32 0.0, %v761
      %v763 = vpop.f32.mrb[0].mxu0
      %v764 = vadd.f32 0.0, %v763
      %765 = vmatprep.mubr.f32.mxu0 0.0
      %766 = vmatmul.mubr.f32.gmra.mrb[0].mxu0 %v519
      %v767 = vpop.f32.mrb[0].mxu0
      %v768 = vadd.f32 0.0, %v767
      %v769 = vpop.f32.mrb[0].mxu0
      %v770 = vadd.f32 0.0, %v769
      %771 = vmatprep.mubr.f32.mxu0 0.0
      %772 = vmatmul.mubr.f32.gmra.mrb[0].mxu0 %v522
      %v773 = vpop.f32.mrb[0].mxu0
      %v774 = vadd.f32 0.0, %v773
      %v775 = vpop.f32.mrb[0].mxu0
      %v776 = vadd.f32 0.0, %v775
      %777 = vmatprep.mubr.f32.mxu0 0.0
      %778 = vmatmul.mubr.f32.gmra.mrb[0].mxu0 %v524
      %v779 = vpop.f32.mrb[0].mxu0
      %v780 = vadd.f32 0.0, %v779
      %v781 = vpop.f32.mrb[0].mxu0
      %v782 = vadd.f32 0.0, %v781
      %783 = vmatprep.mubr.f32.mxu0 0.0
      %784 = vmatmul.mubr.f32.gmra.mrb[0].mxu0 %v527
      %v785 = vpop.f32.mrb[0].mxu0
      %v786 = vadd.f32 0.0, %v785
      %v787 = vpop.f32.mrb[0].mxu0
      %v788 = vadd.f32 0.0, %v787
      %789 = vmatprep.mubr.f32.mxu0 0.0
      %790 = vmatmul.mubr.f32.gmra.mrb[0].mxu0 %v529
      %v791 = vpop.f32.mrb[0].mxu0
      %v792 = vadd.f32 0.0, %v791
      %v793 = vpop.f32.mrb[0].mxu0
      %v794 = vadd.f32 0.0, %v793
      %795 = vmatprep.mubr.f32.mxu0 0.0
      %796 = vmatmul.mubr.f32.gmra.mrb[0].mxu0 %v532
      %v797 = vpop.f32.mrb[0].mxu0
      %v798 = vadd.f32 0.0, %v797
      %v799 = vpop.f32.mrb[0].mxu0
      %v800 = vadd.f32 0.0, %v799
      %801 = vmatprep.mubr.f32.mxu0 0.0
      %802 = vmatmul.mubr.f32.gmra.mrb[0].mxu0 %v534
      %v803 = vpop.f32.mrb[0].mxu0
      %v804 = vadd.f32 0.0, %v803
      %v805 = vpop.f32.mrb[0].mxu0
      %v806 = vadd.f32 0.0, %v805
      %807 = vmatprep.mubr.f32.mxu0 0.0
      %808 = vmatmul.mubr.f32.gmra.mrb[0].mxu0 %v537
      %v809 = vpop.f32.mrb[0].mxu0
      %v810 = vadd.f32 0.0, %v809
      %v811 = vpop.f32.mrb[0].mxu0
      %v812 = vadd.f32 0.0, %v811
      %813 = vmatprep.mubr.f32.mxu0 0.0
      %814 = vmatmul.mubr.f32.gmra.mrb[0].mxu0 %v539
      %v815 = vpop.f32.mrb[0].mxu0
      %v816 = vadd.f32 0.0, %v815
      %v817 = vpop.f32.mrb[0].mxu0
      %v818 = vadd.f32 0.0, %v817
      %819 = vmatprep.mubr.f32.mxu0 0.0
      %820 = vmatmul.mubr.f32.gmra.mrb[0].mxu0 %v542
      %v821 = vpop.f32.mrb[0].mxu0
      %v822 = vadd.f32 0.0, %v821
      %v823 = vpop.f32.mrb[0].mxu0
      %v824 = vadd.f32 0.0, %v823
      %825 = vmatprep.mubr.f32.mxu0 0.0
      %826 = vmatmul.mubr.f32.gmra.mrb[0].mxu0 %v544
      %v827 = vpop.f32.mrb[0].mxu0
      %v828 = vadd.f32 0.0, %v827
      %v829 = vpop.f32.mrb[0].mxu0
      %v830 = vadd.f32 0.0, %v829
      %831 = vmatprep.mubr.f32.mxu0 0.0
      %832 = vmatmul.mubr.f32.gmra.mrb[0].mxu0 %v547
      %v833 = vpop.f32.mrb[0].mxu0
      %v834 = vadd.f32 0.0, %v833
      %v835 = vpop.f32.mrb[0].mxu0
      %v836 = vadd.f32 0.0, %v835
      %837 = vmatprep.mubr.f32.mxu0 0.0
      %838 = vmatmul.mubr.f32.gmra.mrb[0].mxu0 %v549
      %v839 = vpop.f32.mrb[0].mxu0
      %v840 = vadd.f32 0.0, %v839
      %v841 = vpop.f32.mrb[0].mxu0
      %v842 = vadd.f32 0.0, %v841
      %843 = vmatprep.mubr.f32.mxu0 0.0
      %844 = vmatmul.mubr.f32.gmra.mrb[0].mxu0 %v552
      %v845 = vpop.f32.mrb[0].mxu0
      %v846 = vadd.f32 0.0, %v845
      %v847 = vpop.f32.mrb[0].mxu0
      %v848 = vadd.f32 0.0, %v847
      %849 = vmatprep.mubr.f32.mxu0 0.0
      %850 = vmatmul.mubr.f32.gmra.mrb[0].mxu0 %v554
      %v851 = vpop.f32.mrb[0].mxu0
      %v852 = vadd.f32 0.0, %v851
      %v853 = vpop.f32.mrb[0].mxu0
      %v854 = vadd.f32 0.0, %v853
      %855 = vmatprep.mubr.f32.mxu0 0.0
      %856 = vmatmul.mubr.f32.gmra.mrb[0].mxu0 %v557
      %v857 = vpop.f32.mrb[0].mxu0
      %v858 = vadd.f32 0.0, %v857
      %v859 = vpop.f32.mrb[0].mxu0
      %v860 = vadd.f32 0.0, %v859
      %861 = vmatprep.mubr.f32.mxu0 0.0
      %862 = vmatmul.mubr.f32.gmra.mrb[0].mxu0 %v559
      %v863 = vpop.f32.mrb[0].mxu0
      %v864 = vadd.f32 0.0, %v863
      %v865 = vpop.f32.mrb[0].mxu0
      %v866 = vadd.f32 0.0, %v865
      %867 = vmatprep.mubr.f32.mxu0 0.0
      %868 = vmatmul.mubr.f32.gmra.mrb[0].mxu0 %v562
      %v869 = vpop.f32.mrb[0].mxu0
      %v870 = vadd.f32 0.0, %v869
      %v871 = vpop.f32.mrb[0].mxu0
      %v872 = vadd.f32 0.0, %v871
      %873 = vmatprep.mubr.f32.mxu0 0.0
      %874 = vmatmul.mubr.f32.gmra.mrb[0].mxu0 %v564
      %v875 = vpop.f32.mrb[0].mxu0
      %v876 = vadd.f32 0.0, %v875
      %v877 = vpop.f32.mrb[0].mxu0
      %v878 = vadd.f32 0.0, %v877
      %879 = vmatprep.mubr.f32.mxu0 0.0
      %880 = vmatmul.mubr.f32.gmra.mrb[0].mxu0 %v567
      %v881 = vpop.f32.mrb[0].mxu0
      %v882 = vadd.f32 0.0, %v881
      %v883 = vpop.f32.mrb[0].mxu0
      %v884 = vadd.f32 0.0, %v883
      %885 = vmatprep.mubr.f32.mxu0 0.0
      %886 = vmatmul.mubr.f32.gmra.mrb[0].mxu0 %v569
      %v887 = vpop.f32.mrb[0].mxu0
      %v888 = vadd.f32 0.0, %v887
      %v889 = vpop.f32.mrb[0].mxu0
      %v890 = vadd.f32 0.0, %v889
      %891 = vdwg.mxu0
      %892 = vmatprep.subr.mxu0 %v426
      %893 = vmatpush1.msra.mxu0 %v425
      %894 = vmatprep.subr.mxu0 %v428
      %895 = vmatpush1.msra.mxu0 %v427
      %896 = vmatprep.subr.mxu0 %v430
      %897 = vmatpush1.msra.mxu0 %v429
      %898 = vmatprep.subr.mxu0 %v432
      %899 = vmatpush1.msra.mxu0 %v431
      %900 = vmatprep.subr.mxu0 %v434
      %901 = vmatpush1.msra.mxu0 %v433
      %902 = vmatprep.subr.mxu0 %v436
      %903 = vmatpush1.msra.mxu0 %v435
      %904 = vmatprep.subr.mxu0 %v438
      %905 = vmatpush1.msra.mxu0 %v437
      %906 = vmatprep.subr.mxu0 %v440
      %907 = vmatpush1.msra.mxu0 %v439
      %908 = vmatprep.subr.mxu0 %v442
      %909 = vmatpush1.msra.mxu0 %v441
      %910 = vmatprep.subr.mxu0 %v444
      %911 = vmatpush1.msra.mxu0 %v443
      %912 = vmatprep.subr.mxu0 %v446
      %913 = vmatpush1.msra.mxu0 %v445
      %914 = vmatprep.subr.mxu0 %v448
      %915 = vmatpush1.msra.mxu0 %v447
      %916 = vmatprep.subr.mxu0 %v450
      %917 = vmatpush1.msra.mxu0 %v449
      %918 = vmatprep.subr.mxu0 %v452
      %919 = vmatpush1.msra.mxu0 %v451
      %920 = vmatprep.subr.mxu0 %v454
      %921 = vmatpush1.msra.mxu0 %v453
      %922 = vmatprep.subr.mxu0 %v456
      %923 = vmatpush1.msra.mxu0 %v455
      %924 = vmatprep.subr.mxu0 0.0
      %925 = vmatpush1.msra.mxu0 0.0
      %926 = vmatprep.subr.mxu0 0.0
      %927 = vmatpush1.msra.mxu0 0.0
      %928 = vmatprep.subr.mxu0 0.0
      %929 = vmatpush1.msra.mxu0 0.0
      %930 = vmatprep.subr.mxu0 0.0
      %931 = vmatpush1.msra.mxu0 0.0
      %932 = vmatprep.subr.mxu0 0.0
      %933 = vmatpush1.msra.mxu0 0.0
      %934 = vmatprep.subr.mxu0 0.0
      %935 = vmatpush1.msra.mxu0 0.0
      %936 = vmatprep.subr.mxu0 0.0
      %937 = vmatpush1.msra.mxu0 0.0
      %938 = vmatprep.subr.mxu0 0.0
      %939 = vmatpush1.msra.mxu0 0.0
      %940 = vmatprep.subr.mxu0 0.0
      %941 = vmatpush1.msra.mxu0 0.0
      %942 = vmatprep.subr.mxu0 0.0
      %943 = vmatpush1.msra.mxu0 0.0
      %944 = vmatprep.subr.mxu0 0.0
      %945 = vmatpush1.msra.mxu0 0.0
      %946 = vmatprep.subr.mxu0 0.0
      %947 = vmatpush1.msra.mxu0 0.0
      %948 = vmatprep.subr.mxu0 0.0
      %949 = vmatpush1.msra.mxu0 0.0
      %950 = vmatprep.subr.mxu0 0.0
      %951 = vmatpush1.msra.mxu0 0.0
      %952 = vmatprep.subr.mxu0 0.0
      %953 = vmatpush1.msra.mxu0 0.0
      %954 = vmatprep.subr.mxu0 0.0
      %955 = vmatpush1.msra.mxu0 0.0
      %956 = vmatprep.mubr.f32.mxu0 0.0
      %957 = vmatmul.mubr.f32.gmra.mrb[0].mxu0 %v391
      %v958 = vpop.f32.mrb[0].mxu0
      %v959 = vadd.f32 %v702, %v958
      %v960 = vpop.f32.mrb[0].mxu0
      %v961 = vadd.f32 %v704, %v960
      %962 = vmatprep.mubr.f32.mxu0 0.0
      %963 = vmatmul.mubr.f32.gmra.mrb[0].mxu0 %v292
      %v964 = vpop.f32.mrb[0].mxu0
      %v965 = vadd.f32 %v708, %v964
      %v966 = vpop.f32.mrb[0].mxu0
      %v967 = vadd.f32 %v710, %v966
      %968 = vmatprep.mubr.f32.mxu0 0.0
      %969 = vmatmul.mubr.f32.gmra.mrb[0].mxu0 %v392
      %v970 = vpop.f32.mrb[0].mxu0
      %v971 = vadd.f32 %v714, %v970
      %v972 = vpop.f32.mrb[0].mxu0
      %v973 = vadd.f32 %v716, %v972
      %974 = vmatprep.mubr.f32.mxu0 0.0
      %975 = vmatmul.mubr.f32.gmra.mrb[0].mxu0 %v295
      %v976 = vpop.f32.mrb[0].mxu0
      %v977 = vadd.f32 %v720, %v976
      %v978 = vpop.f32.mrb[0].mxu0
      %v979 = vadd.f32 %v722, %v978
      %980 = vmatprep.mubr.f32.mxu0 0.0
      %981 = vmatmul.mubr.f32.gmra.mrb[0].mxu0 %v393
      %v982 = vpop.f32.mrb[0].mxu0
      %v983 = vadd.f32 %v726, %v982
      %v984 = vpop.f32.mrb[0].mxu0
      %v985 = vadd.f32 %v728, %v984
      %986 = vmatprep.mubr.f32.mxu0 0.0
      %987 = vmatmul.mubr.f32.gmra.mrb[0].mxu0 %v298
      %v988 = vpop.f32.mrb[0].mxu0
      %v989 = vadd.f32 %v732, %v988
      %v990 = vpop.f32.mrb[0].mxu0
      %v991 = vadd.f32 %v734, %v990
      %992 = vmatprep.mubr.f32.mxu0 0.0
      %993 = vmatmul.mubr.f32.gmra.mrb[0].mxu0 %v394
      %v994 = vpop.f32.mrb[0].mxu0
      %v995 = vadd.f32 %v738, %v994
      %v996 = vpop.f32.mrb[0].mxu0
      %v997 = vadd.f32 %v740, %v996
      %998 = vmatprep.mubr.f32.mxu0 0.0
      %999 = vmatmul.mubr.f32.gmra.mrb[0].mxu0 %v301
      %v1000 = vpop.f32.mrb[0].mxu0
      %v1001 = vadd.f32 %v744, %v1000
      %v1002 = vpop.f32.mrb[0].mxu0
      %v1003 = vadd.f32 %v746, %v1002
      %1004 = vmatprep.mubr.f32.mxu0 0.0
      %1005 = vmatmul.mubr.f32.gmra.mrb[0].mxu0 %v395
      %v1006 = vpop.f32.mrb[0].mxu0
      %v1007 = vadd.f32 %v750, %v1006
      %v1008 = vpop.f32.mrb[0].mxu0
      %v1009 = vadd.f32 %v752, %v1008
      %1010 = vmatprep.mubr.f32.mxu0 0.0
      %1011 = vmatmul.mubr.f32.gmra.mrb[0].mxu0 %v304
      %v1012 = vpop.f32.mrb[0].mxu0
      %v1013 = vadd.f32 %v756, %v1012
      %v1014 = vpop.f32.mrb[0].mxu0
      %v1015 = vadd.f32 %v758, %v1014
      %1016 = vmatprep.mubr.f32.mxu0 0.0
      %1017 = vmatmul.mubr.f32.gmra.mrb[0].mxu0 %v396
      %v1018 = vpop.f32.mrb[0].mxu0
      %v1019 = vadd.f32 %v762, %v1018
      %v1020 = vpop.f32.mrb[0].mxu0
      %v1021 = vadd.f32 %v764, %v1020
      %1022 = vmatprep.mubr.f32.mxu0 0.0
      %1023 = vmatmul.mubr.f32.gmra.mrb[0].mxu0 %v307
      %v1024 = vpop.f32.mrb[0].mxu0
      %v1025 = vadd.f32 %v768, %v1024
      %v1026 = vpop.f32.mrb[0].mxu0
      %v1027 = vadd.f32 %v770, %v1026
      %1028 = vmatprep.mubr.f32.mxu0 0.0
      %1029 = vmatmul.mubr.f32.gmra.mrb[0].mxu0 %v397
      %v1030 = vpop.f32.mrb[0].mxu0
      %v1031 = vadd.f32 %v774, %v1030
      %v1032 = vpop.f32.mrb[0].mxu0
      %v1033 = vadd.f32 %v776, %v1032
      %1034 = vmatprep.mubr.f32.mxu0 0.0
      %1035 = vmatmul.mubr.f32.gmra.mrb[0].mxu0 %v310
      %v1036 = vpop.f32.mrb[0].mxu0
      %v1037 = vadd.f32 %v780, %v1036
      %v1038 = vpop.f32.mrb[0].mxu0
      %v1039 = vadd.f32 %v782, %v1038
      %1040 = vmatprep.mubr.f32.mxu0 0.0
      %1041 = vmatmul.mubr.f32.gmra.mrb[0].mxu0 %v398
      %v1042 = vpop.f32.mrb[0].mxu0
      %v1043 = vadd.f32 %v786, %v1042
      %v1044 = vpop.f32.mrb[0].mxu0
      %v1045 = vadd.f32 %v788, %v1044
      %1046 = vmatprep.mubr.f32.mxu0 0.0
      %1047 = vmatmul.mubr.f32.gmra.mrb[0].mxu0 %v313
      %v1048 = vpop.f32.mrb[0].mxu0
      %v1049 = vadd.f32 %v792, %v1048
      %v1050 = vpop.f32.mrb[0].mxu0
      %v1051 = vadd.f32 %v794, %v1050
      %1052 = vmatprep.mubr.f32.mxu0 0.0
      %1053 = vmatmul.mubr.f32.gmra.mrb[0].mxu0 %v399
      %v1054 = vpop.f32.mrb[0].mxu0
      %v1055 = vadd.f32 %v798, %v1054
      %v1056 = vpop.f32.mrb[0].mxu0
      %v1057 = vadd.f32 %v800, %v1056
      %1058 = vmatprep.mubr.f32.mxu0 0.0
      %1059 = vmatmul.mubr.f32.gmra.mrb[0].mxu0 %v316
      %v1060 = vpop.f32.mrb[0].mxu0
      %v1061 = vadd.f32 %v804, %v1060
      %v1062 = vpop.f32.mrb[0].mxu0
      %v1063 = vadd.f32 %v806, %v1062
      %1064 = vmatprep.mubr.f32.mxu0 0.0
      %1065 = vmatmul.mubr.f32.gmra.mrb[0].mxu0 %v400
      %v1066 = vpop.f32.mrb[0].mxu0
      %v1067 = vadd.f32 %v810, %v1066
      %v1068 = vpop.f32.mrb[0].mxu0
      %v1069 = vadd.f32 %v812, %v1068
      %1070 = vmatprep.mubr.f32.mxu0 0.0
      %1071 = vmatmul.mubr.f32.gmra.mrb[0].mxu0 %v319
      %v1072 = vpop.f32.mrb[0].mxu0
      %v1073 = vadd.f32 %v816, %v1072
      %v1074 = vpop.f32.mrb[0].mxu0
      %v1075 = vadd.f32 %v818, %v1074
      %1076 = vmatprep.mubr.f32.mxu0 0.0
      %1077 = vmatmul.mubr.f32.gmra.mrb[0].mxu0 %v401
      %v1078 = vpop.f32.mrb[0].mxu0
      %v1079 = vadd.f32 %v822, %v1078
      %v1080 = vpop.f32.mrb[0].mxu0
      %v1081 = vadd.f32 %v824, %v1080
      %1082 = vmatprep.mubr.f32.mxu0 0.0
      %1083 = vmatmul.mubr.f32.gmra.mrb[0].mxu0 %v322
      %v1084 = vpop.f32.mrb[0].mxu0
      %v1085 = vadd.f32 %v828, %v1084
      %v1086 = vpop.f32.mrb[0].mxu0
      %v1087 = vadd.f32 %v830, %v1086
      %1088 = vmatprep.mubr.f32.mxu0 0.0
      %1089 = vmatmul.mubr.f32.gmra.mrb[0].mxu0 %v402
      %v1090 = vpop.f32.mrb[0].mxu0
      %v1091 = vadd.f32 %v834, %v1090
      %v1092 = vpop.f32.mrb[0].mxu0
      %v1093 = vadd.f32 %v836, %v1092
      %1094 = vmatprep.mubr.f32.mxu0 0.0
      %1095 = vmatmul.mubr.f32.gmra.mrb[0].mxu0 %v325
      %v1096 = vpop.f32.mrb[0].mxu0
      %v1097 = vadd.f32 %v840, %v1096
      %v1098 = vpop.f32.mrb[0].mxu0
      %v1099 = vadd.f32 %v842, %v1098
      %1100 = vmatprep.mubr.f32.mxu0 0.0
      %1101 = vmatmul.mubr.f32.gmra.mrb[0].mxu0 %v403
      %v1102 = vpop.f32.mrb[0].mxu0
      %v1103 = vadd.f32 %v846, %v1102
      %v1104 = vpop.f32.mrb[0].mxu0
      %v1105 = vadd.f32 %v848, %v1104
      %1106 = vmatprep.mubr.f32.mxu0 0.0
      %1107 = vmatmul.mubr.f32.gmra.mrb[0].mxu0 %v328
      %v1108 = vpop.f32.mrb[0].mxu0
      %v1109 = vadd.f32 %v852, %v1108
      %v1110 = vpop.f32.mrb[0].mxu0
      %v1111 = vadd.f32 %v854, %v1110
      %1112 = vmatprep.mubr.f32.mxu0 0.0
      %1113 = vmatmul.mubr.f32.gmra.mrb[0].mxu0 %v404
      %v1114 = vpop.f32.mrb[0].mxu0
      %v1115 = vadd.f32 %v858, %v1114
      %v1116 = vpop.f32.mrb[0].mxu0
      %v1117 = vadd.f32 %v860, %v1116
      %1118 = vmatprep.mubr.f32.mxu0 0.0
      %1119 = vmatmul.mubr.f32.gmra.mrb[0].mxu0 %v331
      %v1120 = vpop.f32.mrb[0].mxu0
      %v1121 = vadd.f32 %v864, %v1120
      %v1122 = vpop.f32.mrb[0].mxu0
      %v1123 = vadd.f32 %v866, %v1122
      %1124 = vmatprep.mubr.f32.mxu0 0.0
      %1125 = vmatmul.mubr.f32.gmra.mrb[0].mxu0 %v405
      %v1126 = vpop.f32.mrb[0].mxu0
      %v1127 = vadd.f32 %v870, %v1126
      %v1128 = vpop.f32.mrb[0].mxu0
      %v1129 = vadd.f32 %v872, %v1128
      %1130 = vmatprep.mubr.f32.mxu0 0.0
      %1131 = vmatmul.mubr.f32.gmra.mrb[0].mxu0 %v334
      %v1132 = vpop.f32.mrb[0].mxu0
      %v1133 = vadd.f32 %v876, %v1132
      %v1134 = vpop.f32.mrb[0].mxu0
      %v1135 = vadd.f32 %v878, %v1134
      %1136 = vmatprep.mubr.f32.mxu0 0.0
      %1137 = vmatmul.mubr.f32.gmra.mrb[0].mxu0 %v406
      %v1138 = vpop.f32.mrb[0].mxu0
      %v1139 = vadd.f32 %v882, %v1138
      %v1140 = vpop.f32.mrb[0].mxu0
      %v1141 = vadd.f32 %v884, %v1140
      %1142 = vmatprep.mubr.f32.mxu0 0.0
      %1143 = vmatmul.mubr.f32.gmra.mrb[0].mxu0 %v337
      %v1144 = vpop.f32.mrb[0].mxu0
      %v1145 = vadd.f32 %v888, %v1144
      %v1146 = vpop.f32.mrb[0].mxu0
      %v1147 = vadd.f32 %v890, %v1146
      %1148 = vdwg.mxu0
      %vm1149 = vcmask 1045504
      %v1150 = vrot.slane %v391, 2
      %v1151 = vrot.slane %v292, 2
      %v1152 = vsel %vm1149, %v1150, %v1151
      %v1153 = vrot.slane %v408, 2
      %v1154 = vsel %vm1149, %v1151, %v1153
      %v1155 = vrot.slane %v392, 2
      %v1156 = vrot.slane %v295, 2
      %v1157 = vsel %vm1149, %v1155, %v1156
      %v1158 = vrot.slane %v409, 2
      %v1159 = vsel %vm1149, %v1156, %v1158
      %v1160 = vrot.slane %v393, 2
      %v1161 = vrot.slane %v298, 2
      %v1162 = vsel %vm1149, %v1160, %v1161
      %v1163 = vrot.slane %v410, 2
      %v1164 = vsel %vm1149, %v1161, %v1163
      %v1165 = vrot.slane %v394, 2
      %v1166 = vrot.slane %v301, 2
      %v1167 = vsel %vm1149, %v1165, %v1166
      %v1168 = vrot.slane %v411, 2
      %v1169 = vsel %vm1149, %v1166, %v1168
      %v1170 = vrot.slane %v395, 2
      %v1171 = vrot.slane %v304, 2
      %v1172 = vsel %vm1149, %v1170, %v1171
      %v1173 = vrot.slane %v412, 2
      %v1174 = vsel %vm1149, %v1171, %v1173
      %v1175 = vrot.slane %v396, 2
      %v1176 = vrot.slane %v307, 2
      %v1177 = vsel %vm1149, %v1175, %v1176
      %v1178 = vrot.slane %v413, 2
      %v1179 = vsel %vm1149, %v1176, %v1178
      %v1180 = vrot.slane %v397, 2
      %v1181 = vrot.slane %v310, 2
      %v1182 = vsel %vm1149, %v1180, %v1181
      %v1183 = vrot.slane %v414, 2
      %v1184 = vsel %vm1149, %v1181, %v1183
      %v1185 = vrot.slane %v398, 2
      %v1186 = vrot.slane %v313, 2
      %v1187 = vsel %vm1149, %v1185, %v1186
      %v1188 = vrot.slane %v415, 2
      %v1189 = vsel %vm1149, %v1186, %v1188
      %v1190 = vrot.slane %v399, 2
      %v1191 = vrot.slane %v316, 2
      %v1192 = vsel %vm1149, %v1190, %v1191
      %v1193 = vrot.slane %v416, 2
      %v1194 = vsel %vm1149, %v1191, %v1193
      %v1195 = vrot.slane %v400, 2
      %v1196 = vrot.slane %v319, 2
      %v1197 = vsel %vm1149, %v1195, %v1196
      %v1198 = vrot.slane %v417, 2
      %v1199 = vsel %vm1149, %v1196, %v1198
      %v1200 = vrot.slane %v401, 2
      %v1201 = vrot.slane %v322, 2
      %v1202 = vsel %vm1149, %v1200, %v1201
      %v1203 = vrot.slane %v418, 2
      %v1204 = vsel %vm1149, %v1201, %v1203
      %v1205 = vrot.slane %v402, 2
      %v1206 = vrot.slane %v325, 2
      %v1207 = vsel %vm1149, %v1205, %v1206
      %v1208 = vrot.slane %v419, 2
      %v1209 = vsel %vm1149, %v1206, %v1208
      %v1210 = vrot.slane %v403, 2
      %v1211 = vrot.slane %v328, 2
      %v1212 = vsel %vm1149, %v1210, %v1211
      %v1213 = vrot.slane %v420, 2
      %v1214 = vsel %vm1149, %v1211, %v1213
      %v1215 = vrot.slane %v404, 2
      %v1216 = vrot.slane %v331, 2
      %v1217 = vsel %vm1149, %v1215, %v1216
      %v1218 = vrot.slane %v421, 2
      %v1219 = vsel %vm1149, %v1216, %v1218
      %v1220 = vrot.slane %v405, 2
      %v1221 = vrot.slane %v334, 2
      %v1222 = vsel %vm1149, %v1220, %v1221
      %v1223 = vrot.slane %v422, 2
      %v1224 = vsel %vm1149, %v1221, %v1223
      %v1225 = vrot.slane %v406, 2
      %v1226 = vrot.slane %v337, 2
      %v1227 = vsel %vm1149, %v1225, %v1226
      %v1228 = vrot.slane %v423, 2
      %v1229 = vsel %vm1149, %v1226, %v1228
      %s1262 = scalar_lea.vmem %s1, 512
      %v1263 = vld [vmem:[%s1262] sm:$0xff]
      %v1264 = vld [vmem:[%s1262 + $0x8] sm:$0xff]
      %v1265 = vld [vmem:[%s1262 + $0x10] sm:$0xff]
      %v1266 = vld [vmem:[%s1262 + $0x18] sm:$0xff]
      %v1267 = vld [vmem:[%s1262 + $0x20] sm:$0xff]
      %v1268 = vld [vmem:[%s1262 + $0x28] sm:$0xff]
      %v1269 = vld [vmem:[%s1262 + $0x30] sm:$0xff]
      %v1270 = vld [vmem:[%s1262 + $0x38] sm:$0xff]
      %v1271 = vld [vmem:[%s1262 + $0x40] sm:$0xff]
      %v1272 = vld [vmem:[%s1262 + $0x48] sm:$0xff]
      %v1273 = vld [vmem:[%s1262 + $0x50] sm:$0xff]
      %v1274 = vld [vmem:[%s1262 + $0x58] sm:$0xff]
      %v1275 = vld [vmem:[%s1262 + $0x60] sm:$0xff]
      %v1276 = vld [vmem:[%s1262 + $0x68] sm:$0xff]
      %v1277 = vld [vmem:[%s1262 + $0x70] sm:$0xff]
      %v1278 = vld [vmem:[%s1262 + $0x78] sm:$0xff]
      %v1279 = vld [vmem:[%s1262 + $0x80] sm:$0xff]
      %v1280 = vld [vmem:[%s1262 + $0x88] sm:$0xff]
      %v1281 = vld [vmem:[%s1262 + $0x90] sm:$0xff]
      %v1282 = vld [vmem:[%s1262 + $0x98] sm:$0xff]
      %v1283 = vld [vmem:[%s1262 + $0xa0] sm:$0xff]
      %v1284 = vld [vmem:[%s1262 + $0xa8] sm:$0xff]
      %v1285 = vld [vmem:[%s1262 + $0xb0] sm:$0xff]
      %v1286 = vld [vmem:[%s1262 + $0xb8] sm:$0xff]
      %v1287 = vld [vmem:[%s1262 + $0xc0] sm:$0xff]
      %v1288 = vld [vmem:[%s1262 + $0xc8] sm:$0xff]
      %v1289 = vld [vmem:[%s1262 + $0xd0] sm:$0xff]
      %v1290 = vld [vmem:[%s1262 + $0xd8] sm:$0xff]
      %v1291 = vld [vmem:[%s1262 + $0xe0] sm:$0xff]
      %v1292 = vld [vmem:[%s1262 + $0xe8] sm:$0xff]
      %v1293 = vld [vmem:[%s1262 + $0xf0] sm:$0xff]
      %v1294 = vld [vmem:[%s1262 + $0xf8] sm:$0xff]
      %1295 = vmatprep.subr.mxu0 %v1264
      %1296 = vmatpush1.msra.mxu0 %v1263
      %1297 = vmatprep.subr.mxu0 %v1266
      %1298 = vmatpush1.msra.mxu0 %v1265
      %1299 = vmatprep.subr.mxu0 %v1268
      %1300 = vmatpush1.msra.mxu0 %v1267
      %1301 = vmatprep.subr.mxu0 %v1270
      %1302 = vmatpush1.msra.mxu0 %v1269
      %1303 = vmatprep.subr.mxu0 %v1272
      %1304 = vmatpush1.msra.mxu0 %v1271
      %1305 = vmatprep.subr.mxu0 %v1274
      %1306 = vmatpush1.msra.mxu0 %v1273
      %1307 = vmatprep.subr.mxu0 %v1276
      %1308 = vmatpush1.msra.mxu0 %v1275
      %1309 = vmatprep.subr.mxu0 %v1278
      %1310 = vmatpush1.msra.mxu0 %v1277
      %1311 = vmatprep.subr.mxu0 %v1280
      %1312 = vmatpush1.msra.mxu0 %v1279
      %1313 = vmatprep.subr.mxu0 %v1282
      %1314 = vmatpush1.msra.mxu0 %v1281
      %1315 = vmatprep.subr.mxu0 %v1284
      %1316 = vmatpush1.msra.mxu0 %v1283
      %1317 = vmatprep.subr.mxu0 %v1286
      %1318 = vmatpush1.msra.mxu0 %v1285
      %1319 = vmatprep.subr.mxu0 %v1288
      %1320 = vmatpush1.msra.mxu0 %v1287
      %1321 = vmatprep.subr.mxu0 %v1290
      %1322 = vmatpush1.msra.mxu0 %v1289
      %1323 = vmatprep.subr.mxu0 %v1292
      %1324 = vmatpush1.msra.mxu0 %v1291
      %1325 = vmatprep.subr.mxu0 %v1294
      %1326 = vmatpush1.msra.mxu0 %v1293
      %1327 = vmatprep.subr.mxu0 0.0
      %1328 = vmatpush1.msra.mxu0 0.0
      %1329 = vmatprep.subr.mxu0 0.0
      %1330 = vmatpush1.msra.mxu0 0.0
      %1331 = vmatprep.subr.mxu0 0.0
      %1332 = vmatpush1.msra.mxu0 0.0
      %1333 = vmatprep.subr.mxu0 0.0
      %1334 = vmatpush1.msra.mxu0 0.0
      %1335 = vmatprep.subr.mxu0 0.0
      %1336 = vmatpush1.msra.mxu0 0.0
      %1337 = vmatprep.subr.mxu0 0.0
      %1338 = vmatpush1.msra.mxu0 0.0
      %1339 = vmatprep.subr.mxu0 0.0
      %1340 = vmatpush1.msra.mxu0 0.0
      %1341 = vmatprep.subr.mxu0 0.0
      %1342 = vmatpush1.msra.mxu0 0.0
      %1343 = vmatprep.subr.mxu0 0.0
      %1344 = vmatpush1.msra.mxu0 0.0
      %1345 = vmatprep.subr.mxu0 0.0
      %1346 = vmatpush1.msra.mxu0 0.0
      %1347 = vmatprep.subr.mxu0 0.0
      %1348 = vmatpush1.msra.mxu0 0.0
      %1349 = vmatprep.subr.mxu0 0.0
      %1350 = vmatpush1.msra.mxu0 0.0
      %1351 = vmatprep.subr.mxu0 0.0
      %1352 = vmatpush1.msra.mxu0 0.0
      %1353 = vmatprep.subr.mxu0 0.0
      %1354 = vmatpush1.msra.mxu0 0.0
      %1355 = vmatprep.subr.mxu0 0.0
      %1356 = vmatpush1.msra.mxu0 0.0
      %1357 = vmatprep.subr.mxu0 0.0
      %1358 = vmatpush1.msra.mxu0 0.0
      %1359 = vmatprep.mubr.f32.mxu0 0.0
      %1360 = vmatmul.mubr.f32.gmra.mrb[0].mxu0 %v1152
      %v1361 = vpop.f32.mrb[0].mxu0
      %v1362 = vadd.f32 0.0, %v1361
      %v1363 = vpop.f32.mrb[0].mxu0
      %v1364 = vadd.f32 0.0, %v1363
      %1365 = vmatprep.mubr.f32.mxu0 0.0
      %1366 = vmatmul.mubr.f32.gmra.mrb[0].mxu0 %v1154
      %v1367 = vpop.f32.mrb[0].mxu0
      %v1368 = vadd.f32 0.0, %v1367
      %v1369 = vpop.f32.mrb[0].mxu0
      %v1370 = vadd.f32 0.0, %v1369
      %1371 = vmatprep.mubr.f32.mxu0 0.0
      %1372 = vmatmul.mubr.f32.gmra.mrb[0].mxu0 %v1157
      %v1373 = vpop.f32.mrb[0].mxu0
      %v1374 = vadd.f32 0.0, %v1373
      %v1375 = vpop.f32.mrb[0].mxu0
      %v1376 = vadd.f32 0.0, %v1375
      %1377 = vmatprep.mubr.f32.mxu0 0.0
      %1378 = vmatmul.mubr.f32.gmra.mrb[0].mxu0 %v1159
      %v1379 = vpop.f32.mrb[0].mxu0
      %v1380 = vadd.f32 0.0, %v1379
      %v1381 = vpop.f32.mrb[0].mxu0
      %v1382 = vadd.f32 0.0, %v1381
      %1383 = vmatprep.mubr.f32.mxu0 0.0
      %1384 = vmatmul.mubr.f32.gmra.mrb[0].mxu0 %v1162
      %v1385 = vpop.f32.mrb[0].mxu0
      %v1386 = vadd.f32 0.0, %v1385
      %v1387 = vpop.f32.mrb[0].mxu0
      %v1388 = vadd.f32 0.0, %v1387
      %1389 = vmatprep.mubr.f32.mxu0 0.0
      %1390 = vmatmul.mubr.f32.gmra.mrb[0].mxu0 %v1164
      %v1391 = vpop.f32.mrb[0].mxu0
      %v1392 = vadd.f32 0.0, %v1391
      %v1393 = vpop.f32.mrb[0].mxu0
      %v1394 = vadd.f32 0.0, %v1393
      %1395 = vmatprep.mubr.f32.mxu0 0.0
      %1396 = vmatmul.mubr.f32.gmra.mrb[0].mxu0 %v1167
      %v1397 = vpop.f32.mrb[0].mxu0
      %v1398 = vadd.f32 0.0, %v1397
      %v1399 = vpop.f32.mrb[0].mxu0
      %v1400 = vadd.f32 0.0, %v1399
      %1401 = vmatprep.mubr.f32.mxu0 0.0
      %1402 = vmatmul.mubr.f32.gmra.mrb[0].mxu0 %v1169
      %v1403 = vpop.f32.mrb[0].mxu0
      %v1404 = vadd.f32 0.0, %v1403
      %v1405 = vpop.f32.mrb[0].mxu0
      %v1406 = vadd.f32 0.0, %v1405
      %1407 = vmatprep.mubr.f32.mxu0 0.0
      %1408 = vmatmul.mubr.f32.gmra.mrb[0].mxu0 %v1172
      %v1409 = vpop.f32.mrb[0].mxu0
      %v1410 = vadd.f32 0.0, %v1409
      %v1411 = vpop.f32.mrb[0].mxu0
      %v1412 = vadd.f32 0.0, %v1411
      %1413 = vmatprep.mubr.f32.mxu0 0.0
      %1414 = vmatmul.mubr.f32.gmra.mrb[0].mxu0 %v1174
      %v1415 = vpop.f32.mrb[0].mxu0
      %v1416 = vadd.f32 0.0, %v1415
      %v1417 = vpop.f32.mrb[0].mxu0
      %v1418 = vadd.f32 0.0, %v1417
      %1419 = vmatprep.mubr.f32.mxu0 0.0
      %1420 = vmatmul.mubr.f32.gmra.mrb[0].mxu0 %v1177
      %v1421 = vpop.f32.mrb[0].mxu0
      %v1422 = vadd.f32 0.0, %v1421
      %v1423 = vpop.f32.mrb[0].mxu0
      %v1424 = vadd.f32 0.0, %v1423
      %1425 = vmatprep.mubr.f32.mxu0 0.0
      %1426 = vmatmul.mubr.f32.gmra.mrb[0].mxu0 %v1179
      %v1427 = vpop.f32.mrb[0].mxu0
      %v1428 = vadd.f32 0.0, %v1427
      %v1429 = vpop.f32.mrb[0].mxu0
      %v1430 = vadd.f32 0.0, %v1429
      %1431 = vmatprep.mubr.f32.mxu0 0.0
      %1432 = vmatmul.mubr.f32.gmra.mrb[0].mxu0 %v1182
      %v1433 = vpop.f32.mrb[0].mxu0
      %v1434 = vadd.f32 0.0, %v1433
      %v1435 = vpop.f32.mrb[0].mxu0
      %v1436 = vadd.f32 0.0, %v1435
      %1437 = vmatprep.mubr.f32.mxu0 0.0
      %1438 = vmatmul.mubr.f32.gmra.mrb[0].mxu0 %v1184
      %v1439 = vpop.f32.mrb[0].mxu0
      %v1440 = vadd.f32 0.0, %v1439
      %v1441 = vpop.f32.mrb[0].mxu0
      %v1442 = vadd.f32 0.0, %v1441
      %1443 = vmatprep.mubr.f32.mxu0 0.0
      %1444 = vmatmul.mubr.f32.gmra.mrb[0].mxu0 %v1187
      %v1445 = vpop.f32.mrb[0].mxu0
      %v1446 = vadd.f32 0.0, %v1445
      %v1447 = vpop.f32.mrb[0].mxu0
      %v1448 = vadd.f32 0.0, %v1447
      %1449 = vmatprep.mubr.f32.mxu0 0.0
      %1450 = vmatmul.mubr.f32.gmra.mrb[0].mxu0 %v1189
      %v1451 = vpop.f32.mrb[0].mxu0
      %v1452 = vadd.f32 0.0, %v1451
      %v1453 = vpop.f32.mrb[0].mxu0
      %v1454 = vadd.f32 0.0, %v1453
      %1455 = vmatprep.mubr.f32.mxu0 0.0
      %1456 = vmatmul.mubr.f32.gmra.mrb[0].mxu0 %v1192
      %v1457 = vpop.f32.mrb[0].mxu0
      %v1458 = vadd.f32 0.0, %v1457
      %v1459 = vpop.f32.mrb[0].mxu0
      %v1460 = vadd.f32 0.0, %v1459
      %1461 = vmatprep.mubr.f32.mxu0 0.0
      %1462 = vmatmul.mubr.f32.gmra.mrb[0].mxu0 %v1194
      %v1463 = vpop.f32.mrb[0].mxu0
      %v1464 = vadd.f32 0.0, %v1463
      %v1465 = vpop.f32.mrb[0].mxu0
      %v1466 = vadd.f32 0.0, %v1465
      %1467 = vmatprep.mubr.f32.mxu0 0.0
      %1468 = vmatmul.mubr.f32.gmra.mrb[0].mxu0 %v1197
      %v1469 = vpop.f32.mrb[0].mxu0
      %v1470 = vadd.f32 0.0, %v1469
      %v1471 = vpop.f32.mrb[0].mxu0
      %v1472 = vadd.f32 0.0, %v1471
      %1473 = vmatprep.mubr.f32.mxu0 0.0
      %1474 = vmatmul.mubr.f32.gmra.mrb[0].mxu0 %v1199
      %v1475 = vpop.f32.mrb[0].mxu0
      %v1476 = vadd.f32 0.0, %v1475
      %v1477 = vpop.f32.mrb[0].mxu0
      %v1478 = vadd.f32 0.0, %v1477
      %1479 = vmatprep.mubr.f32.mxu0 0.0
      %1480 = vmatmul.mubr.f32.gmra.mrb[0].mxu0 %v1202
      %v1481 = vpop.f32.mrb[0].mxu0
      %v1482 = vadd.f32 0.0, %v1481
      %v1483 = vpop.f32.mrb[0].mxu0
      %v1484 = vadd.f32 0.0, %v1483
      %1485 = vmatprep.mubr.f32.mxu0 0.0
      %1486 = vmatmul.mubr.f32.gmra.mrb[0].mxu0 %v1204
      %v1487 = vpop.f32.mrb[0].mxu0
      %v1488 = vadd.f32 0.0, %v1487
      %v1489 = vpop.f32.mrb[0].mxu0
      %v1490 = vadd.f32 0.0, %v1489
      %1491 = vmatprep.mubr.f32.mxu0 0.0
      %1492 = vmatmul.mubr.f32.gmra.mrb[0].mxu0 %v1207
      %v1493 = vpop.f32.mrb[0].mxu0
      %v1494 = vadd.f32 0.0, %v1493
      %v1495 = vpop.f32.mrb[0].mxu0
      %v1496 = vadd.f32 0.0, %v1495
      %1497 = vmatprep.mubr.f32.mxu0 0.0
      %1498 = vmatmul.mubr.f32.gmra.mrb[0].mxu0 %v1209
      %v1499 = vpop.f32.mrb[0].mxu0
      %v1500 = vadd.f32 0.0, %v1499
      %v1501 = vpop.f32.mrb[0].mxu0
      %v1502 = vadd.f32 0.0, %v1501
      %1503 = vmatprep.mubr.f32.mxu0 0.0
      %1504 = vmatmul.mubr.f32.gmra.mrb[0].mxu0 %v1212
      %v1505 = vpop.f32.mrb[0].mxu0
      %v1506 = vadd.f32 0.0, %v1505
      %v1507 = vpop.f32.mrb[0].mxu0
      %v1508 = vadd.f32 0.0, %v1507
      %1509 = vmatprep.mubr.f32.mxu0 0.0
      %1510 = vmatmul.mubr.f32.gmra.mrb[0].mxu0 %v1214
      %v1511 = vpop.f32.mrb[0].mxu0
      %v1512 = vadd.f32 0.0, %v1511
      %v1513 = vpop.f32.mrb[0].mxu0
      %v1514 = vadd.f32 0.0, %v1513
      %1515 = vmatprep.mubr.f32.mxu0 0.0
      %1516 = vmatmul.mubr.f32.gmra.mrb[0].mxu0 %v1217
      %v1517 = vpop.f32.mrb[0].mxu0
      %v1518 = vadd.f32 0.0, %v1517
      %v1519 = vpop.f32.mrb[0].mxu0
      %v1520 = vadd.f32 0.0, %v1519
      %1521 = vmatprep.mubr.f32.mxu0 0.0
      %1522 = vmatmul.mubr.f32.gmra.mrb[0].mxu0 %v1219
      %v1523 = vpop.f32.mrb[0].mxu0
      %v1524 = vadd.f32 0.0, %v1523
      %v1525 = vpop.f32.mrb[0].mxu0
      %v1526 = vadd.f32 0.0, %v1525
      %1527 = vmatprep.mubr.f32.mxu0 0.0
      %1528 = vmatmul.mubr.f32.gmra.mrb[0].mxu0 %v1222
      %v1529 = vpop.f32.mrb[0].mxu0
      %v1530 = vadd.f32 0.0, %v1529
      %v1531 = vpop.f32.mrb[0].mxu0
      %v1532 = vadd.f32 0.0, %v1531
      %1533 = vmatprep.mubr.f32.mxu0 0.0
      %1534 = vmatmul.mubr.f32.gmra.mrb[0].mxu0 %v1224
      %v1535 = vpop.f32.mrb[0].mxu0
      %v1536 = vadd.f32 0.0, %v1535
      %v1537 = vpop.f32.mrb[0].mxu0
      %v1538 = vadd.f32 0.0, %v1537
      %1539 = vmatprep.mubr.f32.mxu0 0.0
      %1540 = vmatmul.mubr.f32.gmra.mrb[0].mxu0 %v1227
      %v1541 = vpop.f32.mrb[0].mxu0
      %v1542 = vadd.f32 0.0, %v1541
      %v1543 = vpop.f32.mrb[0].mxu0
      %v1544 = vadd.f32 0.0, %v1543
      %1545 = vmatprep.mubr.f32.mxu0 0.0
      %1546 = vmatmul.mubr.f32.gmra.mrb[0].mxu0 %v1229
      %v1547 = vpop.f32.mrb[0].mxu0
      %v1548 = vadd.f32 0.0, %v1547
      %v1549 = vpop.f32.mrb[0].mxu0
      %v1550 = vadd.f32 0.0, %v1549
      %1551 = vdwg.mxu0
      %v1552 = vadd.f32 %v959, %v1362
      %v1553 = vadd.f32 %v961, %v1364
      %v1554 = vadd.f32 %v965, %v1368
      %v1555 = vadd.f32 %v967, %v1370
      %v1556 = vadd.f32 %v971, %v1374
      %v1557 = vadd.f32 %v973, %v1376
      %v1558 = vadd.f32 %v977, %v1380
      %v1559 = vadd.f32 %v979, %v1382
      %v1560 = vadd.f32 %v983, %v1386
      %v1561 = vadd.f32 %v985, %v1388
      %v1562 = vadd.f32 %v989, %v1392
      %v1563 = vadd.f32 %v991, %v1394
      %v1564 = vadd.f32 %v995, %v1398
      %v1565 = vadd.f32 %v997, %v1400
      %v1566 = vadd.f32 %v1001, %v1404
      %v1567 = vadd.f32 %v1003, %v1406
      %v1568 = vadd.f32 %v1007, %v1410
      %v1569 = vadd.f32 %v1009, %v1412
      %v1570 = vadd.f32 %v1013, %v1416
      %v1571 = vadd.f32 %v1015, %v1418
      %v1572 = vadd.f32 %v1019, %v1422
      %v1573 = vadd.f32 %v1021, %v1424
      %v1574 = vadd.f32 %v1025, %v1428
      %v1575 = vadd.f32 %v1027, %v1430
      %v1576 = vadd.f32 %v1031, %v1434
      %v1577 = vadd.f32 %v1033, %v1436
      %v1578 = vadd.f32 %v1037, %v1440
      %v1579 = vadd.f32 %v1039, %v1442
      %v1580 = vadd.f32 %v1043, %v1446
      %v1581 = vadd.f32 %v1045, %v1448
      %v1582 = vadd.f32 %v1049, %v1452
      %v1583 = vadd.f32 %v1051, %v1454
      %v1584 = vadd.f32 %v1055, %v1458
      %v1585 = vadd.f32 %v1057, %v1460
      %v1586 = vadd.f32 %v1061, %v1464
      %v1587 = vadd.f32 %v1063, %v1466
      %v1588 = vadd.f32 %v1067, %v1470
      %v1589 = vadd.f32 %v1069, %v1472
      %v1590 = vadd.f32 %v1073, %v1476
      %v1591 = vadd.f32 %v1075, %v1478
      %v1592 = vadd.f32 %v1079, %v1482
      %v1593 = vadd.f32 %v1081, %v1484
      %v1594 = vadd.f32 %v1085, %v1488
      %v1595 = vadd.f32 %v1087, %v1490
      %v1596 = vadd.f32 %v1091, %v1494
      %v1597 = vadd.f32 %v1093, %v1496
      %v1598 = vadd.f32 %v1097, %v1500
      %v1599 = vadd.f32 %v1099, %v1502
      %v1600 = vadd.f32 %v1103, %v1506
      %v1601 = vadd.f32 %v1105, %v1508
      %v1602 = vadd.f32 %v1109, %v1512
      %v1603 = vadd.f32 %v1111, %v1514
      %v1604 = vadd.f32 %v1115, %v1518
      %v1605 = vadd.f32 %v1117, %v1520
      %v1606 = vadd.f32 %v1121, %v1524
      %v1607 = vadd.f32 %v1123, %v1526
      %v1608 = vadd.f32 %v1127, %v1530
      %v1609 = vadd.f32 %v1129, %v1532
      %v1610 = vadd.f32 %v1133, %v1536
      %v1611 = vadd.f32 %v1135, %v1538
      %v1612 = vadd.f32 %v1139, %v1542
      %v1613 = vadd.f32 %v1141, %v1544
      %v1614 = vadd.f32 %v1145, %v1548
      %v1615 = vadd.f32 %v1147, %v1550
      %s1616 = scalar_lea.vmem %s1, 768
      %v1617 = vld [vmem:[%s1616] sm:$0xff]
      %v1618 = vld [vmem:[%s1616 + $0x8] sm:$0xff]
      %v1619 = vld [vmem:[%s1616 + $0x10] sm:$0xff]
      %v1620 = vld [vmem:[%s1616 + $0x18] sm:$0xff]
      %v1621 = vld [vmem:[%s1616 + $0x20] sm:$0xff]
      %v1622 = vld [vmem:[%s1616 + $0x28] sm:$0xff]
      %v1623 = vld [vmem:[%s1616 + $0x30] sm:$0xff]
      %v1624 = vld [vmem:[%s1616 + $0x38] sm:$0xff]
      %v1625 = vld [vmem:[%s1616 + $0x40] sm:$0xff]
      %v1626 = vld [vmem:[%s1616 + $0x48] sm:$0xff]
      %v1627 = vld [vmem:[%s1616 + $0x50] sm:$0xff]
      %v1628 = vld [vmem:[%s1616 + $0x58] sm:$0xff]
      %v1629 = vld [vmem:[%s1616 + $0x60] sm:$0xff]
      %v1630 = vld [vmem:[%s1616 + $0x68] sm:$0xff]
      %v1631 = vld [vmem:[%s1616 + $0x70] sm:$0xff]
      %v1632 = vld [vmem:[%s1616 + $0x78] sm:$0xff]
      %v1633 = vld [vmem:[%s1616 + $0x80] sm:$0xff]
      %v1634 = vld [vmem:[%s1616 + $0x88] sm:$0xff]
      %v1635 = vld [vmem:[%s1616 + $0x90] sm:$0xff]
      %v1636 = vld [vmem:[%s1616 + $0x98] sm:$0xff]
      %v1637 = vld [vmem:[%s1616 + $0xa0] sm:$0xff]
      %v1638 = vld [vmem:[%s1616 + $0xa8] sm:$0xff]
      %v1639 = vld [vmem:[%s1616 + $0xb0] sm:$0xff]
      %v1640 = vld [vmem:[%s1616 + $0xb8] sm:$0xff]
      %v1641 = vld [vmem:[%s1616 + $0xc0] sm:$0xff]
      %v1642 = vld [vmem:[%s1616 + $0xc8] sm:$0xff]
      %v1643 = vld [vmem:[%s1616 + $0xd0] sm:$0xff]
      %v1644 = vld [vmem:[%s1616 + $0xd8] sm:$0xff]
      %v1645 = vld [vmem:[%s1616 + $0xe0] sm:$0xff]
      %v1646 = vld [vmem:[%s1616 + $0xe8] sm:$0xff]
      %v1647 = vld [vmem:[%s1616 + $0xf0] sm:$0xff]
      %v1648 = vld [vmem:[%s1616 + $0xf8] sm:$0xff]
      %1649 = vmatprep.subr.mxu0 %v1618
      %1650 = vmatpush1.msra.mxu0 %v1617
      %1651 = vmatprep.subr.mxu0 %v1620
      %1652 = vmatpush1.msra.mxu0 %v1619
      %1653 = vmatprep.subr.mxu0 %v1622
      %1654 = vmatpush1.msra.mxu0 %v1621
      %1655 = vmatprep.subr.mxu0 %v1624
      %1656 = vmatpush1.msra.mxu0 %v1623
      %1657 = vmatprep.subr.mxu0 %v1626
      %1658 = vmatpush1.msra.mxu0 %v1625
      %1659 = vmatprep.subr.mxu0 %v1628
      %1660 = vmatpush1.msra.mxu0 %v1627
      %1661 = vmatprep.subr.mxu0 %v1630
      %1662 = vmatpush1.msra.mxu0 %v1629
      %1663 = vmatprep.subr.mxu0 %v1632
      %1664 = vmatpush1.msra.mxu0 %v1631
      %1665 = vmatprep.subr.mxu0 %v1634
      %1666 = vmatpush1.msra.mxu0 %v1633
      %1667 = vmatprep.subr.mxu0 %v1636
      %1668 = vmatpush1.msra.mxu0 %v1635
      %1669 = vmatprep.subr.mxu0 %v1638
      %1670 = vmatpush1.msra.mxu0 %v1637
      %1671 = vmatprep.subr.mxu0 %v1640
      %1672 = vmatpush1.msra.mxu0 %v1639
      %1673 = vmatprep.subr.mxu0 %v1642
      %1674 = vmatpush1.msra.mxu0 %v1641
      %1675 = vmatprep.subr.mxu0 %v1644
      %1676 = vmatpush1.msra.mxu0 %v1643
      %1677 = vmatprep.subr.mxu0 %v1646
      %1678 = vmatpush1.msra.mxu0 %v1645
      %1679 = vmatprep.subr.mxu0 %v1648
      %1680 = vmatpush1.msra.mxu0 %v1647
      %1681 = vmatprep.subr.mxu0 0.0
      %1682 = vmatpush1.msra.mxu0 0.0
      %1683 = vmatprep.subr.mxu0 0.0
      %1684 = vmatpush1.msra.mxu0 0.0
      %1685 = vmatprep.subr.mxu0 0.0
      %1686 = vmatpush1.msra.mxu0 0.0
      %1687 = vmatprep.subr.mxu0 0.0
      %1688 = vmatpush1.msra.mxu0 0.0
      %1689 = vmatprep.subr.mxu0 0.0
      %1690 = vmatpush1.msra.mxu0 0.0
      %1691 = vmatprep.subr.mxu0 0.0
      %1692 = vmatpush1.msra.mxu0 0.0
      %1693 = vmatprep.subr.mxu0 0.0
      %1694 = vmatpush1.msra.mxu0 0.0
      %1695 = vmatprep.subr.mxu0 0.0
      %1696 = vmatpush1.msra.mxu0 0.0
      %1697 = vmatprep.subr.mxu0 0.0
      %1698 = vmatpush1.msra.mxu0 0.0
      %1699 = vmatprep.subr.mxu0 0.0
      %1700 = vmatpush1.msra.mxu0 0.0
      %1701 = vmatprep.subr.mxu0 0.0
      %1702 = vmatpush1.msra.mxu0 0.0
      %1703 = vmatprep.subr.mxu0 0.0
      %1704 = vmatpush1.msra.mxu0 0.0
      %1705 = vmatprep.subr.mxu0 0.0
      %1706 = vmatpush1.msra.mxu0 0.0
      %1707 = vmatprep.subr.mxu0 0.0
      %1708 = vmatpush1.msra.mxu0 0.0
      %1709 = vmatprep.subr.mxu0 0.0
      %1710 = vmatpush1.msra.mxu0 0.0
      %1711 = vmatprep.subr.mxu0 0.0
      %1712 = vmatpush1.msra.mxu0 0.0
      %1713 = vmatprep.mubr.f32.mxu0 0.0
      %1714 = vmatmul.mubr.f32.gmra.mrb[0].mxu0 %v392
      %v1715 = vpop.f32.mrb[0].mxu0
      %v1716 = vadd.f32 0.0, %v1715
      %v1717 = vpop.f32.mrb[0].mxu0
      %v1718 = vadd.f32 0.0, %v1717
      %1719 = vmatprep.mubr.f32.mxu0 0.0
      %1720 = vmatmul.mubr.f32.gmra.mrb[0].mxu0 %v295
      %v1721 = vpop.f32.mrb[0].mxu0
      %v1722 = vadd.f32 0.0, %v1721
      %v1723 = vpop.f32.mrb[0].mxu0
      %v1724 = vadd.f32 0.0, %v1723
      %1725 = vmatprep.mubr.f32.mxu0 0.0
      %1726 = vmatmul.mubr.f32.gmra.mrb[0].mxu0 %v393
      %v1727 = vpop.f32.mrb[0].mxu0
      %v1728 = vadd.f32 0.0, %v1727
      %v1729 = vpop.f32.mrb[0].mxu0
      %v1730 = vadd.f32 0.0, %v1729
      %1731 = vmatprep.mubr.f32.mxu0 0.0
      %1732 = vmatmul.mubr.f32.gmra.mrb[0].mxu0 %v298
      %v1733 = vpop.f32.mrb[0].mxu0
      %v1734 = vadd.f32 0.0, %v1733
      %v1735 = vpop.f32.mrb[0].mxu0
      %v1736 = vadd.f32 0.0, %v1735
      %1737 = vmatprep.mubr.f32.mxu0 0.0
      %1738 = vmatmul.mubr.f32.gmra.mrb[0].mxu0 %v394
      %v1739 = vpop.f32.mrb[0].mxu0
      %v1740 = vadd.f32 0.0, %v1739
      %v1741 = vpop.f32.mrb[0].mxu0
      %v1742 = vadd.f32 0.0, %v1741
      %1743 = vmatprep.mubr.f32.mxu0 0.0
      %1744 = vmatmul.mubr.f32.gmra.mrb[0].mxu0 %v301
      %v1745 = vpop.f32.mrb[0].mxu0
      %v1746 = vadd.f32 0.0, %v1745
      %v1747 = vpop.f32.mrb[0].mxu0
      %v1748 = vadd.f32 0.0, %v1747
      %1749 = vmatprep.mubr.f32.mxu0 0.0
      %1750 = vmatmul.mubr.f32.gmra.mrb[0].mxu0 %v395
      %v1751 = vpop.f32.mrb[0].mxu0
      %v1752 = vadd.f32 0.0, %v1751
      %v1753 = vpop.f32.mrb[0].mxu0
      %v1754 = vadd.f32 0.0, %v1753
      %1755 = vmatprep.mubr.f32.mxu0 0.0
      %1756 = vmatmul.mubr.f32.gmra.mrb[0].mxu0 %v304
      %v1757 = vpop.f32.mrb[0].mxu0
      %v1758 = vadd.f32 0.0, %v1757
      %v1759 = vpop.f32.mrb[0].mxu0
      %v1760 = vadd.f32 0.0, %v1759
      %1761 = vmatprep.mubr.f32.mxu0 0.0
      %1762 = vmatmul.mubr.f32.gmra.mrb[0].mxu0 %v396
      %v1763 = vpop.f32.mrb[0].mxu0
      %v1764 = vadd.f32 0.0, %v1763
      %v1765 = vpop.f32.mrb[0].mxu0
      %v1766 = vadd.f32 0.0, %v1765
      %1767 = vmatprep.mubr.f32.mxu0 0.0
      %1768 = vmatmul.mubr.f32.gmra.mrb[0].mxu0 %v307
      %v1769 = vpop.f32.mrb[0].mxu0
      %v1770 = vadd.f32 0.0, %v1769
      %v1771 = vpop.f32.mrb[0].mxu0
      %v1772 = vadd.f32 0.0, %v1771
      %1773 = vmatprep.mubr.f32.mxu0 0.0
      %1774 = vmatmul.mubr.f32.gmra.mrb[0].mxu0 %v397
      %v1775 = vpop.f32.mrb[0].mxu0
      %v1776 = vadd.f32 0.0, %v1775
      %v1777 = vpop.f32.mrb[0].mxu0
      %v1778 = vadd.f32 0.0, %v1777
      %1779 = vmatprep.mubr.f32.mxu0 0.0
      %1780 = vmatmul.mubr.f32.gmra.mrb[0].mxu0 %v310
      %v1781 = vpop.f32.mrb[0].mxu0
      %v1782 = vadd.f32 0.0, %v1781
      %v1783 = vpop.f32.mrb[0].mxu0
      %v1784 = vadd.f32 0.0, %v1783
      %1785 = vmatprep.mubr.f32.mxu0 0.0
      %1786 = vmatmul.mubr.f32.gmra.mrb[0].mxu0 %v398
      %v1787 = vpop.f32.mrb[0].mxu0
      %v1788 = vadd.f32 0.0, %v1787
      %v1789 = vpop.f32.mrb[0].mxu0
      %v1790 = vadd.f32 0.0, %v1789
      %1791 = vmatprep.mubr.f32.mxu0 0.0
      %1792 = vmatmul.mubr.f32.gmra.mrb[0].mxu0 %v313
      %v1793 = vpop.f32.mrb[0].mxu0
      %v1794 = vadd.f32 0.0, %v1793
      %v1795 = vpop.f32.mrb[0].mxu0
      %v1796 = vadd.f32 0.0, %v1795
      %1797 = vmatprep.mubr.f32.mxu0 0.0
      %1798 = vmatmul.mubr.f32.gmra.mrb[0].mxu0 %v399
      %v1799 = vpop.f32.mrb[0].mxu0
      %v1800 = vadd.f32 0.0, %v1799
      %v1801 = vpop.f32.mrb[0].mxu0
      %v1802 = vadd.f32 0.0, %v1801
      %1803 = vmatprep.mubr.f32.mxu0 0.0
      %1804 = vmatmul.mubr.f32.gmra.mrb[0].mxu0 %v316
      %v1805 = vpop.f32.mrb[0].mxu0
      %v1806 = vadd.f32 0.0, %v1805
      %v1807 = vpop.f32.mrb[0].mxu0
      %v1808 = vadd.f32 0.0, %v1807
      %1809 = vmatprep.mubr.f32.mxu0 0.0
      %1810 = vmatmul.mubr.f32.gmra.mrb[0].mxu0 %v400
      %v1811 = vpop.f32.mrb[0].mxu0
      %v1812 = vadd.f32 0.0, %v1811
      %v1813 = vpop.f32.mrb[0].mxu0
      %v1814 = vadd.f32 0.0, %v1813
      %1815 = vmatprep.mubr.f32.mxu0 0.0
      %1816 = vmatmul.mubr.f32.gmra.mrb[0].mxu0 %v319
      %v1817 = vpop.f32.mrb[0].mxu0
      %v1818 = vadd.f32 0.0, %v1817
      %v1819 = vpop.f32.mrb[0].mxu0
      %v1820 = vadd.f32 0.0, %v1819
      %1821 = vmatprep.mubr.f32.mxu0 0.0
      %1822 = vmatmul.mubr.f32.gmra.mrb[0].mxu0 %v401
      %v1823 = vpop.f32.mrb[0].mxu0
      %v1824 = vadd.f32 0.0, %v1823
      %v1825 = vpop.f32.mrb[0].mxu0
      %v1826 = vadd.f32 0.0, %v1825
      %1827 = vmatprep.mubr.f32.mxu0 0.0
      %1828 = vmatmul.mubr.f32.gmra.mrb[0].mxu0 %v322
      %v1829 = vpop.f32.mrb[0].mxu0
      %v1830 = vadd.f32 0.0, %v1829
      %v1831 = vpop.f32.mrb[0].mxu0
      %v1832 = vadd.f32 0.0, %v1831
      %1833 = vmatprep.mubr.f32.mxu0 0.0
      %1834 = vmatmul.mubr.f32.gmra.mrb[0].mxu0 %v402
      %v1835 = vpop.f32.mrb[0].mxu0
      %v1836 = vadd.f32 0.0, %v1835
      %v1837 = vpop.f32.mrb[0].mxu0
      %v1838 = vadd.f32 0.0, %v1837
      %1839 = vmatprep.mubr.f32.mxu0 0.0
      %1840 = vmatmul.mubr.f32.gmra.mrb[0].mxu0 %v325
      %v1841 = vpop.f32.mrb[0].mxu0
      %v1842 = vadd.f32 0.0, %v1841
      %v1843 = vpop.f32.mrb[0].mxu0
      %v1844 = vadd.f32 0.0, %v1843
      %1845 = vmatprep.mubr.f32.mxu0 0.0
      %1846 = vmatmul.mubr.f32.gmra.mrb[0].mxu0 %v403
      %v1847 = vpop.f32.mrb[0].mxu0
      %v1848 = vadd.f32 0.0, %v1847
      %v1849 = vpop.f32.mrb[0].mxu0
      %v1850 = vadd.f32 0.0, %v1849
      %1851 = vmatprep.mubr.f32.mxu0 0.0
      %1852 = vmatmul.mubr.f32.gmra.mrb[0].mxu0 %v328
      %v1853 = vpop.f32.mrb[0].mxu0
      %v1854 = vadd.f32 0.0, %v1853
      %v1855 = vpop.f32.mrb[0].mxu0
      %v1856 = vadd.f32 0.0, %v1855
      %1857 = vmatprep.mubr.f32.mxu0 0.0
      %1858 = vmatmul.mubr.f32.gmra.mrb[0].mxu0 %v404
      %v1859 = vpop.f32.mrb[0].mxu0
      %v1860 = vadd.f32 0.0, %v1859
      %v1861 = vpop.f32.mrb[0].mxu0
      %v1862 = vadd.f32 0.0, %v1861
      %1863 = vmatprep.mubr.f32.mxu0 0.0
      %1864 = vmatmul.mubr.f32.gmra.mrb[0].mxu0 %v331
      %v1865 = vpop.f32.mrb[0].mxu0
      %v1866 = vadd.f32 0.0, %v1865
      %v1867 = vpop.f32.mrb[0].mxu0
      %v1868 = vadd.f32 0.0, %v1867
      %1869 = vmatprep.mubr.f32.mxu0 0.0
      %1870 = vmatmul.mubr.f32.gmra.mrb[0].mxu0 %v405
      %v1871 = vpop.f32.mrb[0].mxu0
      %v1872 = vadd.f32 0.0, %v1871
      %v1873 = vpop.f32.mrb[0].mxu0
      %v1874 = vadd.f32 0.0, %v1873
      %1875 = vmatprep.mubr.f32.mxu0 0.0
      %1876 = vmatmul.mubr.f32.gmra.mrb[0].mxu0 %v334
      %v1877 = vpop.f32.mrb[0].mxu0
      %v1878 = vadd.f32 0.0, %v1877
      %v1879 = vpop.f32.mrb[0].mxu0
      %v1880 = vadd.f32 0.0, %v1879
      %1881 = vmatprep.mubr.f32.mxu0 0.0
      %1882 = vmatmul.mubr.f32.gmra.mrb[0].mxu0 %v406
      %v1883 = vpop.f32.mrb[0].mxu0
      %v1884 = vadd.f32 0.0, %v1883
      %v1885 = vpop.f32.mrb[0].mxu0
      %v1886 = vadd.f32 0.0, %v1885
      %1887 = vmatprep.mubr.f32.mxu0 0.0
      %1888 = vmatmul.mubr.f32.gmra.mrb[0].mxu0 %v337
      %v1889 = vpop.f32.mrb[0].mxu0
      %v1890 = vadd.f32 0.0, %v1889
      %v1891 = vpop.f32.mrb[0].mxu0
      %v1892 = vadd.f32 0.0, %v1891
      %1893 = vmatprep.mubr.f32.mxu0 0.0
      %1894 = vmatmul.mubr.f32.gmra.mrb[0].mxu0 %v407
      %v1895 = vpop.f32.mrb[0].mxu0
      %v1896 = vadd.f32 0.0, %v1895
      %v1897 = vpop.f32.mrb[0].mxu0
      %v1898 = vadd.f32 0.0, %v1897
      %1899 = vmatprep.mubr.f32.mxu0 0.0
      %1900 = vmatmul.mubr.f32.gmra.mrb[0].mxu0 %v340
      %v1901 = vpop.f32.mrb[0].mxu0
      %v1902 = vadd.f32 0.0, %v1901
      %v1903 = vpop.f32.mrb[0].mxu0
      %v1904 = vadd.f32 0.0, %v1903
      %1905 = vdwg.mxu0
      %v1906 = vadd.f32 %v1552, %v1716
      %v1907 = vadd.f32 %v1553, %v1718
      %v1908 = vadd.f32 %v1554, %v1722
      %v1909 = vadd.f32 %v1555, %v1724
      %v1910 = vadd.f32 %v1556, %v1728
      %v1911 = vadd.f32 %v1557, %v1730
      %v1912 = vadd.f32 %v1558, %v1734
      %v1913 = vadd.f32 %v1559, %v1736
      %v1914 = vadd.f32 %v1560, %v1740
      %v1915 = vadd.f32 %v1561, %v1742
      %v1916 = vadd.f32 %v1562, %v1746
      %v1917 = vadd.f32 %v1563, %v1748
      %v1918 = vadd.f32 %v1564, %v1752
      %v1919 = vadd.f32 %v1565, %v1754
      %v1920 = vadd.f32 %v1566, %v1758
      %v1921 = vadd.f32 %v1567, %v1760
      %v1922 = vadd.f32 %v1568, %v1764
      %v1923 = vadd.f32 %v1569, %v1766
      %v1924 = vadd.f32 %v1570, %v1770
      %v1925 = vadd.f32 %v1571, %v1772
      %v1926 = vadd.f32 %v1572, %v1776
      %v1927 = vadd.f32 %v1573, %v1778
      %v1928 = vadd.f32 %v1574, %v1782
      %v1929 = vadd.f32 %v1575, %v1784
      %v1930 = vadd.f32 %v1576, %v1788
      %v1931 = vadd.f32 %v1577, %v1790
      %v1932 = vadd.f32 %v1578, %v1794
      %v1933 = vadd.f32 %v1579, %v1796
      %v1934 = vadd.f32 %v1580, %v1800
      %v1935 = vadd.f32 %v1581, %v1802
      %v1936 = vadd.f32 %v1582, %v1806
      %v1937 = vadd.f32 %v1583, %v1808
      %v1938 = vadd.f32 %v1584, %v1812
      %v1939 = vadd.f32 %v1585, %v1814
      %v1940 = vadd.f32 %v1586, %v1818
      %v1941 = vadd.f32 %v1587, %v1820
      %v1942 = vadd.f32 %v1588, %v1824
      %v1943 = vadd.f32 %v1589, %v1826
      %v1944 = vadd.f32 %v1590, %v1830
      %v1945 = vadd.f32 %v1591, %v1832
      %v1946 = vadd.f32 %v1592, %v1836
      %v1947 = vadd.f32 %v1593, %v1838
      %v1948 = vadd.f32 %v1594, %v1842
      %v1949 = vadd.f32 %v1595, %v1844
      %v1950 = vadd.f32 %v1596, %v1848
      %v1951 = vadd.f32 %v1597, %v1850
      %v1952 = vadd.f32 %v1598, %v1854
      %v1953 = vadd.f32 %v1599, %v1856
      %v1954 = vadd.f32 %v1600, %v1860
      %v1955 = vadd.f32 %v1601, %v1862
      %v1956 = vadd.f32 %v1602, %v1866
      %v1957 = vadd.f32 %v1603, %v1868
      %v1958 = vadd.f32 %v1604, %v1872
      %v1959 = vadd.f32 %v1605, %v1874
      %v1960 = vadd.f32 %v1606, %v1878
      %v1961 = vadd.f32 %v1607, %v1880
      %v1962 = vadd.f32 %v1608, %v1884
      %v1963 = vadd.f32 %v1609, %v1886
      %v1964 = vadd.f32 %v1610, %v1890
      %v1965 = vadd.f32 %v1611, %v1892
      %v1966 = vadd.f32 %v1612, %v1896
      %v1967 = vadd.f32 %v1613, %v1898
      %v1968 = vadd.f32 %v1614, %v1902
      %v1969 = vadd.f32 %v1615, %v1904
      %v1972 = vrot.slane %v407, 1
      %v1973 = vrot.slane %v340, 1
      %v1974 = vsel %vm489, %v1972, %v1973
      %v1975 = vrot.slane %v424, 1
      %v1976 = vsel %vm489, %v1973, %v1975
      %s1979 = scalar_lea.vmem %s1, 1024
      %v1980 = vld [vmem:[%s1979] sm:$0xff]
      %v1981 = vld [vmem:[%s1979 + $0x8] sm:$0xff]
      %v1982 = vld [vmem:[%s1979 + $0x10] sm:$0xff]
      %v1983 = vld [vmem:[%s1979 + $0x18] sm:$0xff]
      %v1984 = vld [vmem:[%s1979 + $0x20] sm:$0xff]
      %v1985 = vld [vmem:[%s1979 + $0x28] sm:$0xff]
      %v1986 = vld [vmem:[%s1979 + $0x30] sm:$0xff]
      %v1987 = vld [vmem:[%s1979 + $0x38] sm:$0xff]
      %v1988 = vld [vmem:[%s1979 + $0x40] sm:$0xff]
      %v1989 = vld [vmem:[%s1979 + $0x48] sm:$0xff]
      %v1990 = vld [vmem:[%s1979 + $0x50] sm:$0xff]
      %v1991 = vld [vmem:[%s1979 + $0x58] sm:$0xff]
      %v1992 = vld [vmem:[%s1979 + $0x60] sm:$0xff]
      %v1993 = vld [vmem:[%s1979 + $0x68] sm:$0xff]
      %v1994 = vld [vmem:[%s1979 + $0x70] sm:$0xff]
      %v1995 = vld [vmem:[%s1979 + $0x78] sm:$0xff]
      %v1996 = vld [vmem:[%s1979 + $0x80] sm:$0xff]
      %v1997 = vld [vmem:[%s1979 + $0x88] sm:$0xff]
      %v1998 = vld [vmem:[%s1979 + $0x90] sm:$0xff]
      %v1999 = vld [vmem:[%s1979 + $0x98] sm:$0xff]
      %v2000 = vld [vmem:[%s1979 + $0xa0] sm:$0xff]
      %v2001 = vld [vmem:[%s1979 + $0xa8] sm:$0xff]
      %v2002 = vld [vmem:[%s1979 + $0xb0] sm:$0xff]
      %v2003 = vld [vmem:[%s1979 + $0xb8] sm:$0xff]
      %v2004 = vld [vmem:[%s1979 + $0xc0] sm:$0xff]
      %v2005 = vld [vmem:[%s1979 + $0xc8] sm:$0xff]
      %v2006 = vld [vmem:[%s1979 + $0xd0] sm:$0xff]
      %v2007 = vld [vmem:[%s1979 + $0xd8] sm:$0xff]
      %v2008 = vld [vmem:[%s1979 + $0xe0] sm:$0xff]
      %v2009 = vld [vmem:[%s1979 + $0xe8] sm:$0xff]
      %v2010 = vld [vmem:[%s1979 + $0xf0] sm:$0xff]
      %v2011 = vld [vmem:[%s1979 + $0xf8] sm:$0xff]
      %2012 = vmatprep.subr.mxu0 %v1981
      %2013 = vmatpush1.msra.mxu0 %v1980
      %2014 = vmatprep.subr.mxu0 %v1983
      %2015 = vmatpush1.msra.mxu0 %v1982
      %2016 = vmatprep.subr.mxu0 %v1985
      %2017 = vmatpush1.msra.mxu0 %v1984
      %2018 = vmatprep.subr.mxu0 %v1987
      %2019 = vmatpush1.msra.mxu0 %v1986
      %2020 = vmatprep.subr.mxu0 %v1989
      %2021 = vmatpush1.msra.mxu0 %v1988
      %2022 = vmatprep.subr.mxu0 %v1991
      %2023 = vmatpush1.msra.mxu0 %v1990
      %2024 = vmatprep.subr.mxu0 %v1993
      %2025 = vmatpush1.msra.mxu0 %v1992
      %2026 = vmatprep.subr.mxu0 %v1995
      %2027 = vmatpush1.msra.mxu0 %v1994
      %2028 = vmatprep.subr.mxu0 %v1997
      %2029 = vmatpush1.msra.mxu0 %v1996
      %2030 = vmatprep.subr.mxu0 %v1999
      %2031 = vmatpush1.msra.mxu0 %v1998
      %2032 = vmatprep.subr.mxu0 %v2001
      %2033 = vmatpush1.msra.mxu0 %v2000
      %2034 = vmatprep.subr.mxu0 %v2003
      %2035 = vmatpush1.msra.mxu0 %v2002
      %2036 = vmatprep.subr.mxu0 %v2005
      %2037 = vmatpush1.msra.mxu0 %v2004
      %2038 = vmatprep.subr.mxu0 %v2007
      %2039 = vmatpush1.msra.mxu0 %v2006
      %2040 = vmatprep.subr.mxu0 %v2009
      %2041 = vmatpush1.msra.mxu0 %v2008
      %2042 = vmatprep.subr.mxu0 %v2011
      %2043 = vmatpush1.msra.mxu0 %v2010
      %2044 = vmatprep.subr.mxu0 0.0
      %2045 = vmatpush1.msra.mxu0 0.0
      %2046 = vmatprep.subr.mxu0 0.0
      %2047 = vmatpush1.msra.mxu0 0.0
      %2048 = vmatprep.subr.mxu0 0.0
      %2049 = vmatpush1.msra.mxu0 0.0
      %2050 = vmatprep.subr.mxu0 0.0
      %2051 = vmatpush1.msra.mxu0 0.0
      %2052 = vmatprep.subr.mxu0 0.0
      %2053 = vmatpush1.msra.mxu0 0.0
      %2054 = vmatprep.subr.mxu0 0.0
      %2055 = vmatpush1.msra.mxu0 0.0
      %2056 = vmatprep.subr.mxu0 0.0
      %2057 = vmatpush1.msra.mxu0 0.0
      %2058 = vmatprep.subr.mxu0 0.0
      %2059 = vmatpush1.msra.mxu0 0.0
      %2060 = vmatprep.subr.mxu0 0.0
      %2061 = vmatpush1.msra.mxu0 0.0
      %2062 = vmatprep.subr.mxu0 0.0
      %2063 = vmatpush1.msra.mxu0 0.0
      %2064 = vmatprep.subr.mxu0 0.0
      %2065 = vmatpush1.msra.mxu0 0.0
      %2066 = vmatprep.subr.mxu0 0.0
      %2067 = vmatpush1.msra.mxu0 0.0
      %2068 = vmatprep.subr.mxu0 0.0
      %2069 = vmatpush1.msra.mxu0 0.0
      %2070 = vmatprep.subr.mxu0 0.0
      %2071 = vmatpush1.msra.mxu0 0.0
      %2072 = vmatprep.subr.mxu0 0.0
      %2073 = vmatpush1.msra.mxu0 0.0
      %2074 = vmatprep.subr.mxu0 0.0
      %2075 = vmatpush1.msra.mxu0 0.0
      %2076 = vmatprep.mubr.f32.mxu0 0.0
      %2077 = vmatmul.mubr.f32.gmra.mrb[0].mxu0 %v497
      %v2078 = vpop.f32.mrb[0].mxu0
      %v2079 = vadd.f32 0.0, %v2078
      %v2080 = vpop.f32.mrb[0].mxu0
      %v2081 = vadd.f32 0.0, %v2080
      %2082 = vmatprep.mubr.f32.mxu0 0.0
      %2083 = vmatmul.mubr.f32.gmra.mrb[0].mxu0 %v499
      %v2084 = vpop.f32.mrb[0].mxu0
      %v2085 = vadd.f32 0.0, %v2084
      %v2086 = vpop.f32.mrb[0].mxu0
      %v2087 = vadd.f32 0.0, %v2086
      %2088 = vmatprep.mubr.f32.mxu0 0.0
      %2089 = vmatmul.mubr.f32.gmra.mrb[0].mxu0 %v502
      %v2090 = vpop.f32.mrb[0].mxu0
      %v2091 = vadd.f32 0.0, %v2090
      %v2092 = vpop.f32.mrb[0].mxu0
      %v2093 = vadd.f32 0.0, %v2092
      %2094 = vmatprep.mubr.f32.mxu0 0.0
      %2095 = vmatmul.mubr.f32.gmra.mrb[0].mxu0 %v504
      %v2096 = vpop.f32.mrb[0].mxu0
      %v2097 = vadd.f32 0.0, %v2096
      %v2098 = vpop.f32.mrb[0].mxu0
      %v2099 = vadd.f32 0.0, %v2098
      %2100 = vmatprep.mubr.f32.mxu0 0.0
      %2101 = vmatmul.mubr.f32.gmra.mrb[0].mxu0 %v507
      %v2102 = vpop.f32.mrb[0].mxu0
      %v2103 = vadd.f32 0.0, %v2102
      %v2104 = vpop.f32.mrb[0].mxu0
      %v2105 = vadd.f32 0.0, %v2104
      %2106 = vmatprep.mubr.f32.mxu0 0.0
      %2107 = vmatmul.mubr.f32.gmra.mrb[0].mxu0 %v509
      %v2108 = vpop.f32.mrb[0].mxu0
      %v2109 = vadd.f32 0.0, %v2108
      %v2110 = vpop.f32.mrb[0].mxu0
      %v2111 = vadd.f32 0.0, %v2110
      %2112 = vmatprep.mubr.f32.mxu0 0.0
      %2113 = vmatmul.mubr.f32.gmra.mrb[0].mxu0 %v512
      %v2114 = vpop.f32.mrb[0].mxu0
      %v2115 = vadd.f32 0.0, %v2114
      %v2116 = vpop.f32.mrb[0].mxu0
      %v2117 = vadd.f32 0.0, %v2116
      %2118 = vmatprep.mubr.f32.mxu0 0.0
      %2119 = vmatmul.mubr.f32.gmra.mrb[0].mxu0 %v514
      %v2120 = vpop.f32.mrb[0].mxu0
      %v2121 = vadd.f32 0.0, %v2120
      %v2122 = vpop.f32.mrb[0].mxu0
      %v2123 = vadd.f32 0.0, %v2122
      %2124 = vmatprep.mubr.f32.mxu0 0.0
      %2125 = vmatmul.mubr.f32.gmra.mrb[0].mxu0 %v517
      %v2126 = vpop.f32.mrb[0].mxu0
      %v2127 = vadd.f32 0.0, %v2126
      %v2128 = vpop.f32.mrb[0].mxu0
      %v2129 = vadd.f32 0.0, %v2128
      %2130 = vmatprep.mubr.f32.mxu0 0.0
      %2131 = vmatmul.mubr.f32.gmra.mrb[0].mxu0 %v519
      %v2132 = vpop.f32.mrb[0].mxu0
      %v2133 = vadd.f32 0.0, %v2132
      %v2134 = vpop.f32.mrb[0].mxu0
      %v2135 = vadd.f32 0.0, %v2134
      %2136 = vmatprep.mubr.f32.mxu0 0.0
      %2137 = vmatmul.mubr.f32.gmra.mrb[0].mxu0 %v522
      %v2138 = vpop.f32.mrb[0].mxu0
      %v2139 = vadd.f32 0.0, %v2138
      %v2140 = vpop.f32.mrb[0].mxu0
      %v2141 = vadd.f32 0.0, %v2140
      %2142 = vmatprep.mubr.f32.mxu0 0.0
      %2143 = vmatmul.mubr.f32.gmra.mrb[0].mxu0 %v524
      %v2144 = vpop.f32.mrb[0].mxu0
      %v2145 = vadd.f32 0.0, %v2144
      %v2146 = vpop.f32.mrb[0].mxu0
      %v2147 = vadd.f32 0.0, %v2146
      %2148 = vmatprep.mubr.f32.mxu0 0.0
      %2149 = vmatmul.mubr.f32.gmra.mrb[0].mxu0 %v527
      %v2150 = vpop.f32.mrb[0].mxu0
      %v2151 = vadd.f32 0.0, %v2150
      %v2152 = vpop.f32.mrb[0].mxu0
      %v2153 = vadd.f32 0.0, %v2152
      %2154 = vmatprep.mubr.f32.mxu0 0.0
      %2155 = vmatmul.mubr.f32.gmra.mrb[0].mxu0 %v529
      %v2156 = vpop.f32.mrb[0].mxu0
      %v2157 = vadd.f32 0.0, %v2156
      %v2158 = vpop.f32.mrb[0].mxu0
      %v2159 = vadd.f32 0.0, %v2158
      %2160 = vmatprep.mubr.f32.mxu0 0.0
      %2161 = vmatmul.mubr.f32.gmra.mrb[0].mxu0 %v532
      %v2162 = vpop.f32.mrb[0].mxu0
      %v2163 = vadd.f32 0.0, %v2162
      %v2164 = vpop.f32.mrb[0].mxu0
      %v2165 = vadd.f32 0.0, %v2164
      %2166 = vmatprep.mubr.f32.mxu0 0.0
      %2167 = vmatmul.mubr.f32.gmra.mrb[0].mxu0 %v534
      %v2168 = vpop.f32.mrb[0].mxu0
      %v2169 = vadd.f32 0.0, %v2168
      %v2170 = vpop.f32.mrb[0].mxu0
      %v2171 = vadd.f32 0.0, %v2170
      %2172 = vmatprep.mubr.f32.mxu0 0.0
      %2173 = vmatmul.mubr.f32.gmra.mrb[0].mxu0 %v537
      %v2174 = vpop.f32.mrb[0].mxu0
      %v2175 = vadd.f32 0.0, %v2174
      %v2176 = vpop.f32.mrb[0].mxu0
      %v2177 = vadd.f32 0.0, %v2176
      %2178 = vmatprep.mubr.f32.mxu0 0.0
      %2179 = vmatmul.mubr.f32.gmra.mrb[0].mxu0 %v539
      %v2180 = vpop.f32.mrb[0].mxu0
      %v2181 = vadd.f32 0.0, %v2180
      %v2182 = vpop.f32.mrb[0].mxu0
      %v2183 = vadd.f32 0.0, %v2182
      %2184 = vmatprep.mubr.f32.mxu0 0.0
      %2185 = vmatmul.mubr.f32.gmra.mrb[0].mxu0 %v542
      %v2186 = vpop.f32.mrb[0].mxu0
      %v2187 = vadd.f32 0.0, %v2186
      %v2188 = vpop.f32.mrb[0].mxu0
      %v2189 = vadd.f32 0.0, %v2188
      %2190 = vmatprep.mubr.f32.mxu0 0.0
      %2191 = vmatmul.mubr.f32.gmra.mrb[0].mxu0 %v544
      %v2192 = vpop.f32.mrb[0].mxu0
      %v2193 = vadd.f32 0.0, %v2192
      %v2194 = vpop.f32.mrb[0].mxu0
      %v2195 = vadd.f32 0.0, %v2194
      %2196 = vmatprep.mubr.f32.mxu0 0.0
      %2197 = vmatmul.mubr.f32.gmra.mrb[0].mxu0 %v547
      %v2198 = vpop.f32.mrb[0].mxu0
      %v2199 = vadd.f32 0.0, %v2198
      %v2200 = vpop.f32.mrb[0].mxu0
      %v2201 = vadd.f32 0.0, %v2200
      %2202 = vmatprep.mubr.f32.mxu0 0.0
      %2203 = vmatmul.mubr.f32.gmra.mrb[0].mxu0 %v549
      %v2204 = vpop.f32.mrb[0].mxu0
      %v2205 = vadd.f32 0.0, %v2204
      %v2206 = vpop.f32.mrb[0].mxu0
      %v2207 = vadd.f32 0.0, %v2206
      %2208 = vmatprep.mubr.f32.mxu0 0.0
      %2209 = vmatmul.mubr.f32.gmra.mrb[0].mxu0 %v552
      %v2210 = vpop.f32.mrb[0].mxu0
      %v2211 = vadd.f32 0.0, %v2210
      %v2212 = vpop.f32.mrb[0].mxu0
      %v2213 = vadd.f32 0.0, %v2212
      %2214 = vmatprep.mubr.f32.mxu0 0.0
      %2215 = vmatmul.mubr.f32.gmra.mrb[0].mxu0 %v554
      %v2216 = vpop.f32.mrb[0].mxu0
      %v2217 = vadd.f32 0.0, %v2216
      %v2218 = vpop.f32.mrb[0].mxu0
      %v2219 = vadd.f32 0.0, %v2218
      %2220 = vmatprep.mubr.f32.mxu0 0.0
      %2221 = vmatmul.mubr.f32.gmra.mrb[0].mxu0 %v557
      %v2222 = vpop.f32.mrb[0].mxu0
      %v2223 = vadd.f32 0.0, %v2222
      %v2224 = vpop.f32.mrb[0].mxu0
      %v2225 = vadd.f32 0.0, %v2224
      %2226 = vmatprep.mubr.f32.mxu0 0.0
      %2227 = vmatmul.mubr.f32.gmra.mrb[0].mxu0 %v559
      %v2228 = vpop.f32.mrb[0].mxu0
      %v2229 = vadd.f32 0.0, %v2228
      %v2230 = vpop.f32.mrb[0].mxu0
      %v2231 = vadd.f32 0.0, %v2230
      %2232 = vmatprep.mubr.f32.mxu0 0.0
      %2233 = vmatmul.mubr.f32.gmra.mrb[0].mxu0 %v562
      %v2234 = vpop.f32.mrb[0].mxu0
      %v2235 = vadd.f32 0.0, %v2234
      %v2236 = vpop.f32.mrb[0].mxu0
      %v2237 = vadd.f32 0.0, %v2236
      %2238 = vmatprep.mubr.f32.mxu0 0.0
      %2239 = vmatmul.mubr.f32.gmra.mrb[0].mxu0 %v564
      %v2240 = vpop.f32.mrb[0].mxu0
      %v2241 = vadd.f32 0.0, %v2240
      %v2242 = vpop.f32.mrb[0].mxu0
      %v2243 = vadd.f32 0.0, %v2242
      %2244 = vmatprep.mubr.f32.mxu0 0.0
      %2245 = vmatmul.mubr.f32.gmra.mrb[0].mxu0 %v567
      %v2246 = vpop.f32.mrb[0].mxu0
      %v2247 = vadd.f32 0.0, %v2246
      %v2248 = vpop.f32.mrb[0].mxu0
      %v2249 = vadd.f32 0.0, %v2248
      %2250 = vmatprep.mubr.f32.mxu0 0.0
      %2251 = vmatmul.mubr.f32.gmra.mrb[0].mxu0 %v569
      %v2252 = vpop.f32.mrb[0].mxu0
      %v2253 = vadd.f32 0.0, %v2252
      %v2254 = vpop.f32.mrb[0].mxu0
      %v2255 = vadd.f32 0.0, %v2254
      %2256 = vmatprep.mubr.f32.mxu0 0.0
      %2257 = vmatmul.mubr.f32.gmra.mrb[0].mxu0 %v1974
      %v2258 = vpop.f32.mrb[0].mxu0
      %v2259 = vadd.f32 0.0, %v2258
      %v2260 = vpop.f32.mrb[0].mxu0
      %v2261 = vadd.f32 0.0, %v2260
      %2262 = vmatprep.mubr.f32.mxu0 0.0
      %2263 = vmatmul.mubr.f32.gmra.mrb[0].mxu0 %v1976
      %v2264 = vpop.f32.mrb[0].mxu0
      %v2265 = vadd.f32 0.0, %v2264
      %v2266 = vpop.f32.mrb[0].mxu0
      %v2267 = vadd.f32 0.0, %v2266
      %2268 = vdwg.mxu0
      %v2269 = vadd.f32 %v1906, %v2079
      %v2270 = vadd.f32 %v1907, %v2081
      %v2271 = vadd.f32 %v1908, %v2085
      %v2272 = vadd.f32 %v1909, %v2087
      %v2273 = vadd.f32 %v1910, %v2091
      %v2274 = vadd.f32 %v1911, %v2093
      %v2275 = vadd.f32 %v1912, %v2097
      %v2276 = vadd.f32 %v1913, %v2099
      %v2277 = vadd.f32 %v1914, %v2103
      %v2278 = vadd.f32 %v1915, %v2105
      %v2279 = vadd.f32 %v1916, %v2109
      %v2280 = vadd.f32 %v1917, %v2111
      %v2281 = vadd.f32 %v1918, %v2115
      %v2282 = vadd.f32 %v1919, %v2117
      %v2283 = vadd.f32 %v1920, %v2121
      %v2284 = vadd.f32 %v1921, %v2123
      %v2285 = vadd.f32 %v1922, %v2127
      %v2286 = vadd.f32 %v1923, %v2129
      %v2287 = vadd.f32 %v1924, %v2133
      %v2288 = vadd.f32 %v1925, %v2135
      %v2289 = vadd.f32 %v1926, %v2139
      %v2290 = vadd.f32 %v1927, %v2141
      %v2291 = vadd.f32 %v1928, %v2145
      %v2292 = vadd.f32 %v1929, %v2147
      %v2293 = vadd.f32 %v1930, %v2151
      %v2294 = vadd.f32 %v1931, %v2153
      %v2295 = vadd.f32 %v1932, %v2157
      %v2296 = vadd.f32 %v1933, %v2159
      %v2297 = vadd.f32 %v1934, %v2163
      %v2298 = vadd.f32 %v1935, %v2165
      %v2299 = vadd.f32 %v1936, %v2169
      %v2300 = vadd.f32 %v1937, %v2171
      %v2301 = vadd.f32 %v1938, %v2175
      %v2302 = vadd.f32 %v1939, %v2177
      %v2303 = vadd.f32 %v1940, %v2181
      %v2304 = vadd.f32 %v1941, %v2183
      %v2305 = vadd.f32 %v1942, %v2187
      %v2306 = vadd.f32 %v1943, %v2189
      %v2307 = vadd.f32 %v1944, %v2193
      %v2308 = vadd.f32 %v1945, %v2195
      %v2309 = vadd.f32 %v1946, %v2199
      %v2310 = vadd.f32 %v1947, %v2201
      %v2311 = vadd.f32 %v1948, %v2205
      %v2312 = vadd.f32 %v1949, %v2207
      %v2313 = vadd.f32 %v1950, %v2211
      %v2314 = vadd.f32 %v1951, %v2213
      %v2315 = vadd.f32 %v1952, %v2217
      %v2316 = vadd.f32 %v1953, %v2219
      %v2317 = vadd.f32 %v1954, %v2223
      %v2318 = vadd.f32 %v1955, %v2225
      %v2319 = vadd.f32 %v1956, %v2229
      %v2320 = vadd.f32 %v1957, %v2231
      %v2321 = vadd.f32 %v1958, %v2235
      %v2322 = vadd.f32 %v1959, %v2237
      %v2323 = vadd.f32 %v1960, %v2241
      %v2324 = vadd.f32 %v1961, %v2243
      %v2325 = vadd.f32 %v1962, %v2247
      %v2326 = vadd.f32 %v1963, %v2249
      %v2327 = vadd.f32 %v1964, %v2253
      %v2328 = vadd.f32 %v1965, %v2255
      %v2329 = vadd.f32 %v1966, %v2259
      %v2330 = vadd.f32 %v1967, %v2261
      %v2331 = vadd.f32 %v1968, %v2265
      %v2332 = vadd.f32 %v1969, %v2267
      %v2333 = vrot.slane %v407, 2
      %v2334 = vrot.slane %v340, 2
      %v2335 = vsel %vm1149, %v2333, %v2334
      %v2336 = vrot.slane %v424, 2
      %v2337 = vsel %vm1149, %v2334, %v2336
      %s2340 = scalar_lea.vmem %s1, 1280
      %v2341 = vld [vmem:[%s2340] sm:$0xff]
      %v2342 = vld [vmem:[%s2340 + $0x8] sm:$0xff]
      %v2343 = vld [vmem:[%s2340 + $0x10] sm:$0xff]
      %v2344 = vld [vmem:[%s2340 + $0x18] sm:$0xff]
      %v2345 = vld [vmem:[%s2340 + $0x20] sm:$0xff]
      %v2346 = vld [vmem:[%s2340 + $0x28] sm:$0xff]
      %v2347 = vld [vmem:[%s2340 + $0x30] sm:$0xff]
      %v2348 = vld [vmem:[%s2340 + $0x38] sm:$0xff]
      %v2349 = vld [vmem:[%s2340 + $0x40] sm:$0xff]
      %v2350 = vld [vmem:[%s2340 + $0x48] sm:$0xff]
      %v2351 = vld [vmem:[%s2340 + $0x50] sm:$0xff]
      %v2352 = vld [vmem:[%s2340 + $0x58] sm:$0xff]
      %v2353 = vld [vmem:[%s2340 + $0x60] sm:$0xff]
      %v2354 = vld [vmem:[%s2340 + $0x68] sm:$0xff]
      %v2355 = vld [vmem:[%s2340 + $0x70] sm:$0xff]
      %v2356 = vld [vmem:[%s2340 + $0x78] sm:$0xff]
      %v2357 = vld [vmem:[%s2340 + $0x80] sm:$0xff]
      %v2358 = vld [vmem:[%s2340 + $0x88] sm:$0xff]
      %v2359 = vld [vmem:[%s2340 + $0x90] sm:$0xff]
      %v2360 = vld [vmem:[%s2340 + $0x98] sm:$0xff]
      %v2361 = vld [vmem:[%s2340 + $0xa0] sm:$0xff]
      %v2362 = vld [vmem:[%s2340 + $0xa8] sm:$0xff]
      %v2363 = vld [vmem:[%s2340 + $0xb0] sm:$0xff]
      %v2364 = vld [vmem:[%s2340 + $0xb8] sm:$0xff]
      %v2365 = vld [vmem:[%s2340 + $0xc0] sm:$0xff]
      %v2366 = vld [vmem:[%s2340 + $0xc8] sm:$0xff]
      %v2367 = vld [vmem:[%s2340 + $0xd0] sm:$0xff]
      %v2368 = vld [vmem:[%s2340 + $0xd8] sm:$0xff]
      %v2369 = vld [vmem:[%s2340 + $0xe0] sm:$0xff]
      %v2370 = vld [vmem:[%s2340 + $0xe8] sm:$0xff]
      %v2371 = vld [vmem:[%s2340 + $0xf0] sm:$0xff]
      %v2372 = vld [vmem:[%s2340 + $0xf8] sm:$0xff]
      %2373 = vmatprep.subr.mxu0 %v2342
      %2374 = vmatpush1.msra.mxu0 %v2341
      %2375 = vmatprep.subr.mxu0 %v2344
      %2376 = vmatpush1.msra.mxu0 %v2343
      %2377 = vmatprep.subr.mxu0 %v2346
      %2378 = vmatpush1.msra.mxu0 %v2345
      %2379 = vmatprep.subr.mxu0 %v2348
      %2380 = vmatpush1.msra.mxu0 %v2347
      %2381 = vmatprep.subr.mxu0 %v2350
      %2382 = vmatpush1.msra.mxu0 %v2349
      %2383 = vmatprep.subr.mxu0 %v2352
      %2384 = vmatpush1.msra.mxu0 %v2351
      %2385 = vmatprep.subr.mxu0 %v2354
      %2386 = vmatpush1.msra.mxu0 %v2353
      %2387 = vmatprep.subr.mxu0 %v2356
      %2388 = vmatpush1.msra.mxu0 %v2355
      %2389 = vmatprep.subr.mxu0 %v2358
      %2390 = vmatpush1.msra.mxu0 %v2357
      %2391 = vmatprep.subr.mxu0 %v2360
      %2392 = vmatpush1.msra.mxu0 %v2359
      %2393 = vmatprep.subr.mxu0 %v2362
      %2394 = vmatpush1.msra.mxu0 %v2361
      %2395 = vmatprep.subr.mxu0 %v2364
      %2396 = vmatpush1.msra.mxu0 %v2363
      %2397 = vmatprep.subr.mxu0 %v2366
      %2398 = vmatpush1.msra.mxu0 %v2365
      %2399 = vmatprep.subr.mxu0 %v2368
      %2400 = vmatpush1.msra.mxu0 %v2367
      %2401 = vmatprep.subr.mxu0 %v2370
      %2402 = vmatpush1.msra.mxu0 %v2369
      %2403 = vmatprep.subr.mxu0 %v2372
      %2404 = vmatpush1.msra.mxu0 %v2371
      %2405 = vmatprep.subr.mxu0 0.0
      %2406 = vmatpush1.msra.mxu0 0.0
      %2407 = vmatprep.subr.mxu0 0.0
      %2408 = vmatpush1.msra.mxu0 0.0
      %2409 = vmatprep.subr.mxu0 0.0
      %2410 = vmatpush1.msra.mxu0 0.0
      %2411 = vmatprep.subr.mxu0 0.0
      %2412 = vmatpush1.msra.mxu0 0.0
      %2413 = vmatprep.subr.mxu0 0.0
      %2414 = vmatpush1.msra.mxu0 0.0
      %2415 = vmatprep.subr.mxu0 0.0
      %2416 = vmatpush1.msra.mxu0 0.0
      %2417 = vmatprep.subr.mxu0 0.0
      %2418 = vmatpush1.msra.mxu0 0.0
      %2419 = vmatprep.subr.mxu0 0.0
      %2420 = vmatpush1.msra.mxu0 0.0
      %2421 = vmatprep.subr.mxu0 0.0
      %2422 = vmatpush1.msra.mxu0 0.0
      %2423 = vmatprep.subr.mxu0 0.0
      %2424 = vmatpush1.msra.mxu0 0.0
      %2425 = vmatprep.subr.mxu0 0.0
      %2426 = vmatpush1.msra.mxu0 0.0
      %2427 = vmatprep.subr.mxu0 0.0
      %2428 = vmatpush1.msra.mxu0 0.0
      %2429 = vmatprep.subr.mxu0 0.0
      %2430 = vmatpush1.msra.mxu0 0.0
      %2431 = vmatprep.subr.mxu0 0.0
      %2432 = vmatpush1.msra.mxu0 0.0
      %2433 = vmatprep.subr.mxu0 0.0
      %2434 = vmatpush1.msra.mxu0 0.0
      %2435 = vmatprep.subr.mxu0 0.0
      %2436 = vmatpush1.msra.mxu0 0.0
      %2437 = vmatprep.mubr.f32.mxu0 0.0
      %2438 = vmatmul.mubr.f32.gmra.mrb[0].mxu0 %v1157
      %v2439 = vpop.f32.mrb[0].mxu0
      %v2440 = vadd.f32 0.0, %v2439
      %v2441 = vpop.f32.mrb[0].mxu0
      %v2442 = vadd.f32 0.0, %v2441
      %2443 = vmatprep.mubr.f32.mxu0 0.0
      %2444 = vmatmul.mubr.f32.gmra.mrb[0].mxu0 %v1159
      %v2445 = vpop.f32.mrb[0].mxu0
      %v2446 = vadd.f32 0.0, %v2445
      %v2447 = vpop.f32.mrb[0].mxu0
      %v2448 = vadd.f32 0.0, %v2447
      %2449 = vmatprep.mubr.f32.mxu0 0.0
      %2450 = vmatmul.mubr.f32.gmra.mrb[0].mxu0 %v1162
      %v2451 = vpop.f32.mrb[0].mxu0
      %v2452 = vadd.f32 0.0, %v2451
      %v2453 = vpop.f32.mrb[0].mxu0
      %v2454 = vadd.f32 0.0, %v2453
      %2455 = vmatprep.mubr.f32.mxu0 0.0
      %2456 = vmatmul.mubr.f32.gmra.mrb[0].mxu0 %v1164
      %v2457 = vpop.f32.mrb[0].mxu0
      %v2458 = vadd.f32 0.0, %v2457
      %v2459 = vpop.f32.mrb[0].mxu0
      %v2460 = vadd.f32 0.0, %v2459
      %2461 = vmatprep.mubr.f32.mxu0 0.0
      %2462 = vmatmul.mubr.f32.gmra.mrb[0].mxu0 %v1167
      %v2463 = vpop.f32.mrb[0].mxu0
      %v2464 = vadd.f32 0.0, %v2463
      %v2465 = vpop.f32.mrb[0].mxu0
      %v2466 = vadd.f32 0.0, %v2465
      %2467 = vmatprep.mubr.f32.mxu0 0.0
      %2468 = vmatmul.mubr.f32.gmra.mrb[0].mxu0 %v1169
      %v2469 = vpop.f32.mrb[0].mxu0
      %v2470 = vadd.f32 0.0, %v2469
      %v2471 = vpop.f32.mrb[0].mxu0
      %v2472 = vadd.f32 0.0, %v2471
      %2473 = vmatprep.mubr.f32.mxu0 0.0
      %2474 = vmatmul.mubr.f32.gmra.mrb[0].mxu0 %v1172
      %v2475 = vpop.f32.mrb[0].mxu0
      %v2476 = vadd.f32 0.0, %v2475
      %v2477 = vpop.f32.mrb[0].mxu0
      %v2478 = vadd.f32 0.0, %v2477
      %2479 = vmatprep.mubr.f32.mxu0 0.0
      %2480 = vmatmul.mubr.f32.gmra.mrb[0].mxu0 %v1174
      %v2481 = vpop.f32.mrb[0].mxu0
      %v2482 = vadd.f32 0.0, %v2481
      %v2483 = vpop.f32.mrb[0].mxu0
      %v2484 = vadd.f32 0.0, %v2483
      %2485 = vmatprep.mubr.f32.mxu0 0.0
      %2486 = vmatmul.mubr.f32.gmra.mrb[0].mxu0 %v1177
      %v2487 = vpop.f32.mrb[0].mxu0
      %v2488 = vadd.f32 0.0, %v2487
      %v2489 = vpop.f32.mrb[0].mxu0
      %v2490 = vadd.f32 0.0, %v2489
      %2491 = vmatprep.mubr.f32.mxu0 0.0
      %2492 = vmatmul.mubr.f32.gmra.mrb[0].mxu0 %v1179
      %v2493 = vpop.f32.mrb[0].mxu0
      %v2494 = vadd.f32 0.0, %v2493
      %v2495 = vpop.f32.mrb[0].mxu0
      %v2496 = vadd.f32 0.0, %v2495
      %2497 = vmatprep.mubr.f32.mxu0 0.0
      %2498 = vmatmul.mubr.f32.gmra.mrb[0].mxu0 %v1182
      %v2499 = vpop.f32.mrb[0].mxu0
      %v2500 = vadd.f32 0.0, %v2499
      %v2501 = vpop.f32.mrb[0].mxu0
      %v2502 = vadd.f32 0.0, %v2501
      %2503 = vmatprep.mubr.f32.mxu0 0.0
      %2504 = vmatmul.mubr.f32.gmra.mrb[0].mxu0 %v1184
      %v2505 = vpop.f32.mrb[0].mxu0
      %v2506 = vadd.f32 0.0, %v2505
      %v2507 = vpop.f32.mrb[0].mxu0
      %v2508 = vadd.f32 0.0, %v2507
      %2509 = vmatprep.mubr.f32.mxu0 0.0
      %2510 = vmatmul.mubr.f32.gmra.mrb[0].mxu0 %v1187
      %v2511 = vpop.f32.mrb[0].mxu0
      %v2512 = vadd.f32 0.0, %v2511
      %v2513 = vpop.f32.mrb[0].mxu0
      %v2514 = vadd.f32 0.0, %v2513
      %2515 = vmatprep.mubr.f32.mxu0 0.0
      %2516 = vmatmul.mubr.f32.gmra.mrb[0].mxu0 %v1189
      %v2517 = vpop.f32.mrb[0].mxu0
      %v2518 = vadd.f32 0.0, %v2517
      %v2519 = vpop.f32.mrb[0].mxu0
      %v2520 = vadd.f32 0.0, %v2519
      %2521 = vmatprep.mubr.f32.mxu0 0.0
      %2522 = vmatmul.mubr.f32.gmra.mrb[0].mxu0 %v1192
      %v2523 = vpop.f32.mrb[0].mxu0
      %v2524 = vadd.f32 0.0, %v2523
      %v2525 = vpop.f32.mrb[0].mxu0
      %v2526 = vadd.f32 0.0, %v2525
      %2527 = vmatprep.mubr.f32.mxu0 0.0
      %2528 = vmatmul.mubr.f32.gmra.mrb[0].mxu0 %v1194
      %v2529 = vpop.f32.mrb[0].mxu0
      %v2530 = vadd.f32 0.0, %v2529
      %v2531 = vpop.f32.mrb[0].mxu0
      %v2532 = vadd.f32 0.0, %v2531
      %2533 = vmatprep.mubr.f32.mxu0 0.0
      %2534 = vmatmul.mubr.f32.gmra.mrb[0].mxu0 %v1197
      %v2535 = vpop.f32.mrb[0].mxu0
      %v2536 = vadd.f32 0.0, %v2535
      %v2537 = vpop.f32.mrb[0].mxu0
      %v2538 = vadd.f32 0.0, %v2537
      %2539 = vmatprep.mubr.f32.mxu0 0.0
      %2540 = vmatmul.mubr.f32.gmra.mrb[0].mxu0 %v1199
      %v2541 = vpop.f32.mrb[0].mxu0
      %v2542 = vadd.f32 0.0, %v2541
      %v2543 = vpop.f32.mrb[0].mxu0
      %v2544 = vadd.f32 0.0, %v2543
      %2545 = vmatprep.mubr.f32.mxu0 0.0
      %2546 = vmatmul.mubr.f32.gmra.mrb[0].mxu0 %v1202
      %v2547 = vpop.f32.mrb[0].mxu0
      %v2548 = vadd.f32 0.0, %v2547
      %v2549 = vpop.f32.mrb[0].mxu0
      %v2550 = vadd.f32 0.0, %v2549
      %2551 = vmatprep.mubr.f32.mxu0 0.0
      %2552 = vmatmul.mubr.f32.gmra.mrb[0].mxu0 %v1204
      %v2553 = vpop.f32.mrb[0].mxu0
      %v2554 = vadd.f32 0.0, %v2553
      %v2555 = vpop.f32.mrb[0].mxu0
      %v2556 = vadd.f32 0.0, %v2555
      %2557 = vmatprep.mubr.f32.mxu0 0.0
      %2558 = vmatmul.mubr.f32.gmra.mrb[0].mxu0 %v1207
      %v2559 = vpop.f32.mrb[0].mxu0
      %v2560 = vadd.f32 0.0, %v2559
      %v2561 = vpop.f32.mrb[0].mxu0
      %v2562 = vadd.f32 0.0, %v2561
      %2563 = vmatprep.mubr.f32.mxu0 0.0
      %2564 = vmatmul.mubr.f32.gmra.mrb[0].mxu0 %v1209
      %v2565 = vpop.f32.mrb[0].mxu0
      %v2566 = vadd.f32 0.0, %v2565
      %v2567 = vpop.f32.mrb[0].mxu0
      %v2568 = vadd.f32 0.0, %v2567
      %2569 = vmatprep.mubr.f32.mxu0 0.0
      %2570 = vmatmul.mubr.f32.gmra.mrb[0].mxu0 %v1212
      %v2571 = vpop.f32.mrb[0].mxu0
      %v2572 = vadd.f32 0.0, %v2571
      %v2573 = vpop.f32.mrb[0].mxu0
      %v2574 = vadd.f32 0.0, %v2573
      %2575 = vmatprep.mubr.f32.mxu0 0.0
      %2576 = vmatmul.mubr.f32.gmra.mrb[0].mxu0 %v1214
      %v2577 = vpop.f32.mrb[0].mxu0
      %v2578 = vadd.f32 0.0, %v2577
      %v2579 = vpop.f32.mrb[0].mxu0
      %v2580 = vadd.f32 0.0, %v2579
      %2581 = vmatprep.mubr.f32.mxu0 0.0
      %2582 = vmatmul.mubr.f32.gmra.mrb[0].mxu0 %v1217
      %v2583 = vpop.f32.mrb[0].mxu0
      %v2584 = vadd.f32 0.0, %v2583
      %v2585 = vpop.f32.mrb[0].mxu0
      %v2586 = vadd.f32 0.0, %v2585
      %2587 = vmatprep.mubr.f32.mxu0 0.0
      %2588 = vmatmul.mubr.f32.gmra.mrb[0].mxu0 %v1219
      %v2589 = vpop.f32.mrb[0].mxu0
      %v2590 = vadd.f32 0.0, %v2589
      %v2591 = vpop.f32.mrb[0].mxu0
      %v2592 = vadd.f32 0.0, %v2591
      %2593 = vmatprep.mubr.f32.mxu0 0.0
      %2594 = vmatmul.mubr.f32.gmra.mrb[0].mxu0 %v1222
      %v2595 = vpop.f32.mrb[0].mxu0
      %v2596 = vadd.f32 0.0, %v2595
      %v2597 = vpop.f32.mrb[0].mxu0
      %v2598 = vadd.f32 0.0, %v2597
      %2599 = vmatprep.mubr.f32.mxu0 0.0
      %2600 = vmatmul.mubr.f32.gmra.mrb[0].mxu0 %v1224
      %v2601 = vpop.f32.mrb[0].mxu0
      %v2602 = vadd.f32 0.0, %v2601
      %v2603 = vpop.f32.mrb[0].mxu0
      %v2604 = vadd.f32 0.0, %v2603
      %2605 = vmatprep.mubr.f32.mxu0 0.0
      %2606 = vmatmul.mubr.f32.gmra.mrb[0].mxu0 %v1227
      %v2607 = vpop.f32.mrb[0].mxu0
      %v2608 = vadd.f32 0.0, %v2607
      %v2609 = vpop.f32.mrb[0].mxu0
      %v2610 = vadd.f32 0.0, %v2609
      %2611 = vmatprep.mubr.f32.mxu0 0.0
      %2612 = vmatmul.mubr.f32.gmra.mrb[0].mxu0 %v1229
      %v2613 = vpop.f32.mrb[0].mxu0
      %v2614 = vadd.f32 0.0, %v2613
      %v2615 = vpop.f32.mrb[0].mxu0
      %v2616 = vadd.f32 0.0, %v2615
      %2617 = vmatprep.mubr.f32.mxu0 0.0
      %2618 = vmatmul.mubr.f32.gmra.mrb[0].mxu0 %v2335
      %v2619 = vpop.f32.mrb[0].mxu0
      %v2620 = vadd.f32 0.0, %v2619
      %v2621 = vpop.f32.mrb[0].mxu0
      %v2622 = vadd.f32 0.0, %v2621
      %2623 = vmatprep.mubr.f32.mxu0 0.0
      %2624 = vmatmul.mubr.f32.gmra.mrb[0].mxu0 %v2337
      %v2625 = vpop.f32.mrb[0].mxu0
      %v2626 = vadd.f32 0.0, %v2625
      %v2627 = vpop.f32.mrb[0].mxu0
      %v2628 = vadd.f32 0.0, %v2627
      %2629 = vdwg.mxu0
      %v2630 = vadd.f32 %v2269, %v2440
      %v2631 = vadd.f32 %v2270, %v2442
      %v2632 = vadd.f32 %v2271, %v2446
      %v2633 = vadd.f32 %v2272, %v2448
      %v2634 = vadd.f32 %v2273, %v2452
      %v2635 = vadd.f32 %v2274, %v2454
      %v2636 = vadd.f32 %v2275, %v2458
      %v2637 = vadd.f32 %v2276, %v2460
      %v2638 = vadd.f32 %v2277, %v2464
      %v2639 = vadd.f32 %v2278, %v2466
      %v2640 = vadd.f32 %v2279, %v2470
      %v2641 = vadd.f32 %v2280, %v2472
      %v2642 = vadd.f32 %v2281, %v2476
      %v2643 = vadd.f32 %v2282, %v2478
      %v2644 = vadd.f32 %v2283, %v2482
      %v2645 = vadd.f32 %v2284, %v2484
      %v2646 = vadd.f32 %v2285, %v2488
      %v2647 = vadd.f32 %v2286, %v2490
      %v2648 = vadd.f32 %v2287, %v2494
      %v2649 = vadd.f32 %v2288, %v2496
      %v2650 = vadd.f32 %v2289, %v2500
      %v2651 = vadd.f32 %v2290, %v2502
      %v2652 = vadd.f32 %v2291, %v2506
      %v2653 = vadd.f32 %v2292, %v2508
      %v2654 = vadd.f32 %v2293, %v2512
      %v2655 = vadd.f32 %v2294, %v2514
      %v2656 = vadd.f32 %v2295, %v2518
      %v2657 = vadd.f32 %v2296, %v2520
      %v2658 = vadd.f32 %v2297, %v2524
      %v2659 = vadd.f32 %v2298, %v2526
      %v2660 = vadd.f32 %v2299, %v2530
      %v2661 = vadd.f32 %v2300, %v2532
      %v2662 = vadd.f32 %v2301, %v2536
      %v2663 = vadd.f32 %v2302, %v2538
      %v2664 = vadd.f32 %v2303, %v2542
      %v2665 = vadd.f32 %v2304, %v2544
      %v2666 = vadd.f32 %v2305, %v2548
      %v2667 = vadd.f32 %v2306, %v2550
      %v2668 = vadd.f32 %v2307, %v2554
      %v2669 = vadd.f32 %v2308, %v2556
      %v2670 = vadd.f32 %v2309, %v2560
      %v2671 = vadd.f32 %v2310, %v2562
      %v2672 = vadd.f32 %v2311, %v2566
      %v2673 = vadd.f32 %v2312, %v2568
      %v2674 = vadd.f32 %v2313, %v2572
      %v2675 = vadd.f32 %v2314, %v2574
      %v2676 = vadd.f32 %v2315, %v2578
      %v2677 = vadd.f32 %v2316, %v2580
      %v2678 = vadd.f32 %v2317, %v2584
      %v2679 = vadd.f32 %v2318, %v2586
      %v2680 = vadd.f32 %v2319, %v2590
      %v2681 = vadd.f32 %v2320, %v2592
      %v2682 = vadd.f32 %v2321, %v2596
      %v2683 = vadd.f32 %v2322, %v2598
      %v2684 = vadd.f32 %v2323, %v2602
      %v2685 = vadd.f32 %v2324, %v2604
      %v2686 = vadd.f32 %v2325, %v2608
      %v2687 = vadd.f32 %v2326, %v2610
      %v2688 = vadd.f32 %v2327, %v2614
      %v2689 = vadd.f32 %v2328, %v2616
      %v2690 = vadd.f32 %v2329, %v2620
      %v2691 = vadd.f32 %v2330, %v2622
      %v2692 = vadd.f32 %v2331, %v2626
      %v2693 = vadd.f32 %v2332, %v2628
      %s2694 = scalar_lea.vmem %s1, 1536
      %v2695 = vld [vmem:[%s2694] sm:$0xff]
      %v2696 = vld [vmem:[%s2694 + $0x8] sm:$0xff]
      %v2697 = vld [vmem:[%s2694 + $0x10] sm:$0xff]
      %v2698 = vld [vmem:[%s2694 + $0x18] sm:$0xff]
      %v2699 = vld [vmem:[%s2694 + $0x20] sm:$0xff]
      %v2700 = vld [vmem:[%s2694 + $0x28] sm:$0xff]
      %v2701 = vld [vmem:[%s2694 + $0x30] sm:$0xff]
      %v2702 = vld [vmem:[%s2694 + $0x38] sm:$0xff]
      %v2703 = vld [vmem:[%s2694 + $0x40] sm:$0xff]
      %v2704 = vld [vmem:[%s2694 + $0x48] sm:$0xff]
      %v2705 = vld [vmem:[%s2694 + $0x50] sm:$0xff]
      %v2706 = vld [vmem:[%s2694 + $0x58] sm:$0xff]
      %v2707 = vld [vmem:[%s2694 + $0x60] sm:$0xff]
      %v2708 = vld [vmem:[%s2694 + $0x68] sm:$0xff]
      %v2709 = vld [vmem:[%s2694 + $0x70] sm:$0xff]
      %v2710 = vld [vmem:[%s2694 + $0x78] sm:$0xff]
      %v2711 = vld [vmem:[%s2694 + $0x80] sm:$0xff]
      %v2712 = vld [vmem:[%s2694 + $0x88] sm:$0xff]
      %v2713 = vld [vmem:[%s2694 + $0x90] sm:$0xff]
      %v2714 = vld [vmem:[%s2694 + $0x98] sm:$0xff]
      %v2715 = vld [vmem:[%s2694 + $0xa0] sm:$0xff]
      %v2716 = vld [vmem:[%s2694 + $0xa8] sm:$0xff]
      %v2717 = vld [vmem:[%s2694 + $0xb0] sm:$0xff]
      %v2718 = vld [vmem:[%s2694 + $0xb8] sm:$0xff]
      %v2719 = vld [vmem:[%s2694 + $0xc0] sm:$0xff]
      %v2720 = vld [vmem:[%s2694 + $0xc8] sm:$0xff]
      %v2721 = vld [vmem:[%s2694 + $0xd0] sm:$0xff]
      %v2722 = vld [vmem:[%s2694 + $0xd8] sm:$0xff]
      %v2723 = vld [vmem:[%s2694 + $0xe0] sm:$0xff]
      %v2724 = vld [vmem:[%s2694 + $0xe8] sm:$0xff]
      %v2725 = vld [vmem:[%s2694 + $0xf0] sm:$0xff]
      %v2726 = vld [vmem:[%s2694 + $0xf8] sm:$0xff]
      %2727 = vmatprep.subr.mxu0 %v2696
      %2728 = vmatpush1.msra.mxu0 %v2695
      %2729 = vmatprep.subr.mxu0 %v2698
      %2730 = vmatpush1.msra.mxu0 %v2697
      %2731 = vmatprep.subr.mxu0 %v2700
      %2732 = vmatpush1.msra.mxu0 %v2699
      %2733 = vmatprep.subr.mxu0 %v2702
      %2734 = vmatpush1.msra.mxu0 %v2701
      %2735 = vmatprep.subr.mxu0 %v2704
      %2736 = vmatpush1.msra.mxu0 %v2703
      %2737 = vmatprep.subr.mxu0 %v2706
      %2738 = vmatpush1.msra.mxu0 %v2705
      %2739 = vmatprep.subr.mxu0 %v2708
      %2740 = vmatpush1.msra.mxu0 %v2707
      %2741 = vmatprep.subr.mxu0 %v2710
      %2742 = vmatpush1.msra.mxu0 %v2709
      %2743 = vmatprep.subr.mxu0 %v2712
      %2744 = vmatpush1.msra.mxu0 %v2711
      %2745 = vmatprep.subr.mxu0 %v2714
      %2746 = vmatpush1.msra.mxu0 %v2713
      %2747 = vmatprep.subr.mxu0 %v2716
      %2748 = vmatpush1.msra.mxu0 %v2715
      %2749 = vmatprep.subr.mxu0 %v2718
      %2750 = vmatpush1.msra.mxu0 %v2717
      %2751 = vmatprep.subr.mxu0 %v2720
      %2752 = vmatpush1.msra.mxu0 %v2719
      %2753 = vmatprep.subr.mxu0 %v2722
      %2754 = vmatpush1.msra.mxu0 %v2721
      %2755 = vmatprep.subr.mxu0 %v2724
      %2756 = vmatpush1.msra.mxu0 %v2723
      %2757 = vmatprep.subr.mxu0 %v2726
      %2758 = vmatpush1.msra.mxu0 %v2725
      %2759 = vmatprep.subr.mxu0 0.0
      %2760 = vmatpush1.msra.mxu0 0.0
      %2761 = vmatprep.subr.mxu0 0.0
      %2762 = vmatpush1.msra.mxu0 0.0
      %2763 = vmatprep.subr.mxu0 0.0
      %2764 = vmatpush1.msra.mxu0 0.0
      %2765 = vmatprep.subr.mxu0 0.0
      %2766 = vmatpush1.msra.mxu0 0.0
      %2767 = vmatprep.subr.mxu0 0.0
      %2768 = vmatpush1.msra.mxu0 0.0
      %2769 = vmatprep.subr.mxu0 0.0
      %2770 = vmatpush1.msra.mxu0 0.0
      %2771 = vmatprep.subr.mxu0 0.0
      %2772 = vmatpush1.msra.mxu0 0.0
      %2773 = vmatprep.subr.mxu0 0.0
      %2774 = vmatpush1.msra.mxu0 0.0
      %2775 = vmatprep.subr.mxu0 0.0
      %2776 = vmatpush1.msra.mxu0 0.0
      %2777 = vmatprep.subr.mxu0 0.0
      %2778 = vmatpush1.msra.mxu0 0.0
      %2779 = vmatprep.subr.mxu0 0.0
      %2780 = vmatpush1.msra.mxu0 0.0
      %2781 = vmatprep.subr.mxu0 0.0
      %2782 = vmatpush1.msra.mxu0 0.0
      %2783 = vmatprep.subr.mxu0 0.0
      %2784 = vmatpush1.msra.mxu0 0.0
      %2785 = vmatprep.subr.mxu0 0.0
      %2786 = vmatpush1.msra.mxu0 0.0
      %2787 = vmatprep.subr.mxu0 0.0
      %2788 = vmatpush1.msra.mxu0 0.0
      %2789 = vmatprep.subr.mxu0 0.0
      %2790 = vmatpush1.msra.mxu0 0.0
      %2791 = vmatprep.mubr.f32.mxu0 0.0
      %2792 = vmatmul.mubr.f32.gmra.mrb[0].mxu0 %v393
      %v2793 = vpop.f32.mrb[0].mxu0
      %v2794 = vadd.f32 0.0, %v2793
      %v2795 = vpop.f32.mrb[0].mxu0
      %v2796 = vadd.f32 0.0, %v2795
      %2797 = vmatprep.mubr.f32.mxu0 0.0
      %2798 = vmatmul.mubr.f32.gmra.mrb[0].mxu0 %v298
      %v2799 = vpop.f32.mrb[0].mxu0
      %v2800 = vadd.f32 0.0, %v2799
      %v2801 = vpop.f32.mrb[0].mxu0
      %v2802 = vadd.f32 0.0, %v2801
      %2803 = vmatprep.mubr.f32.mxu0 0.0
      %2804 = vmatmul.mubr.f32.gmra.mrb[0].mxu0 %v394
      %v2805 = vpop.f32.mrb[0].mxu0
      %v2806 = vadd.f32 0.0, %v2805
      %v2807 = vpop.f32.mrb[0].mxu0
      %v2808 = vadd.f32 0.0, %v2807
      %2809 = vmatprep.mubr.f32.mxu0 0.0
      %2810 = vmatmul.mubr.f32.gmra.mrb[0].mxu0 %v301
      %v2811 = vpop.f32.mrb[0].mxu0
      %v2812 = vadd.f32 0.0, %v2811
      %v2813 = vpop.f32.mrb[0].mxu0
      %v2814 = vadd.f32 0.0, %v2813
      %2815 = vmatprep.mubr.f32.mxu0 0.0
      %2816 = vmatmul.mubr.f32.gmra.mrb[0].mxu0 %v395
      %v2817 = vpop.f32.mrb[0].mxu0
      %v2818 = vadd.f32 0.0, %v2817
      %v2819 = vpop.f32.mrb[0].mxu0
      %v2820 = vadd.f32 0.0, %v2819
      %2821 = vmatprep.mubr.f32.mxu0 0.0
      %2822 = vmatmul.mubr.f32.gmra.mrb[0].mxu0 %v304
      %v2823 = vpop.f32.mrb[0].mxu0
      %v2824 = vadd.f32 0.0, %v2823
      %v2825 = vpop.f32.mrb[0].mxu0
      %v2826 = vadd.f32 0.0, %v2825
      %2827 = vmatprep.mubr.f32.mxu0 0.0
      %2828 = vmatmul.mubr.f32.gmra.mrb[0].mxu0 %v396
      %v2829 = vpop.f32.mrb[0].mxu0
      %v2830 = vadd.f32 0.0, %v2829
      %v2831 = vpop.f32.mrb[0].mxu0
      %v2832 = vadd.f32 0.0, %v2831
      %2833 = vmatprep.mubr.f32.mxu0 0.0
      %2834 = vmatmul.mubr.f32.gmra.mrb[0].mxu0 %v307
      %v2835 = vpop.f32.mrb[0].mxu0
      %v2836 = vadd.f32 0.0, %v2835
      %v2837 = vpop.f32.mrb[0].mxu0
      %v2838 = vadd.f32 0.0, %v2837
      %2839 = vmatprep.mubr.f32.mxu0 0.0
      %2840 = vmatmul.mubr.f32.gmra.mrb[0].mxu0 %v397
      %v2841 = vpop.f32.mrb[0].mxu0
      %v2842 = vadd.f32 0.0, %v2841
      %v2843 = vpop.f32.mrb[0].mxu0
      %v2844 = vadd.f32 0.0, %v2843
      %2845 = vmatprep.mubr.f32.mxu0 0.0
      %2846 = vmatmul.mubr.f32.gmra.mrb[0].mxu0 %v310
      %v2847 = vpop.f32.mrb[0].mxu0
      %v2848 = vadd.f32 0.0, %v2847
      %v2849 = vpop.f32.mrb[0].mxu0
      %v2850 = vadd.f32 0.0, %v2849
      %2851 = vmatprep.mubr.f32.mxu0 0.0
      %2852 = vmatmul.mubr.f32.gmra.mrb[0].mxu0 %v398
      %v2853 = vpop.f32.mrb[0].mxu0
      %v2854 = vadd.f32 0.0, %v2853
      %v2855 = vpop.f32.mrb[0].mxu0
      %v2856 = vadd.f32 0.0, %v2855
      %2857 = vmatprep.mubr.f32.mxu0 0.0
      %2858 = vmatmul.mubr.f32.gmra.mrb[0].mxu0 %v313
      %v2859 = vpop.f32.mrb[0].mxu0
      %v2860 = vadd.f32 0.0, %v2859
      %v2861 = vpop.f32.mrb[0].mxu0
      %v2862 = vadd.f32 0.0, %v2861
      %2863 = vmatprep.mubr.f32.mxu0 0.0
      %2864 = vmatmul.mubr.f32.gmra.mrb[0].mxu0 %v399
      %v2865 = vpop.f32.mrb[0].mxu0
      %v2866 = vadd.f32 0.0, %v2865
      %v2867 = vpop.f32.mrb[0].mxu0
      %v2868 = vadd.f32 0.0, %v2867
      %2869 = vmatprep.mubr.f32.mxu0 0.0
      %2870 = vmatmul.mubr.f32.gmra.mrb[0].mxu0 %v316
      %v2871 = vpop.f32.mrb[0].mxu0
      %v2872 = vadd.f32 0.0, %v2871
      %v2873 = vpop.f32.mrb[0].mxu0
      %v2874 = vadd.f32 0.0, %v2873
      %2875 = vmatprep.mubr.f32.mxu0 0.0
      %2876 = vmatmul.mubr.f32.gmra.mrb[0].mxu0 %v400
      %v2877 = vpop.f32.mrb[0].mxu0
      %v2878 = vadd.f32 0.0, %v2877
      %v2879 = vpop.f32.mrb[0].mxu0
      %v2880 = vadd.f32 0.0, %v2879
      %2881 = vmatprep.mubr.f32.mxu0 0.0
      %2882 = vmatmul.mubr.f32.gmra.mrb[0].mxu0 %v319
      %v2883 = vpop.f32.mrb[0].mxu0
      %v2884 = vadd.f32 0.0, %v2883
      %v2885 = vpop.f32.mrb[0].mxu0
      %v2886 = vadd.f32 0.0, %v2885
      %2887 = vmatprep.mubr.f32.mxu0 0.0
      %2888 = vmatmul.mubr.f32.gmra.mrb[0].mxu0 %v401
      %v2889 = vpop.f32.mrb[0].mxu0
      %v2890 = vadd.f32 0.0, %v2889
      %v2891 = vpop.f32.mrb[0].mxu0
      %v2892 = vadd.f32 0.0, %v2891
      %2893 = vmatprep.mubr.f32.mxu0 0.0
      %2894 = vmatmul.mubr.f32.gmra.mrb[0].mxu0 %v322
      %v2895 = vpop.f32.mrb[0].mxu0
      %v2896 = vadd.f32 0.0, %v2895
      %v2897 = vpop.f32.mrb[0].mxu0
      %v2898 = vadd.f32 0.0, %v2897
      %2899 = vmatprep.mubr.f32.mxu0 0.0
      %2900 = vmatmul.mubr.f32.gmra.mrb[0].mxu0 %v402
      %v2901 = vpop.f32.mrb[0].mxu0
      %v2902 = vadd.f32 0.0, %v2901
      %v2903 = vpop.f32.mrb[0].mxu0
      %v2904 = vadd.f32 0.0, %v2903
      %2905 = vmatprep.mubr.f32.mxu0 0.0
      %2906 = vmatmul.mubr.f32.gmra.mrb[0].mxu0 %v325
      %v2907 = vpop.f32.mrb[0].mxu0
      %v2908 = vadd.f32 0.0, %v2907
      %v2909 = vpop.f32.mrb[0].mxu0
      %v2910 = vadd.f32 0.0, %v2909
      %2911 = vmatprep.mubr.f32.mxu0 0.0
      %2912 = vmatmul.mubr.f32.gmra.mrb[0].mxu0 %v403
      %v2913 = vpop.f32.mrb[0].mxu0
      %v2914 = vadd.f32 0.0, %v2913
      %v2915 = vpop.f32.mrb[0].mxu0
      %v2916 = vadd.f32 0.0, %v2915
      %2917 = vmatprep.mubr.f32.mxu0 0.0
      %2918 = vmatmul.mubr.f32.gmra.mrb[0].mxu0 %v328
      %v2919 = vpop.f32.mrb[0].mxu0
      %v2920 = vadd.f32 0.0, %v2919
      %v2921 = vpop.f32.mrb[0].mxu0
      %v2922 = vadd.f32 0.0, %v2921
      %2923 = vmatprep.mubr.f32.mxu0 0.0
      %2924 = vmatmul.mubr.f32.gmra.mrb[0].mxu0 %v404
      %v2925 = vpop.f32.mrb[0].mxu0
      %v2926 = vadd.f32 0.0, %v2925
      %v2927 = vpop.f32.mrb[0].mxu0
      %v2928 = vadd.f32 0.0, %v2927
      %2929 = vmatprep.mubr.f32.mxu0 0.0
      %2930 = vmatmul.mubr.f32.gmra.mrb[0].mxu0 %v331
      %v2931 = vpop.f32.mrb[0].mxu0
      %v2932 = vadd.f32 0.0, %v2931
      %v2933 = vpop.f32.mrb[0].mxu0
      %v2934 = vadd.f32 0.0, %v2933
      %2935 = vmatprep.mubr.f32.mxu0 0.0
      %2936 = vmatmul.mubr.f32.gmra.mrb[0].mxu0 %v405
      %v2937 = vpop.f32.mrb[0].mxu0
      %v2938 = vadd.f32 0.0, %v2937
      %v2939 = vpop.f32.mrb[0].mxu0
      %v2940 = vadd.f32 0.0, %v2939
      %2941 = vmatprep.mubr.f32.mxu0 0.0
      %2942 = vmatmul.mubr.f32.gmra.mrb[0].mxu0 %v334
      %v2943 = vpop.f32.mrb[0].mxu0
      %v2944 = vadd.f32 0.0, %v2943
      %v2945 = vpop.f32.mrb[0].mxu0
      %v2946 = vadd.f32 0.0, %v2945
      %2947 = vmatprep.mubr.f32.mxu0 0.0
      %2948 = vmatmul.mubr.f32.gmra.mrb[0].mxu0 %v406
      %v2949 = vpop.f32.mrb[0].mxu0
      %v2950 = vadd.f32 0.0, %v2949
      %v2951 = vpop.f32.mrb[0].mxu0
      %v2952 = vadd.f32 0.0, %v2951
      %2953 = vmatprep.mubr.f32.mxu0 0.0
      %2954 = vmatmul.mubr.f32.gmra.mrb[0].mxu0 %v337
      %v2955 = vpop.f32.mrb[0].mxu0
      %v2956 = vadd.f32 0.0, %v2955
      %v2957 = vpop.f32.mrb[0].mxu0
      %v2958 = vadd.f32 0.0, %v2957
      %2959 = vmatprep.mubr.f32.mxu0 0.0
      %2960 = vmatmul.mubr.f32.gmra.mrb[0].mxu0 %v407
      %v2961 = vpop.f32.mrb[0].mxu0
      %v2962 = vadd.f32 0.0, %v2961
      %v2963 = vpop.f32.mrb[0].mxu0
      %v2964 = vadd.f32 0.0, %v2963
      %2965 = vmatprep.mubr.f32.mxu0 0.0
      %2966 = vmatmul.mubr.f32.gmra.mrb[0].mxu0 %v340
      %v2967 = vpop.f32.mrb[0].mxu0
      %v2968 = vadd.f32 0.0, %v2967
      %v2969 = vpop.f32.mrb[0].mxu0
      %v2970 = vadd.f32 0.0, %v2969
      %2971 = vmatprep.mubr.f32.mxu0 0.0
      %2972 = vmatmul.mubr.f32.gmra.mrb[0].mxu0 %v391
      %v2973 = vpop.f32.mrb[0].mxu0
      %v2974 = vadd.f32 0.0, %v2973
      %v2975 = vpop.f32.mrb[0].mxu0
      %v2976 = vadd.f32 0.0, %v2975
      %2977 = vmatprep.mubr.f32.mxu0 0.0
      %2978 = vmatmul.mubr.f32.gmra.mrb[0].mxu0 %v292
      %v2979 = vpop.f32.mrb[0].mxu0
      %v2980 = vadd.f32 0.0, %v2979
      %v2981 = vpop.f32.mrb[0].mxu0
      %v2982 = vadd.f32 0.0, %v2981
      %2983 = vdwg.mxu0
      %v2984 = vadd.f32 %v2630, %v2794
      %v2985 = vadd.f32 %v2631, %v2796
      %v2986 = vadd.f32 %v2632, %v2800
      %v2987 = vadd.f32 %v2633, %v2802
      %v2988 = vadd.f32 %v2634, %v2806
      %v2989 = vadd.f32 %v2635, %v2808
      %v2990 = vadd.f32 %v2636, %v2812
      %v2991 = vadd.f32 %v2637, %v2814
      %v2992 = vadd.f32 %v2638, %v2818
      %v2993 = vadd.f32 %v2639, %v2820
      %v2994 = vadd.f32 %v2640, %v2824
      %v2995 = vadd.f32 %v2641, %v2826
      %v2996 = vadd.f32 %v2642, %v2830
      %v2997 = vadd.f32 %v2643, %v2832
      %v2998 = vadd.f32 %v2644, %v2836
      %v2999 = vadd.f32 %v2645, %v2838
      %v3000 = vadd.f32 %v2646, %v2842
      %v3001 = vadd.f32 %v2647, %v2844
      %v3002 = vadd.f32 %v2648, %v2848
      %v3003 = vadd.f32 %v2649, %v2850
      %v3004 = vadd.f32 %v2650, %v2854
      %v3005 = vadd.f32 %v2651, %v2856
      %v3006 = vadd.f32 %v2652, %v2860
      %v3007 = vadd.f32 %v2653, %v2862
      %v3008 = vadd.f32 %v2654, %v2866
      %v3009 = vadd.f32 %v2655, %v2868
      %v3010 = vadd.f32 %v2656, %v2872
      %v3011 = vadd.f32 %v2657, %v2874
      %v3012 = vadd.f32 %v2658, %v2878
      %v3013 = vadd.f32 %v2659, %v2880
      %v3014 = vadd.f32 %v2660, %v2884
      %v3015 = vadd.f32 %v2661, %v2886
      %v3016 = vadd.f32 %v2662, %v2890
      %v3017 = vadd.f32 %v2663, %v2892
      %v3018 = vadd.f32 %v2664, %v2896
      %v3019 = vadd.f32 %v2665, %v2898
      %v3020 = vadd.f32 %v2666, %v2902
      %v3021 = vadd.f32 %v2667, %v2904
      %v3022 = vadd.f32 %v2668, %v2908
      %v3023 = vadd.f32 %v2669, %v2910
      %v3024 = vadd.f32 %v2670, %v2914
      %v3025 = vadd.f32 %v2671, %v2916
      %v3026 = vadd.f32 %v2672, %v2920
      %v3027 = vadd.f32 %v2673, %v2922
      %v3028 = vadd.f32 %v2674, %v2926
      %v3029 = vadd.f32 %v2675, %v2928
      %v3030 = vadd.f32 %v2676, %v2932
      %v3031 = vadd.f32 %v2677, %v2934
      %v3032 = vadd.f32 %v2678, %v2938
      %v3033 = vadd.f32 %v2679, %v2940
      %v3034 = vadd.f32 %v2680, %v2944
      %v3035 = vadd.f32 %v2681, %v2946
      %v3036 = vadd.f32 %v2682, %v2950
      %v3037 = vadd.f32 %v2683, %v2952
      %v3038 = vadd.f32 %v2684, %v2956
      %v3039 = vadd.f32 %v2685, %v2958
      %v3040 = vadd.f32 %v2686, %v2962
      %v3041 = vadd.f32 %v2687, %v2964
      %v3042 = vadd.f32 %v2688, %v2968
      %v3043 = vadd.f32 %v2689, %v2970
      %v3044 = vadd.f32 %v2690, %v2974
      %v3045 = vadd.f32 %v2691, %v2976
      %v3046 = vadd.f32 %v2692, %v2980
      %v3047 = vadd.f32 %v2693, %v2982
      %s3048 = scalar_lea.vmem %s1, 1792
      %v3049 = vld [vmem:[%s3048] sm:$0xff]
      %v3050 = vld [vmem:[%s3048 + $0x8] sm:$0xff]
      %v3051 = vld [vmem:[%s3048 + $0x10] sm:$0xff]
      %v3052 = vld [vmem:[%s3048 + $0x18] sm:$0xff]
      %v3053 = vld [vmem:[%s3048 + $0x20] sm:$0xff]
      %v3054 = vld [vmem:[%s3048 + $0x28] sm:$0xff]
      %v3055 = vld [vmem:[%s3048 + $0x30] sm:$0xff]
      %v3056 = vld [vmem:[%s3048 + $0x38] sm:$0xff]
      %v3057 = vld [vmem:[%s3048 + $0x40] sm:$0xff]
      %v3058 = vld [vmem:[%s3048 + $0x48] sm:$0xff]
      %v3059 = vld [vmem:[%s3048 + $0x50] sm:$0xff]
      %v3060 = vld [vmem:[%s3048 + $0x58] sm:$0xff]
      %v3061 = vld [vmem:[%s3048 + $0x60] sm:$0xff]
      %v3062 = vld [vmem:[%s3048 + $0x68] sm:$0xff]
      %v3063 = vld [vmem:[%s3048 + $0x70] sm:$0xff]
      %v3064 = vld [vmem:[%s3048 + $0x78] sm:$0xff]
      %v3065 = vld [vmem:[%s3048 + $0x80] sm:$0xff]
      %v3066 = vld [vmem:[%s3048 + $0x88] sm:$0xff]
      %v3067 = vld [vmem:[%s3048 + $0x90] sm:$0xff]
      %v3068 = vld [vmem:[%s3048 + $0x98] sm:$0xff]
      %v3069 = vld [vmem:[%s3048 + $0xa0] sm:$0xff]
      %v3070 = vld [vmem:[%s3048 + $0xa8] sm:$0xff]
      %v3071 = vld [vmem:[%s3048 + $0xb0] sm:$0xff]
      %v3072 = vld [vmem:[%s3048 + $0xb8] sm:$0xff]
      %v3073 = vld [vmem:[%s3048 + $0xc0] sm:$0xff]
      %v3074 = vld [vmem:[%s3048 + $0xc8] sm:$0xff]
      %v3075 = vld [vmem:[%s3048 + $0xd0] sm:$0xff]
      %v3076 = vld [vmem:[%s3048 + $0xd8] sm:$0xff]
      %v3077 = vld [vmem:[%s3048 + $0xe0] sm:$0xff]
      %v3078 = vld [vmem:[%s3048 + $0xe8] sm:$0xff]
      %v3079 = vld [vmem:[%s3048 + $0xf0] sm:$0xff]
      %v3080 = vld [vmem:[%s3048 + $0xf8] sm:$0xff]
      %3081 = vmatprep.subr.mxu0 %v3050
      %3082 = vmatpush1.msra.mxu0 %v3049
      %3083 = vmatprep.subr.mxu0 %v3052
      %3084 = vmatpush1.msra.mxu0 %v3051
      %3085 = vmatprep.subr.mxu0 %v3054
      %3086 = vmatpush1.msra.mxu0 %v3053
      %3087 = vmatprep.subr.mxu0 %v3056
      %3088 = vmatpush1.msra.mxu0 %v3055
      %3089 = vmatprep.subr.mxu0 %v3058
      %3090 = vmatpush1.msra.mxu0 %v3057
      %3091 = vmatprep.subr.mxu0 %v3060
      %3092 = vmatpush1.msra.mxu0 %v3059
      %3093 = vmatprep.subr.mxu0 %v3062
      %3094 = vmatpush1.msra.mxu0 %v3061
      %3095 = vmatprep.subr.mxu0 %v3064
      %3096 = vmatpush1.msra.mxu0 %v3063
      %3097 = vmatprep.subr.mxu0 %v3066
      %3098 = vmatpush1.msra.mxu0 %v3065
      %3099 = vmatprep.subr.mxu0 %v3068
      %3100 = vmatpush1.msra.mxu0 %v3067
      %3101 = vmatprep.subr.mxu0 %v3070
      %3102 = vmatpush1.msra.mxu0 %v3069
      %3103 = vmatprep.subr.mxu0 %v3072
      %3104 = vmatpush1.msra.mxu0 %v3071
      %3105 = vmatprep.subr.mxu0 %v3074
      %3106 = vmatpush1.msra.mxu0 %v3073
      %3107 = vmatprep.subr.mxu0 %v3076
      %3108 = vmatpush1.msra.mxu0 %v3075
      %3109 = vmatprep.subr.mxu0 %v3078
      %3110 = vmatpush1.msra.mxu0 %v3077
      %3111 = vmatprep.subr.mxu0 %v3080
      %3112 = vmatpush1.msra.mxu0 %v3079
      %3113 = vmatprep.subr.mxu0 0.0
      %3114 = vmatpush1.msra.mxu0 0.0
      %3115 = vmatprep.subr.mxu0 0.0
      %3116 = vmatpush1.msra.mxu0 0.0
      %3117 = vmatprep.subr.mxu0 0.0
      %3118 = vmatpush1.msra.mxu0 0.0
      %3119 = vmatprep.subr.mxu0 0.0
      %3120 = vmatpush1.msra.mxu0 0.0
      %3121 = vmatprep.subr.mxu0 0.0
      %3122 = vmatpush1.msra.mxu0 0.0
      %3123 = vmatprep.subr.mxu0 0.0
      %3124 = vmatpush1.msra.mxu0 0.0
      %3125 = vmatprep.subr.mxu0 0.0
      %3126 = vmatpush1.msra.mxu0 0.0
      %3127 = vmatprep.subr.mxu0 0.0
      %3128 = vmatpush1.msra.mxu0 0.0
      %3129 = vmatprep.subr.mxu0 0.0
      %3130 = vmatpush1.msra.mxu0 0.0
      %3131 = vmatprep.subr.mxu0 0.0
      %3132 = vmatpush1.msra.mxu0 0.0
      %3133 = vmatprep.subr.mxu0 0.0
      %3134 = vmatpush1.msra.mxu0 0.0
      %3135 = vmatprep.subr.mxu0 0.0
      %3136 = vmatpush1.msra.mxu0 0.0
      %3137 = vmatprep.subr.mxu0 0.0
      %3138 = vmatpush1.msra.mxu0 0.0
      %3139 = vmatprep.subr.mxu0 0.0
      %3140 = vmatpush1.msra.mxu0 0.0
      %3141 = vmatprep.subr.mxu0 0.0
      %3142 = vmatpush1.msra.mxu0 0.0
      %3143 = vmatprep.subr.mxu0 0.0
      %3144 = vmatpush1.msra.mxu0 0.0
      %3145 = vmatprep.mubr.f32.mxu0 0.0
      %3146 = vmatmul.mubr.f32.gmra.mrb[0].mxu0 %v502
      %v3147 = vpop.f32.mrb[0].mxu0
      %v3148 = vadd.f32 0.0, %v3147
      %v3149 = vpop.f32.mrb[0].mxu0
      %v3150 = vadd.f32 0.0, %v3149
      %3151 = vmatprep.mubr.f32.mxu0 0.0
      %3152 = vmatmul.mubr.f32.gmra.mrb[0].mxu0 %v504
      %v3153 = vpop.f32.mrb[0].mxu0
      %v3154 = vadd.f32 0.0, %v3153
      %v3155 = vpop.f32.mrb[0].mxu0
      %v3156 = vadd.f32 0.0, %v3155
      %3157 = vmatprep.mubr.f32.mxu0 0.0
      %3158 = vmatmul.mubr.f32.gmra.mrb[0].mxu0 %v507
      %v3159 = vpop.f32.mrb[0].mxu0
      %v3160 = vadd.f32 0.0, %v3159
      %v3161 = vpop.f32.mrb[0].mxu0
      %v3162 = vadd.f32 0.0, %v3161
      %3163 = vmatprep.mubr.f32.mxu0 0.0
      %3164 = vmatmul.mubr.f32.gmra.mrb[0].mxu0 %v509
      %v3165 = vpop.f32.mrb[0].mxu0
      %v3166 = vadd.f32 0.0, %v3165
      %v3167 = vpop.f32.mrb[0].mxu0
      %v3168 = vadd.f32 0.0, %v3167
      %3169 = vmatprep.mubr.f32.mxu0 0.0
      %3170 = vmatmul.mubr.f32.gmra.mrb[0].mxu0 %v512
      %v3171 = vpop.f32.mrb[0].mxu0
      %v3172 = vadd.f32 0.0, %v3171
      %v3173 = vpop.f32.mrb[0].mxu0
      %v3174 = vadd.f32 0.0, %v3173
      %3175 = vmatprep.mubr.f32.mxu0 0.0
      %3176 = vmatmul.mubr.f32.gmra.mrb[0].mxu0 %v514
      %v3177 = vpop.f32.mrb[0].mxu0
      %v3178 = vadd.f32 0.0, %v3177
      %v3179 = vpop.f32.mrb[0].mxu0
      %v3180 = vadd.f32 0.0, %v3179
      %3181 = vmatprep.mubr.f32.mxu0 0.0
      %3182 = vmatmul.mubr.f32.gmra.mrb[0].mxu0 %v517
      %v3183 = vpop.f32.mrb[0].mxu0
      %v3184 = vadd.f32 0.0, %v3183
      %v3185 = vpop.f32.mrb[0].mxu0
      %v3186 = vadd.f32 0.0, %v3185
      %3187 = vmatprep.mubr.f32.mxu0 0.0
      %3188 = vmatmul.mubr.f32.gmra.mrb[0].mxu0 %v519
      %v3189 = vpop.f32.mrb[0].mxu0
      %v3190 = vadd.f32 0.0, %v3189
      %v3191 = vpop.f32.mrb[0].mxu0
      %v3192 = vadd.f32 0.0, %v3191
      %3193 = vmatprep.mubr.f32.mxu0 0.0
      %3194 = vmatmul.mubr.f32.gmra.mrb[0].mxu0 %v522
      %v3195 = vpop.f32.mrb[0].mxu0
      %v3196 = vadd.f32 0.0, %v3195
      %v3197 = vpop.f32.mrb[0].mxu0
      %v3198 = vadd.f32 0.0, %v3197
      %3199 = vmatprep.mubr.f32.mxu0 0.0
      %3200 = vmatmul.mubr.f32.gmra.mrb[0].mxu0 %v524
      %v3201 = vpop.f32.mrb[0].mxu0
      %v3202 = vadd.f32 0.0, %v3201
      %v3203 = vpop.f32.mrb[0].mxu0
      %v3204 = vadd.f32 0.0, %v3203
      %3205 = vmatprep.mubr.f32.mxu0 0.0
      %3206 = vmatmul.mubr.f32.gmra.mrb[0].mxu0 %v527
      %v3207 = vpop.f32.mrb[0].mxu0
      %v3208 = vadd.f32 0.0, %v3207
      %v3209 = vpop.f32.mrb[0].mxu0
      %v3210 = vadd.f32 0.0, %v3209
      %3211 = vmatprep.mubr.f32.mxu0 0.0
      %3212 = vmatmul.mubr.f32.gmra.mrb[0].mxu0 %v529
      %v3213 = vpop.f32.mrb[0].mxu0
      %v3214 = vadd.f32 0.0, %v3213
      %v3215 = vpop.f32.mrb[0].mxu0
      %v3216 = vadd.f32 0.0, %v3215
      %3217 = vmatprep.mubr.f32.mxu0 0.0
      %3218 = vmatmul.mubr.f32.gmra.mrb[0].mxu0 %v532
      %v3219 = vpop.f32.mrb[0].mxu0
      %v3220 = vadd.f32 0.0, %v3219
      %v3221 = vpop.f32.mrb[0].mxu0
      %v3222 = vadd.f32 0.0, %v3221
      %3223 = vmatprep.mubr.f32.mxu0 0.0
      %3224 = vmatmul.mubr.f32.gmra.mrb[0].mxu0 %v534
      %v3225 = vpop.f32.mrb[0].mxu0
      %v3226 = vadd.f32 0.0, %v3225
      %v3227 = vpop.f32.mrb[0].mxu0
      %v3228 = vadd.f32 0.0, %v3227
      %3229 = vmatprep.mubr.f32.mxu0 0.0
      %3230 = vmatmul.mubr.f32.gmra.mrb[0].mxu0 %v537
      %v3231 = vpop.f32.mrb[0].mxu0
      %v3232 = vadd.f32 0.0, %v3231
      %v3233 = vpop.f32.mrb[0].mxu0
      %v3234 = vadd.f32 0.0, %v3233
      %3235 = vmatprep.mubr.f32.mxu0 0.0
      %3236 = vmatmul.mubr.f32.gmra.mrb[0].mxu0 %v539
      %v3237 = vpop.f32.mrb[0].mxu0
      %v3238 = vadd.f32 0.0, %v3237
      %v3239 = vpop.f32.mrb[0].mxu0
      %v3240 = vadd.f32 0.0, %v3239
      %3241 = vmatprep.mubr.f32.mxu0 0.0
      %3242 = vmatmul.mubr.f32.gmra.mrb[0].mxu0 %v542
      %v3243 = vpop.f32.mrb[0].mxu0
      %v3244 = vadd.f32 0.0, %v3243
      %v3245 = vpop.f32.mrb[0].mxu0
      %v3246 = vadd.f32 0.0, %v3245
      %3247 = vmatprep.mubr.f32.mxu0 0.0
      %3248 = vmatmul.mubr.f32.gmra.mrb[0].mxu0 %v544
      %v3249 = vpop.f32.mrb[0].mxu0
      %v3250 = vadd.f32 0.0, %v3249
      %v3251 = vpop.f32.mrb[0].mxu0
      %v3252 = vadd.f32 0.0, %v3251
      %3253 = vmatprep.mubr.f32.mxu0 0.0
      %3254 = vmatmul.mubr.f32.gmra.mrb[0].mxu0 %v547
      %v3255 = vpop.f32.mrb[0].mxu0
      %v3256 = vadd.f32 0.0, %v3255
      %v3257 = vpop.f32.mrb[0].mxu0
      %v3258 = vadd.f32 0.0, %v3257
      %3259 = vmatprep.mubr.f32.mxu0 0.0
      %3260 = vmatmul.mubr.f32.gmra.mrb[0].mxu0 %v549
      %v3261 = vpop.f32.mrb[0].mxu0
      %v3262 = vadd.f32 0.0, %v3261
      %v3263 = vpop.f32.mrb[0].mxu0
      %v3264 = vadd.f32 0.0, %v3263
      %3265 = vmatprep.mubr.f32.mxu0 0.0
      %3266 = vmatmul.mubr.f32.gmra.mrb[0].mxu0 %v552
      %v3267 = vpop.f32.mrb[0].mxu0
      %v3268 = vadd.f32 0.0, %v3267
      %v3269 = vpop.f32.mrb[0].mxu0
      %v3270 = vadd.f32 0.0, %v3269
      %3271 = vmatprep.mubr.f32.mxu0 0.0
      %3272 = vmatmul.mubr.f32.gmra.mrb[0].mxu0 %v554
      %v3273 = vpop.f32.mrb[0].mxu0
      %v3274 = vadd.f32 0.0, %v3273
      %v3275 = vpop.f32.mrb[0].mxu0
      %v3276 = vadd.f32 0.0, %v3275
      %3277 = vmatprep.mubr.f32.mxu0 0.0
      %3278 = vmatmul.mubr.f32.gmra.mrb[0].mxu0 %v557
      %v3279 = vpop.f32.mrb[0].mxu0
      %v3280 = vadd.f32 0.0, %v3279
      %v3281 = vpop.f32.mrb[0].mxu0
      %v3282 = vadd.f32 0.0, %v3281
      %3283 = vmatprep.mubr.f32.mxu0 0.0
      %3284 = vmatmul.mubr.f32.gmra.mrb[0].mxu0 %v559
      %v3285 = vpop.f32.mrb[0].mxu0
      %v3286 = vadd.f32 0.0, %v3285
      %v3287 = vpop.f32.mrb[0].mxu0
      %v3288 = vadd.f32 0.0, %v3287
      %3289 = vmatprep.mubr.f32.mxu0 0.0
      %3290 = vmatmul.mubr.f32.gmra.mrb[0].mxu0 %v562
      %v3291 = vpop.f32.mrb[0].mxu0
      %v3292 = vadd.f32 0.0, %v3291
      %v3293 = vpop.f32.mrb[0].mxu0
      %v3294 = vadd.f32 0.0, %v3293
      %3295 = vmatprep.mubr.f32.mxu0 0.0
      %3296 = vmatmul.mubr.f32.gmra.mrb[0].mxu0 %v564
      %v3297 = vpop.f32.mrb[0].mxu0
      %v3298 = vadd.f32 0.0, %v3297
      %v3299 = vpop.f32.mrb[0].mxu0
      %v3300 = vadd.f32 0.0, %v3299
      %3301 = vmatprep.mubr.f32.mxu0 0.0
      %3302 = vmatmul.mubr.f32.gmra.mrb[0].mxu0 %v567
      %v3303 = vpop.f32.mrb[0].mxu0
      %v3304 = vadd.f32 0.0, %v3303
      %v3305 = vpop.f32.mrb[0].mxu0
      %v3306 = vadd.f32 0.0, %v3305
      %3307 = vmatprep.mubr.f32.mxu0 0.0
      %3308 = vmatmul.mubr.f32.gmra.mrb[0].mxu0 %v569
      %v3309 = vpop.f32.mrb[0].mxu0
      %v3310 = vadd.f32 0.0, %v3309
      %v3311 = vpop.f32.mrb[0].mxu0
      %v3312 = vadd.f32 0.0, %v3311
      %3313 = vmatprep.mubr.f32.mxu0 0.0
      %3314 = vmatmul.mubr.f32.gmra.mrb[0].mxu0 %v1974
      %v3315 = vpop.f32.mrb[0].mxu0
      %v3316 = vadd.f32 0.0, %v3315
      %v3317 = vpop.f32.mrb[0].mxu0
      %v3318 = vadd.f32 0.0, %v3317
      %3319 = vmatprep.mubr.f32.mxu0 0.0
      %3320 = vmatmul.mubr.f32.gmra.mrb[0].mxu0 %v1976
      %v3321 = vpop.f32.mrb[0].mxu0
      %v3322 = vadd.f32 0.0, %v3321
      %v3323 = vpop.f32.mrb[0].mxu0
      %v3324 = vadd.f32 0.0, %v3323
      %3325 = vmatprep.mubr.f32.mxu0 0.0
      %3326 = vmatmul.mubr.f32.gmra.mrb[0].mxu0 %v492
      %v3327 = vpop.f32.mrb[0].mxu0
      %v3328 = vadd.f32 0.0, %v3327
      %v3329 = vpop.f32.mrb[0].mxu0
      %v3330 = vadd.f32 0.0, %v3329
      %3331 = vmatprep.mubr.f32.mxu0 0.0
      %3332 = vmatmul.mubr.f32.gmra.mrb[0].mxu0 %v494
      %v3333 = vpop.f32.mrb[0].mxu0
      %v3334 = vadd.f32 0.0, %v3333
      %v3335 = vpop.f32.mrb[0].mxu0
      %v3336 = vadd.f32 0.0, %v3335
      %3337 = vdwg.mxu0
      %v3338 = vadd.f32 %v2984, %v3148
      %v3339 = vadd.f32 %v2985, %v3150
      %v3340 = vadd.f32 %v2986, %v3154
      %v3341 = vadd.f32 %v2987, %v3156
      %v3342 = vadd.f32 %v2988, %v3160
      %v3343 = vadd.f32 %v2989, %v3162
      %v3344 = vadd.f32 %v2990, %v3166
      %v3345 = vadd.f32 %v2991, %v3168
      %v3346 = vadd.f32 %v2992, %v3172
      %v3347 = vadd.f32 %v2993, %v3174
      %v3348 = vadd.f32 %v2994, %v3178
      %v3349 = vadd.f32 %v2995, %v3180
      %v3350 = vadd.f32 %v2996, %v3184
      %v3351 = vadd.f32 %v2997, %v3186
      %v3352 = vadd.f32 %v2998, %v3190
      %v3353 = vadd.f32 %v2999, %v3192
      %v3354 = vadd.f32 %v3000, %v3196
      %v3355 = vadd.f32 %v3001, %v3198
      %v3356 = vadd.f32 %v3002, %v3202
      %v3357 = vadd.f32 %v3003, %v3204
      %v3358 = vadd.f32 %v3004, %v3208
      %v3359 = vadd.f32 %v3005, %v3210
      %v3360 = vadd.f32 %v3006, %v3214
      %v3361 = vadd.f32 %v3007, %v3216
      %v3362 = vadd.f32 %v3008, %v3220
      %v3363 = vadd.f32 %v3009, %v3222
      %v3364 = vadd.f32 %v3010, %v3226
      %v3365 = vadd.f32 %v3011, %v3228
      %v3366 = vadd.f32 %v3012, %v3232
      %v3367 = vadd.f32 %v3013, %v3234
      %v3368 = vadd.f32 %v3014, %v3238
      %v3369 = vadd.f32 %v3015, %v3240
      %v3370 = vadd.f32 %v3016, %v3244
      %v3371 = vadd.f32 %v3017, %v3246
      %v3372 = vadd.f32 %v3018, %v3250
      %v3373 = vadd.f32 %v3019, %v3252
      %v3374 = vadd.f32 %v3020, %v3256
      %v3375 = vadd.f32 %v3021, %v3258
      %v3376 = vadd.f32 %v3022, %v3262
      %v3377 = vadd.f32 %v3023, %v3264
      %v3378 = vadd.f32 %v3024, %v3268
      %v3379 = vadd.f32 %v3025, %v3270
      %v3380 = vadd.f32 %v3026, %v3274
      %v3381 = vadd.f32 %v3027, %v3276
      %v3382 = vadd.f32 %v3028, %v3280
      %v3383 = vadd.f32 %v3029, %v3282
      %v3384 = vadd.f32 %v3030, %v3286
      %v3385 = vadd.f32 %v3031, %v3288
      %v3386 = vadd.f32 %v3032, %v3292
      %v3387 = vadd.f32 %v3033, %v3294
      %v3388 = vadd.f32 %v3034, %v3298
      %v3389 = vadd.f32 %v3035, %v3300
      %v3390 = vadd.f32 %v3036, %v3304
      %v3391 = vadd.f32 %v3037, %v3306
      %v3392 = vadd.f32 %v3038, %v3310
      %v3393 = vadd.f32 %v3039, %v3312
      %v3394 = vadd.f32 %v3040, %v3316
      %v3395 = vadd.f32 %v3041, %v3318
      %v3396 = vadd.f32 %v3042, %v3322
      %v3397 = vadd.f32 %v3043, %v3324
      %v3398 = vadd.f32 %v3044, %v3328
      %v3399 = vadd.f32 %v3045, %v3330
      %v3400 = vadd.f32 %v3046, %v3334
      %v3401 = vadd.f32 %v3047, %v3336
      %s3402 = scalar_lea.vmem %s1, 2048
      %v3403 = vld [vmem:[%s3402] sm:$0xff]
      %v3404 = vld [vmem:[%s3402 + $0x8] sm:$0xff]
      %v3405 = vld [vmem:[%s3402 + $0x10] sm:$0xff]
      %v3406 = vld [vmem:[%s3402 + $0x18] sm:$0xff]
      %v3407 = vld [vmem:[%s3402 + $0x20] sm:$0xff]
      %v3408 = vld [vmem:[%s3402 + $0x28] sm:$0xff]
      %v3409 = vld [vmem:[%s3402 + $0x30] sm:$0xff]
      %v3410 = vld [vmem:[%s3402 + $0x38] sm:$0xff]
      %v3411 = vld [vmem:[%s3402 + $0x40] sm:$0xff]
      %v3412 = vld [vmem:[%s3402 + $0x48] sm:$0xff]
      %v3413 = vld [vmem:[%s3402 + $0x50] sm:$0xff]
      %v3414 = vld [vmem:[%s3402 + $0x58] sm:$0xff]
      %v3415 = vld [vmem:[%s3402 + $0x60] sm:$0xff]
      %v3416 = vld [vmem:[%s3402 + $0x68] sm:$0xff]
      %v3417 = vld [vmem:[%s3402 + $0x70] sm:$0xff]
      %v3418 = vld [vmem:[%s3402 + $0x78] sm:$0xff]
      %v3419 = vld [vmem:[%s3402 + $0x80] sm:$0xff]
      %v3420 = vld [vmem:[%s3402 + $0x88] sm:$0xff]
      %v3421 = vld [vmem:[%s3402 + $0x90] sm:$0xff]
      %v3422 = vld [vmem:[%s3402 + $0x98] sm:$0xff]
      %v3423 = vld [vmem:[%s3402 + $0xa0] sm:$0xff]
      %v3424 = vld [vmem:[%s3402 + $0xa8] sm:$0xff]
      %v3425 = vld [vmem:[%s3402 + $0xb0] sm:$0xff]
      %v3426 = vld [vmem:[%s3402 + $0xb8] sm:$0xff]
      %v3427 = vld [vmem:[%s3402 + $0xc0] sm:$0xff]
      %v3428 = vld [vmem:[%s3402 + $0xc8] sm:$0xff]
      %v3429 = vld [vmem:[%s3402 + $0xd0] sm:$0xff]
      %v3430 = vld [vmem:[%s3402 + $0xd8] sm:$0xff]
      %v3431 = vld [vmem:[%s3402 + $0xe0] sm:$0xff]
      %v3432 = vld [vmem:[%s3402 + $0xe8] sm:$0xff]
      %v3433 = vld [vmem:[%s3402 + $0xf0] sm:$0xff]
      %v3434 = vld [vmem:[%s3402 + $0xf8] sm:$0xff]
      %3435 = vmatprep.subr.mxu0 %v3404
      %3436 = vmatpush1.msra.mxu0 %v3403
      %3437 = vmatprep.subr.mxu0 %v3406
      %3438 = vmatpush1.msra.mxu0 %v3405
      %3439 = vmatprep.subr.mxu0 %v3408
      %3440 = vmatpush1.msra.mxu0 %v3407
      %3441 = vmatprep.subr.mxu0 %v3410
      %3442 = vmatpush1.msra.mxu0 %v3409
      %3443 = vmatprep.subr.mxu0 %v3412
      %3444 = vmatpush1.msra.mxu0 %v3411
      %3445 = vmatprep.subr.mxu0 %v3414
      %3446 = vmatpush1.msra.mxu0 %v3413
      %3447 = vmatprep.subr.mxu0 %v3416
      %3448 = vmatpush1.msra.mxu0 %v3415
      %3449 = vmatprep.subr.mxu0 %v3418
      %3450 = vmatpush1.msra.mxu0 %v3417
      %3451 = vmatprep.subr.mxu0 %v3420
      %3452 = vmatpush1.msra.mxu0 %v3419
      %3453 = vmatprep.subr.mxu0 %v3422
      %3454 = vmatpush1.msra.mxu0 %v3421
      %3455 = vmatprep.subr.mxu0 %v3424
      %3456 = vmatpush1.msra.mxu0 %v3423
      %3457 = vmatprep.subr.mxu0 %v3426
      %3458 = vmatpush1.msra.mxu0 %v3425
      %3459 = vmatprep.subr.mxu0 %v3428
      %3460 = vmatpush1.msra.mxu0 %v3427
      %3461 = vmatprep.subr.mxu0 %v3430
      %3462 = vmatpush1.msra.mxu0 %v3429
      %3463 = vmatprep.subr.mxu0 %v3432
      %3464 = vmatpush1.msra.mxu0 %v3431
      %3465 = vmatprep.subr.mxu0 %v3434
      %3466 = vmatpush1.msra.mxu0 %v3433
      %3467 = vmatprep.subr.mxu0 0.0
      %3468 = vmatpush1.msra.mxu0 0.0
      %3469 = vmatprep.subr.mxu0 0.0
      %3470 = vmatpush1.msra.mxu0 0.0
      %3471 = vmatprep.subr.mxu0 0.0
      %3472 = vmatpush1.msra.mxu0 0.0
      %3473 = vmatprep.subr.mxu0 0.0
      %3474 = vmatpush1.msra.mxu0 0.0
      %3475 = vmatprep.subr.mxu0 0.0
      %3476 = vmatpush1.msra.mxu0 0.0
      %3477 = vmatprep.subr.mxu0 0.0
      %3478 = vmatpush1.msra.mxu0 0.0
      %3479 = vmatprep.subr.mxu0 0.0
      %3480 = vmatpush1.msra.mxu0 0.0
      %3481 = vmatprep.subr.mxu0 0.0
      %3482 = vmatpush1.msra.mxu0 0.0
      %3483 = vmatprep.subr.mxu0 0.0
      %3484 = vmatpush1.msra.mxu0 0.0
      %3485 = vmatprep.subr.mxu0 0.0
      %3486 = vmatpush1.msra.mxu0 0.0
      %3487 = vmatprep.subr.mxu0 0.0
      %3488 = vmatpush1.msra.mxu0 0.0
      %3489 = vmatprep.subr.mxu0 0.0
      %3490 = vmatpush1.msra.mxu0 0.0
      %3491 = vmatprep.subr.mxu0 0.0
      %3492 = vmatpush1.msra.mxu0 0.0
      %3493 = vmatprep.subr.mxu0 0.0
      %3494 = vmatpush1.msra.mxu0 0.0
      %3495 = vmatprep.subr.mxu0 0.0
      %3496 = vmatpush1.msra.mxu0 0.0
      %3497 = vmatprep.subr.mxu0 0.0
      %3498 = vmatpush1.msra.mxu0 0.0
      %3499 = vmatprep.mubr.f32.mxu0 0.0
      %3500 = vmatmul.mubr.f32.gmra.mrb[0].mxu0 %v1162
      %v3501 = vpop.f32.mrb[0].mxu0
      %v3502 = vadd.f32 0.0, %v3501
      %v3503 = vpop.f32.mrb[0].mxu0
      %v3504 = vadd.f32 0.0, %v3503
      %3505 = vmatprep.mubr.f32.mxu0 0.0
      %3506 = vmatmul.mubr.f32.gmra.mrb[0].mxu0 %v1164
      %v3507 = vpop.f32.mrb[0].mxu0
      %v3508 = vadd.f32 0.0, %v3507
      %v3509 = vpop.f32.mrb[0].mxu0
      %v3510 = vadd.f32 0.0, %v3509
      %3511 = vmatprep.mubr.f32.mxu0 0.0
      %3512 = vmatmul.mubr.f32.gmra.mrb[0].mxu0 %v1167
      %v3513 = vpop.f32.mrb[0].mxu0
      %v3514 = vadd.f32 0.0, %v3513
      %v3515 = vpop.f32.mrb[0].mxu0
      %v3516 = vadd.f32 0.0, %v3515
      %3517 = vmatprep.mubr.f32.mxu0 0.0
      %3518 = vmatmul.mubr.f32.gmra.mrb[0].mxu0 %v1169
      %v3519 = vpop.f32.mrb[0].mxu0
      %v3520 = vadd.f32 0.0, %v3519
      %v3521 = vpop.f32.mrb[0].mxu0
      %v3522 = vadd.f32 0.0, %v3521
      %3523 = vmatprep.mubr.f32.mxu0 0.0
      %3524 = vmatmul.mubr.f32.gmra.mrb[0].mxu0 %v1172
      %v3525 = vpop.f32.mrb[0].mxu0
      %v3526 = vadd.f32 0.0, %v3525
      %v3527 = vpop.f32.mrb[0].mxu0
      %v3528 = vadd.f32 0.0, %v3527
      %3529 = vmatprep.mubr.f32.mxu0 0.0
      %3530 = vmatmul.mubr.f32.gmra.mrb[0].mxu0 %v1174
      %v3531 = vpop.f32.mrb[0].mxu0
      %v3532 = vadd.f32 0.0, %v3531
      %v3533 = vpop.f32.mrb[0].mxu0
      %v3534 = vadd.f32 0.0, %v3533
      %3535 = vmatprep.mubr.f32.mxu0 0.0
      %3536 = vmatmul.mubr.f32.gmra.mrb[0].mxu0 %v1177
      %v3537 = vpop.f32.mrb[0].mxu0
      %v3538 = vadd.f32 0.0, %v3537
      %v3539 = vpop.f32.mrb[0].mxu0
      %v3540 = vadd.f32 0.0, %v3539
      %3541 = vmatprep.mubr.f32.mxu0 0.0
      %3542 = vmatmul.mubr.f32.gmra.mrb[0].mxu0 %v1179
      %v3543 = vpop.f32.mrb[0].mxu0
      %v3544 = vadd.f32 0.0, %v3543
      %v3545 = vpop.f32.mrb[0].mxu0
      %v3546 = vadd.f32 0.0, %v3545
      %3547 = vmatprep.mubr.f32.mxu0 0.0
      %3548 = vmatmul.mubr.f32.gmra.mrb[0].mxu0 %v1182
      %v3549 = vpop.f32.mrb[0].mxu0
      %v3550 = vadd.f32 0.0, %v3549
      %v3551 = vpop.f32.mrb[0].mxu0
      %v3552 = vadd.f32 0.0, %v3551
      %3553 = vmatprep.mubr.f32.mxu0 0.0
      %3554 = vmatmul.mubr.f32.gmra.mrb[0].mxu0 %v1184
      %v3555 = vpop.f32.mrb[0].mxu0
      %v3556 = vadd.f32 0.0, %v3555
      %v3557 = vpop.f32.mrb[0].mxu0
      %v3558 = vadd.f32 0.0, %v3557
      %3559 = vmatprep.mubr.f32.mxu0 0.0
      %3560 = vmatmul.mubr.f32.gmra.mrb[0].mxu0 %v1187
      %v3561 = vpop.f32.mrb[0].mxu0
      %v3562 = vadd.f32 0.0, %v3561
      %v3563 = vpop.f32.mrb[0].mxu0
      %v3564 = vadd.f32 0.0, %v3563
      %3565 = vmatprep.mubr.f32.mxu0 0.0
      %3566 = vmatmul.mubr.f32.gmra.mrb[0].mxu0 %v1189
      %v3567 = vpop.f32.mrb[0].mxu0
      %v3568 = vadd.f32 0.0, %v3567
      %v3569 = vpop.f32.mrb[0].mxu0
      %v3570 = vadd.f32 0.0, %v3569
      %3571 = vmatprep.mubr.f32.mxu0 0.0
      %3572 = vmatmul.mubr.f32.gmra.mrb[0].mxu0 %v1192
      %v3573 = vpop.f32.mrb[0].mxu0
      %v3574 = vadd.f32 0.0, %v3573
      %v3575 = vpop.f32.mrb[0].mxu0
      %v3576 = vadd.f32 0.0, %v3575
      %3577 = vmatprep.mubr.f32.mxu0 0.0
      %3578 = vmatmul.mubr.f32.gmra.mrb[0].mxu0 %v1194
      %v3579 = vpop.f32.mrb[0].mxu0
      %v3580 = vadd.f32 0.0, %v3579
      %v3581 = vpop.f32.mrb[0].mxu0
      %v3582 = vadd.f32 0.0, %v3581
      %3583 = vmatprep.mubr.f32.mxu0 0.0
      %3584 = vmatmul.mubr.f32.gmra.mrb[0].mxu0 %v1197
      %v3585 = vpop.f32.mrb[0].mxu0
      %v3586 = vadd.f32 0.0, %v3585
      %v3587 = vpop.f32.mrb[0].mxu0
      %v3588 = vadd.f32 0.0, %v3587
      %3589 = vmatprep.mubr.f32.mxu0 0.0
      %3590 = vmatmul.mubr.f32.gmra.mrb[0].mxu0 %v1199
      %v3591 = vpop.f32.mrb[0].mxu0
      %v3592 = vadd.f32 0.0, %v3591
      %v3593 = vpop.f32.mrb[0].mxu0
      %v3594 = vadd.f32 0.0, %v3593
      %3595 = vmatprep.mubr.f32.mxu0 0.0
      %3596 = vmatmul.mubr.f32.gmra.mrb[0].mxu0 %v1202
      %v3597 = vpop.f32.mrb[0].mxu0
      %v3598 = vadd.f32 0.0, %v3597
      %v3599 = vpop.f32.mrb[0].mxu0
      %v3600 = vadd.f32 0.0, %v3599
      %3601 = vmatprep.mubr.f32.mxu0 0.0
      %3602 = vmatmul.mubr.f32.gmra.mrb[0].mxu0 %v1204
      %v3603 = vpop.f32.mrb[0].mxu0
      %v3604 = vadd.f32 0.0, %v3603
      %v3605 = vpop.f32.mrb[0].mxu0
      %v3606 = vadd.f32 0.0, %v3605
      %3607 = vmatprep.mubr.f32.mxu0 0.0
      %3608 = vmatmul.mubr.f32.gmra.mrb[0].mxu0 %v1207
      %v3609 = vpop.f32.mrb[0].mxu0
      %v3610 = vadd.f32 0.0, %v3609
      %v3611 = vpop.f32.mrb[0].mxu0
      %v3612 = vadd.f32 0.0, %v3611
      %3613 = vmatprep.mubr.f32.mxu0 0.0
      %3614 = vmatmul.mubr.f32.gmra.mrb[0].mxu0 %v1209
      %v3615 = vpop.f32.mrb[0].mxu0
      %v3616 = vadd.f32 0.0, %v3615
      %v3617 = vpop.f32.mrb[0].mxu0
      %v3618 = vadd.f32 0.0, %v3617
      %3619 = vmatprep.mubr.f32.mxu0 0.0
      %3620 = vmatmul.mubr.f32.gmra.mrb[0].mxu0 %v1212
      %v3621 = vpop.f32.mrb[0].mxu0
      %v3622 = vadd.f32 0.0, %v3621
      %v3623 = vpop.f32.mrb[0].mxu0
      %v3624 = vadd.f32 0.0, %v3623
      %3625 = vmatprep.mubr.f32.mxu0 0.0
      %3626 = vmatmul.mubr.f32.gmra.mrb[0].mxu0 %v1214
      %v3627 = vpop.f32.mrb[0].mxu0
      %v3628 = vadd.f32 0.0, %v3627
      %v3629 = vpop.f32.mrb[0].mxu0
      %v3630 = vadd.f32 0.0, %v3629
      %3631 = vmatprep.mubr.f32.mxu0 0.0
      %3632 = vmatmul.mubr.f32.gmra.mrb[0].mxu0 %v1217
      %v3633 = vpop.f32.mrb[0].mxu0
      %v3634 = vadd.f32 0.0, %v3633
      %v3635 = vpop.f32.mrb[0].mxu0
      %v3636 = vadd.f32 0.0, %v3635
      %3637 = vmatprep.mubr.f32.mxu0 0.0
      %3638 = vmatmul.mubr.f32.gmra.mrb[0].mxu0 %v1219
      %v3639 = vpop.f32.mrb[0].mxu0
      %v3640 = vadd.f32 0.0, %v3639
      %v3641 = vpop.f32.mrb[0].mxu0
      %v3642 = vadd.f32 0.0, %v3641
      %3643 = vmatprep.mubr.f32.mxu0 0.0
      %3644 = vmatmul.mubr.f32.gmra.mrb[0].mxu0 %v1222
      %v3645 = vpop.f32.mrb[0].mxu0
      %v3646 = vadd.f32 0.0, %v3645
      %v3647 = vpop.f32.mrb[0].mxu0
      %v3648 = vadd.f32 0.0, %v3647
      %3649 = vmatprep.mubr.f32.mxu0 0.0
      %3650 = vmatmul.mubr.f32.gmra.mrb[0].mxu0 %v1224
      %v3651 = vpop.f32.mrb[0].mxu0
      %v3652 = vadd.f32 0.0, %v3651
      %v3653 = vpop.f32.mrb[0].mxu0
      %v3654 = vadd.f32 0.0, %v3653
      %3655 = vmatprep.mubr.f32.mxu0 0.0
      %3656 = vmatmul.mubr.f32.gmra.mrb[0].mxu0 %v1227
      %v3657 = vpop.f32.mrb[0].mxu0
      %v3658 = vadd.f32 0.0, %v3657
      %v3659 = vpop.f32.mrb[0].mxu0
      %v3660 = vadd.f32 0.0, %v3659
      %3661 = vmatprep.mubr.f32.mxu0 0.0
      %3662 = vmatmul.mubr.f32.gmra.mrb[0].mxu0 %v1229
      %v3663 = vpop.f32.mrb[0].mxu0
      %v3664 = vadd.f32 0.0, %v3663
      %v3665 = vpop.f32.mrb[0].mxu0
      %v3666 = vadd.f32 0.0, %v3665
      %3667 = vmatprep.mubr.f32.mxu0 0.0
      %3668 = vmatmul.mubr.f32.gmra.mrb[0].mxu0 %v2335
      %v3669 = vpop.f32.mrb[0].mxu0
      %v3670 = vadd.f32 0.0, %v3669
      %v3671 = vpop.f32.mrb[0].mxu0
      %v3672 = vadd.f32 0.0, %v3671
      %3673 = vmatprep.mubr.f32.mxu0 0.0
      %3674 = vmatmul.mubr.f32.gmra.mrb[0].mxu0 %v2337
      %v3675 = vpop.f32.mrb[0].mxu0
      %v3676 = vadd.f32 0.0, %v3675
      %v3677 = vpop.f32.mrb[0].mxu0
      %v3678 = vadd.f32 0.0, %v3677
      %3679 = vmatprep.mubr.f32.mxu0 0.0
      %3680 = vmatmul.mubr.f32.gmra.mrb[0].mxu0 %v1152
      %v3681 = vpop.f32.mrb[0].mxu0
      %v3682 = vadd.f32 0.0, %v3681
      %v3683 = vpop.f32.mrb[0].mxu0
      %v3684 = vadd.f32 0.0, %v3683
      %3685 = vmatprep.mubr.f32.mxu0 0.0
      %3686 = vmatmul.mubr.f32.gmra.mrb[0].mxu0 %v1154
      %v3687 = vpop.f32.mrb[0].mxu0
      %v3688 = vadd.f32 0.0, %v3687
      %v3689 = vpop.f32.mrb[0].mxu0
      %v3690 = vadd.f32 0.0, %v3689
      %3691 = vdwg.mxu0
      %v3692 = vadd.f32 %v3338, %v3502
      %v3693 = vadd.f32 %v3339, %v3504
      %v3694 = vadd.f32 %v3340, %v3508
      %v3695 = vadd.f32 %v3341, %v3510
      %v3696 = vadd.f32 %v3342, %v3514
      %v3697 = vadd.f32 %v3343, %v3516
      %v3698 = vadd.f32 %v3344, %v3520
      %v3699 = vadd.f32 %v3345, %v3522
      %v3700 = vadd.f32 %v3346, %v3526
      %v3701 = vadd.f32 %v3347, %v3528
      %v3702 = vadd.f32 %v3348, %v3532
      %v3703 = vadd.f32 %v3349, %v3534
      %v3704 = vadd.f32 %v3350, %v3538
      %v3705 = vadd.f32 %v3351, %v3540
      %v3706 = vadd.f32 %v3352, %v3544
      %v3707 = vadd.f32 %v3353, %v3546
      %v3708 = vadd.f32 %v3354, %v3550
      %v3709 = vadd.f32 %v3355, %v3552
      %v3710 = vadd.f32 %v3356, %v3556
      %v3711 = vadd.f32 %v3357, %v3558
      %v3712 = vadd.f32 %v3358, %v3562
      %v3713 = vadd.f32 %v3359, %v3564
      %v3714 = vadd.f32 %v3360, %v3568
      %v3715 = vadd.f32 %v3361, %v3570
      %v3716 = vadd.f32 %v3362, %v3574
      %v3717 = vadd.f32 %v3363, %v3576
      %v3718 = vadd.f32 %v3364, %v3580
      %v3719 = vadd.f32 %v3365, %v3582
      %v3720 = vadd.f32 %v3366, %v3586
      %v3721 = vadd.f32 %v3367, %v3588
      %v3722 = vadd.f32 %v3368, %v3592
      %v3723 = vadd.f32 %v3369, %v3594
      %v3724 = vadd.f32 %v3370, %v3598
      %v3725 = vadd.f32 %v3371, %v3600
      %v3726 = vadd.f32 %v3372, %v3604
      %v3727 = vadd.f32 %v3373, %v3606
      %v3728 = vadd.f32 %v3374, %v3610
      %v3729 = vadd.f32 %v3375, %v3612
      %v3730 = vadd.f32 %v3376, %v3616
      %v3731 = vadd.f32 %v3377, %v3618
      %v3732 = vadd.f32 %v3378, %v3622
      %v3733 = vadd.f32 %v3379, %v3624
      %v3734 = vadd.f32 %v3380, %v3628
      %v3735 = vadd.f32 %v3381, %v3630
      %v3736 = vadd.f32 %v3382, %v3634
      %v3737 = vadd.f32 %v3383, %v3636
      %v3738 = vadd.f32 %v3384, %v3640
      %v3739 = vadd.f32 %v3385, %v3642
      %v3740 = vadd.f32 %v3386, %v3646
      %v3741 = vadd.f32 %v3387, %v3648
      %v3742 = vadd.f32 %v3388, %v3652
      %v3743 = vadd.f32 %v3389, %v3654
      %v3744 = vadd.f32 %v3390, %v3658
      %v3745 = vadd.f32 %v3391, %v3660
      %v3746 = vadd.f32 %v3392, %v3664
      %v3747 = vadd.f32 %v3393, %v3666
      %v3748 = vadd.f32 %v3394, %v3670
      %v3749 = vadd.f32 %v3395, %v3672
      %v3750 = vadd.f32 %v3396, %v3676
      %v3751 = vadd.f32 %v3397, %v3678
      %v3752 = vadd.f32 %v3398, %v3682
      %v3753 = vadd.f32 %v3399, %v3684
      %v3754 = vadd.f32 %v3400, %v3688
      %v3755 = vadd.f32 %v3401, %v3690
      %v3756 = vld [vmem:[%s2] sm:$0x3]
      %v3758 = vlaneseq
      %v3759 = vshrl.u32 %v3758, 7
      %v3760 = vsub.s32 0, %v3759
      %v3761 = vrot.slane %v3756, %v3760
      %v3762 = vlaneseq
      %v3763 = vshrl.u32 %v3762, 7
      %v3764 = vsub.s32 1, %v3763
      %v3765 = vrot.slane %v3756, %v3764
      %v3768 = vadd.f32 %v3692, %v3761
      %v3769 = vadd.f32 %v3693, %v3765
      %v3770 = vadd.f32 %v3694, %v3761
      %v3771 = vadd.f32 %v3695, %v3765
      %v3772 = vadd.f32 %v3696, %v3761
      %v3773 = vadd.f32 %v3697, %v3765
      %v3774 = vadd.f32 %v3698, %v3761
      %v3775 = vadd.f32 %v3699, %v3765
      %v3776 = vadd.f32 %v3700, %v3761
      %v3777 = vadd.f32 %v3701, %v3765
      %v3778 = vadd.f32 %v3702, %v3761
      %v3779 = vadd.f32 %v3703, %v3765
      %v3780 = vadd.f32 %v3704, %v3761
      %v3781 = vadd.f32 %v3705, %v3765
      %v3782 = vadd.f32 %v3706, %v3761
      %v3783 = vadd.f32 %v3707, %v3765
      %v3784 = vadd.f32 %v3708, %v3761
      %v3785 = vadd.f32 %v3709, %v3765
      %v3786 = vadd.f32 %v3710, %v3761
      %v3787 = vadd.f32 %v3711, %v3765
      %v3788 = vadd.f32 %v3712, %v3761
      %v3789 = vadd.f32 %v3713, %v3765
      %v3790 = vadd.f32 %v3714, %v3761
      %v3791 = vadd.f32 %v3715, %v3765
      %v3792 = vadd.f32 %v3716, %v3761
      %v3793 = vadd.f32 %v3717, %v3765
      %v3794 = vadd.f32 %v3718, %v3761
      %v3795 = vadd.f32 %v3719, %v3765
      %v3796 = vadd.f32 %v3720, %v3761
      %v3797 = vadd.f32 %v3721, %v3765
      %v3798 = vadd.f32 %v3722, %v3761
      %v3799 = vadd.f32 %v3723, %v3765
      %v3800 = vadd.f32 %v3724, %v3761
      %v3801 = vadd.f32 %v3725, %v3765
      %v3802 = vadd.f32 %v3726, %v3761
      %v3803 = vadd.f32 %v3727, %v3765
      %v3804 = vadd.f32 %v3728, %v3761
      %v3805 = vadd.f32 %v3729, %v3765
      %v3806 = vadd.f32 %v3730, %v3761
      %v3807 = vadd.f32 %v3731, %v3765
      %v3808 = vadd.f32 %v3732, %v3761
      %v3809 = vadd.f32 %v3733, %v3765
      %v3810 = vadd.f32 %v3734, %v3761
      %v3811 = vadd.f32 %v3735, %v3765
      %v3812 = vadd.f32 %v3736, %v3761
      %v3813 = vadd.f32 %v3737, %v3765
      %v3814 = vadd.f32 %v3738, %v3761
      %v3815 = vadd.f32 %v3739, %v3765
      %v3816 = vadd.f32 %v3740, %v3761
      %v3817 = vadd.f32 %v3741, %v3765
      %v3818 = vadd.f32 %v3742, %v3761
      %v3819 = vadd.f32 %v3743, %v3765
      %v3820 = vadd.f32 %v3744, %v3761
      %v3821 = vadd.f32 %v3745, %v3765
      %v3822 = vadd.f32 %v3746, %v3761
      %v3823 = vadd.f32 %v3747, %v3765
      %v3824 = vadd.f32 %v3748, %v3761
      %v3825 = vadd.f32 %v3749, %v3765
      %v3826 = vadd.f32 %v3750, %v3761
      %v3827 = vadd.f32 %v3751, %v3765
      %v3828 = vadd.f32 %v3752, %v3761
      %v3829 = vadd.f32 %v3753, %v3765
      %v3830 = vadd.f32 %v3754, %v3761
      %v3831 = vadd.f32 %v3755, %v3765
      %v3832 = vmax.f32 %v3768, 0.0
      %v3833 = vmax.f32 %v3769, 0.0
      %v3834 = vmax.f32 %v3770, 0.0
      %v3835 = vmax.f32 %v3771, 0.0
      %v3836 = vmax.f32 %v3772, 0.0
      %v3837 = vmax.f32 %v3773, 0.0
      %v3838 = vmax.f32 %v3774, 0.0
      %v3839 = vmax.f32 %v3775, 0.0
      %v3840 = vmax.f32 %v3776, 0.0
      %v3841 = vmax.f32 %v3777, 0.0
      %v3842 = vmax.f32 %v3778, 0.0
      %v3843 = vmax.f32 %v3779, 0.0
      %v3844 = vmax.f32 %v3780, 0.0
      %v3845 = vmax.f32 %v3781, 0.0
      %v3846 = vmax.f32 %v3782, 0.0
      %v3847 = vmax.f32 %v3783, 0.0
      %v3848 = vmax.f32 %v3784, 0.0
      %v3849 = vmax.f32 %v3785, 0.0
      %v3850 = vmax.f32 %v3786, 0.0
      %v3851 = vmax.f32 %v3787, 0.0
      %v3852 = vmax.f32 %v3788, 0.0
      %v3853 = vmax.f32 %v3789, 0.0
      %v3854 = vmax.f32 %v3790, 0.0
      %v3855 = vmax.f32 %v3791, 0.0
      %v3856 = vmax.f32 %v3792, 0.0
      %v3857 = vmax.f32 %v3793, 0.0
      %v3858 = vmax.f32 %v3794, 0.0
      %v3859 = vmax.f32 %v3795, 0.0
      %v3860 = vmax.f32 %v3796, 0.0
      %v3861 = vmax.f32 %v3797, 0.0
      %v3862 = vmax.f32 %v3798, 0.0
      %v3863 = vmax.f32 %v3799, 0.0
      %v3864 = vmax.f32 %v3800, 0.0
      %v3865 = vmax.f32 %v3801, 0.0
      %v3866 = vmax.f32 %v3802, 0.0
      %v3867 = vmax.f32 %v3803, 0.0
      %v3868 = vmax.f32 %v3804, 0.0
      %v3869 = vmax.f32 %v3805, 0.0
      %v3870 = vmax.f32 %v3806, 0.0
      %v3871 = vmax.f32 %v3807, 0.0
      %v3872 = vmax.f32 %v3808, 0.0
      %v3873 = vmax.f32 %v3809, 0.0
      %v3874 = vmax.f32 %v3810, 0.0
      %v3875 = vmax.f32 %v3811, 0.0
      %v3876 = vmax.f32 %v3812, 0.0
      %v3877 = vmax.f32 %v3813, 0.0
      %v3878 = vmax.f32 %v3814, 0.0
      %v3879 = vmax.f32 %v3815, 0.0
      %v3880 = vmax.f32 %v3816, 0.0
      %v3881 = vmax.f32 %v3817, 0.0
      %v3882 = vmax.f32 %v3818, 0.0
      %v3883 = vmax.f32 %v3819, 0.0
      %v3884 = vmax.f32 %v3820, 0.0
      %v3885 = vmax.f32 %v3821, 0.0
      %v3886 = vmax.f32 %v3822, 0.0
      %v3887 = vmax.f32 %v3823, 0.0
      %v3888 = vmax.f32 %v3824, 0.0
      %v3889 = vmax.f32 %v3825, 0.0
      %v3890 = vmax.f32 %v3826, 0.0
      %v3891 = vmax.f32 %v3827, 0.0
      %v3892 = vmax.f32 %v3828, 0.0
      %v3893 = vmax.f32 %v3829, 0.0
      %v3894 = vmax.f32 %v3830, 0.0
      %v3895 = vmax.f32 %v3831, 0.0
      %v3960 = vrot.slane %v3832, 7
      %v3961 = vrot.slane %v3833, 7
      %v3962 = vrot.slane %v3834, 7
      %v3963 = vsel %vm290, %v3960, %v3962
      %v3964 = vrot.slane %v3835, 7
      %v3965 = vsel %vm290, %v3961, %v3964
      %v3966 = vrot.slane %v3836, 7
      %v3967 = vrot.slane %v3837, 7
      %v3968 = vrot.slane %v3838, 7
      %v3969 = vsel %vm290, %v3966, %v3968
      %v3970 = vrot.slane %v3839, 7
      %v3971 = vsel %vm290, %v3967, %v3970
      %v3972 = vrot.slane %v3840, 7
      %v3973 = vrot.slane %v3841, 7
      %v3974 = vrot.slane %v3842, 7
      %v3975 = vsel %vm290, %v3972, %v3974
      %v3976 = vrot.slane %v3843, 7
      %v3977 = vsel %vm290, %v3973, %v3976
      %v3978 = vrot.slane %v3844, 7
      %v3979 = vrot.slane %v3845, 7
      %v3980 = vrot.slane %v3846, 7
      %v3981 = vsel %vm290, %v3978, %v3980
      %v3982 = vrot.slane %v3847, 7
      %v3983 = vsel %vm290, %v3979, %v3982
      %v3984 = vrot.slane %v3848, 7
      %v3985 = vrot.slane %v3849, 7
      %v3986 = vrot.slane %v3850, 7
      %v3987 = vsel %vm290, %v3984, %v3986
      %v3988 = vrot.slane %v3851, 7
      %v3989 = vsel %vm290, %v3985, %v3988
      %v3990 = vrot.slane %v3852, 7
      %v3991 = vrot.slane %v3853, 7
      %v3992 = vrot.slane %v3854, 7
      %v3993 = vsel %vm290, %v3990, %v3992
      %v3994 = vrot.slane %v3855, 7
      %v3995 = vsel %vm290, %v3991, %v3994
      %v3996 = vrot.slane %v3856, 7
      %v3997 = vrot.slane %v3857, 7
      %v3998 = vrot.slane %v3858, 7
      %v3999 = vsel %vm290, %v3996, %v3998
      %v4000 = vrot.slane %v3859, 7
      %v4001 = vsel %vm290, %v3997, %v4000
      %v4002 = vrot.slane %v3860, 7
      %v4003 = vrot.slane %v3861, 7
      %v4004 = vrot.slane %v3862, 7
      %v4005 = vsel %vm290, %v4002, %v4004
      %v4006 = vrot.slane %v3863, 7
      %v4007 = vsel %vm290, %v4003, %v4006
      %v4008 = vrot.slane %v3864, 7
      %v4009 = vrot.slane %v3865, 7
      %v4010 = vrot.slane %v3866, 7
      %v4011 = vsel %vm290, %v4008, %v4010
      %v4012 = vrot.slane %v3867, 7
      %v4013 = vsel %vm290, %v4009, %v4012
      %v4014 = vrot.slane %v3868, 7
      %v4015 = vrot.slane %v3869, 7
      %v4016 = vrot.slane %v3870, 7
      %v4017 = vsel %vm290, %v4014, %v4016
      %v4018 = vrot.slane %v3871, 7
      %v4019 = vsel %vm290, %v4015, %v4018
      %v4020 = vrot.slane %v3872, 7
      %v4021 = vrot.slane %v3873, 7
      %v4022 = vrot.slane %v3874, 7
      %v4023 = vsel %vm290, %v4020, %v4022
      %v4024 = vrot.slane %v3875, 7
      %v4025 = vsel %vm290, %v4021, %v4024
      %v4026 = vrot.slane %v3876, 7
      %v4027 = vrot.slane %v3877, 7
      %v4028 = vrot.slane %v3878, 7
      %v4029 = vsel %vm290, %v4026, %v4028
      %v4030 = vrot.slane %v3879, 7
      %v4031 = vsel %vm290, %v4027, %v4030
      %v4032 = vrot.slane %v3880, 7
      %v4033 = vrot.slane %v3881, 7
      %v4034 = vrot.slane %v3882, 7
      %v4035 = vsel %vm290, %v4032, %v4034
      %v4036 = vrot.slane %v3883, 7
      %v4037 = vsel %vm290, %v4033, %v4036
      %v4038 = vrot.slane %v3884, 7
      %v4039 = vrot.slane %v3885, 7
      %v4040 = vrot.slane %v3886, 7
      %v4041 = vsel %vm290, %v4038, %v4040
      %v4042 = vrot.slane %v3887, 7
      %v4043 = vsel %vm290, %v4039, %v4042
      %v4044 = vrot.slane %v3888, 7
      %v4045 = vrot.slane %v3889, 7
      %v4046 = vrot.slane %v3890, 7
      %v4047 = vsel %vm290, %v4044, %v4046
      %v4048 = vrot.slane %v3891, 7
      %v4049 = vsel %vm290, %v4045, %v4048
      %v4050 = vrot.slane %v3892, 7
      %v4051 = vrot.slane %v3893, 7
      %v4052 = vrot.slane %v3894, 7
      %v4053 = vsel %vm290, %v4050, %v4052
      %v4054 = vrot.slane %v3895, 7
      %v4055 = vsel %vm290, %v4051, %v4054
      %v4152 = vsel %vm290, 0.0, %v3960
      %v4153 = vsel %vm290, 0.0, %v3961
      %v4154 = vsel %vm290, 0.0, %v3966
      %v4155 = vsel %vm290, 0.0, %v3967
      %v4156 = vsel %vm290, 0.0, %v3972
      %v4157 = vsel %vm290, 0.0, %v3973
      %v4158 = vsel %vm290, 0.0, %v3978
      %v4159 = vsel %vm290, 0.0, %v3979
      %v4160 = vsel %vm290, 0.0, %v3984
      %v4161 = vsel %vm290, 0.0, %v3985
      %v4162 = vsel %vm290, 0.0, %v3990
      %v4163 = vsel %vm290, 0.0, %v3991
      %v4164 = vsel %vm290, 0.0, %v3996
      %v4165 = vsel %vm290, 0.0, %v3997
      %v4166 = vsel %vm290, 0.0, %v4002
      %v4167 = vsel %vm290, 0.0, %v4003
      %v4168 = vsel %vm290, 0.0, %v4008
      %v4169 = vsel %vm290, 0.0, %v4009
      %v4170 = vsel %vm290, 0.0, %v4014
      %v4171 = vsel %vm290, 0.0, %v4015
      %v4172 = vsel %vm290, 0.0, %v4020
      %v4173 = vsel %vm290, 0.0, %v4021
      %v4174 = vsel %vm290, 0.0, %v4026
      %v4175 = vsel %vm290, 0.0, %v4027
      %v4176 = vsel %vm290, 0.0, %v4032
      %v4177 = vsel %vm290, 0.0, %v4033
      %v4178 = vsel %vm290, 0.0, %v4038
      %v4179 = vsel %vm290, 0.0, %v4039
      %v4180 = vsel %vm290, 0.0, %v4044
      %v4181 = vsel %vm290, 0.0, %v4045
      %v4182 = vsel %vm290, 0.0, %v4050
      %v4183 = vsel %vm290, 0.0, %v4051
      %v4184 = vsel %vm290, %v3962, 0.0
      %v4185 = vsel %vm290, %v3964, 0.0
      %v4186 = vsel %vm290, %v3968, 0.0
      %v4187 = vsel %vm290, %v3970, 0.0
      %v4188 = vsel %vm290, %v3974, 0.0
      %v4189 = vsel %vm290, %v3976, 0.0
      %v4190 = vsel %vm290, %v3980, 0.0
      %v4191 = vsel %vm290, %v3982, 0.0
      %v4192 = vsel %vm290, %v3986, 0.0
      %v4193 = vsel %vm290, %v3988, 0.0
      %v4194 = vsel %vm290, %v3992, 0.0
      %v4195 = vsel %vm290, %v3994, 0.0
      %v4196 = vsel %vm290, %v3998, 0.0
      %v4197 = vsel %vm290, %v4000, 0.0
      %v4198 = vsel %vm290, %v4004, 0.0
      %v4199 = vsel %vm290, %v4006, 0.0
      %v4200 = vsel %vm290, %v4010, 0.0
      %v4201 = vsel %vm290, %v4012, 0.0
      %v4202 = vsel %vm290, %v4016, 0.0
      %v4203 = vsel %vm290, %v4018, 0.0
      %v4204 = vsel %vm290, %v4022, 0.0
      %v4205 = vsel %vm290, %v4024, 0.0
      %v4206 = vsel %vm290, %v4028, 0.0
      %v4207 = vsel %vm290, %v4030, 0.0
      %v4208 = vsel %vm290, %v4034, 0.0
      %v4209 = vsel %vm290, %v4036, 0.0
      %v4210 = vsel %vm290, %v4040, 0.0
      %v4211 = vsel %vm290, %v4042, 0.0
      %v4212 = vsel %vm290, %v4046, 0.0
      %v4213 = vsel %vm290, %v4048, 0.0
      %v4214 = vsel %vm290, %v4052, 0.0
      %v4215 = vsel %vm290, %v4054, 0.0
      %v4216 = vld [vmem:[%s3] sm:$0xff]
      %v4217 = vld [vmem:[%s3 + $0x8] sm:$0xff]
      %v4218 = vld [vmem:[%s3 + $0x10] sm:$0xff]
      %v4219 = vld [vmem:[%s3 + $0x18] sm:$0xff]
      %v4220 = vld [vmem:[%s3 + $0x20] sm:$0xff]
      %v4221 = vld [vmem:[%s3 + $0x28] sm:$0xff]
      %v4222 = vld [vmem:[%s3 + $0x30] sm:$0xff]
      %v4223 = vld [vmem:[%s3 + $0x38] sm:$0xff]
      %v4224 = vld [vmem:[%s3 + $0x40] sm:$0xff]
      %v4225 = vld [vmem:[%s3 + $0x48] sm:$0xff]
      %v4226 = vld [vmem:[%s3 + $0x50] sm:$0xff]
      %v4227 = vld [vmem:[%s3 + $0x58] sm:$0xff]
      %v4228 = vld [vmem:[%s3 + $0x60] sm:$0xff]
      %v4229 = vld [vmem:[%s3 + $0x68] sm:$0xff]
      %v4230 = vld [vmem:[%s3 + $0x70] sm:$0xff]
      %v4231 = vld [vmem:[%s3 + $0x78] sm:$0xff]
      %v4232 = vld [vmem:[%s3 + $0x80] sm:$0xff]
      %v4233 = vld [vmem:[%s3 + $0x88] sm:$0xff]
      %v4234 = vld [vmem:[%s3 + $0x90] sm:$0xff]
      %v4235 = vld [vmem:[%s3 + $0x98] sm:$0xff]
      %v4236 = vld [vmem:[%s3 + $0xa0] sm:$0xff]
      %v4237 = vld [vmem:[%s3 + $0xa8] sm:$0xff]
      %v4238 = vld [vmem:[%s3 + $0xb0] sm:$0xff]
      %v4239 = vld [vmem:[%s3 + $0xb8] sm:$0xff]
      %v4240 = vld [vmem:[%s3 + $0xc0] sm:$0xff]
      %v4241 = vld [vmem:[%s3 + $0xc8] sm:$0xff]
      %v4242 = vld [vmem:[%s3 + $0xd0] sm:$0xff]
      %v4243 = vld [vmem:[%s3 + $0xd8] sm:$0xff]
      %v4244 = vld [vmem:[%s3 + $0xe0] sm:$0xff]
      %v4245 = vld [vmem:[%s3 + $0xe8] sm:$0xff]
      %v4246 = vld [vmem:[%s3 + $0xf0] sm:$0xff]
      %v4247 = vld [vmem:[%s3 + $0xf8] sm:$0xff]
      %v4308 = vrot.slane %v4152, 1
      %v4309 = vrot.slane %v3963, 1
      %v4310 = vsel %vm489, %v4308, %v4309
      %v4311 = vrot.slane %v4153, 1
      %v4312 = vrot.slane %v3965, 1
      %v4313 = vsel %vm489, %v4311, %v4312
      %v4314 = vrot.slane %v4184, 1
      %v4315 = vsel %vm489, %v4309, %v4314
      %v4316 = vrot.slane %v4185, 1
      %v4317 = vsel %vm489, %v4312, %v4316
      %v4318 = vrot.slane %v4154, 1
      %v4319 = vrot.slane %v3969, 1
      %v4320 = vsel %vm489, %v4318, %v4319
      %v4321 = vrot.slane %v4155, 1
      %v4322 = vrot.slane %v3971, 1
      %v4323 = vsel %vm489, %v4321, %v4322
      %v4324 = vrot.slane %v4186, 1
      %v4325 = vsel %vm489, %v4319, %v4324
      %v4326 = vrot.slane %v4187, 1
      %v4327 = vsel %vm489, %v4322, %v4326
      %v4328 = vrot.slane %v4156, 1
      %v4329 = vrot.slane %v3975, 1
      %v4330 = vsel %vm489, %v4328, %v4329
      %v4331 = vrot.slane %v4157, 1
      %v4332 = vrot.slane %v3977, 1
      %v4333 = vsel %vm489, %v4331, %v4332
      %v4334 = vrot.slane %v4188, 1
      %v4335 = vsel %vm489, %v4329, %v4334
      %v4336 = vrot.slane %v4189, 1
      %v4337 = vsel %vm489, %v4332, %v4336
      %v4338 = vrot.slane %v4158, 1
      %v4339 = vrot.slane %v3981, 1
      %v4340 = vsel %vm489, %v4338, %v4339
      %v4341 = vrot.slane %v4159, 1
      %v4342 = vrot.slane %v3983, 1
      %v4343 = vsel %vm489, %v4341, %v4342
      %v4344 = vrot.slane %v4190, 1
      %v4345 = vsel %vm489, %v4339, %v4344
      %v4346 = vrot.slane %v4191, 1
      %v4347 = vsel %vm489, %v4342, %v4346
      %v4348 = vrot.slane %v4160, 1
      %v4349 = vrot.slane %v3987, 1
      %v4350 = vsel %vm489, %v4348, %v4349
      %v4351 = vrot.slane %v4161, 1
      %v4352 = vrot.slane %v3989, 1
      %v4353 = vsel %vm489, %v4351, %v4352
      %v4354 = vrot.slane %v4192, 1
      %v4355 = vsel %vm489, %v4349, %v4354
      %v4356 = vrot.slane %v4193, 1
      %v4357 = vsel %vm489, %v4352, %v4356
      %v4358 = vrot.slane %v4162, 1
      %v4359 = vrot.slane %v3993, 1
      %v4360 = vsel %vm489, %v4358, %v4359
      %v4361 = vrot.slane %v4163, 1
      %v4362 = vrot.slane %v3995, 1
      %v4363 = vsel %vm489, %v4361, %v4362
      %v4364 = vrot.slane %v4194, 1
      %v4365 = vsel %vm489, %v4359, %v4364
      %v4366 = vrot.slane %v4195, 1
      %v4367 = vsel %vm489, %v4362, %v4366
      %v4368 = vrot.slane %v4164, 1
      %v4369 = vrot.slane %v3999, 1
      %v4370 = vsel %vm489, %v4368, %v4369
      %v4371 = vrot.slane %v4165, 1
      %v4372 = vrot.slane %v4001, 1
      %v4373 = vsel %vm489, %v4371, %v4372
      %v4374 = vrot.slane %v4196, 1
      %v4375 = vsel %vm489, %v4369, %v4374
      %v4376 = vrot.slane %v4197, 1
      %v4377 = vsel %vm489, %v4372, %v4376
      %v4378 = vrot.slane %v4166, 1
      %v4379 = vrot.slane %v4005, 1
      %v4380 = vsel %vm489, %v4378, %v4379
      %v4381 = vrot.slane %v4167, 1
      %v4382 = vrot.slane %v4007, 1
      %v4383 = vsel %vm489, %v4381, %v4382
      %v4384 = vrot.slane %v4198, 1
      %v4385 = vsel %vm489, %v4379, %v4384
      %v4386 = vrot.slane %v4199, 1
      %v4387 = vsel %vm489, %v4382, %v4386
      %v4388 = vrot.slane %v4168, 1
      %v4389 = vrot.slane %v4011, 1
      %v4390 = vsel %vm489, %v4388, %v4389
      %v4391 = vrot.slane %v4169, 1
      %v4392 = vrot.slane %v4013, 1
      %v4393 = vsel %vm489, %v4391, %v4392
      %v4394 = vrot.slane %v4200, 1
      %v4395 = vsel %vm489, %v4389, %v4394
      %v4396 = vrot.slane %v4201, 1
      %v4397 = vsel %vm489, %v4392, %v4396
      %v4398 = vrot.slane %v4170, 1
      %v4399 = vrot.slane %v4017, 1
      %v4400 = vsel %vm489, %v4398, %v4399
      %v4401 = vrot.slane %v4171, 1
      %v4402 = vrot.slane %v4019, 1
      %v4403 = vsel %vm489, %v4401, %v4402
      %v4404 = vrot.slane %v4202, 1
      %v4405 = vsel %vm489, %v4399, %v4404
      %v4406 = vrot.slane %v4203, 1
      %v4407 = vsel %vm489, %v4402, %v4406
      %v4408 = vrot.slane %v4172, 1
      %v4409 = vrot.slane %v4023, 1
      %v4410 = vsel %vm489, %v4408, %v4409
      %v4411 = vrot.slane %v4173, 1
      %v4412 = vrot.slane %v4025, 1
      %v4413 = vsel %vm489, %v4411, %v4412
      %v4414 = vrot.slane %v4204, 1
      %v4415 = vsel %vm489, %v4409, %v4414
      %v4416 = vrot.slane %v4205, 1
      %v4417 = vsel %vm489, %v4412, %v4416
      %v4418 = vrot.slane %v4174, 1
      %v4419 = vrot.slane %v4029, 1
      %v4420 = vsel %vm489, %v4418, %v4419
      %v4421 = vrot.slane %v4175, 1
      %v4422 = vrot.slane %v4031, 1
      %v4423 = vsel %vm489, %v4421, %v4422
      %v4424 = vrot.slane %v4206, 1
      %v4425 = vsel %vm489, %v4419, %v4424
      %v4426 = vrot.slane %v4207, 1
      %v4427 = vsel %vm489, %v4422, %v4426
      %v4428 = vrot.slane %v4176, 1
      %v4429 = vrot.slane %v4035, 1
      %v4430 = vsel %vm489, %v4428, %v4429
      %v4431 = vrot.slane %v4177, 1
      %v4432 = vrot.slane %v4037, 1
      %v4433 = vsel %vm489, %v4431, %v4432
      %v4434 = vrot.slane %v4208, 1
      %v4435 = vsel %vm489, %v4429, %v4434
      %v4436 = vrot.slane %v4209, 1
      %v4437 = vsel %vm489, %v4432, %v4436
      %v4438 = vrot.slane %v4178, 1
      %v4439 = vrot.slane %v4041, 1
      %v4440 = vsel %vm489, %v4438, %v4439
      %v4441 = vrot.slane %v4179, 1
      %v4442 = vrot.slane %v4043, 1
      %v4443 = vsel %vm489, %v4441, %v4442
      %v4444 = vrot.slane %v4210, 1
      %v4445 = vsel %vm489, %v4439, %v4444
      %v4446 = vrot.slane %v4211, 1
      %v4447 = vsel %vm489, %v4442, %v4446
      %v4448 = vrot.slane %v4180, 1
      %v4449 = vrot.slane %v4047, 1
      %v4450 = vsel %vm489, %v4448, %v4449
      %v4451 = vrot.slane %v4181, 1
      %v4452 = vrot.slane %v4049, 1
      %v4453 = vsel %vm489, %v4451, %v4452
      %v4454 = vrot.slane %v4212, 1
      %v4455 = vsel %vm489, %v4449, %v4454
      %v4456 = vrot.slane %v4213, 1
      %v4457 = vsel %vm489, %v4452, %v4456
      %s4518 = scalar_lea.vmem %s3, 256
      %v4519 = vld [vmem:[%s4518] sm:$0xff]
      %v4520 = vld [vmem:[%s4518 + $0x8] sm:$0xff]
      %v4521 = vld [vmem:[%s4518 + $0x10] sm:$0xff]
      %v4522 = vld [vmem:[%s4518 + $0x18] sm:$0xff]
      %v4523 = vld [vmem:[%s4518 + $0x20] sm:$0xff]
      %v4524 = vld [vmem:[%s4518 + $0x28] sm:$0xff]
      %v4525 = vld [vmem:[%s4518 + $0x30] sm:$0xff]
      %v4526 = vld [vmem:[%s4518 + $0x38] sm:$0xff]
      %v4527 = vld [vmem:[%s4518 + $0x40] sm:$0xff]
      %v4528 = vld [vmem:[%s4518 + $0x48] sm:$0xff]
      %v4529 = vld [vmem:[%s4518 + $0x50] sm:$0xff]
      %v4530 = vld [vmem:[%s4518 + $0x58] sm:$0xff]
      %v4531 = vld [vmem:[%s4518 + $0x60] sm:$0xff]
      %v4532 = vld [vmem:[%s4518 + $0x68] sm:$0xff]
      %v4533 = vld [vmem:[%s4518 + $0x70] sm:$0xff]
      %v4534 = vld [vmem:[%s4518 + $0x78] sm:$0xff]
      %v4535 = vld [vmem:[%s4518 + $0x80] sm:$0xff]
      %v4536 = vld [vmem:[%s4518 + $0x88] sm:$0xff]
      %v4537 = vld [vmem:[%s4518 + $0x90] sm:$0xff]
      %v4538 = vld [vmem:[%s4518 + $0x98] sm:$0xff]
      %v4539 = vld [vmem:[%s4518 + $0xa0] sm:$0xff]
      %v4540 = vld [vmem:[%s4518 + $0xa8] sm:$0xff]
      %v4541 = vld [vmem:[%s4518 + $0xb0] sm:$0xff]
      %v4542 = vld [vmem:[%s4518 + $0xb8] sm:$0xff]
      %v4543 = vld [vmem:[%s4518 + $0xc0] sm:$0xff]
      %v4544 = vld [vmem:[%s4518 + $0xc8] sm:$0xff]
      %v4545 = vld [vmem:[%s4518 + $0xd0] sm:$0xff]
      %v4546 = vld [vmem:[%s4518 + $0xd8] sm:$0xff]
      %v4547 = vld [vmem:[%s4518 + $0xe0] sm:$0xff]
      %v4548 = vld [vmem:[%s4518 + $0xe8] sm:$0xff]
      %v4549 = vld [vmem:[%s4518 + $0xf0] sm:$0xff]
      %v4550 = vld [vmem:[%s4518 + $0xf8] sm:$0xff]
      %4551 = vmatprep.subr.mxu0 0.0
      %4552 = vmatpush1.msra.mxu0 %v4519
      %4553 = vmatprep.subr.mxu0 0.0
      %4554 = vmatpush1.msra.mxu0 %v4520
      %4555 = vmatprep.subr.mxu0 0.0
      %4556 = vmatpush1.msra.mxu0 %v4521
      %4557 = vmatprep.subr.mxu0 0.0
      %4558 = vmatpush1.msra.mxu0 %v4522
      %4559 = vmatprep.subr.mxu0 0.0
      %4560 = vmatpush1.msra.mxu0 %v4523
      %4561 = vmatprep.subr.mxu0 0.0
      %4562 = vmatpush1.msra.mxu0 %v4524
      %4563 = vmatprep.subr.mxu0 0.0
      %4564 = vmatpush1.msra.mxu0 %v4525
      %4565 = vmatprep.subr.mxu0 0.0
      %4566 = vmatpush1.msra.mxu0 %v4526
      %4567 = vmatprep.subr.mxu0 0.0
      %4568 = vmatpush1.msra.mxu0 %v4527
      %4569 = vmatprep.subr.mxu0 0.0
      %4570 = vmatpush1.msra.mxu0 %v4528
      %4571 = vmatprep.subr.mxu0 0.0
      %4572 = vmatpush1.msra.mxu0 %v4529
      %4573 = vmatprep.subr.mxu0 0.0
      %4574 = vmatpush1.msra.mxu0 %v4530
      %4575 = vmatprep.subr.mxu0 0.0
      %4576 = vmatpush1.msra.mxu0 %v4531
      %4577 = vmatprep.subr.mxu0 0.0
      %4578 = vmatpush1.msra.mxu0 %v4532
      %4579 = vmatprep.subr.mxu0 0.0
      %4580 = vmatpush1.msra.mxu0 %v4533
      %4581 = vmatprep.subr.mxu0 0.0
      %4582 = vmatpush1.msra.mxu0 %v4534
      %4583 = vmatprep.subr.mxu0 0.0
      %4584 = vmatpush1.msra.mxu0 %v4535
      %4585 = vmatprep.subr.mxu0 0.0
      %4586 = vmatpush1.msra.mxu0 %v4536
      %4587 = vmatprep.subr.mxu0 0.0
      %4588 = vmatpush1.msra.mxu0 %v4537
      %4589 = vmatprep.subr.mxu0 0.0
      %4590 = vmatpush1.msra.mxu0 %v4538
      %4591 = vmatprep.subr.mxu0 0.0
      %4592 = vmatpush1.msra.mxu0 %v4539
      %4593 = vmatprep.subr.mxu0 0.0
      %4594 = vmatpush1.msra.mxu0 %v4540
      %4595 = vmatprep.subr.mxu0 0.0
      %4596 = vmatpush1.msra.mxu0 %v4541
      %4597 = vmatprep.subr.mxu0 0.0
      %4598 = vmatpush1.msra.mxu0 %v4542
      %4599 = vmatprep.subr.mxu0 0.0
      %4600 = vmatpush1.msra.mxu0 %v4543
      %4601 = vmatprep.subr.mxu0 0.0
      %4602 = vmatpush1.msra.mxu0 %v4544
      %4603 = vmatprep.subr.mxu0 0.0
      %4604 = vmatpush1.msra.mxu0 %v4545
      %4605 = vmatprep.subr.mxu0 0.0
      %4606 = vmatpush1.msra.mxu0 %v4546
      %4607 = vmatprep.subr.mxu0 0.0
      %4608 = vmatpush1.msra.mxu0 %v4547
      %4609 = vmatprep.subr.mxu0 0.0
      %4610 = vmatpush1.msra.mxu0 %v4548
      %4611 = vmatprep.subr.mxu0 0.0
      %4612 = vmatpush1.msra.mxu0 %v4549
      %4613 = vmatprep.subr.mxu0 0.0
      %4614 = vmatpush1.msra.mxu0 %v4550
      %4615 = vmatprep.mubr.f32.mxu0 %v492
      %4616 = vmatmul.mubr.f32.gmra.mrb[0].mxu0 %v492
      %v4617 = vpop.f32.mrb[0].mxu0
      %v4618 = vadd.f32 0.0, %v4617
      %v4619 = vpop.f32.mrb[0].mxu0
      %4620 = vmatprep.mubr.f32.mxu0 %v494
      %4621 = vmatmul.mubr.f32.gmra.mrb[0].mxu0 %v494
      %v4622 = vpop.f32.mrb[0].mxu0
      %v4623 = vadd.f32 0.0, %v4622
      %v4624 = vpop.f32.mrb[0].mxu0
      %4625 = vmatprep.mubr.f32.mxu0 %v4313
      %4626 = vmatmul.mubr.f32.gmra.mrb[0].mxu0 %v4310
      %v4627 = vpop.f32.mrb[0].mxu0
      %v4628 = vadd.f32 0.0, %v4627
      %v4629 = vpop.f32.mrb[0].mxu0
      %4630 = vmatprep.mubr.f32.mxu0 %v4317
      %4631 = vmatmul.mubr.f32.gmra.mrb[0].mxu0 %v4315
      %v4632 = vpop.f32.mrb[0].mxu0
      %v4633 = vadd.f32 0.0, %v4632
      %v4634 = vpop.f32.mrb[0].mxu0
      %4635 = vmatprep.mubr.f32.mxu0 %v4323
      %4636 = vmatmul.mubr.f32.gmra.mrb[0].mxu0 %v4320
      %v4637 = vpop.f32.mrb[0].mxu0
      %v4638 = vadd.f32 0.0, %v4637
      %v4639 = vpop.f32.mrb[0].mxu0
      %4640 = vmatprep.mubr.f32.mxu0 %v4327
      %4641 = vmatmul.mubr.f32.gmra.mrb[0].mxu0 %v4325
      %v4642 = vpop.f32.mrb[0].mxu0
      %v4643 = vadd.f32 0.0, %v4642
      %v4644 = vpop.f32.mrb[0].mxu0
      %4645 = vmatprep.mubr.f32.mxu0 %v4333
      %4646 = vmatmul.mubr.f32.gmra.mrb[0].mxu0 %v4330
      %v4647 = vpop.f32.mrb[0].mxu0
      %v4648 = vadd.f32 0.0, %v4647
      %v4649 = vpop.f32.mrb[0].mxu0
      %4650 = vmatprep.mubr.f32.mxu0 %v4337
      %4651 = vmatmul.mubr.f32.gmra.mrb[0].mxu0 %v4335
      %v4652 = vpop.f32.mrb[0].mxu0
      %v4653 = vadd.f32 0.0, %v4652
      %v4654 = vpop.f32.mrb[0].mxu0
      %4655 = vmatprep.mubr.f32.mxu0 %v4343
      %4656 = vmatmul.mubr.f32.gmra.mrb[0].mxu0 %v4340
      %v4657 = vpop.f32.mrb[0].mxu0
      %v4658 = vadd.f32 0.0, %v4657
      %v4659 = vpop.f32.mrb[0].mxu0
      %4660 = vmatprep.mubr.f32.mxu0 %v4347
      %4661 = vmatmul.mubr.f32.gmra.mrb[0].mxu0 %v4345
      %v4662 = vpop.f32.mrb[0].mxu0
      %v4663 = vadd.f32 0.0, %v4662
      %v4664 = vpop.f32.mrb[0].mxu0
      %4665 = vmatprep.mubr.f32.mxu0 %v4353
      %4666 = vmatmul.mubr.f32.gmra.mrb[0].mxu0 %v4350
      %v4667 = vpop.f32.mrb[0].mxu0
      %v4668 = vadd.f32 0.0, %v4667
      %v4669 = vpop.f32.mrb[0].mxu0
      %4670 = vmatprep.mubr.f32.mxu0 %v4357
      %4671 = vmatmul.mubr.f32.gmra.mrb[0].mxu0 %v4355
      %v4672 = vpop.f32.mrb[0].mxu0
      %v4673 = vadd.f32 0.0, %v4672
      %v4674 = vpop.f32.mrb[0].mxu0
      %4675 = vmatprep.mubr.f32.mxu0 %v4363
      %4676 = vmatmul.mubr.f32.gmra.mrb[0].mxu0 %v4360
      %v4677 = vpop.f32.mrb[0].mxu0
      %v4678 = vadd.f32 0.0, %v4677
      %v4679 = vpop.f32.mrb[0].mxu0
      %4680 = vmatprep.mubr.f32.mxu0 %v4367
      %4681 = vmatmul.mubr.f32.gmra.mrb[0].mxu0 %v4365
      %v4682 = vpop.f32.mrb[0].mxu0
      %v4683 = vadd.f32 0.0, %v4682
      %v4684 = vpop.f32.mrb[0].mxu0
      %4685 = vmatprep.mubr.f32.mxu0 %v4373
      %4686 = vmatmul.mubr.f32.gmra.mrb[0].mxu0 %v4370
      %v4687 = vpop.f32.mrb[0].mxu0
      %v4688 = vadd.f32 0.0, %v4687
      %v4689 = vpop.f32.mrb[0].mxu0
      %4690 = vmatprep.mubr.f32.mxu0 %v4377
      %4691 = vmatmul.mubr.f32.gmra.mrb[0].mxu0 %v4375
      %v4692 = vpop.f32.mrb[0].mxu0
      %v4693 = vadd.f32 0.0, %v4692
      %v4694 = vpop.f32.mrb[0].mxu0
      %4695 = vmatprep.mubr.f32.mxu0 %v4383
      %4696 = vmatmul.mubr.f32.gmra.mrb[0].mxu0 %v4380
      %v4697 = vpop.f32.mrb[0].mxu0
      %v4698 = vadd.f32 0.0, %v4697
      %v4699 = vpop.f32.mrb[0].mxu0
      %4700 = vmatprep.mubr.f32.mxu0 %v4387
      %4701 = vmatmul.mubr.f32.gmra.mrb[0].mxu0 %v4385
      %v4702 = vpop.f32.mrb[0].mxu0
      %v4703 = vadd.f32 0.0, %v4702
      %v4704 = vpop.f32.mrb[0].mxu0
      %4705 = vmatprep.mubr.f32.mxu0 %v4393
      %4706 = vmatmul.mubr.f32.gmra.mrb[0].mxu0 %v4390
      %v4707 = vpop.f32.mrb[0].mxu0
      %v4708 = vadd.f32 0.0, %v4707
      %v4709 = vpop.f32.mrb[0].mxu0
      %4710 = vmatprep.mubr.f32.mxu0 %v4397
      %4711 = vmatmul.mubr.f32.gmra.mrb[0].mxu0 %v4395
      %v4712 = vpop.f32.mrb[0].mxu0
      %v4713 = vadd.f32 0.0, %v4712
      %v4714 = vpop.f32.mrb[0].mxu0
      %4715 = vmatprep.mubr.f32.mxu0 %v4403
      %4716 = vmatmul.mubr.f32.gmra.mrb[0].mxu0 %v4400
      %v4717 = vpop.f32.mrb[0].mxu0
      %v4718 = vadd.f32 0.0, %v4717
      %v4719 = vpop.f32.mrb[0].mxu0
      %4720 = vmatprep.mubr.f32.mxu0 %v4407
      %4721 = vmatmul.mubr.f32.gmra.mrb[0].mxu0 %v4405
      %v4722 = vpop.f32.mrb[0].mxu0
      %v4723 = vadd.f32 0.0, %v4722
      %v4724 = vpop.f32.mrb[0].mxu0
      %4725 = vmatprep.mubr.f32.mxu0 %v4413
      %4726 = vmatmul.mubr.f32.gmra.mrb[0].mxu0 %v4410
      %v4727 = vpop.f32.mrb[0].mxu0
      %v4728 = vadd.f32 0.0, %v4727
      %v4729 = vpop.f32.mrb[0].mxu0
      %4730 = vmatprep.mubr.f32.mxu0 %v4417
      %4731 = vmatmul.mubr.f32.gmra.mrb[0].mxu0 %v4415
      %v4732 = vpop.f32.mrb[0].mxu0
      %v4733 = vadd.f32 0.0, %v4732
      %v4734 = vpop.f32.mrb[0].mxu0
      %4735 = vmatprep.mubr.f32.mxu0 %v4423
      %4736 = vmatmul.mubr.f32.gmra.mrb[0].mxu0 %v4420
      %v4737 = vpop.f32.mrb[0].mxu0
      %v4738 = vadd.f32 0.0, %v4737
      %v4739 = vpop.f32.mrb[0].mxu0
      %4740 = vmatprep.mubr.f32.mxu0 %v4427
      %4741 = vmatmul.mubr.f32.gmra.mrb[0].mxu0 %v4425
      %v4742 = vpop.f32.mrb[0].mxu0
      %v4743 = vadd.f32 0.0, %v4742
      %v4744 = vpop.f32.mrb[0].mxu0
      %4745 = vmatprep.mubr.f32.mxu0 %v4433
      %4746 = vmatmul.mubr.f32.gmra.mrb[0].mxu0 %v4430
      %v4747 = vpop.f32.mrb[0].mxu0
      %v4748 = vadd.f32 0.0, %v4747
      %v4749 = vpop.f32.mrb[0].mxu0
      %4750 = vmatprep.mubr.f32.mxu0 %v4437
      %4751 = vmatmul.mubr.f32.gmra.mrb[0].mxu0 %v4435
      %v4752 = vpop.f32.mrb[0].mxu0
      %v4753 = vadd.f32 0.0, %v4752
      %v4754 = vpop.f32.mrb[0].mxu0
      %4755 = vmatprep.mubr.f32.mxu0 %v4443
      %4756 = vmatmul.mubr.f32.gmra.mrb[0].mxu0 %v4440
      %v4757 = vpop.f32.mrb[0].mxu0
      %v4758 = vadd.f32 0.0, %v4757
      %v4759 = vpop.f32.mrb[0].mxu0
      %4760 = vmatprep.mubr.f32.mxu0 %v4447
      %4761 = vmatmul.mubr.f32.gmra.mrb[0].mxu0 %v4445
      %v4762 = vpop.f32.mrb[0].mxu0
      %v4763 = vadd.f32 0.0, %v4762
      %v4764 = vpop.f32.mrb[0].mxu0
      %4765 = vmatprep.mubr.f32.mxu0 %v4453
      %4766 = vmatmul.mubr.f32.gmra.mrb[0].mxu0 %v4450
      %v4767 = vpop.f32.mrb[0].mxu0
      %v4768 = vadd.f32 0.0, %v4767
      %v4769 = vpop.f32.mrb[0].mxu0
      %4770 = vmatprep.mubr.f32.mxu0 %v4457
      %4771 = vmatmul.mubr.f32.gmra.mrb[0].mxu0 %v4455
      %v4772 = vpop.f32.mrb[0].mxu0
      %v4773 = vadd.f32 0.0, %v4772
      %v4774 = vpop.f32.mrb[0].mxu0
      %4775 = vdwg.mxu0
      %4776 = vmatprep.subr.mxu0 0.0
      %4777 = vmatpush1.msra.mxu0 %v4216
      %4778 = vmatprep.subr.mxu0 0.0
      %4779 = vmatpush1.msra.mxu0 %v4217
      %4780 = vmatprep.subr.mxu0 0.0
      %4781 = vmatpush1.msra.mxu0 %v4218
      %4782 = vmatprep.subr.mxu0 0.0
      %4783 = vmatpush1.msra.mxu0 %v4219
      %4784 = vmatprep.subr.mxu0 0.0
      %4785 = vmatpush1.msra.mxu0 %v4220
      %4786 = vmatprep.subr.mxu0 0.0
      %4787 = vmatpush1.msra.mxu0 %v4221
      %4788 = vmatprep.subr.mxu0 0.0
      %4789 = vmatpush1.msra.mxu0 %v4222
      %4790 = vmatprep.subr.mxu0 0.0
      %4791 = vmatpush1.msra.mxu0 %v4223
      %4792 = vmatprep.subr.mxu0 0.0
      %4793 = vmatpush1.msra.mxu0 %v4224
      %4794 = vmatprep.subr.mxu0 0.0
      %4795 = vmatpush1.msra.mxu0 %v4225
      %4796 = vmatprep.subr.mxu0 0.0
      %4797 = vmatpush1.msra.mxu0 %v4226
      %4798 = vmatprep.subr.mxu0 0.0
      %4799 = vmatpush1.msra.mxu0 %v4227
      %4800 = vmatprep.subr.mxu0 0.0
      %4801 = vmatpush1.msra.mxu0 %v4228
      %4802 = vmatprep.subr.mxu0 0.0
      %4803 = vmatpush1.msra.mxu0 %v4229
      %4804 = vmatprep.subr.mxu0 0.0
      %4805 = vmatpush1.msra.mxu0 %v4230
      %4806 = vmatprep.subr.mxu0 0.0
      %4807 = vmatpush1.msra.mxu0 %v4231
      %4808 = vmatprep.subr.mxu0 0.0
      %4809 = vmatpush1.msra.mxu0 %v4232
      %4810 = vmatprep.subr.mxu0 0.0
      %4811 = vmatpush1.msra.mxu0 %v4233
      %4812 = vmatprep.subr.mxu0 0.0
      %4813 = vmatpush1.msra.mxu0 %v4234
      %4814 = vmatprep.subr.mxu0 0.0
      %4815 = vmatpush1.msra.mxu0 %v4235
      %4816 = vmatprep.subr.mxu0 0.0
      %4817 = vmatpush1.msra.mxu0 %v4236
      %4818 = vmatprep.subr.mxu0 0.0
      %4819 = vmatpush1.msra.mxu0 %v4237
      %4820 = vmatprep.subr.mxu0 0.0
      %4821 = vmatpush1.msra.mxu0 %v4238
      %4822 = vmatprep.subr.mxu0 0.0
      %4823 = vmatpush1.msra.mxu0 %v4239
      %4824 = vmatprep.subr.mxu0 0.0
      %4825 = vmatpush1.msra.mxu0 %v4240
      %4826 = vmatprep.subr.mxu0 0.0
      %4827 = vmatpush1.msra.mxu0 %v4241
      %4828 = vmatprep.subr.mxu0 0.0
      %4829 = vmatpush1.msra.mxu0 %v4242
      %4830 = vmatprep.subr.mxu0 0.0
      %4831 = vmatpush1.msra.mxu0 %v4243
      %4832 = vmatprep.subr.mxu0 0.0
      %4833 = vmatpush1.msra.mxu0 %v4244
      %4834 = vmatprep.subr.mxu0 0.0
      %4835 = vmatpush1.msra.mxu0 %v4245
      %4836 = vmatprep.subr.mxu0 0.0
      %4837 = vmatpush1.msra.mxu0 %v4246
      %4838 = vmatprep.subr.mxu0 0.0
      %4839 = vmatpush1.msra.mxu0 %v4247
      %4840 = vmatprep.mubr.f32.mxu0 %v391
      %4841 = vmatmul.mubr.f32.gmra.mrb[0].mxu0 %v391
      %v4842 = vpop.f32.mrb[0].mxu0
      %v4843 = vadd.f32 %v4618, %v4842
      %v4844 = vpop.f32.mrb[0].mxu0
      %4845 = vmatprep.mubr.f32.mxu0 %v292
      %4846 = vmatmul.mubr.f32.gmra.mrb[0].mxu0 %v292
      %v4847 = vpop.f32.mrb[0].mxu0
      %v4848 = vadd.f32 %v4623, %v4847
      %v4849 = vpop.f32.mrb[0].mxu0
      %4850 = vmatprep.mubr.f32.mxu0 %v4153
      %4851 = vmatmul.mubr.f32.gmra.mrb[0].mxu0 %v4152
      %v4852 = vpop.f32.mrb[0].mxu0
      %v4853 = vadd.f32 %v4628, %v4852
      %v4854 = vpop.f32.mrb[0].mxu0
      %4855 = vmatprep.mubr.f32.mxu0 %v3965
      %4856 = vmatmul.mubr.f32.gmra.mrb[0].mxu0 %v3963
      %v4857 = vpop.f32.mrb[0].mxu0
      %v4858 = vadd.f32 %v4633, %v4857
      %v4859 = vpop.f32.mrb[0].mxu0
      %4860 = vmatprep.mubr.f32.mxu0 %v4155
      %4861 = vmatmul.mubr.f32.gmra.mrb[0].mxu0 %v4154
      %v4862 = vpop.f32.mrb[0].mxu0
      %v4863 = vadd.f32 %v4638, %v4862
      %v4864 = vpop.f32.mrb[0].mxu0
      %4865 = vmatprep.mubr.f32.mxu0 %v3971
      %4866 = vmatmul.mubr.f32.gmra.mrb[0].mxu0 %v3969
      %v4867 = vpop.f32.mrb[0].mxu0
      %v4868 = vadd.f32 %v4643, %v4867
      %v4869 = vpop.f32.mrb[0].mxu0
      %4870 = vmatprep.mubr.f32.mxu0 %v4157
      %4871 = vmatmul.mubr.f32.gmra.mrb[0].mxu0 %v4156
      %v4872 = vpop.f32.mrb[0].mxu0
      %v4873 = vadd.f32 %v4648, %v4872
      %v4874 = vpop.f32.mrb[0].mxu0
      %4875 = vmatprep.mubr.f32.mxu0 %v3977
      %4876 = vmatmul.mubr.f32.gmra.mrb[0].mxu0 %v3975
      %v4877 = vpop.f32.mrb[0].mxu0
      %v4878 = vadd.f32 %v4653, %v4877
      %v4879 = vpop.f32.mrb[0].mxu0
      %4880 = vmatprep.mubr.f32.mxu0 %v4159
      %4881 = vmatmul.mubr.f32.gmra.mrb[0].mxu0 %v4158
      %v4882 = vpop.f32.mrb[0].mxu0
      %v4883 = vadd.f32 %v4658, %v4882
      %v4884 = vpop.f32.mrb[0].mxu0
      %4885 = vmatprep.mubr.f32.mxu0 %v3983
      %4886 = vmatmul.mubr.f32.gmra.mrb[0].mxu0 %v3981
      %v4887 = vpop.f32.mrb[0].mxu0
      %v4888 = vadd.f32 %v4663, %v4887
      %v4889 = vpop.f32.mrb[0].mxu0
      %4890 = vmatprep.mubr.f32.mxu0 %v4161
      %4891 = vmatmul.mubr.f32.gmra.mrb[0].mxu0 %v4160
      %v4892 = vpop.f32.mrb[0].mxu0
      %v4893 = vadd.f32 %v4668, %v4892
      %v4894 = vpop.f32.mrb[0].mxu0
      %4895 = vmatprep.mubr.f32.mxu0 %v3989
      %4896 = vmatmul.mubr.f32.gmra.mrb[0].mxu0 %v3987
      %v4897 = vpop.f32.mrb[0].mxu0
      %v4898 = vadd.f32 %v4673, %v4897
      %v4899 = vpop.f32.mrb[0].mxu0
      %4900 = vmatprep.mubr.f32.mxu0 %v4163
      %4901 = vmatmul.mubr.f32.gmra.mrb[0].mxu0 %v4162
      %v4902 = vpop.f32.mrb[0].mxu0
      %v4903 = vadd.f32 %v4678, %v4902
      %v4904 = vpop.f32.mrb[0].mxu0
      %4905 = vmatprep.mubr.f32.mxu0 %v3995
      %4906 = vmatmul.mubr.f32.gmra.mrb[0].mxu0 %v3993
      %v4907 = vpop.f32.mrb[0].mxu0
      %v4908 = vadd.f32 %v4683, %v4907
      %v4909 = vpop.f32.mrb[0].mxu0
      %4910 = vmatprep.mubr.f32.mxu0 %v4165
      %4911 = vmatmul.mubr.f32.gmra.mrb[0].mxu0 %v4164
      %v4912 = vpop.f32.mrb[0].mxu0
      %v4913 = vadd.f32 %v4688, %v4912
      %v4914 = vpop.f32.mrb[0].mxu0
      %4915 = vmatprep.mubr.f32.mxu0 %v4001
      %4916 = vmatmul.mubr.f32.gmra.mrb[0].mxu0 %v3999
      %v4917 = vpop.f32.mrb[0].mxu0
      %v4918 = vadd.f32 %v4693, %v4917
      %v4919 = vpop.f32.mrb[0].mxu0
      %4920 = vmatprep.mubr.f32.mxu0 %v4167
      %4921 = vmatmul.mubr.f32.gmra.mrb[0].mxu0 %v4166
      %v4922 = vpop.f32.mrb[0].mxu0
      %v4923 = vadd.f32 %v4698, %v4922
      %v4924 = vpop.f32.mrb[0].mxu0
      %4925 = vmatprep.mubr.f32.mxu0 %v4007
      %4926 = vmatmul.mubr.f32.gmra.mrb[0].mxu0 %v4005
      %v4927 = vpop.f32.mrb[0].mxu0
      %v4928 = vadd.f32 %v4703, %v4927
      %v4929 = vpop.f32.mrb[0].mxu0
      %4930 = vmatprep.mubr.f32.mxu0 %v4169
      %4931 = vmatmul.mubr.f32.gmra.mrb[0].mxu0 %v4168
      %v4932 = vpop.f32.mrb[0].mxu0
      %v4933 = vadd.f32 %v4708, %v4932
      %v4934 = vpop.f32.mrb[0].mxu0
      %4935 = vmatprep.mubr.f32.mxu0 %v4013
      %4936 = vmatmul.mubr.f32.gmra.mrb[0].mxu0 %v4011
      %v4937 = vpop.f32.mrb[0].mxu0
      %v4938 = vadd.f32 %v4713, %v4937
      %v4939 = vpop.f32.mrb[0].mxu0
      %4940 = vmatprep.mubr.f32.mxu0 %v4171
      %4941 = vmatmul.mubr.f32.gmra.mrb[0].mxu0 %v4170
      %v4942 = vpop.f32.mrb[0].mxu0
      %v4943 = vadd.f32 %v4718, %v4942
      %v4944 = vpop.f32.mrb[0].mxu0
      %4945 = vmatprep.mubr.f32.mxu0 %v4019
      %4946 = vmatmul.mubr.f32.gmra.mrb[0].mxu0 %v4017
      %v4947 = vpop.f32.mrb[0].mxu0
      %v4948 = vadd.f32 %v4723, %v4947
      %v4949 = vpop.f32.mrb[0].mxu0
      %4950 = vmatprep.mubr.f32.mxu0 %v4173
      %4951 = vmatmul.mubr.f32.gmra.mrb[0].mxu0 %v4172
      %v4952 = vpop.f32.mrb[0].mxu0
      %v4953 = vadd.f32 %v4728, %v4952
      %v4954 = vpop.f32.mrb[0].mxu0
      %4955 = vmatprep.mubr.f32.mxu0 %v4025
      %4956 = vmatmul.mubr.f32.gmra.mrb[0].mxu0 %v4023
      %v4957 = vpop.f32.mrb[0].mxu0
      %v4958 = vadd.f32 %v4733, %v4957
      %v4959 = vpop.f32.mrb[0].mxu0
      %4960 = vmatprep.mubr.f32.mxu0 %v4175
      %4961 = vmatmul.mubr.f32.gmra.mrb[0].mxu0 %v4174
      %v4962 = vpop.f32.mrb[0].mxu0
      %v4963 = vadd.f32 %v4738, %v4962
      %v4964 = vpop.f32.mrb[0].mxu0
      %4965 = vmatprep.mubr.f32.mxu0 %v4031
      %4966 = vmatmul.mubr.f32.gmra.mrb[0].mxu0 %v4029
      %v4967 = vpop.f32.mrb[0].mxu0
      %v4968 = vadd.f32 %v4743, %v4967
      %v4969 = vpop.f32.mrb[0].mxu0
      %4970 = vmatprep.mubr.f32.mxu0 %v4177
      %4971 = vmatmul.mubr.f32.gmra.mrb[0].mxu0 %v4176
      %v4972 = vpop.f32.mrb[0].mxu0
      %v4973 = vadd.f32 %v4748, %v4972
      %v4974 = vpop.f32.mrb[0].mxu0
      %4975 = vmatprep.mubr.f32.mxu0 %v4037
      %4976 = vmatmul.mubr.f32.gmra.mrb[0].mxu0 %v4035
      %v4977 = vpop.f32.mrb[0].mxu0
      %v4978 = vadd.f32 %v4753, %v4977
      %v4979 = vpop.f32.mrb[0].mxu0
      %4980 = vmatprep.mubr.f32.mxu0 %v4179
      %4981 = vmatmul.mubr.f32.gmra.mrb[0].mxu0 %v4178
      %v4982 = vpop.f32.mrb[0].mxu0
      %v4983 = vadd.f32 %v4758, %v4982
      %v4984 = vpop.f32.mrb[0].mxu0
      %4985 = vmatprep.mubr.f32.mxu0 %v4043
      %4986 = vmatmul.mubr.f32.gmra.mrb[0].mxu0 %v4041
      %v4987 = vpop.f32.mrb[0].mxu0
      %v4988 = vadd.f32 %v4763, %v4987
      %v4989 = vpop.f32.mrb[0].mxu0
      %4990 = vmatprep.mubr.f32.mxu0 %v4181
      %4991 = vmatmul.mubr.f32.gmra.mrb[0].mxu0 %v4180
      %v4992 = vpop.f32.mrb[0].mxu0
      %v4993 = vadd.f32 %v4768, %v4992
      %v4994 = vpop.f32.mrb[0].mxu0
      %4995 = vmatprep.mubr.f32.mxu0 %v4049
      %4996 = vmatmul.mubr.f32.gmra.mrb[0].mxu0 %v4047
      %v4997 = vpop.f32.mrb[0].mxu0
      %v4998 = vadd.f32 %v4773, %v4997
      %v4999 = vpop.f32.mrb[0].mxu0
      %5000 = vdwg.mxu0
      %v5001 = vrot.slane %v4152, 2
      %v5002 = vrot.slane %v3963, 2
      %v5003 = vsel %vm1149, %v5001, %v5002
      %v5004 = vrot.slane %v4153, 2
      %v5005 = vrot.slane %v3965, 2
      %v5006 = vsel %vm1149, %v5004, %v5005
      %v5007 = vrot.slane %v4184, 2
      %v5008 = vsel %vm1149, %v5002, %v5007
      %v5009 = vrot.slane %v4185, 2
      %v5010 = vsel %vm1149, %v5005, %v5009
      %v5011 = vrot.slane %v4154, 2
      %v5012 = vrot.slane %v3969, 2
      %v5013 = vsel %vm1149, %v5011, %v5012
      %v5014 = vrot.slane %v4155, 2
      %v5015 = vrot.slane %v3971, 2
      %v5016 = vsel %vm1149, %v5014, %v5015
      %v5017 = vrot.slane %v4186, 2
      %v5018 = vsel %vm1149, %v5012, %v5017
      %v5019 = vrot.slane %v4187, 2
      %v5020 = vsel %vm1149, %v5015, %v5019
      %v5021 = vrot.slane %v4156, 2
      %v5022 = vrot.slane %v3975, 2
      %v5023 = vsel %vm1149, %v5021, %v5022
      %v5024 = vrot.slane %v4157, 2
      %v5025 = vrot.slane %v3977, 2
      %v5026 = vsel %vm1149, %v5024, %v5025
      %v5027 = vrot.slane %v4188, 2
      %v5028 = vsel %vm1149, %v5022, %v5027
      %v5029 = vrot.slane %v4189, 2
      %v5030 = vsel %vm1149, %v5025, %v5029
      %v5031 = vrot.slane %v4158, 2
      %v5032 = vrot.slane %v3981, 2
      %v5033 = vsel %vm1149, %v5031, %v5032
      %v5034 = vrot.slane %v4159, 2
      %v5035 = vrot.slane %v3983, 2
      %v5036 = vsel %vm1149, %v5034, %v5035
      %v5037 = vrot.slane %v4190, 2
      %v5038 = vsel %vm1149, %v5032, %v5037
      %v5039 = vrot.slane %v4191, 2
      %v5040 = vsel %vm1149, %v5035, %v5039
      %v5041 = vrot.slane %v4160, 2
      %v5042 = vrot.slane %v3987, 2
      %v5043 = vsel %vm1149, %v5041, %v5042
      %v5044 = vrot.slane %v4161, 2
      %v5045 = vrot.slane %v3989, 2
      %v5046 = vsel %vm1149, %v5044, %v5045
      %v5047 = vrot.slane %v4192, 2
      %v5048 = vsel %vm1149, %v5042, %v5047
      %v5049 = vrot.slane %v4193, 2
      %v5050 = vsel %vm1149, %v5045, %v5049
      %v5051 = vrot.slane %v4162, 2
      %v5052 = vrot.slane %v3993, 2
      %v5053 = vsel %vm1149, %v5051, %v5052
      %v5054 = vrot.slane %v4163, 2
      %v5055 = vrot.slane %v3995, 2
      %v5056 = vsel %vm1149, %v5054, %v5055
      %v5057 = vrot.slane %v4194, 2
      %v5058 = vsel %vm1149, %v5052, %v5057
      %v5059 = vrot.slane %v4195, 2
      %v5060 = vsel %vm1149, %v5055, %v5059
      %v5061 = vrot.slane %v4164, 2
      %v5062 = vrot.slane %v3999, 2
      %v5063 = vsel %vm1149, %v5061, %v5062
      %v5064 = vrot.slane %v4165, 2
      %v5065 = vrot.slane %v4001, 2
      %v5066 = vsel %vm1149, %v5064, %v5065
      %v5067 = vrot.slane %v4196, 2
      %v5068 = vsel %vm1149, %v5062, %v5067
      %v5069 = vrot.slane %v4197, 2
      %v5070 = vsel %vm1149, %v5065, %v5069
      %v5071 = vrot.slane %v4166, 2
      %v5072 = vrot.slane %v4005, 2
      %v5073 = vsel %vm1149, %v5071, %v5072
      %v5074 = vrot.slane %v4167, 2
      %v5075 = vrot.slane %v4007, 2
      %v5076 = vsel %vm1149, %v5074, %v5075
      %v5077 = vrot.slane %v4198, 2
      %v5078 = vsel %vm1149, %v5072, %v5077
      %v5079 = vrot.slane %v4199, 2
      %v5080 = vsel %vm1149, %v5075, %v5079
      %v5081 = vrot.slane %v4168, 2
      %v5082 = vrot.slane %v4011, 2
      %v5083 = vsel %vm1149, %v5081, %v5082
      %v5084 = vrot.slane %v4169, 2
      %v5085 = vrot.slane %v4013, 2
      %v5086 = vsel %vm1149, %v5084, %v5085
      %v5087 = vrot.slane %v4200, 2
      %v5088 = vsel %vm1149, %v5082, %v5087
      %v5089 = vrot.slane %v4201, 2
      %v5090 = vsel %vm1149, %v5085, %v5089
      %v5091 = vrot.slane %v4170, 2
      %v5092 = vrot.slane %v4017, 2
      %v5093 = vsel %vm1149, %v5091, %v5092
      %v5094 = vrot.slane %v4171, 2
      %v5095 = vrot.slane %v4019, 2
      %v5096 = vsel %vm1149, %v5094, %v5095
      %v5097 = vrot.slane %v4202, 2
      %v5098 = vsel %vm1149, %v5092, %v5097
      %v5099 = vrot.slane %v4203, 2
      %v5100 = vsel %vm1149, %v5095, %v5099
      %v5101 = vrot.slane %v4172, 2
      %v5102 = vrot.slane %v4023, 2
      %v5103 = vsel %vm1149, %v5101, %v5102
      %v5104 = vrot.slane %v4173, 2
      %v5105 = vrot.slane %v4025, 2
      %v5106 = vsel %vm1149, %v5104, %v5105
      %v5107 = vrot.slane %v4204, 2
      %v5108 = vsel %vm1149, %v5102, %v5107
      %v5109 = vrot.slane %v4205, 2
      %v5110 = vsel %vm1149, %v5105, %v5109
      %v5111 = vrot.slane %v4174, 2
      %v5112 = vrot.slane %v4029, 2
      %v5113 = vsel %vm1149, %v5111, %v5112
      %v5114 = vrot.slane %v4175, 2
      %v5115 = vrot.slane %v4031, 2
      %v5116 = vsel %vm1149, %v5114, %v5115
      %v5117 = vrot.slane %v4206, 2
      %v5118 = vsel %vm1149, %v5112, %v5117
      %v5119 = vrot.slane %v4207, 2
      %v5120 = vsel %vm1149, %v5115, %v5119
      %v5121 = vrot.slane %v4176, 2
      %v5122 = vrot.slane %v4035, 2
      %v5123 = vsel %vm1149, %v5121, %v5122
      %v5124 = vrot.slane %v4177, 2
      %v5125 = vrot.slane %v4037, 2
      %v5126 = vsel %vm1149, %v5124, %v5125
      %v5127 = vrot.slane %v4208, 2
      %v5128 = vsel %vm1149, %v5122, %v5127
      %v5129 = vrot.slane %v4209, 2
      %v5130 = vsel %vm1149, %v5125, %v5129
      %v5131 = vrot.slane %v4178, 2
      %v5132 = vrot.slane %v4041, 2
      %v5133 = vsel %vm1149, %v5131, %v5132
      %v5134 = vrot.slane %v4179, 2
      %v5135 = vrot.slane %v4043, 2
      %v5136 = vsel %vm1149, %v5134, %v5135
      %v5137 = vrot.slane %v4210, 2
      %v5138 = vsel %vm1149, %v5132, %v5137
      %v5139 = vrot.slane %v4211, 2
      %v5140 = vsel %vm1149, %v5135, %v5139
      %v5141 = vrot.slane %v4180, 2
      %v5142 = vrot.slane %v4047, 2
      %v5143 = vsel %vm1149, %v5141, %v5142
      %v5144 = vrot.slane %v4181, 2
      %v5145 = vrot.slane %v4049, 2
      %v5146 = vsel %vm1149, %v5144, %v5145
      %v5147 = vrot.slane %v4212, 2
      %v5148 = vsel %vm1149, %v5142, %v5147
      %v5149 = vrot.slane %v4213, 2
      %v5150 = vsel %vm1149, %v5145, %v5149
      %s5211 = scalar_lea.vmem %s3, 512
      %v5212 = vld [vmem:[%s5211] sm:$0xff]
      %v5213 = vld [vmem:[%s5211 + $0x8] sm:$0xff]
      %v5214 = vld [vmem:[%s5211 + $0x10] sm:$0xff]
      %v5215 = vld [vmem:[%s5211 + $0x18] sm:$0xff]
      %v5216 = vld [vmem:[%s5211 + $0x20] sm:$0xff]
      %v5217 = vld [vmem:[%s5211 + $0x28] sm:$0xff]
      %v5218 = vld [vmem:[%s5211 + $0x30] sm:$0xff]
      %v5219 = vld [vmem:[%s5211 + $0x38] sm:$0xff]
      %v5220 = vld [vmem:[%s5211 + $0x40] sm:$0xff]
      %v5221 = vld [vmem:[%s5211 + $0x48] sm:$0xff]
      %v5222 = vld [vmem:[%s5211 + $0x50] sm:$0xff]
      %v5223 = vld [vmem:[%s5211 + $0x58] sm:$0xff]
      %v5224 = vld [vmem:[%s5211 + $0x60] sm:$0xff]
      %v5225 = vld [vmem:[%s5211 + $0x68] sm:$0xff]
      %v5226 = vld [vmem:[%s5211 + $0x70] sm:$0xff]
      %v5227 = vld [vmem:[%s5211 + $0x78] sm:$0xff]
      %v5228 = vld [vmem:[%s5211 + $0x80] sm:$0xff]
      %v5229 = vld [vmem:[%s5211 + $0x88] sm:$0xff]
      %v5230 = vld [vmem:[%s5211 + $0x90] sm:$0xff]
      %v5231 = vld [vmem:[%s5211 + $0x98] sm:$0xff]
      %v5232 = vld [vmem:[%s5211 + $0xa0] sm:$0xff]
      %v5233 = vld [vmem:[%s5211 + $0xa8] sm:$0xff]
      %v5234 = vld [vmem:[%s5211 + $0xb0] sm:$0xff]
      %v5235 = vld [vmem:[%s5211 + $0xb8] sm:$0xff]
      %v5236 = vld [vmem:[%s5211 + $0xc0] sm:$0xff]
      %v5237 = vld [vmem:[%s5211 + $0xc8] sm:$0xff]
      %v5238 = vld [vmem:[%s5211 + $0xd0] sm:$0xff]
      %v5239 = vld [vmem:[%s5211 + $0xd8] sm:$0xff]
      %v5240 = vld [vmem:[%s5211 + $0xe0] sm:$0xff]
      %v5241 = vld [vmem:[%s5211 + $0xe8] sm:$0xff]
      %v5242 = vld [vmem:[%s5211 + $0xf0] sm:$0xff]
      %v5243 = vld [vmem:[%s5211 + $0xf8] sm:$0xff]
      %5244 = vmatprep.subr.mxu0 0.0
      %5245 = vmatpush1.msra.mxu0 %v5212
      %5246 = vmatprep.subr.mxu0 0.0
      %5247 = vmatpush1.msra.mxu0 %v5213
      %5248 = vmatprep.subr.mxu0 0.0
      %5249 = vmatpush1.msra.mxu0 %v5214
      %5250 = vmatprep.subr.mxu0 0.0
      %5251 = vmatpush1.msra.mxu0 %v5215
      %5252 = vmatprep.subr.mxu0 0.0
      %5253 = vmatpush1.msra.mxu0 %v5216
      %5254 = vmatprep.subr.mxu0 0.0
      %5255 = vmatpush1.msra.mxu0 %v5217
      %5256 = vmatprep.subr.mxu0 0.0
      %5257 = vmatpush1.msra.mxu0 %v5218
      %5258 = vmatprep.subr.mxu0 0.0
      %5259 = vmatpush1.msra.mxu0 %v5219
      %5260 = vmatprep.subr.mxu0 0.0
      %5261 = vmatpush1.msra.mxu0 %v5220
      %5262 = vmatprep.subr.mxu0 0.0
      %5263 = vmatpush1.msra.mxu0 %v5221
      %5264 = vmatprep.subr.mxu0 0.0
      %5265 = vmatpush1.msra.mxu0 %v5222
      %5266 = vmatprep.subr.mxu0 0.0
      %5267 = vmatpush1.msra.mxu0 %v5223
      %5268 = vmatprep.subr.mxu0 0.0
      %5269 = vmatpush1.msra.mxu0 %v5224
      %5270 = vmatprep.subr.mxu0 0.0
      %5271 = vmatpush1.msra.mxu0 %v5225
      %5272 = vmatprep.subr.mxu0 0.0
      %5273 = vmatpush1.msra.mxu0 %v5226
      %5274 = vmatprep.subr.mxu0 0.0
      %5275 = vmatpush1.msra.mxu0 %v5227
      %5276 = vmatprep.subr.mxu0 0.0
      %5277 = vmatpush1.msra.mxu0 %v5228
      %5278 = vmatprep.subr.mxu0 0.0
      %5279 = vmatpush1.msra.mxu0 %v5229
      %5280 = vmatprep.subr.mxu0 0.0
      %5281 = vmatpush1.msra.mxu0 %v5230
      %5282 = vmatprep.subr.mxu0 0.0
      %5283 = vmatpush1.msra.mxu0 %v5231
      %5284 = vmatprep.subr.mxu0 0.0
      %5285 = vmatpush1.msra.mxu0 %v5232
      %5286 = vmatprep.subr.mxu0 0.0
      %5287 = vmatpush1.msra.mxu0 %v5233
      %5288 = vmatprep.subr.mxu0 0.0
      %5289 = vmatpush1.msra.mxu0 %v5234
      %5290 = vmatprep.subr.mxu0 0.0
      %5291 = vmatpush1.msra.mxu0 %v5235
      %5292 = vmatprep.subr.mxu0 0.0
      %5293 = vmatpush1.msra.mxu0 %v5236
      %5294 = vmatprep.subr.mxu0 0.0
      %5295 = vmatpush1.msra.mxu0 %v5237
      %5296 = vmatprep.subr.mxu0 0.0
      %5297 = vmatpush1.msra.mxu0 %v5238
      %5298 = vmatprep.subr.mxu0 0.0
      %5299 = vmatpush1.msra.mxu0 %v5239
      %5300 = vmatprep.subr.mxu0 0.0
      %5301 = vmatpush1.msra.mxu0 %v5240
      %5302 = vmatprep.subr.mxu0 0.0
      %5303 = vmatpush1.msra.mxu0 %v5241
      %5304 = vmatprep.subr.mxu0 0.0
      %5305 = vmatpush1.msra.mxu0 %v5242
      %5306 = vmatprep.subr.mxu0 0.0
      %5307 = vmatpush1.msra.mxu0 %v5243
      %5308 = vmatprep.mubr.f32.mxu0 %v1152
      %5309 = vmatmul.mubr.f32.gmra.mrb[0].mxu0 %v1152
      %v5310 = vpop.f32.mrb[0].mxu0
      %v5311 = vadd.f32 0.0, %v5310
      %v5312 = vpop.f32.mrb[0].mxu0
      %5313 = vmatprep.mubr.f32.mxu0 %v1154
      %5314 = vmatmul.mubr.f32.gmra.mrb[0].mxu0 %v1154
      %v5315 = vpop.f32.mrb[0].mxu0
      %v5316 = vadd.f32 0.0, %v5315
      %v5317 = vpop.f32.mrb[0].mxu0
      %5318 = vmatprep.mubr.f32.mxu0 %v5006
      %5319 = vmatmul.mubr.f32.gmra.mrb[0].mxu0 %v5003
      %v5320 = vpop.f32.mrb[0].mxu0
      %v5321 = vadd.f32 0.0, %v5320
      %v5322 = vpop.f32.mrb[0].mxu0
      %5323 = vmatprep.mubr.f32.mxu0 %v5010
      %5324 = vmatmul.mubr.f32.gmra.mrb[0].mxu0 %v5008
      %v5325 = vpop.f32.mrb[0].mxu0
      %v5326 = vadd.f32 0.0, %v5325
      %v5327 = vpop.f32.mrb[0].mxu0
      %5328 = vmatprep.mubr.f32.mxu0 %v5016
      %5329 = vmatmul.mubr.f32.gmra.mrb[0].mxu0 %v5013
      %v5330 = vpop.f32.mrb[0].mxu0
      %v5331 = vadd.f32 0.0, %v5330
      %v5332 = vpop.f32.mrb[0].mxu0
      %5333 = vmatprep.mubr.f32.mxu0 %v5020
      %5334 = vmatmul.mubr.f32.gmra.mrb[0].mxu0 %v5018
      %v5335 = vpop.f32.mrb[0].mxu0
      %v5336 = vadd.f32 0.0, %v5335
      %v5337 = vpop.f32.mrb[0].mxu0
      %5338 = vmatprep.mubr.f32.mxu0 %v5026
      %5339 = vmatmul.mubr.f32.gmra.mrb[0].mxu0 %v5023
      %v5340 = vpop.f32.mrb[0].mxu0
      %v5341 = vadd.f32 0.0, %v5340
      %v5342 = vpop.f32.mrb[0].mxu0
      %5343 = vmatprep.mubr.f32.mxu0 %v5030
      %5344 = vmatmul.mubr.f32.gmra.mrb[0].mxu0 %v5028
      %v5345 = vpop.f32.mrb[0].mxu0
      %v5346 = vadd.f32 0.0, %v5345
      %v5347 = vpop.f32.mrb[0].mxu0
      %5348 = vmatprep.mubr.f32.mxu0 %v5036
      %5349 = vmatmul.mubr.f32.gmra.mrb[0].mxu0 %v5033
      %v5350 = vpop.f32.mrb[0].mxu0
      %v5351 = vadd.f32 0.0, %v5350
      %v5352 = vpop.f32.mrb[0].mxu0
      %5353 = vmatprep.mubr.f32.mxu0 %v5040
      %5354 = vmatmul.mubr.f32.gmra.mrb[0].mxu0 %v5038
      %v5355 = vpop.f32.mrb[0].mxu0
      %v5356 = vadd.f32 0.0, %v5355
      %v5357 = vpop.f32.mrb[0].mxu0
      %5358 = vmatprep.mubr.f32.mxu0 %v5046
      %5359 = vmatmul.mubr.f32.gmra.mrb[0].mxu0 %v5043
      %v5360 = vpop.f32.mrb[0].mxu0
      %v5361 = vadd.f32 0.0, %v5360
      %v5362 = vpop.f32.mrb[0].mxu0
      %5363 = vmatprep.mubr.f32.mxu0 %v5050
      %5364 = vmatmul.mubr.f32.gmra.mrb[0].mxu0 %v5048
      %v5365 = vpop.f32.mrb[0].mxu0
      %v5366 = vadd.f32 0.0, %v5365
      %v5367 = vpop.f32.mrb[0].mxu0
      %5368 = vmatprep.mubr.f32.mxu0 %v5056
      %5369 = vmatmul.mubr.f32.gmra.mrb[0].mxu0 %v5053
      %v5370 = vpop.f32.mrb[0].mxu0
      %v5371 = vadd.f32 0.0, %v5370
      %v5372 = vpop.f32.mrb[0].mxu0
      %5373 = vmatprep.mubr.f32.mxu0 %v5060
      %5374 = vmatmul.mubr.f32.gmra.mrb[0].mxu0 %v5058
      %v5375 = vpop.f32.mrb[0].mxu0
      %v5376 = vadd.f32 0.0, %v5375
      %v5377 = vpop.f32.mrb[0].mxu0
      %5378 = vmatprep.mubr.f32.mxu0 %v5066
      %5379 = vmatmul.mubr.f32.gmra.mrb[0].mxu0 %v5063
      %v5380 = vpop.f32.mrb[0].mxu0
      %v5381 = vadd.f32 0.0, %v5380
      %v5382 = vpop.f32.mrb[0].mxu0
      %5383 = vmatprep.mubr.f32.mxu0 %v5070
      %5384 = vmatmul.mubr.f32.gmra.mrb[0].mxu0 %v5068
      %v5385 = vpop.f32.mrb[0].mxu0
      %v5386 = vadd.f32 0.0, %v5385
      %v5387 = vpop.f32.mrb[0].mxu0
      %5388 = vmatprep.mubr.f32.mxu0 %v5076
      %5389 = vmatmul.mubr.f32.gmra.mrb[0].mxu0 %v5073
      %v5390 = vpop.f32.mrb[0].mxu0
      %v5391 = vadd.f32 0.0, %v5390
      %v5392 = vpop.f32.mrb[0].mxu0
      %5393 = vmatprep.mubr.f32.mxu0 %v5080
      %5394 = vmatmul.mubr.f32.gmra.mrb[0].mxu0 %v5078
      %v5395 = vpop.f32.mrb[0].mxu0
      %v5396 = vadd.f32 0.0, %v5395
      %v5397 = vpop.f32.mrb[0].mxu0
      %5398 = vmatprep.mubr.f32.mxu0 %v5086
      %5399 = vmatmul.mubr.f32.gmra.mrb[0].mxu0 %v5083
      %v5400 = vpop.f32.mrb[0].mxu0
      %v5401 = vadd.f32 0.0, %v5400
      %v5402 = vpop.f32.mrb[0].mxu0
      %5403 = vmatprep.mubr.f32.mxu0 %v5090
      %5404 = vmatmul.mubr.f32.gmra.mrb[0].mxu0 %v5088
      %v5405 = vpop.f32.mrb[0].mxu0
      %v5406 = vadd.f32 0.0, %v5405
      %v5407 = vpop.f32.mrb[0].mxu0
      %5408 = vmatprep.mubr.f32.mxu0 %v5096
      %5409 = vmatmul.mubr.f32.gmra.mrb[0].mxu0 %v5093
      %v5410 = vpop.f32.mrb[0].mxu0
      %v5411 = vadd.f32 0.0, %v5410
      %v5412 = vpop.f32.mrb[0].mxu0
      %5413 = vmatprep.mubr.f32.mxu0 %v5100
      %5414 = vmatmul.mubr.f32.gmra.mrb[0].mxu0 %v5098
      %v5415 = vpop.f32.mrb[0].mxu0
      %v5416 = vadd.f32 0.0, %v5415
      %v5417 = vpop.f32.mrb[0].mxu0
      %5418 = vmatprep.mubr.f32.mxu0 %v5106
      %5419 = vmatmul.mubr.f32.gmra.mrb[0].mxu0 %v5103
      %v5420 = vpop.f32.mrb[0].mxu0
      %v5421 = vadd.f32 0.0, %v5420
      %v5422 = vpop.f32.mrb[0].mxu0
      %5423 = vmatprep.mubr.f32.mxu0 %v5110
      %5424 = vmatmul.mubr.f32.gmra.mrb[0].mxu0 %v5108
      %v5425 = vpop.f32.mrb[0].mxu0
      %v5426 = vadd.f32 0.0, %v5425
      %v5427 = vpop.f32.mrb[0].mxu0
      %5428 = vmatprep.mubr.f32.mxu0 %v5116
      %5429 = vmatmul.mubr.f32.gmra.mrb[0].mxu0 %v5113
      %v5430 = vpop.f32.mrb[0].mxu0
      %v5431 = vadd.f32 0.0, %v5430
      %v5432 = vpop.f32.mrb[0].mxu0
      %5433 = vmatprep.mubr.f32.mxu0 %v5120
      %5434 = vmatmul.mubr.f32.gmra.mrb[0].mxu0 %v5118
      %v5435 = vpop.f32.mrb[0].mxu0
      %v5436 = vadd.f32 0.0, %v5435
      %v5437 = vpop.f32.mrb[0].mxu0
      %5438 = vmatprep.mubr.f32.mxu0 %v5126
      %5439 = vmatmul.mubr.f32.gmra.mrb[0].mxu0 %v5123
      %v5440 = vpop.f32.mrb[0].mxu0
      %v5441 = vadd.f32 0.0, %v5440
      %v5442 = vpop.f32.mrb[0].mxu0
      %5443 = vmatprep.mubr.f32.mxu0 %v5130
      %5444 = vmatmul.mubr.f32.gmra.mrb[0].mxu0 %v5128
      %v5445 = vpop.f32.mrb[0].mxu0
      %v5446 = vadd.f32 0.0, %v5445
      %v5447 = vpop.f32.mrb[0].mxu0
      %5448 = vmatprep.mubr.f32.mxu0 %v5136
      %5449 = vmatmul.mubr.f32.gmra.mrb[0].mxu0 %v5133
      %v5450 = vpop.f32.mrb[0].mxu0
      %v5451 = vadd.f32 0.0, %v5450
      %v5452 = vpop.f32.mrb[0].mxu0
      %5453 = vmatprep.mubr.f32.mxu0 %v5140
      %5454 = vmatmul.mubr.f32.gmra.mrb[0].mxu0 %v5138
      %v5455 = vpop.f32.mrb[0].mxu0
      %v5456 = vadd.f32 0.0, %v5455
      %v5457 = vpop.f32.mrb[0].mxu0
      %5458 = vmatprep.mubr.f32.mxu0 %v5146
      %5459 = vmatmul.mubr.f32.gmra.mrb[0].mxu0 %v5143
      %v5460 = vpop.f32.mrb[0].mxu0
      %v5461 = vadd.f32 0.0, %v5460
      %v5462 = vpop.f32.mrb[0].mxu0
      %5463 = vmatprep.mubr.f32.mxu0 %v5150
      %5464 = vmatmul.mubr.f32.gmra.mrb[0].mxu0 %v5148
      %v5465 = vpop.f32.mrb[0].mxu0
      %v5466 = vadd.f32 0.0, %v5465
      %v5467 = vpop.f32.mrb[0].mxu0
      %5468 = vdwg.mxu0
      %v5469 = vadd.f32 %v4843, %v5311
      %v5470 = vadd.f32 %v4848, %v5316
      %v5471 = vadd.f32 %v4853, %v5321
      %v5472 = vadd.f32 %v4858, %v5326
      %v5473 = vadd.f32 %v4863, %v5331
      %v5474 = vadd.f32 %v4868, %v5336
      %v5475 = vadd.f32 %v4873, %v5341
      %v5476 = vadd.f32 %v4878, %v5346
      %v5477 = vadd.f32 %v4883, %v5351
      %v5478 = vadd.f32 %v4888, %v5356
      %v5479 = vadd.f32 %v4893, %v5361
      %v5480 = vadd.f32 %v4898, %v5366
      %v5481 = vadd.f32 %v4903, %v5371
      %v5482 = vadd.f32 %v4908, %v5376
      %v5483 = vadd.f32 %v4913, %v5381
      %v5484 = vadd.f32 %v4918, %v5386
      %v5485 = vadd.f32 %v4923, %v5391
      %v5486 = vadd.f32 %v4928, %v5396
      %v5487 = vadd.f32 %v4933, %v5401
      %v5488 = vadd.f32 %v4938, %v5406
      %v5489 = vadd.f32 %v4943, %v5411
      %v5490 = vadd.f32 %v4948, %v5416
      %v5491 = vadd.f32 %v4953, %v5421
      %v5492 = vadd.f32 %v4958, %v5426
      %v5493 = vadd.f32 %v4963, %v5431
      %v5494 = vadd.f32 %v4968, %v5436
      %v5495 = vadd.f32 %v4973, %v5441
      %v5496 = vadd.f32 %v4978, %v5446
      %v5497 = vadd.f32 %v4983, %v5451
      %v5498 = vadd.f32 %v4988, %v5456
      %v5499 = vadd.f32 %v4993, %v5461
      %v5500 = vadd.f32 %v4998, %v5466
      %s5501 = scalar_lea.vmem %s3, 768
      %v5502 = vld [vmem:[%s5501] sm:$0xff]
      %v5503 = vld [vmem:[%s5501 + $0x8] sm:$0xff]
      %v5504 = vld [vmem:[%s5501 + $0x10] sm:$0xff]
      %v5505 = vld [vmem:[%s5501 + $0x18] sm:$0xff]
      %v5506 = vld [vmem:[%s5501 + $0x20] sm:$0xff]
      %v5507 = vld [vmem:[%s5501 + $0x28] sm:$0xff]
      %v5508 = vld [vmem:[%s5501 + $0x30] sm:$0xff]
      %v5509 = vld [vmem:[%s5501 + $0x38] sm:$0xff]
      %v5510 = vld [vmem:[%s5501 + $0x40] sm:$0xff]
      %v5511 = vld [vmem:[%s5501 + $0x48] sm:$0xff]
      %v5512 = vld [vmem:[%s5501 + $0x50] sm:$0xff]
      %v5513 = vld [vmem:[%s5501 + $0x58] sm:$0xff]
      %v5514 = vld [vmem:[%s5501 + $0x60] sm:$0xff]
      %v5515 = vld [vmem:[%s5501 + $0x68] sm:$0xff]
      %v5516 = vld [vmem:[%s5501 + $0x70] sm:$0xff]
      %v5517 = vld [vmem:[%s5501 + $0x78] sm:$0xff]
      %v5518 = vld [vmem:[%s5501 + $0x80] sm:$0xff]
      %v5519 = vld [vmem:[%s5501 + $0x88] sm:$0xff]
      %v5520 = vld [vmem:[%s5501 + $0x90] sm:$0xff]
      %v5521 = vld [vmem:[%s5501 + $0x98] sm:$0xff]
      %v5522 = vld [vmem:[%s5501 + $0xa0] sm:$0xff]
      %v5523 = vld [vmem:[%s5501 + $0xa8] sm:$0xff]
      %v5524 = vld [vmem:[%s5501 + $0xb0] sm:$0xff]
      %v5525 = vld [vmem:[%s5501 + $0xb8] sm:$0xff]
      %v5526 = vld [vmem:[%s5501 + $0xc0] sm:$0xff]
      %v5527 = vld [vmem:[%s5501 + $0xc8] sm:$0xff]
      %v5528 = vld [vmem:[%s5501 + $0xd0] sm:$0xff]
      %v5529 = vld [vmem:[%s5501 + $0xd8] sm:$0xff]
      %v5530 = vld [vmem:[%s5501 + $0xe0] sm:$0xff]
      %v5531 = vld [vmem:[%s5501 + $0xe8] sm:$0xff]
      %v5532 = vld [vmem:[%s5501 + $0xf0] sm:$0xff]
      %v5533 = vld [vmem:[%s5501 + $0xf8] sm:$0xff]
      %5534 = vmatprep.subr.mxu0 0.0
      %5535 = vmatpush1.msra.mxu0 %v5502
      %5536 = vmatprep.subr.mxu0 0.0
      %5537 = vmatpush1.msra.mxu0 %v5503
      %5538 = vmatprep.subr.mxu0 0.0
      %5539 = vmatpush1.msra.mxu0 %v5504
      %5540 = vmatprep.subr.mxu0 0.0
      %5541 = vmatpush1.msra.mxu0 %v5505
      %5542 = vmatprep.subr.mxu0 0.0
      %5543 = vmatpush1.msra.mxu0 %v5506
      %5544 = vmatprep.subr.mxu0 0.0
      %5545 = vmatpush1.msra.mxu0 %v5507
      %5546 = vmatprep.subr.mxu0 0.0
      %5547 = vmatpush1.msra.mxu0 %v5508
      %5548 = vmatprep.subr.mxu0 0.0
      %5549 = vmatpush1.msra.mxu0 %v5509
      %5550 = vmatprep.subr.mxu0 0.0
      %5551 = vmatpush1.msra.mxu0 %v5510
      %5552 = vmatprep.subr.mxu0 0.0
      %5553 = vmatpush1.msra.mxu0 %v5511
      %5554 = vmatprep.subr.mxu0 0.0
      %5555 = vmatpush1.msra.mxu0 %v5512
      %5556 = vmatprep.subr.mxu0 0.0
      %5557 = vmatpush1.msra.mxu0 %v5513
      %5558 = vmatprep.subr.mxu0 0.0
      %5559 = vmatpush1.msra.mxu0 %v5514
      %5560 = vmatprep.subr.mxu0 0.0
      %5561 = vmatpush1.msra.mxu0 %v5515
      %5562 = vmatprep.subr.mxu0 0.0
      %5563 = vmatpush1.msra.mxu0 %v5516
      %5564 = vmatprep.subr.mxu0 0.0
      %5565 = vmatpush1.msra.mxu0 %v5517
      %5566 = vmatprep.subr.mxu0 0.0
      %5567 = vmatpush1.msra.mxu0 %v5518
      %5568 = vmatprep.subr.mxu0 0.0
      %5569 = vmatpush1.msra.mxu0 %v5519
      %5570 = vmatprep.subr.mxu0 0.0
      %5571 = vmatpush1.msra.mxu0 %v5520
      %5572 = vmatprep.subr.mxu0 0.0
      %5573 = vmatpush1.msra.mxu0 %v5521
      %5574 = vmatprep.subr.mxu0 0.0
      %5575 = vmatpush1.msra.mxu0 %v5522
      %5576 = vmatprep.subr.mxu0 0.0
      %5577 = vmatpush1.msra.mxu0 %v5523
      %5578 = vmatprep.subr.mxu0 0.0
      %5579 = vmatpush1.msra.mxu0 %v5524
      %5580 = vmatprep.subr.mxu0 0.0
      %5581 = vmatpush1.msra.mxu0 %v5525
      %5582 = vmatprep.subr.mxu0 0.0
      %5583 = vmatpush1.msra.mxu0 %v5526
      %5584 = vmatprep.subr.mxu0 0.0
      %5585 = vmatpush1.msra.mxu0 %v5527
      %5586 = vmatprep.subr.mxu0 0.0
      %5587 = vmatpush1.msra.mxu0 %v5528
      %5588 = vmatprep.subr.mxu0 0.0
      %5589 = vmatpush1.msra.mxu0 %v5529
      %5590 = vmatprep.subr.mxu0 0.0
      %5591 = vmatpush1.msra.mxu0 %v5530
      %5592 = vmatprep.subr.mxu0 0.0
      %5593 = vmatpush1.msra.mxu0 %v5531
      %5594 = vmatprep.subr.mxu0 0.0
      %5595 = vmatpush1.msra.mxu0 %v5532
      %5596 = vmatprep.subr.mxu0 0.0
      %5597 = vmatpush1.msra.mxu0 %v5533
      %5598 = vmatprep.mubr.f32.mxu0 %v4153
      %5599 = vmatmul.mubr.f32.gmra.mrb[0].mxu0 %v4152
      %v5600 = vpop.f32.mrb[0].mxu0
      %v5601 = vadd.f32 0.0, %v5600
      %v5602 = vpop.f32.mrb[0].mxu0
      %5603 = vmatprep.mubr.f32.mxu0 %v3965
      %5604 = vmatmul.mubr.f32.gmra.mrb[0].mxu0 %v3963
      %v5605 = vpop.f32.mrb[0].mxu0
      %v5606 = vadd.f32 0.0, %v5605
      %v5607 = vpop.f32.mrb[0].mxu0
      %5608 = vmatprep.mubr.f32.mxu0 %v4155
      %5609 = vmatmul.mubr.f32.gmra.mrb[0].mxu0 %v4154
      %v5610 = vpop.f32.mrb[0].mxu0
      %v5611 = vadd.f32 0.0, %v5610
      %v5612 = vpop.f32.mrb[0].mxu0
      %5613 = vmatprep.mubr.f32.mxu0 %v3971
      %5614 = vmatmul.mubr.f32.gmra.mrb[0].mxu0 %v3969
      %v5615 = vpop.f32.mrb[0].mxu0
      %v5616 = vadd.f32 0.0, %v5615
      %v5617 = vpop.f32.mrb[0].mxu0
      %5618 = vmatprep.mubr.f32.mxu0 %v4157
      %5619 = vmatmul.mubr.f32.gmra.mrb[0].mxu0 %v4156
      %v5620 = vpop.f32.mrb[0].mxu0
      %v5621 = vadd.f32 0.0, %v5620
      %v5622 = vpop.f32.mrb[0].mxu0
      %5623 = vmatprep.mubr.f32.mxu0 %v3977
      %5624 = vmatmul.mubr.f32.gmra.mrb[0].mxu0 %v3975
      %v5625 = vpop.f32.mrb[0].mxu0
      %v5626 = vadd.f32 0.0, %v5625
      %v5627 = vpop.f32.mrb[0].mxu0
      %5628 = vmatprep.mubr.f32.mxu0 %v4159
      %5629 = vmatmul.mubr.f32.gmra.mrb[0].mxu0 %v4158
      %v5630 = vpop.f32.mrb[0].mxu0
      %v5631 = vadd.f32 0.0, %v5630
      %v5632 = vpop.f32.mrb[0].mxu0
      %5633 = vmatprep.mubr.f32.mxu0 %v3983
      %5634 = vmatmul.mubr.f32.gmra.mrb[0].mxu0 %v3981
      %v5635 = vpop.f32.mrb[0].mxu0
      %v5636 = vadd.f32 0.0, %v5635
      %v5637 = vpop.f32.mrb[0].mxu0
      %5638 = vmatprep.mubr.f32.mxu0 %v4161
      %5639 = vmatmul.mubr.f32.gmra.mrb[0].mxu0 %v4160
      %v5640 = vpop.f32.mrb[0].mxu0
      %v5641 = vadd.f32 0.0, %v5640
      %v5642 = vpop.f32.mrb[0].mxu0
      %5643 = vmatprep.mubr.f32.mxu0 %v3989
      %5644 = vmatmul.mubr.f32.gmra.mrb[0].mxu0 %v3987
      %v5645 = vpop.f32.mrb[0].mxu0
      %v5646 = vadd.f32 0.0, %v5645
      %v5647 = vpop.f32.mrb[0].mxu0
      %5648 = vmatprep.mubr.f32.mxu0 %v4163
      %5649 = vmatmul.mubr.f32.gmra.mrb[0].mxu0 %v4162
      %v5650 = vpop.f32.mrb[0].mxu0
      %v5651 = vadd.f32 0.0, %v5650
      %v5652 = vpop.f32.mrb[0].mxu0
      %5653 = vmatprep.mubr.f32.mxu0 %v3995
      %5654 = vmatmul.mubr.f32.gmra.mrb[0].mxu0 %v3993
      %v5655 = vpop.f32.mrb[0].mxu0
      %v5656 = vadd.f32 0.0, %v5655
      %v5657 = vpop.f32.mrb[0].mxu0
      %5658 = vmatprep.mubr.f32.mxu0 %v4165
      %5659 = vmatmul.mubr.f32.gmra.mrb[0].mxu0 %v4164
      %v5660 = vpop.f32.mrb[0].mxu0
      %v5661 = vadd.f32 0.0, %v5660
      %v5662 = vpop.f32.mrb[0].mxu0
      %5663 = vmatprep.mubr.f32.mxu0 %v4001
      %5664 = vmatmul.mubr.f32.gmra.mrb[0].mxu0 %v3999
      %v5665 = vpop.f32.mrb[0].mxu0
      %v5666 = vadd.f32 0.0, %v5665
      %v5667 = vpop.f32.mrb[0].mxu0
      %5668 = vmatprep.mubr.f32.mxu0 %v4167
      %5669 = vmatmul.mubr.f32.gmra.mrb[0].mxu0 %v4166
      %v5670 = vpop.f32.mrb[0].mxu0
      %v5671 = vadd.f32 0.0, %v5670
      %v5672 = vpop.f32.mrb[0].mxu0
      %5673 = vmatprep.mubr.f32.mxu0 %v4007
      %5674 = vmatmul.mubr.f32.gmra.mrb[0].mxu0 %v4005
      %v5675 = vpop.f32.mrb[0].mxu0
      %v5676 = vadd.f32 0.0, %v5675
      %v5677 = vpop.f32.mrb[0].mxu0
      %5678 = vmatprep.mubr.f32.mxu0 %v4169
      %5679 = vmatmul.mubr.f32.gmra.mrb[0].mxu0 %v4168
      %v5680 = vpop.f32.mrb[0].mxu0
      %v5681 = vadd.f32 0.0, %v5680
      %v5682 = vpop.f32.mrb[0].mxu0
      %5683 = vmatprep.mubr.f32.mxu0 %v4013
      %5684 = vmatmul.mubr.f32.gmra.mrb[0].mxu0 %v4011
      %v5685 = vpop.f32.mrb[0].mxu0
      %v5686 = vadd.f32 0.0, %v5685
      %v5687 = vpop.f32.mrb[0].mxu0
      %5688 = vmatprep.mubr.f32.mxu0 %v4171
      %5689 = vmatmul.mubr.f32.gmra.mrb[0].mxu0 %v4170
      %v5690 = vpop.f32.mrb[0].mxu0
      %v5691 = vadd.f32 0.0, %v5690
      %v5692 = vpop.f32.mrb[0].mxu0
      %5693 = vmatprep.mubr.f32.mxu0 %v4019
      %5694 = vmatmul.mubr.f32.gmra.mrb[0].mxu0 %v4017
      %v5695 = vpop.f32.mrb[0].mxu0
      %v5696 = vadd.f32 0.0, %v5695
      %v5697 = vpop.f32.mrb[0].mxu0
      %5698 = vmatprep.mubr.f32.mxu0 %v4173
      %5699 = vmatmul.mubr.f32.gmra.mrb[0].mxu0 %v4172
      %v5700 = vpop.f32.mrb[0].mxu0
      %v5701 = vadd.f32 0.0, %v5700
      %v5702 = vpop.f32.mrb[0].mxu0
      %5703 = vmatprep.mubr.f32.mxu0 %v4025
      %5704 = vmatmul.mubr.f32.gmra.mrb[0].mxu0 %v4023
      %v5705 = vpop.f32.mrb[0].mxu0
      %v5706 = vadd.f32 0.0, %v5705
      %v5707 = vpop.f32.mrb[0].mxu0
      %5708 = vmatprep.mubr.f32.mxu0 %v4175
      %5709 = vmatmul.mubr.f32.gmra.mrb[0].mxu0 %v4174
      %v5710 = vpop.f32.mrb[0].mxu0
      %v5711 = vadd.f32 0.0, %v5710
      %v5712 = vpop.f32.mrb[0].mxu0
      %5713 = vmatprep.mubr.f32.mxu0 %v4031
      %5714 = vmatmul.mubr.f32.gmra.mrb[0].mxu0 %v4029
      %v5715 = vpop.f32.mrb[0].mxu0
      %v5716 = vadd.f32 0.0, %v5715
      %v5717 = vpop.f32.mrb[0].mxu0
      %5718 = vmatprep.mubr.f32.mxu0 %v4177
      %5719 = vmatmul.mubr.f32.gmra.mrb[0].mxu0 %v4176
      %v5720 = vpop.f32.mrb[0].mxu0
      %v5721 = vadd.f32 0.0, %v5720
      %v5722 = vpop.f32.mrb[0].mxu0
      %5723 = vmatprep.mubr.f32.mxu0 %v4037
      %5724 = vmatmul.mubr.f32.gmra.mrb[0].mxu0 %v4035
      %v5725 = vpop.f32.mrb[0].mxu0
      %v5726 = vadd.f32 0.0, %v5725
      %v5727 = vpop.f32.mrb[0].mxu0
      %5728 = vmatprep.mubr.f32.mxu0 %v4179
      %5729 = vmatmul.mubr.f32.gmra.mrb[0].mxu0 %v4178
      %v5730 = vpop.f32.mrb[0].mxu0
      %v5731 = vadd.f32 0.0, %v5730
      %v5732 = vpop.f32.mrb[0].mxu0
      %5733 = vmatprep.mubr.f32.mxu0 %v4043
      %5734 = vmatmul.mubr.f32.gmra.mrb[0].mxu0 %v4041
      %v5735 = vpop.f32.mrb[0].mxu0
      %v5736 = vadd.f32 0.0, %v5735
      %v5737 = vpop.f32.mrb[0].mxu0
      %5738 = vmatprep.mubr.f32.mxu0 %v4181
      %5739 = vmatmul.mubr.f32.gmra.mrb[0].mxu0 %v4180
      %v5740 = vpop.f32.mrb[0].mxu0
      %v5741 = vadd.f32 0.0, %v5740
      %v5742 = vpop.f32.mrb[0].mxu0
      %5743 = vmatprep.mubr.f32.mxu0 %v4049
      %5744 = vmatmul.mubr.f32.gmra.mrb[0].mxu0 %v4047
      %v5745 = vpop.f32.mrb[0].mxu0
      %v5746 = vadd.f32 0.0, %v5745
      %v5747 = vpop.f32.mrb[0].mxu0
      %5748 = vmatprep.mubr.f32.mxu0 %v4183
      %5749 = vmatmul.mubr.f32.gmra.mrb[0].mxu0 %v4182
      %v5750 = vpop.f32.mrb[0].mxu0
      %v5751 = vadd.f32 0.0, %v5750
      %v5752 = vpop.f32.mrb[0].mxu0
      %5753 = vmatprep.mubr.f32.mxu0 %v4055
      %5754 = vmatmul.mubr.f32.gmra.mrb[0].mxu0 %v4053
      %v5755 = vpop.f32.mrb[0].mxu0
      %v5756 = vadd.f32 0.0, %v5755
      %v5757 = vpop.f32.mrb[0].mxu0
      %5758 = vdwg.mxu0
      %v5759 = vadd.f32 %v5469, %v5601
      %v5760 = vadd.f32 %v5470, %v5606
      %v5761 = vadd.f32 %v5471, %v5611
      %v5762 = vadd.f32 %v5472, %v5616
      %v5763 = vadd.f32 %v5473, %v5621
      %v5764 = vadd.f32 %v5474, %v5626
      %v5765 = vadd.f32 %v5475, %v5631
      %v5766 = vadd.f32 %v5476, %v5636
      %v5767 = vadd.f32 %v5477, %v5641
      %v5768 = vadd.f32 %v5478, %v5646
      %v5769 = vadd.f32 %v5479, %v5651
      %v5770 = vadd.f32 %v5480, %v5656
      %v5771 = vadd.f32 %v5481, %v5661
      %v5772 = vadd.f32 %v5482, %v5666
      %v5773 = vadd.f32 %v5483, %v5671
      %v5774 = vadd.f32 %v5484, %v5676
      %v5775 = vadd.f32 %v5485, %v5681
      %v5776 = vadd.f32 %v5486, %v5686
      %v5777 = vadd.f32 %v5487, %v5691
      %v5778 = vadd.f32 %v5488, %v5696
      %v5779 = vadd.f32 %v5489, %v5701
      %v5780 = vadd.f32 %v5490, %v5706
      %v5781 = vadd.f32 %v5491, %v5711
      %v5782 = vadd.f32 %v5492, %v5716
      %v5783 = vadd.f32 %v5493, %v5721
      %v5784 = vadd.f32 %v5494, %v5726
      %v5785 = vadd.f32 %v5495, %v5731
      %v5786 = vadd.f32 %v5496, %v5736
      %v5787 = vadd.f32 %v5497, %v5741
      %v5788 = vadd.f32 %v5498, %v5746
      %v5789 = vadd.f32 %v5499, %v5751
      %v5790 = vadd.f32 %v5500, %v5756
      %v5795 = vrot.slane %v4182, 1
      %v5796 = vrot.slane %v4053, 1
      %v5797 = vsel %vm489, %v5795, %v5796
      %v5798 = vrot.slane %v4183, 1
      %v5799 = vrot.slane %v4055, 1
      %v5800 = vsel %vm489, %v5798, %v5799
      %v5801 = vrot.slane %v4214, 1
      %v5802 = vsel %vm489, %v5796, %v5801
      %v5803 = vrot.slane %v4215, 1
      %v5804 = vsel %vm489, %v5799, %v5803
      %s5809 = scalar_lea.vmem %s3, 1024
      %v5810 = vld [vmem:[%s5809] sm:$0xff]
      %v5811 = vld [vmem:[%s5809 + $0x8] sm:$0xff]
      %v5812 = vld [vmem:[%s5809 + $0x10] sm:$0xff]
      %v5813 = vld [vmem:[%s5809 + $0x18] sm:$0xff]
      %v5814 = vld [vmem:[%s5809 + $0x20] sm:$0xff]
      %v5815 = vld [vmem:[%s5809 + $0x28] sm:$0xff]
      %v5816 = vld [vmem:[%s5809 + $0x30] sm:$0xff]
      %v5817 = vld [vmem:[%s5809 + $0x38] sm:$0xff]
      %v5818 = vld [vmem:[%s5809 + $0x40] sm:$0xff]
      %v5819 = vld [vmem:[%s5809 + $0x48] sm:$0xff]
      %v5820 = vld [vmem:[%s5809 + $0x50] sm:$0xff]
      %v5821 = vld [vmem:[%s5809 + $0x58] sm:$0xff]
      %v5822 = vld [vmem:[%s5809 + $0x60] sm:$0xff]
      %v5823 = vld [vmem:[%s5809 + $0x68] sm:$0xff]
      %v5824 = vld [vmem:[%s5809 + $0x70] sm:$0xff]
      %v5825 = vld [vmem:[%s5809 + $0x78] sm:$0xff]
      %v5826 = vld [vmem:[%s5809 + $0x80] sm:$0xff]
      %v5827 = vld [vmem:[%s5809 + $0x88] sm:$0xff]
      %v5828 = vld [vmem:[%s5809 + $0x90] sm:$0xff]
      %v5829 = vld [vmem:[%s5809 + $0x98] sm:$0xff]
      %v5830 = vld [vmem:[%s5809 + $0xa0] sm:$0xff]
      %v5831 = vld [vmem:[%s5809 + $0xa8] sm:$0xff]
      %v5832 = vld [vmem:[%s5809 + $0xb0] sm:$0xff]
      %v5833 = vld [vmem:[%s5809 + $0xb8] sm:$0xff]
      %v5834 = vld [vmem:[%s5809 + $0xc0] sm:$0xff]
      %v5835 = vld [vmem:[%s5809 + $0xc8] sm:$0xff]
      %v5836 = vld [vmem:[%s5809 + $0xd0] sm:$0xff]
      %v5837 = vld [vmem:[%s5809 + $0xd8] sm:$0xff]
      %v5838 = vld [vmem:[%s5809 + $0xe0] sm:$0xff]
      %v5839 = vld [vmem:[%s5809 + $0xe8] sm:$0xff]
      %v5840 = vld [vmem:[%s5809 + $0xf0] sm:$0xff]
      %v5841 = vld [vmem:[%s5809 + $0xf8] sm:$0xff]
      %5842 = vmatprep.subr.mxu0 0.0
      %5843 = vmatpush1.msra.mxu0 %v5810
      %5844 = vmatprep.subr.mxu0 0.0
      %5845 = vmatpush1.msra.mxu0 %v5811
      %5846 = vmatprep.subr.mxu0 0.0
      %5847 = vmatpush1.msra.mxu0 %v5812
      %5848 = vmatprep.subr.mxu0 0.0
      %5849 = vmatpush1.msra.mxu0 %v5813
      %5850 = vmatprep.subr.mxu0 0.0
      %5851 = vmatpush1.msra.mxu0 %v5814
      %5852 = vmatprep.subr.mxu0 0.0
      %5853 = vmatpush1.msra.mxu0 %v5815
      %5854 = vmatprep.subr.mxu0 0.0
      %5855 = vmatpush1.msra.mxu0 %v5816
      %5856 = vmatprep.subr.mxu0 0.0
      %5857 = vmatpush1.msra.mxu0 %v5817
      %5858 = vmatprep.subr.mxu0 0.0
      %5859 = vmatpush1.msra.mxu0 %v5818
      %5860 = vmatprep.subr.mxu0 0.0
      %5861 = vmatpush1.msra.mxu0 %v5819
      %5862 = vmatprep.subr.mxu0 0.0
      %5863 = vmatpush1.msra.mxu0 %v5820
      %5864 = vmatprep.subr.mxu0 0.0
      %5865 = vmatpush1.msra.mxu0 %v5821
      %5866 = vmatprep.subr.mxu0 0.0
      %5867 = vmatpush1.msra.mxu0 %v5822
      %5868 = vmatprep.subr.mxu0 0.0
      %5869 = vmatpush1.msra.mxu0 %v5823
      %5870 = vmatprep.subr.mxu0 0.0
      %5871 = vmatpush1.msra.mxu0 %v5824
      %5872 = vmatprep.subr.mxu0 0.0
      %5873 = vmatpush1.msra.mxu0 %v5825
      %5874 = vmatprep.subr.mxu0 0.0
      %5875 = vmatpush1.msra.mxu0 %v5826
      %5876 = vmatprep.subr.mxu0 0.0
      %5877 = vmatpush1.msra.mxu0 %v5827
      %5878 = vmatprep.subr.mxu0 0.0
      %5879 = vmatpush1.msra.mxu0 %v5828
      %5880 = vmatprep.subr.mxu0 0.0
      %5881 = vmatpush1.msra.mxu0 %v5829
      %5882 = vmatprep.subr.mxu0 0.0
      %5883 = vmatpush1.msra.mxu0 %v5830
      %5884 = vmatprep.subr.mxu0 0.0
      %5885 = vmatpush1.msra.mxu0 %v5831
      %5886 = vmatprep.subr.mxu0 0.0
      %5887 = vmatpush1.msra.mxu0 %v5832
      %5888 = vmatprep.subr.mxu0 0.0
      %5889 = vmatpush1.msra.mxu0 %v5833
      %5890 = vmatprep.subr.mxu0 0.0
      %5891 = vmatpush1.msra.mxu0 %v5834
      %5892 = vmatprep.subr.mxu0 0.0
      %5893 = vmatpush1.msra.mxu0 %v5835
      %5894 = vmatprep.subr.mxu0 0.0
      %5895 = vmatpush1.msra.mxu0 %v5836
      %5896 = vmatprep.subr.mxu0 0.0
      %5897 = vmatpush1.msra.mxu0 %v5837
      %5898 = vmatprep.subr.mxu0 0.0
      %5899 = vmatpush1.msra.mxu0 %v5838
      %5900 = vmatprep.subr.mxu0 0.0
      %5901 = vmatpush1.msra.mxu0 %v5839
      %5902 = vmatprep.subr.mxu0 0.0
      %5903 = vmatpush1.msra.mxu0 %v5840
      %5904 = vmatprep.subr.mxu0 0.0
      %5905 = vmatpush1.msra.mxu0 %v5841
      %5906 = vmatprep.mubr.f32.mxu0 %v4313
      %5907 = vmatmul.mubr.f32.gmra.mrb[0].mxu0 %v4310
      %v5908 = vpop.f32.mrb[0].mxu0
      %v5909 = vadd.f32 0.0, %v5908
      %v5910 = vpop.f32.mrb[0].mxu0
      %5911 = vmatprep.mubr.f32.mxu0 %v4317
      %5912 = vmatmul.mubr.f32.gmra.mrb[0].mxu0 %v4315
      %v5913 = vpop.f32.mrb[0].mxu0
      %v5914 = vadd.f32 0.0, %v5913
      %v5915 = vpop.f32.mrb[0].mxu0
      %5916 = vmatprep.mubr.f32.mxu0 %v4323
      %5917 = vmatmul.mubr.f32.gmra.mrb[0].mxu0 %v4320
      %v5918 = vpop.f32.mrb[0].mxu0
      %v5919 = vadd.f32 0.0, %v5918
      %v5920 = vpop.f32.mrb[0].mxu0
      %5921 = vmatprep.mubr.f32.mxu0 %v4327
      %5922 = vmatmul.mubr.f32.gmra.mrb[0].mxu0 %v4325
      %v5923 = vpop.f32.mrb[0].mxu0
      %v5924 = vadd.f32 0.0, %v5923
      %v5925 = vpop.f32.mrb[0].mxu0
      %5926 = vmatprep.mubr.f32.mxu0 %v4333
      %5927 = vmatmul.mubr.f32.gmra.mrb[0].mxu0 %v4330
      %v5928 = vpop.f32.mrb[0].mxu0
      %v5929 = vadd.f32 0.0, %v5928
      %v5930 = vpop.f32.mrb[0].mxu0
      %5931 = vmatprep.mubr.f32.mxu0 %v4337
      %5932 = vmatmul.mubr.f32.gmra.mrb[0].mxu0 %v4335
      %v5933 = vpop.f32.mrb[0].mxu0
      %v5934 = vadd.f32 0.0, %v5933
      %v5935 = vpop.f32.mrb[0].mxu0
      %5936 = vmatprep.mubr.f32.mxu0 %v4343
      %5937 = vmatmul.mubr.f32.gmra.mrb[0].mxu0 %v4340
      %v5938 = vpop.f32.mrb[0].mxu0
      %v5939 = vadd.f32 0.0, %v5938
      %v5940 = vpop.f32.mrb[0].mxu0
      %5941 = vmatprep.mubr.f32.mxu0 %v4347
      %5942 = vmatmul.mubr.f32.gmra.mrb[0].mxu0 %v4345
      %v5943 = vpop.f32.mrb[0].mxu0
      %v5944 = vadd.f32 0.0, %v5943
      %v5945 = vpop.f32.mrb[0].mxu0
      %5946 = vmatprep.mubr.f32.mxu0 %v4353
      %5947 = vmatmul.mubr.f32.gmra.mrb[0].mxu0 %v4350
      %v5948 = vpop.f32.mrb[0].mxu0
      %v5949 = vadd.f32 0.0, %v5948
      %v5950 = vpop.f32.mrb[0].mxu0
      %5951 = vmatprep.mubr.f32.mxu0 %v4357
      %5952 = vmatmul.mubr.f32.gmra.mrb[0].mxu0 %v4355
      %v5953 = vpop.f32.mrb[0].mxu0
      %v5954 = vadd.f32 0.0, %v5953
      %v5955 = vpop.f32.mrb[0].mxu0
      %5956 = vmatprep.mubr.f32.mxu0 %v4363
      %5957 = vmatmul.mubr.f32.gmra.mrb[0].mxu0 %v4360
      %v5958 = vpop.f32.mrb[0].mxu0
      %v5959 = vadd.f32 0.0, %v5958
      %v5960 = vpop.f32.mrb[0].mxu0
      %5961 = vmatprep.mubr.f32.mxu0 %v4367
      %5962 = vmatmul.mubr.f32.gmra.mrb[0].mxu0 %v4365
      %v5963 = vpop.f32.mrb[0].mxu0
      %v5964 = vadd.f32 0.0, %v5963
      %v5965 = vpop.f32.mrb[0].mxu0
      %5966 = vmatprep.mubr.f32.mxu0 %v4373
      %5967 = vmatmul.mubr.f32.gmra.mrb[0].mxu0 %v4370
      %v5968 = vpop.f32.mrb[0].mxu0
      %v5969 = vadd.f32 0.0, %v5968
      %v5970 = vpop.f32.mrb[0].mxu0
      %5971 = vmatprep.mubr.f32.mxu0 %v4377
      %5972 = vmatmul.mubr.f32.gmra.mrb[0].mxu0 %v4375
      %v5973 = vpop.f32.mrb[0].mxu0
      %v5974 = vadd.f32 0.0, %v5973
      %v5975 = vpop.f32.mrb[0].mxu0
      %5976 = vmatprep.mubr.f32.mxu0 %v4383
      %5977 = vmatmul.mubr.f32.gmra.mrb[0].mxu0 %v4380
      %v5978 = vpop.f32.mrb[0].mxu0
      %v5979 = vadd.f32 0.0, %v5978
      %v5980 = vpop.f32.mrb[0].mxu0
      %5981 = vmatprep.mubr.f32.mxu0 %v4387
      %5982 = vmatmul.mubr.f32.gmra.mrb[0].mxu0 %v4385
      %v5983 = vpop.f32.mrb[0].mxu0
      %v5984 = vadd.f32 0.0, %v5983
      %v5985 = vpop.f32.mrb[0].mxu0
      %5986 = vmatprep.mubr.f32.mxu0 %v4393
      %5987 = vmatmul.mubr.f32.gmra.mrb[0].mxu0 %v4390
      %v5988 = vpop.f32.mrb[0].mxu0
      %v5989 = vadd.f32 0.0, %v5988
      %v5990 = vpop.f32.mrb[0].mxu0
      %5991 = vmatprep.mubr.f32.mxu0 %v4397
      %5992 = vmatmul.mubr.f32.gmra.mrb[0].mxu0 %v4395
      %v5993 = vpop.f32.mrb[0].mxu0
      %v5994 = vadd.f32 0.0, %v5993
      %v5995 = vpop.f32.mrb[0].mxu0
      %5996 = vmatprep.mubr.f32.mxu0 %v4403
      %5997 = vmatmul.mubr.f32.gmra.mrb[0].mxu0 %v4400
      %v5998 = vpop.f32.mrb[0].mxu0
      %v5999 = vadd.f32 0.0, %v5998
      %v6000 = vpop.f32.mrb[0].mxu0
      %6001 = vmatprep.mubr.f32.mxu0 %v4407
      %6002 = vmatmul.mubr.f32.gmra.mrb[0].mxu0 %v4405
      %v6003 = vpop.f32.mrb[0].mxu0
      %v6004 = vadd.f32 0.0, %v6003
      %v6005 = vpop.f32.mrb[0].mxu0
      %6006 = vmatprep.mubr.f32.mxu0 %v4413
      %6007 = vmatmul.mubr.f32.gmra.mrb[0].mxu0 %v4410
      %v6008 = vpop.f32.mrb[0].mxu0
      %v6009 = vadd.f32 0.0, %v6008
      %v6010 = vpop.f32.mrb[0].mxu0
      %6011 = vmatprep.mubr.f32.mxu0 %v4417
      %6012 = vmatmul.mubr.f32.gmra.mrb[0].mxu0 %v4415
      %v6013 = vpop.f32.mrb[0].mxu0
      %v6014 = vadd.f32 0.0, %v6013
      %v6015 = vpop.f32.mrb[0].mxu0
      %6016 = vmatprep.mubr.f32.mxu0 %v4423
      %6017 = vmatmul.mubr.f32.gmra.mrb[0].mxu0 %v4420
      %v6018 = vpop.f32.mrb[0].mxu0
      %v6019 = vadd.f32 0.0, %v6018
      %v6020 = vpop.f32.mrb[0].mxu0
      %6021 = vmatprep.mubr.f32.mxu0 %v4427
      %6022 = vmatmul.mubr.f32.gmra.mrb[0].mxu0 %v4425
      %v6023 = vpop.f32.mrb[0].mxu0
      %v6024 = vadd.f32 0.0, %v6023
      %v6025 = vpop.f32.mrb[0].mxu0
      %6026 = vmatprep.mubr.f32.mxu0 %v4433
      %6027 = vmatmul.mubr.f32.gmra.mrb[0].mxu0 %v4430
      %v6028 = vpop.f32.mrb[0].mxu0
      %v6029 = vadd.f32 0.0, %v6028
      %v6030 = vpop.f32.mrb[0].mxu0
      %6031 = vmatprep.mubr.f32.mxu0 %v4437
      %6032 = vmatmul.mubr.f32.gmra.mrb[0].mxu0 %v4435
      %v6033 = vpop.f32.mrb[0].mxu0
      %v6034 = vadd.f32 0.0, %v6033
      %v6035 = vpop.f32.mrb[0].mxu0
      %6036 = vmatprep.mubr.f32.mxu0 %v4443
      %6037 = vmatmul.mubr.f32.gmra.mrb[0].mxu0 %v4440
      %v6038 = vpop.f32.mrb[0].mxu0
      %v6039 = vadd.f32 0.0, %v6038
      %v6040 = vpop.f32.mrb[0].mxu0
      %6041 = vmatprep.mubr.f32.mxu0 %v4447
      %6042 = vmatmul.mubr.f32.gmra.mrb[0].mxu0 %v4445
      %v6043 = vpop.f32.mrb[0].mxu0
      %v6044 = vadd.f32 0.0, %v6043
      %v6045 = vpop.f32.mrb[0].mxu0
      %6046 = vmatprep.mubr.f32.mxu0 %v4453
      %6047 = vmatmul.mubr.f32.gmra.mrb[0].mxu0 %v4450
      %v6048 = vpop.f32.mrb[0].mxu0
      %v6049 = vadd.f32 0.0, %v6048
      %v6050 = vpop.f32.mrb[0].mxu0
      %6051 = vmatprep.mubr.f32.mxu0 %v4457
      %6052 = vmatmul.mubr.f32.gmra.mrb[0].mxu0 %v4455
      %v6053 = vpop.f32.mrb[0].mxu0
      %v6054 = vadd.f32 0.0, %v6053
      %v6055 = vpop.f32.mrb[0].mxu0
      %6056 = vmatprep.mubr.f32.mxu0 %v5800
      %6057 = vmatmul.mubr.f32.gmra.mrb[0].mxu0 %v5797
      %v6058 = vpop.f32.mrb[0].mxu0
      %v6059 = vadd.f32 0.0, %v6058
      %v6060 = vpop.f32.mrb[0].mxu0
      %6061 = vmatprep.mubr.f32.mxu0 %v5804
      %6062 = vmatmul.mubr.f32.gmra.mrb[0].mxu0 %v5802
      %v6063 = vpop.f32.mrb[0].mxu0
      %v6064 = vadd.f32 0.0, %v6063
      %v6065 = vpop.f32.mrb[0].mxu0
      %6066 = vdwg.mxu0
      %v6067 = vadd.f32 %v5759, %v5909
      %v6068 = vadd.f32 %v5760, %v5914
      %v6069 = vadd.f32 %v5761, %v5919
      %v6070 = vadd.f32 %v5762, %v5924
      %v6071 = vadd.f32 %v5763, %v5929
      %v6072 = vadd.f32 %v5764, %v5934
      %v6073 = vadd.f32 %v5765, %v5939
      %v6074 = vadd.f32 %v5766, %v5944
      %v6075 = vadd.f32 %v5767, %v5949
      %v6076 = vadd.f32 %v5768, %v5954
      %v6077 = vadd.f32 %v5769, %v5959
      %v6078 = vadd.f32 %v5770, %v5964
      %v6079 = vadd.f32 %v5771, %v5969
      %v6080 = vadd.f32 %v5772, %v5974
      %v6081 = vadd.f32 %v5773, %v5979
      %v6082 = vadd.f32 %v5774, %v5984
      %v6083 = vadd.f32 %v5775, %v5989
      %v6084 = vadd.f32 %v5776, %v5994
      %v6085 = vadd.f32 %v5777, %v5999
      %v6086 = vadd.f32 %v5778, %v6004
      %v6087 = vadd.f32 %v5779, %v6009
      %v6088 = vadd.f32 %v5780, %v6014
      %v6089 = vadd.f32 %v5781, %v6019
      %v6090 = vadd.f32 %v5782, %v6024
      %v6091 = vadd.f32 %v5783, %v6029
      %v6092 = vadd.f32 %v5784, %v6034
      %v6093 = vadd.f32 %v5785, %v6039
      %v6094 = vadd.f32 %v5786, %v6044
      %v6095 = vadd.f32 %v5787, %v6049
      %v6096 = vadd.f32 %v5788, %v6054
      %v6097 = vadd.f32 %v5789, %v6059
      %v6098 = vadd.f32 %v5790, %v6064
      %v6099 = vrot.slane %v4182, 2
      %v6100 = vrot.slane %v4053, 2
      %v6101 = vsel %vm1149, %v6099, %v6100
      %v6102 = vrot.slane %v4183, 2
      %v6103 = vrot.slane %v4055, 2
      %v6104 = vsel %vm1149, %v6102, %v6103
      %v6105 = vrot.slane %v4214, 2
      %v6106 = vsel %vm1149, %v6100, %v6105
      %v6107 = vrot.slane %v4215, 2
      %v6108 = vsel %vm1149, %v6103, %v6107
      %s6113 = scalar_lea.vmem %s3, 1280
      %v6114 = vld [vmem:[%s6113] sm:$0xff]
      %v6115 = vld [vmem:[%s6113 + $0x8] sm:$0xff]
      %v6116 = vld [vmem:[%s6113 + $0x10] sm:$0xff]
      %v6117 = vld [vmem:[%s6113 + $0x18] sm:$0xff]
      %v6118 = vld [vmem:[%s6113 + $0x20] sm:$0xff]
      %v6119 = vld [vmem:[%s6113 + $0x28] sm:$0xff]
      %v6120 = vld [vmem:[%s6113 + $0x30] sm:$0xff]
      %v6121 = vld [vmem:[%s6113 + $0x38] sm:$0xff]
      %v6122 = vld [vmem:[%s6113 + $0x40] sm:$0xff]
      %v6123 = vld [vmem:[%s6113 + $0x48] sm:$0xff]
      %v6124 = vld [vmem:[%s6113 + $0x50] sm:$0xff]
      %v6125 = vld [vmem:[%s6113 + $0x58] sm:$0xff]
      %v6126 = vld [vmem:[%s6113 + $0x60] sm:$0xff]
      %v6127 = vld [vmem:[%s6113 + $0x68] sm:$0xff]
      %v6128 = vld [vmem:[%s6113 + $0x70] sm:$0xff]
      %v6129 = vld [vmem:[%s6113 + $0x78] sm:$0xff]
      %v6130 = vld [vmem:[%s6113 + $0x80] sm:$0xff]
      %v6131 = vld [vmem:[%s6113 + $0x88] sm:$0xff]
      %v6132 = vld [vmem:[%s6113 + $0x90] sm:$0xff]
      %v6133 = vld [vmem:[%s6113 + $0x98] sm:$0xff]
      %v6134 = vld [vmem:[%s6113 + $0xa0] sm:$0xff]
      %v6135 = vld [vmem:[%s6113 + $0xa8] sm:$0xff]
      %v6136 = vld [vmem:[%s6113 + $0xb0] sm:$0xff]
      %v6137 = vld [vmem:[%s6113 + $0xb8] sm:$0xff]
      %v6138 = vld [vmem:[%s6113 + $0xc0] sm:$0xff]
      %v6139 = vld [vmem:[%s6113 + $0xc8] sm:$0xff]
      %v6140 = vld [vmem:[%s6113 + $0xd0] sm:$0xff]
      %v6141 = vld [vmem:[%s6113 + $0xd8] sm:$0xff]
      %v6142 = vld [vmem:[%s6113 + $0xe0] sm:$0xff]
      %v6143 = vld [vmem:[%s6113 + $0xe8] sm:$0xff]
      %v6144 = vld [vmem:[%s6113 + $0xf0] sm:$0xff]
      %v6145 = vld [vmem:[%s6113 + $0xf8] sm:$0xff]
      %6146 = vmatprep.subr.mxu0 0.0
      %6147 = vmatpush1.msra.mxu0 %v6114
      %6148 = vmatprep.subr.mxu0 0.0
      %6149 = vmatpush1.msra.mxu0 %v6115
      %6150 = vmatprep.subr.mxu0 0.0
      %6151 = vmatpush1.msra.mxu0 %v6116
      %6152 = vmatprep.subr.mxu0 0.0
      %6153 = vmatpush1.msra.mxu0 %v6117
      %6154 = vmatprep.subr.mxu0 0.0
      %6155 = vmatpush1.msra.mxu0 %v6118
      %6156 = vmatprep.subr.mxu0 0.0
      %6157 = vmatpush1.msra.mxu0 %v6119
      %6158 = vmatprep.subr.mxu0 0.0
      %6159 = vmatpush1.msra.mxu0 %v6120
      %6160 = vmatprep.subr.mxu0 0.0
      %6161 = vmatpush1.msra.mxu0 %v6121
      %6162 = vmatprep.subr.mxu0 0.0
      %6163 = vmatpush1.msra.mxu0 %v6122
      %6164 = vmatprep.subr.mxu0 0.0
      %6165 = vmatpush1.msra.mxu0 %v6123
      %6166 = vmatprep.subr.mxu0 0.0
      %6167 = vmatpush1.msra.mxu0 %v6124
      %6168 = vmatprep.subr.mxu0 0.0
      %6169 = vmatpush1.msra.mxu0 %v6125
      %6170 = vmatprep.subr.mxu0 0.0
      %6171 = vmatpush1.msra.mxu0 %v6126
      %6172 = vmatprep.subr.mxu0 0.0
      %6173 = vmatpush1.msra.mxu0 %v6127
      %6174 = vmatprep.subr.mxu0 0.0
      %6175 = vmatpush1.msra.mxu0 %v6128
      %6176 = vmatprep.subr.mxu0 0.0
      %6177 = vmatpush1.msra.mxu0 %v6129
      %6178 = vmatprep.subr.mxu0 0.0
      %6179 = vmatpush1.msra.mxu0 %v6130
      %6180 = vmatprep.subr.mxu0 0.0
      %6181 = vmatpush1.msra.mxu0 %v6131
      %6182 = vmatprep.subr.mxu0 0.0
      %6183 = vmatpush1.msra.mxu0 %v6132
      %6184 = vmatprep.subr.mxu0 0.0
      %6185 = vmatpush1.msra.mxu0 %v6133
      %6186 = vmatprep.subr.mxu0 0.0
      %6187 = vmatpush1.msra.mxu0 %v6134
      %6188 = vmatprep.subr.mxu0 0.0
      %6189 = vmatpush1.msra.mxu0 %v6135
      %6190 = vmatprep.subr.mxu0 0.0
      %6191 = vmatpush1.msra.mxu0 %v6136
      %6192 = vmatprep.subr.mxu0 0.0
      %6193 = vmatpush1.msra.mxu0 %v6137
      %6194 = vmatprep.subr.mxu0 0.0
      %6195 = vmatpush1.msra.mxu0 %v6138
      %6196 = vmatprep.subr.mxu0 0.0
      %6197 = vmatpush1.msra.mxu0 %v6139
      %6198 = vmatprep.subr.mxu0 0.0
      %6199 = vmatpush1.msra.mxu0 %v6140
      %6200 = vmatprep.subr.mxu0 0.0
      %6201 = vmatpush1.msra.mxu0 %v6141
      %6202 = vmatprep.subr.mxu0 0.0
      %6203 = vmatpush1.msra.mxu0 %v6142
      %6204 = vmatprep.subr.mxu0 0.0
      %6205 = vmatpush1.msra.mxu0 %v6143
      %6206 = vmatprep.subr.mxu0 0.0
      %6207 = vmatpush1.msra.mxu0 %v6144
      %6208 = vmatprep.subr.mxu0 0.0
      %6209 = vmatpush1.msra.mxu0 %v6145
      %6210 = vmatprep.mubr.f32.mxu0 %v5006
      %6211 = vmatmul.mubr.f32.gmra.mrb[0].mxu0 %v5003
      %v6212 = vpop.f32.mrb[0].mxu0
      %v6213 = vadd.f32 0.0, %v6212
      %v6214 = vpop.f32.mrb[0].mxu0
      %6215 = vmatprep.mubr.f32.mxu0 %v5010
      %6216 = vmatmul.mubr.f32.gmra.mrb[0].mxu0 %v5008
      %v6217 = vpop.f32.mrb[0].mxu0
      %v6218 = vadd.f32 0.0, %v6217
      %v6219 = vpop.f32.mrb[0].mxu0
      %6220 = vmatprep.mubr.f32.mxu0 %v5016
      %6221 = vmatmul.mubr.f32.gmra.mrb[0].mxu0 %v5013
      %v6222 = vpop.f32.mrb[0].mxu0
      %v6223 = vadd.f32 0.0, %v6222
      %v6224 = vpop.f32.mrb[0].mxu0
      %6225 = vmatprep.mubr.f32.mxu0 %v5020
      %6226 = vmatmul.mubr.f32.gmra.mrb[0].mxu0 %v5018
      %v6227 = vpop.f32.mrb[0].mxu0
      %v6228 = vadd.f32 0.0, %v6227
      %v6229 = vpop.f32.mrb[0].mxu0
      %6230 = vmatprep.mubr.f32.mxu0 %v5026
      %6231 = vmatmul.mubr.f32.gmra.mrb[0].mxu0 %v5023
      %v6232 = vpop.f32.mrb[0].mxu0
      %v6233 = vadd.f32 0.0, %v6232
      %v6234 = vpop.f32.mrb[0].mxu0
      %6235 = vmatprep.mubr.f32.mxu0 %v5030
      %6236 = vmatmul.mubr.f32.gmra.mrb[0].mxu0 %v5028
      %v6237 = vpop.f32.mrb[0].mxu0
      %v6238 = vadd.f32 0.0, %v6237
      %v6239 = vpop.f32.mrb[0].mxu0
      %6240 = vmatprep.mubr.f32.mxu0 %v5036
      %6241 = vmatmul.mubr.f32.gmra.mrb[0].mxu0 %v5033
      %v6242 = vpop.f32.mrb[0].mxu0
      %v6243 = vadd.f32 0.0, %v6242
      %v6244 = vpop.f32.mrb[0].mxu0
      %6245 = vmatprep.mubr.f32.mxu0 %v5040
      %6246 = vmatmul.mubr.f32.gmra.mrb[0].mxu0 %v5038
      %v6247 = vpop.f32.mrb[0].mxu0
      %v6248 = vadd.f32 0.0, %v6247
      %v6249 = vpop.f32.mrb[0].mxu0
      %6250 = vmatprep.mubr.f32.mxu0 %v5046
      %6251 = vmatmul.mubr.f32.gmra.mrb[0].mxu0 %v5043
      %v6252 = vpop.f32.mrb[0].mxu0
      %v6253 = vadd.f32 0.0, %v6252
      %v6254 = vpop.f32.mrb[0].mxu0
      %6255 = vmatprep.mubr.f32.mxu0 %v5050
      %6256 = vmatmul.mubr.f32.gmra.mrb[0].mxu0 %v5048
      %v6257 = vpop.f32.mrb[0].mxu0
      %v6258 = vadd.f32 0.0, %v6257
      %v6259 = vpop.f32.mrb[0].mxu0
      %6260 = vmatprep.mubr.f32.mxu0 %v5056
      %6261 = vmatmul.mubr.f32.gmra.mrb[0].mxu0 %v5053
      %v6262 = vpop.f32.mrb[0].mxu0
      %v6263 = vadd.f32 0.0, %v6262
      %v6264 = vpop.f32.mrb[0].mxu0
      %6265 = vmatprep.mubr.f32.mxu0 %v5060
      %6266 = vmatmul.mubr.f32.gmra.mrb[0].mxu0 %v5058
      %v6267 = vpop.f32.mrb[0].mxu0
      %v6268 = vadd.f32 0.0, %v6267
      %v6269 = vpop.f32.mrb[0].mxu0
      %6270 = vmatprep.mubr.f32.mxu0 %v5066
      %6271 = vmatmul.mubr.f32.gmra.mrb[0].mxu0 %v5063
      %v6272 = vpop.f32.mrb[0].mxu0
      %v6273 = vadd.f32 0.0, %v6272
      %v6274 = vpop.f32.mrb[0].mxu0
      %6275 = vmatprep.mubr.f32.mxu0 %v5070
      %6276 = vmatmul.mubr.f32.gmra.mrb[0].mxu0 %v5068
      %v6277 = vpop.f32.mrb[0].mxu0
      %v6278 = vadd.f32 0.0, %v6277
      %v6279 = vpop.f32.mrb[0].mxu0
      %6280 = vmatprep.mubr.f32.mxu0 %v5076
      %6281 = vmatmul.mubr.f32.gmra.mrb[0].mxu0 %v5073
      %v6282 = vpop.f32.mrb[0].mxu0
      %v6283 = vadd.f32 0.0, %v6282
      %v6284 = vpop.f32.mrb[0].mxu0
      %6285 = vmatprep.mubr.f32.mxu0 %v5080
      %6286 = vmatmul.mubr.f32.gmra.mrb[0].mxu0 %v5078
      %v6287 = vpop.f32.mrb[0].mxu0
      %v6288 = vadd.f32 0.0, %v6287
      %v6289 = vpop.f32.mrb[0].mxu0
      %6290 = vmatprep.mubr.f32.mxu0 %v5086
      %6291 = vmatmul.mubr.f32.gmra.mrb[0].mxu0 %v5083
      %v6292 = vpop.f32.mrb[0].mxu0
      %v6293 = vadd.f32 0.0, %v6292
      %v6294 = vpop.f32.mrb[0].mxu0
      %6295 = vmatprep.mubr.f32.mxu0 %v5090
      %6296 = vmatmul.mubr.f32.gmra.mrb[0].mxu0 %v5088
      %v6297 = vpop.f32.mrb[0].mxu0
      %v6298 = vadd.f32 0.0, %v6297
      %v6299 = vpop.f32.mrb[0].mxu0
      %6300 = vmatprep.mubr.f32.mxu0 %v5096
      %6301 = vmatmul.mubr.f32.gmra.mrb[0].mxu0 %v5093
      %v6302 = vpop.f32.mrb[0].mxu0
      %v6303 = vadd.f32 0.0, %v6302
      %v6304 = vpop.f32.mrb[0].mxu0
      %6305 = vmatprep.mubr.f32.mxu0 %v5100
      %6306 = vmatmul.mubr.f32.gmra.mrb[0].mxu0 %v5098
      %v6307 = vpop.f32.mrb[0].mxu0
      %v6308 = vadd.f32 0.0, %v6307
      %v6309 = vpop.f32.mrb[0].mxu0
      %6310 = vmatprep.mubr.f32.mxu0 %v5106
      %6311 = vmatmul.mubr.f32.gmra.mrb[0].mxu0 %v5103
      %v6312 = vpop.f32.mrb[0].mxu0
      %v6313 = vadd.f32 0.0, %v6312
      %v6314 = vpop.f32.mrb[0].mxu0
      %6315 = vmatprep.mubr.f32.mxu0 %v5110
      %6316 = vmatmul.mubr.f32.gmra.mrb[0].mxu0 %v5108
      %v6317 = vpop.f32.mrb[0].mxu0
      %v6318 = vadd.f32 0.0, %v6317
      %v6319 = vpop.f32.mrb[0].mxu0
      %6320 = vmatprep.mubr.f32.mxu0 %v5116
      %6321 = vmatmul.mubr.f32.gmra.mrb[0].mxu0 %v5113
      %v6322 = vpop.f32.mrb[0].mxu0
      %v6323 = vadd.f32 0.0, %v6322
      %v6324 = vpop.f32.mrb[0].mxu0
      %6325 = vmatprep.mubr.f32.mxu0 %v5120
      %6326 = vmatmul.mubr.f32.gmra.mrb[0].mxu0 %v5118
      %v6327 = vpop.f32.mrb[0].mxu0
      %v6328 = vadd.f32 0.0, %v6327
      %v6329 = vpop.f32.mrb[0].mxu0
      %6330 = vmatprep.mubr.f32.mxu0 %v5126
      %6331 = vmatmul.mubr.f32.gmra.mrb[0].mxu0 %v5123
      %v6332 = vpop.f32.mrb[0].mxu0
      %v6333 = vadd.f32 0.0, %v6332
      %v6334 = vpop.f32.mrb[0].mxu0
      %6335 = vmatprep.mubr.f32.mxu0 %v5130
      %6336 = vmatmul.mubr.f32.gmra.mrb[0].mxu0 %v5128
      %v6337 = vpop.f32.mrb[0].mxu0
      %v6338 = vadd.f32 0.0, %v6337
      %v6339 = vpop.f32.mrb[0].mxu0
      %6340 = vmatprep.mubr.f32.mxu0 %v5136
      %6341 = vmatmul.mubr.f32.gmra.mrb[0].mxu0 %v5133
      %v6342 = vpop.f32.mrb[0].mxu0
      %v6343 = vadd.f32 0.0, %v6342
      %v6344 = vpop.f32.mrb[0].mxu0
      %6345 = vmatprep.mubr.f32.mxu0 %v5140
      %6346 = vmatmul.mubr.f32.gmra.mrb[0].mxu0 %v5138
      %v6347 = vpop.f32.mrb[0].mxu0
      %v6348 = vadd.f32 0.0, %v6347
      %v6349 = vpop.f32.mrb[0].mxu0
      %6350 = vmatprep.mubr.f32.mxu0 %v5146
      %6351 = vmatmul.mubr.f32.gmra.mrb[0].mxu0 %v5143
      %v6352 = vpop.f32.mrb[0].mxu0
      %v6353 = vadd.f32 0.0, %v6352
      %v6354 = vpop.f32.mrb[0].mxu0
      %6355 = vmatprep.mubr.f32.mxu0 %v5150
      %6356 = vmatmul.mubr.f32.gmra.mrb[0].mxu0 %v5148
      %v6357 = vpop.f32.mrb[0].mxu0
      %v6358 = vadd.f32 0.0, %v6357
      %v6359 = vpop.f32.mrb[0].mxu0
      %6360 = vmatprep.mubr.f32.mxu0 %v6104
      %6361 = vmatmul.mubr.f32.gmra.mrb[0].mxu0 %v6101
      %v6362 = vpop.f32.mrb[0].mxu0
      %v6363 = vadd.f32 0.0, %v6362
      %v6364 = vpop.f32.mrb[0].mxu0
      %6365 = vmatprep.mubr.f32.mxu0 %v6108
      %6366 = vmatmul.mubr.f32.gmra.mrb[0].mxu0 %v6106
      %v6367 = vpop.f32.mrb[0].mxu0
      %v6368 = vadd.f32 0.0, %v6367
      %v6369 = vpop.f32.mrb[0].mxu0
      %6370 = vdwg.mxu0
      %v6371 = vadd.f32 %v6067, %v6213
      %v6372 = vadd.f32 %v6068, %v6218
      %v6373 = vadd.f32 %v6069, %v6223
      %v6374 = vadd.f32 %v6070, %v6228
      %v6375 = vadd.f32 %v6071, %v6233
      %v6376 = vadd.f32 %v6072, %v6238
      %v6377 = vadd.f32 %v6073, %v6243
      %v6378 = vadd.f32 %v6074, %v6248
      %v6379 = vadd.f32 %v6075, %v6253
      %v6380 = vadd.f32 %v6076, %v6258
      %v6381 = vadd.f32 %v6077, %v6263
      %v6382 = vadd.f32 %v6078, %v6268
      %v6383 = vadd.f32 %v6079, %v6273
      %v6384 = vadd.f32 %v6080, %v6278
      %v6385 = vadd.f32 %v6081, %v6283
      %v6386 = vadd.f32 %v6082, %v6288
      %v6387 = vadd.f32 %v6083, %v6293
      %v6388 = vadd.f32 %v6084, %v6298
      %v6389 = vadd.f32 %v6085, %v6303
      %v6390 = vadd.f32 %v6086, %v6308
      %v6391 = vadd.f32 %v6087, %v6313
      %v6392 = vadd.f32 %v6088, %v6318
      %v6393 = vadd.f32 %v6089, %v6323
      %v6394 = vadd.f32 %v6090, %v6328
      %v6395 = vadd.f32 %v6091, %v6333
      %v6396 = vadd.f32 %v6092, %v6338
      %v6397 = vadd.f32 %v6093, %v6343
      %v6398 = vadd.f32 %v6094, %v6348
      %v6399 = vadd.f32 %v6095, %v6353
      %v6400 = vadd.f32 %v6096, %v6358
      %v6401 = vadd.f32 %v6097, %v6363
      %v6402 = vadd.f32 %v6098, %v6368
      %s6403 = scalar_lea.vmem %s3, 1536
      %v6404 = vld [vmem:[%s6403] sm:$0xff]
      %v6405 = vld [vmem:[%s6403 + $0x8] sm:$0xff]
      %v6406 = vld [vmem:[%s6403 + $0x10] sm:$0xff]
      %v6407 = vld [vmem:[%s6403 + $0x18] sm:$0xff]
      %v6408 = vld [vmem:[%s6403 + $0x20] sm:$0xff]
      %v6409 = vld [vmem:[%s6403 + $0x28] sm:$0xff]
      %v6410 = vld [vmem:[%s6403 + $0x30] sm:$0xff]
      %v6411 = vld [vmem:[%s6403 + $0x38] sm:$0xff]
      %v6412 = vld [vmem:[%s6403 + $0x40] sm:$0xff]
      %v6413 = vld [vmem:[%s6403 + $0x48] sm:$0xff]
      %v6414 = vld [vmem:[%s6403 + $0x50] sm:$0xff]
      %v6415 = vld [vmem:[%s6403 + $0x58] sm:$0xff]
      %v6416 = vld [vmem:[%s6403 + $0x60] sm:$0xff]
      %v6417 = vld [vmem:[%s6403 + $0x68] sm:$0xff]
      %v6418 = vld [vmem:[%s6403 + $0x70] sm:$0xff]
      %v6419 = vld [vmem:[%s6403 + $0x78] sm:$0xff]
      %v6420 = vld [vmem:[%s6403 + $0x80] sm:$0xff]
      %v6421 = vld [vmem:[%s6403 + $0x88] sm:$0xff]
      %v6422 = vld [vmem:[%s6403 + $0x90] sm:$0xff]
      %v6423 = vld [vmem:[%s6403 + $0x98] sm:$0xff]
      %v6424 = vld [vmem:[%s6403 + $0xa0] sm:$0xff]
      %v6425 = vld [vmem:[%s6403 + $0xa8] sm:$0xff]
      %v6426 = vld [vmem:[%s6403 + $0xb0] sm:$0xff]
      %v6427 = vld [vmem:[%s6403 + $0xb8] sm:$0xff]
      %v6428 = vld [vmem:[%s6403 + $0xc0] sm:$0xff]
      %v6429 = vld [vmem:[%s6403 + $0xc8] sm:$0xff]
      %v6430 = vld [vmem:[%s6403 + $0xd0] sm:$0xff]
      %v6431 = vld [vmem:[%s6403 + $0xd8] sm:$0xff]
      %v6432 = vld [vmem:[%s6403 + $0xe0] sm:$0xff]
      %v6433 = vld [vmem:[%s6403 + $0xe8] sm:$0xff]
      %v6434 = vld [vmem:[%s6403 + $0xf0] sm:$0xff]
      %v6435 = vld [vmem:[%s6403 + $0xf8] sm:$0xff]
      %6436 = vmatprep.subr.mxu0 0.0
      %6437 = vmatpush1.msra.mxu0 %v6404
      %6438 = vmatprep.subr.mxu0 0.0
      %6439 = vmatpush1.msra.mxu0 %v6405
      %6440 = vmatprep.subr.mxu0 0.0
      %6441 = vmatpush1.msra.mxu0 %v6406
      %6442 = vmatprep.subr.mxu0 0.0
      %6443 = vmatpush1.msra.mxu0 %v6407
      %6444 = vmatprep.subr.mxu0 0.0
      %6445 = vmatpush1.msra.mxu0 %v6408
      %6446 = vmatprep.subr.mxu0 0.0
      %6447 = vmatpush1.msra.mxu0 %v6409
      %6448 = vmatprep.subr.mxu0 0.0
      %6449 = vmatpush1.msra.mxu0 %v6410
      %6450 = vmatprep.subr.mxu0 0.0
      %6451 = vmatpush1.msra.mxu0 %v6411
      %6452 = vmatprep.subr.mxu0 0.0
      %6453 = vmatpush1.msra.mxu0 %v6412
      %6454 = vmatprep.subr.mxu0 0.0
      %6455 = vmatpush1.msra.mxu0 %v6413
      %6456 = vmatprep.subr.mxu0 0.0
      %6457 = vmatpush1.msra.mxu0 %v6414
      %6458 = vmatprep.subr.mxu0 0.0
      %6459 = vmatpush1.msra.mxu0 %v6415
      %6460 = vmatprep.subr.mxu0 0.0
      %6461 = vmatpush1.msra.mxu0 %v6416
      %6462 = vmatprep.subr.mxu0 0.0
      %6463 = vmatpush1.msra.mxu0 %v6417
      %6464 = vmatprep.subr.mxu0 0.0
      %6465 = vmatpush1.msra.mxu0 %v6418
      %6466 = vmatprep.subr.mxu0 0.0
      %6467 = vmatpush1.msra.mxu0 %v6419
      %6468 = vmatprep.subr.mxu0 0.0
      %6469 = vmatpush1.msra.mxu0 %v6420
      %6470 = vmatprep.subr.mxu0 0.0
      %6471 = vmatpush1.msra.mxu0 %v6421
      %6472 = vmatprep.subr.mxu0 0.0
      %6473 = vmatpush1.msra.mxu0 %v6422
      %6474 = vmatprep.subr.mxu0 0.0
      %6475 = vmatpush1.msra.mxu0 %v6423
      %6476 = vmatprep.subr.mxu0 0.0
      %6477 = vmatpush1.msra.mxu0 %v6424
      %6478 = vmatprep.subr.mxu0 0.0
      %6479 = vmatpush1.msra.mxu0 %v6425
      %6480 = vmatprep.subr.mxu0 0.0
      %6481 = vmatpush1.msra.mxu0 %v6426
      %6482 = vmatprep.subr.mxu0 0.0
      %6483 = vmatpush1.msra.mxu0 %v6427
      %6484 = vmatprep.subr.mxu0 0.0
      %6485 = vmatpush1.msra.mxu0 %v6428
      %6486 = vmatprep.subr.mxu0 0.0
      %6487 = vmatpush1.msra.mxu0 %v6429
      %6488 = vmatprep.subr.mxu0 0.0
      %6489 = vmatpush1.msra.mxu0 %v6430
      %6490 = vmatprep.subr.mxu0 0.0
      %6491 = vmatpush1.msra.mxu0 %v6431
      %6492 = vmatprep.subr.mxu0 0.0
      %6493 = vmatpush1.msra.mxu0 %v6432
      %6494 = vmatprep.subr.mxu0 0.0
      %6495 = vmatpush1.msra.mxu0 %v6433
      %6496 = vmatprep.subr.mxu0 0.0
      %6497 = vmatpush1.msra.mxu0 %v6434
      %6498 = vmatprep.subr.mxu0 0.0
      %6499 = vmatpush1.msra.mxu0 %v6435
      %6500 = vmatprep.mubr.f32.mxu0 %v4155
      %6501 = vmatmul.mubr.f32.gmra.mrb[0].mxu0 %v4154
      %v6502 = vpop.f32.mrb[0].mxu0
      %v6503 = vadd.f32 0.0, %v6502
      %v6504 = vpop.f32.mrb[0].mxu0
      %6505 = vmatprep.mubr.f32.mxu0 %v3971
      %6506 = vmatmul.mubr.f32.gmra.mrb[0].mxu0 %v3969
      %v6507 = vpop.f32.mrb[0].mxu0
      %v6508 = vadd.f32 0.0, %v6507
      %v6509 = vpop.f32.mrb[0].mxu0
      %6510 = vmatprep.mubr.f32.mxu0 %v4157
      %6511 = vmatmul.mubr.f32.gmra.mrb[0].mxu0 %v4156
      %v6512 = vpop.f32.mrb[0].mxu0
      %v6513 = vadd.f32 0.0, %v6512
      %v6514 = vpop.f32.mrb[0].mxu0
      %6515 = vmatprep.mubr.f32.mxu0 %v3977
      %6516 = vmatmul.mubr.f32.gmra.mrb[0].mxu0 %v3975
      %v6517 = vpop.f32.mrb[0].mxu0
      %v6518 = vadd.f32 0.0, %v6517
      %v6519 = vpop.f32.mrb[0].mxu0
      %6520 = vmatprep.mubr.f32.mxu0 %v4159
      %6521 = vmatmul.mubr.f32.gmra.mrb[0].mxu0 %v4158
      %v6522 = vpop.f32.mrb[0].mxu0
      %v6523 = vadd.f32 0.0, %v6522
      %v6524 = vpop.f32.mrb[0].mxu0
      %6525 = vmatprep.mubr.f32.mxu0 %v3983
      %6526 = vmatmul.mubr.f32.gmra.mrb[0].mxu0 %v3981
      %v6527 = vpop.f32.mrb[0].mxu0
      %v6528 = vadd.f32 0.0, %v6527
      %v6529 = vpop.f32.mrb[0].mxu0
      %6530 = vmatprep.mubr.f32.mxu0 %v4161
      %6531 = vmatmul.mubr.f32.gmra.mrb[0].mxu0 %v4160
      %v6532 = vpop.f32.mrb[0].mxu0
      %v6533 = vadd.f32 0.0, %v6532
      %v6534 = vpop.f32.mrb[0].mxu0
      %6535 = vmatprep.mubr.f32.mxu0 %v3989
      %6536 = vmatmul.mubr.f32.gmra.mrb[0].mxu0 %v3987
      %v6537 = vpop.f32.mrb[0].mxu0
      %v6538 = vadd.f32 0.0, %v6537
      %v6539 = vpop.f32.mrb[0].mxu0
      %6540 = vmatprep.mubr.f32.mxu0 %v4163
      %6541 = vmatmul.mubr.f32.gmra.mrb[0].mxu0 %v4162
      %v6542 = vpop.f32.mrb[0].mxu0
      %v6543 = vadd.f32 0.0, %v6542
      %v6544 = vpop.f32.mrb[0].mxu0
      %6545 = vmatprep.mubr.f32.mxu0 %v3995
      %6546 = vmatmul.mubr.f32.gmra.mrb[0].mxu0 %v3993
      %v6547 = vpop.f32.mrb[0].mxu0
      %v6548 = vadd.f32 0.0, %v6547
      %v6549 = vpop.f32.mrb[0].mxu0
      %6550 = vmatprep.mubr.f32.mxu0 %v4165
      %6551 = vmatmul.mubr.f32.gmra.mrb[0].mxu0 %v4164
      %v6552 = vpop.f32.mrb[0].mxu0
      %v6553 = vadd.f32 0.0, %v6552
      %v6554 = vpop.f32.mrb[0].mxu0
      %6555 = vmatprep.mubr.f32.mxu0 %v4001
      %6556 = vmatmul.mubr.f32.gmra.mrb[0].mxu0 %v3999
      %v6557 = vpop.f32.mrb[0].mxu0
      %v6558 = vadd.f32 0.0, %v6557
      %v6559 = vpop.f32.mrb[0].mxu0
      %6560 = vmatprep.mubr.f32.mxu0 %v4167
      %6561 = vmatmul.mubr.f32.gmra.mrb[0].mxu0 %v4166
      %v6562 = vpop.f32.mrb[0].mxu0
      %v6563 = vadd.f32 0.0, %v6562
      %v6564 = vpop.f32.mrb[0].mxu0
      %6565 = vmatprep.mubr.f32.mxu0 %v4007
      %6566 = vmatmul.mubr.f32.gmra.mrb[0].mxu0 %v4005
      %v6567 = vpop.f32.mrb[0].mxu0
      %v6568 = vadd.f32 0.0, %v6567
      %v6569 = vpop.f32.mrb[0].mxu0
      %6570 = vmatprep.mubr.f32.mxu0 %v4169
      %6571 = vmatmul.mubr.f32.gmra.mrb[0].mxu0 %v4168
      %v6572 = vpop.f32.mrb[0].mxu0
      %v6573 = vadd.f32 0.0, %v6572
      %v6574 = vpop.f32.mrb[0].mxu0
      %6575 = vmatprep.mubr.f32.mxu0 %v4013
      %6576 = vmatmul.mubr.f32.gmra.mrb[0].mxu0 %v4011
      %v6577 = vpop.f32.mrb[0].mxu0
      %v6578 = vadd.f32 0.0, %v6577
      %v6579 = vpop.f32.mrb[0].mxu0
      %6580 = vmatprep.mubr.f32.mxu0 %v4171
      %6581 = vmatmul.mubr.f32.gmra.mrb[0].mxu0 %v4170
      %v6582 = vpop.f32.mrb[0].mxu0
      %v6583 = vadd.f32 0.0, %v6582
      %v6584 = vpop.f32.mrb[0].mxu0
      %6585 = vmatprep.mubr.f32.mxu0 %v4019
      %6586 = vmatmul.mubr.f32.gmra.mrb[0].mxu0 %v4017
      %v6587 = vpop.f32.mrb[0].mxu0
      %v6588 = vadd.f32 0.0, %v6587
      %v6589 = vpop.f32.mrb[0].mxu0
      %6590 = vmatprep.mubr.f32.mxu0 %v4173
      %6591 = vmatmul.mubr.f32.gmra.mrb[0].mxu0 %v4172
      %v6592 = vpop.f32.mrb[0].mxu0
      %v6593 = vadd.f32 0.0, %v6592
      %v6594 = vpop.f32.mrb[0].mxu0
      %6595 = vmatprep.mubr.f32.mxu0 %v4025
      %6596 = vmatmul.mubr.f32.gmra.mrb[0].mxu0 %v4023
      %v6597 = vpop.f32.mrb[0].mxu0
      %v6598 = vadd.f32 0.0, %v6597
      %v6599 = vpop.f32.mrb[0].mxu0
      %6600 = vmatprep.mubr.f32.mxu0 %v4175
      %6601 = vmatmul.mubr.f32.gmra.mrb[0].mxu0 %v4174
      %v6602 = vpop.f32.mrb[0].mxu0
      %v6603 = vadd.f32 0.0, %v6602
      %v6604 = vpop.f32.mrb[0].mxu0
      %6605 = vmatprep.mubr.f32.mxu0 %v4031
      %6606 = vmatmul.mubr.f32.gmra.mrb[0].mxu0 %v4029
      %v6607 = vpop.f32.mrb[0].mxu0
      %v6608 = vadd.f32 0.0, %v6607
      %v6609 = vpop.f32.mrb[0].mxu0
      %6610 = vmatprep.mubr.f32.mxu0 %v4177
      %6611 = vmatmul.mubr.f32.gmra.mrb[0].mxu0 %v4176
      %v6612 = vpop.f32.mrb[0].mxu0
      %v6613 = vadd.f32 0.0, %v6612
      %v6614 = vpop.f32.mrb[0].mxu0
      %6615 = vmatprep.mubr.f32.mxu0 %v4037
      %6616 = vmatmul.mubr.f32.gmra.mrb[0].mxu0 %v4035
      %v6617 = vpop.f32.mrb[0].mxu0
      %v6618 = vadd.f32 0.0, %v6617
      %v6619 = vpop.f32.mrb[0].mxu0
      %6620 = vmatprep.mubr.f32.mxu0 %v4179
      %6621 = vmatmul.mubr.f32.gmra.mrb[0].mxu0 %v4178
      %v6622 = vpop.f32.mrb[0].mxu0
      %v6623 = vadd.f32 0.0, %v6622
      %v6624 = vpop.f32.mrb[0].mxu0
      %6625 = vmatprep.mubr.f32.mxu0 %v4043
      %6626 = vmatmul.mubr.f32.gmra.mrb[0].mxu0 %v4041
      %v6627 = vpop.f32.mrb[0].mxu0
      %v6628 = vadd.f32 0.0, %v6627
      %v6629 = vpop.f32.mrb[0].mxu0
      %6630 = vmatprep.mubr.f32.mxu0 %v4181
      %6631 = vmatmul.mubr.f32.gmra.mrb[0].mxu0 %v4180
      %v6632 = vpop.f32.mrb[0].mxu0
      %v6633 = vadd.f32 0.0, %v6632
      %v6634 = vpop.f32.mrb[0].mxu0
      %6635 = vmatprep.mubr.f32.mxu0 %v4049
      %6636 = vmatmul.mubr.f32.gmra.mrb[0].mxu0 %v4047
      %v6637 = vpop.f32.mrb[0].mxu0
      %v6638 = vadd.f32 0.0, %v6637
      %v6639 = vpop.f32.mrb[0].mxu0
      %6640 = vmatprep.mubr.f32.mxu0 %v4183
      %6641 = vmatmul.mubr.f32.gmra.mrb[0].mxu0 %v4182
      %v6642 = vpop.f32.mrb[0].mxu0
      %v6643 = vadd.f32 0.0, %v6642
      %v6644 = vpop.f32.mrb[0].mxu0
      %6645 = vmatprep.mubr.f32.mxu0 %v4055
      %6646 = vmatmul.mubr.f32.gmra.mrb[0].mxu0 %v4053
      %v6647 = vpop.f32.mrb[0].mxu0
      %v6648 = vadd.f32 0.0, %v6647
      %v6649 = vpop.f32.mrb[0].mxu0
      %6650 = vmatprep.mubr.f32.mxu0 %v391
      %6651 = vmatmul.mubr.f32.gmra.mrb[0].mxu0 %v391
      %v6652 = vpop.f32.mrb[0].mxu0
      %v6653 = vadd.f32 0.0, %v6652
      %v6654 = vpop.f32.mrb[0].mxu0
      %6655 = vmatprep.mubr.f32.mxu0 %v292
      %6656 = vmatmul.mubr.f32.gmra.mrb[0].mxu0 %v292
      %v6657 = vpop.f32.mrb[0].mxu0
      %v6658 = vadd.f32 0.0, %v6657
      %v6659 = vpop.f32.mrb[0].mxu0
      %6660 = vdwg.mxu0
      %v6661 = vadd.f32 %v6371, %v6503
      %v6662 = vadd.f32 %v6372, %v6508
      %v6663 = vadd.f32 %v6373, %v6513
      %v6664 = vadd.f32 %v6374, %v6518
      %v6665 = vadd.f32 %v6375, %v6523
      %v6666 = vadd.f32 %v6376, %v6528
      %v6667 = vadd.f32 %v6377, %v6533
      %v6668 = vadd.f32 %v6378, %v6538
      %v6669 = vadd.f32 %v6379, %v6543
      %v6670 = vadd.f32 %v6380, %v6548
      %v6671 = vadd.f32 %v6381, %v6553
      %v6672 = vadd.f32 %v6382, %v6558
      %v6673 = vadd.f32 %v6383, %v6563
      %v6674 = vadd.f32 %v6384, %v6568
      %v6675 = vadd.f32 %v6385, %v6573
      %v6676 = vadd.f32 %v6386, %v6578
      %v6677 = vadd.f32 %v6387, %v6583
      %v6678 = vadd.f32 %v6388, %v6588
      %v6679 = vadd.f32 %v6389, %v6593
      %v6680 = vadd.f32 %v6390, %v6598
      %v6681 = vadd.f32 %v6391, %v6603
      %v6682 = vadd.f32 %v6392, %v6608
      %v6683 = vadd.f32 %v6393, %v6613
      %v6684 = vadd.f32 %v6394, %v6618
      %v6685 = vadd.f32 %v6395, %v6623
      %v6686 = vadd.f32 %v6396, %v6628
      %v6687 = vadd.f32 %v6397, %v6633
      %v6688 = vadd.f32 %v6398, %v6638
      %v6689 = vadd.f32 %v6399, %v6643
      %v6690 = vadd.f32 %v6400, %v6648
      %v6691 = vadd.f32 %v6401, %v6653
      %v6692 = vadd.f32 %v6402, %v6658
      %s6693 = scalar_lea.vmem %s3, 1792
      %v6694 = vld [vmem:[%s6693] sm:$0xff]
      %v6695 = vld [vmem:[%s6693 + $0x8] sm:$0xff]
      %v6696 = vld [vmem:[%s6693 + $0x10] sm:$0xff]
      %v6697 = vld [vmem:[%s6693 + $0x18] sm:$0xff]
      %v6698 = vld [vmem:[%s6693 + $0x20] sm:$0xff]
      %v6699 = vld [vmem:[%s6693 + $0x28] sm:$0xff]
      %v6700 = vld [vmem:[%s6693 + $0x30] sm:$0xff]
      %v6701 = vld [vmem:[%s6693 + $0x38] sm:$0xff]
      %v6702 = vld [vmem:[%s6693 + $0x40] sm:$0xff]
      %v6703 = vld [vmem:[%s6693 + $0x48] sm:$0xff]
      %v6704 = vld [vmem:[%s6693 + $0x50] sm:$0xff]
      %v6705 = vld [vmem:[%s6693 + $0x58] sm:$0xff]
      %v6706 = vld [vmem:[%s6693 + $0x60] sm:$0xff]
      %v6707 = vld [vmem:[%s6693 + $0x68] sm:$0xff]
      %v6708 = vld [vmem:[%s6693 + $0x70] sm:$0xff]
      %v6709 = vld [vmem:[%s6693 + $0x78] sm:$0xff]
      %v6710 = vld [vmem:[%s6693 + $0x80] sm:$0xff]
      %v6711 = vld [vmem:[%s6693 + $0x88] sm:$0xff]
      %v6712 = vld [vmem:[%s6693 + $0x90] sm:$0xff]
      %v6713 = vld [vmem:[%s6693 + $0x98] sm:$0xff]
      %v6714 = vld [vmem:[%s6693 + $0xa0] sm:$0xff]
      %v6715 = vld [vmem:[%s6693 + $0xa8] sm:$0xff]
      %v6716 = vld [vmem:[%s6693 + $0xb0] sm:$0xff]
      %v6717 = vld [vmem:[%s6693 + $0xb8] sm:$0xff]
      %v6718 = vld [vmem:[%s6693 + $0xc0] sm:$0xff]
      %v6719 = vld [vmem:[%s6693 + $0xc8] sm:$0xff]
      %v6720 = vld [vmem:[%s6693 + $0xd0] sm:$0xff]
      %v6721 = vld [vmem:[%s6693 + $0xd8] sm:$0xff]
      %v6722 = vld [vmem:[%s6693 + $0xe0] sm:$0xff]
      %v6723 = vld [vmem:[%s6693 + $0xe8] sm:$0xff]
      %v6724 = vld [vmem:[%s6693 + $0xf0] sm:$0xff]
      %v6725 = vld [vmem:[%s6693 + $0xf8] sm:$0xff]
      %6726 = vmatprep.subr.mxu0 0.0
      %6727 = vmatpush1.msra.mxu0 %v6694
      %6728 = vmatprep.subr.mxu0 0.0
      %6729 = vmatpush1.msra.mxu0 %v6695
      %6730 = vmatprep.subr.mxu0 0.0
      %6731 = vmatpush1.msra.mxu0 %v6696
      %6732 = vmatprep.subr.mxu0 0.0
      %6733 = vmatpush1.msra.mxu0 %v6697
      %6734 = vmatprep.subr.mxu0 0.0
      %6735 = vmatpush1.msra.mxu0 %v6698
      %6736 = vmatprep.subr.mxu0 0.0
      %6737 = vmatpush1.msra.mxu0 %v6699
      %6738 = vmatprep.subr.mxu0 0.0
      %6739 = vmatpush1.msra.mxu0 %v6700
      %6740 = vmatprep.subr.mxu0 0.0
      %6741 = vmatpush1.msra.mxu0 %v6701
      %6742 = vmatprep.subr.mxu0 0.0
      %6743 = vmatpush1.msra.mxu0 %v6702
      %6744 = vmatprep.subr.mxu0 0.0
      %6745 = vmatpush1.msra.mxu0 %v6703
      %6746 = vmatprep.subr.mxu0 0.0
      %6747 = vmatpush1.msra.mxu0 %v6704
      %6748 = vmatprep.subr.mxu0 0.0
      %6749 = vmatpush1.msra.mxu0 %v6705
      %6750 = vmatprep.subr.mxu0 0.0
      %6751 = vmatpush1.msra.mxu0 %v6706
      %6752 = vmatprep.subr.mxu0 0.0
      %6753 = vmatpush1.msra.mxu0 %v6707
      %6754 = vmatprep.subr.mxu0 0.0
      %6755 = vmatpush1.msra.mxu0 %v6708
      %6756 = vmatprep.subr.mxu0 0.0
      %6757 = vmatpush1.msra.mxu0 %v6709
      %6758 = vmatprep.subr.mxu0 0.0
      %6759 = vmatpush1.msra.mxu0 %v6710
      %6760 = vmatprep.subr.mxu0 0.0
      %6761 = vmatpush1.msra.mxu0 %v6711
      %6762 = vmatprep.subr.mxu0 0.0
      %6763 = vmatpush1.msra.mxu0 %v6712
      %6764 = vmatprep.subr.mxu0 0.0
      %6765 = vmatpush1.msra.mxu0 %v6713
      %6766 = vmatprep.subr.mxu0 0.0
      %6767 = vmatpush1.msra.mxu0 %v6714
      %6768 = vmatprep.subr.mxu0 0.0
      %6769 = vmatpush1.msra.mxu0 %v6715
      %6770 = vmatprep.subr.mxu0 0.0
      %6771 = vmatpush1.msra.mxu0 %v6716
      %6772 = vmatprep.subr.mxu0 0.0
      %6773 = vmatpush1.msra.mxu0 %v6717
      %6774 = vmatprep.subr.mxu0 0.0
      %6775 = vmatpush1.msra.mxu0 %v6718
      %6776 = vmatprep.subr.mxu0 0.0
      %6777 = vmatpush1.msra.mxu0 %v6719
      %6778 = vmatprep.subr.mxu0 0.0
      %6779 = vmatpush1.msra.mxu0 %v6720
      %6780 = vmatprep.subr.mxu0 0.0
      %6781 = vmatpush1.msra.mxu0 %v6721
      %6782 = vmatprep.subr.mxu0 0.0
      %6783 = vmatpush1.msra.mxu0 %v6722
      %6784 = vmatprep.subr.mxu0 0.0
      %6785 = vmatpush1.msra.mxu0 %v6723
      %6786 = vmatprep.subr.mxu0 0.0
      %6787 = vmatpush1.msra.mxu0 %v6724
      %6788 = vmatprep.subr.mxu0 0.0
      %6789 = vmatpush1.msra.mxu0 %v6725
      %6790 = vmatprep.mubr.f32.mxu0 %v4323
      %6791 = vmatmul.mubr.f32.gmra.mrb[0].mxu0 %v4320
      %v6792 = vpop.f32.mrb[0].mxu0
      %v6793 = vadd.f32 0.0, %v6792
      %v6794 = vpop.f32.mrb[0].mxu0
      %6795 = vmatprep.mubr.f32.mxu0 %v4327
      %6796 = vmatmul.mubr.f32.gmra.mrb[0].mxu0 %v4325
      %v6797 = vpop.f32.mrb[0].mxu0
      %v6798 = vadd.f32 0.0, %v6797
      %v6799 = vpop.f32.mrb[0].mxu0
      %6800 = vmatprep.mubr.f32.mxu0 %v4333
      %6801 = vmatmul.mubr.f32.gmra.mrb[0].mxu0 %v4330
      %v6802 = vpop.f32.mrb[0].mxu0
      %v6803 = vadd.f32 0.0, %v6802
      %v6804 = vpop.f32.mrb[0].mxu0
      %6805 = vmatprep.mubr.f32.mxu0 %v4337
      %6806 = vmatmul.mubr.f32.gmra.mrb[0].mxu0 %v4335
      %v6807 = vpop.f32.mrb[0].mxu0
      %v6808 = vadd.f32 0.0, %v6807
      %v6809 = vpop.f32.mrb[0].mxu0
      %6810 = vmatprep.mubr.f32.mxu0 %v4343
      %6811 = vmatmul.mubr.f32.gmra.mrb[0].mxu0 %v4340
      %v6812 = vpop.f32.mrb[0].mxu0
      %v6813 = vadd.f32 0.0, %v6812
      %v6814 = vpop.f32.mrb[0].mxu0
      %6815 = vmatprep.mubr.f32.mxu0 %v4347
      %6816 = vmatmul.mubr.f32.gmra.mrb[0].mxu0 %v4345
      %v6817 = vpop.f32.mrb[0].mxu0
      %v6818 = vadd.f32 0.0, %v6817
      %v6819 = vpop.f32.mrb[0].mxu0
      %6820 = vmatprep.mubr.f32.mxu0 %v4353
      %6821 = vmatmul.mubr.f32.gmra.mrb[0].mxu0 %v4350
      %v6822 = vpop.f32.mrb[0].mxu0
      %v6823 = vadd.f32 0.0, %v6822
      %v6824 = vpop.f32.mrb[0].mxu0
      %6825 = vmatprep.mubr.f32.mxu0 %v4357
      %6826 = vmatmul.mubr.f32.gmra.mrb[0].mxu0 %v4355
      %v6827 = vpop.f32.mrb[0].mxu0
      %v6828 = vadd.f32 0.0, %v6827
      %v6829 = vpop.f32.mrb[0].mxu0
      %6830 = vmatprep.mubr.f32.mxu0 %v4363
      %6831 = vmatmul.mubr.f32.gmra.mrb[0].mxu0 %v4360
      %v6832 = vpop.f32.mrb[0].mxu0
      %v6833 = vadd.f32 0.0, %v6832
      %v6834 = vpop.f32.mrb[0].mxu0
      %6835 = vmatprep.mubr.f32.mxu0 %v4367
      %6836 = vmatmul.mubr.f32.gmra.mrb[0].mxu0 %v4365
      %v6837 = vpop.f32.mrb[0].mxu0
      %v6838 = vadd.f32 0.0, %v6837
      %v6839 = vpop.f32.mrb[0].mxu0
      %6840 = vmatprep.mubr.f32.mxu0 %v4373
      %6841 = vmatmul.mubr.f32.gmra.mrb[0].mxu0 %v4370
      %v6842 = vpop.f32.mrb[0].mxu0
      %v6843 = vadd.f32 0.0, %v6842
      %v6844 = vpop.f32.mrb[0].mxu0
      %6845 = vmatprep.mubr.f32.mxu0 %v4377
      %6846 = vmatmul.mubr.f32.gmra.mrb[0].mxu0 %v4375
      %v6847 = vpop.f32.mrb[0].mxu0
      %v6848 = vadd.f32 0.0, %v6847
      %v6849 = vpop.f32.mrb[0].mxu0
      %6850 = vmatprep.mubr.f32.mxu0 %v4383
      %6851 = vmatmul.mubr.f32.gmra.mrb[0].mxu0 %v4380
      %v6852 = vpop.f32.mrb[0].mxu0
      %v6853 = vadd.f32 0.0, %v6852
      %v6854 = vpop.f32.mrb[0].mxu0
      %6855 = vmatprep.mubr.f32.mxu0 %v4387
      %6856 = vmatmul.mubr.f32.gmra.mrb[0].mxu0 %v4385
      %v6857 = vpop.f32.mrb[0].mxu0
      %v6858 = vadd.f32 0.0, %v6857
      %v6859 = vpop.f32.mrb[0].mxu0
      %6860 = vmatprep.mubr.f32.mxu0 %v4393
      %6861 = vmatmul.mubr.f32.gmra.mrb[0].mxu0 %v4390
      %v6862 = vpop.f32.mrb[0].mxu0
      %v6863 = vadd.f32 0.0, %v6862
      %v6864 = vpop.f32.mrb[0].mxu0
      %6865 = vmatprep.mubr.f32.mxu0 %v4397
      %6866 = vmatmul.mubr.f32.gmra.mrb[0].mxu0 %v4395
      %v6867 = vpop.f32.mrb[0].mxu0
      %v6868 = vadd.f32 0.0, %v6867
      %v6869 = vpop.f32.mrb[0].mxu0
      %6870 = vmatprep.mubr.f32.mxu0 %v4403
      %6871 = vmatmul.mubr.f32.gmra.mrb[0].mxu0 %v4400
      %v6872 = vpop.f32.mrb[0].mxu0
      %v6873 = vadd.f32 0.0, %v6872
      %v6874 = vpop.f32.mrb[0].mxu0
      %6875 = vmatprep.mubr.f32.mxu0 %v4407
      %6876 = vmatmul.mubr.f32.gmra.mrb[0].mxu0 %v4405
      %v6877 = vpop.f32.mrb[0].mxu0
      %v6878 = vadd.f32 0.0, %v6877
      %v6879 = vpop.f32.mrb[0].mxu0
      %6880 = vmatprep.mubr.f32.mxu0 %v4413
      %6881 = vmatmul.mubr.f32.gmra.mrb[0].mxu0 %v4410
      %v6882 = vpop.f32.mrb[0].mxu0
      %v6883 = vadd.f32 0.0, %v6882
      %v6884 = vpop.f32.mrb[0].mxu0
      %6885 = vmatprep.mubr.f32.mxu0 %v4417
      %6886 = vmatmul.mubr.f32.gmra.mrb[0].mxu0 %v4415
      %v6887 = vpop.f32.mrb[0].mxu0
      %v6888 = vadd.f32 0.0, %v6887
      %v6889 = vpop.f32.mrb[0].mxu0
      %6890 = vmatprep.mubr.f32.mxu0 %v4423
      %6891 = vmatmul.mubr.f32.gmra.mrb[0].mxu0 %v4420
      %v6892 = vpop.f32.mrb[0].mxu0
      %v6893 = vadd.f32 0.0, %v6892
      %v6894 = vpop.f32.mrb[0].mxu0
      %6895 = vmatprep.mubr.f32.mxu0 %v4427
      %6896 = vmatmul.mubr.f32.gmra.mrb[0].mxu0 %v4425
      %v6897 = vpop.f32.mrb[0].mxu0
      %v6898 = vadd.f32 0.0, %v6897
      %v6899 = vpop.f32.mrb[0].mxu0
      %6900 = vmatprep.mubr.f32.mxu0 %v4433
      %6901 = vmatmul.mubr.f32.gmra.mrb[0].mxu0 %v4430
      %v6902 = vpop.f32.mrb[0].mxu0
      %v6903 = vadd.f32 0.0, %v6902
      %v6904 = vpop.f32.mrb[0].mxu0
      %6905 = vmatprep.mubr.f32.mxu0 %v4437
      %6906 = vmatmul.mubr.f32.gmra.mrb[0].mxu0 %v4435
      %v6907 = vpop.f32.mrb[0].mxu0
      %v6908 = vadd.f32 0.0, %v6907
      %v6909 = vpop.f32.mrb[0].mxu0
      %6910 = vmatprep.mubr.f32.mxu0 %v4443
      %6911 = vmatmul.mubr.f32.gmra.mrb[0].mxu0 %v4440
      %v6912 = vpop.f32.mrb[0].mxu0
      %v6913 = vadd.f32 0.0, %v6912
      %v6914 = vpop.f32.mrb[0].mxu0
      %6915 = vmatprep.mubr.f32.mxu0 %v4447
      %6916 = vmatmul.mubr.f32.gmra.mrb[0].mxu0 %v4445
      %v6917 = vpop.f32.mrb[0].mxu0
      %v6918 = vadd.f32 0.0, %v6917
      %v6919 = vpop.f32.mrb[0].mxu0
      %6920 = vmatprep.mubr.f32.mxu0 %v4453
      %6921 = vmatmul.mubr.f32.gmra.mrb[0].mxu0 %v4450
      %v6922 = vpop.f32.mrb[0].mxu0
      %v6923 = vadd.f32 0.0, %v6922
      %v6924 = vpop.f32.mrb[0].mxu0
      %6925 = vmatprep.mubr.f32.mxu0 %v4457
      %6926 = vmatmul.mubr.f32.gmra.mrb[0].mxu0 %v4455
      %v6927 = vpop.f32.mrb[0].mxu0
      %v6928 = vadd.f32 0.0, %v6927
      %v6929 = vpop.f32.mrb[0].mxu0
      %6930 = vmatprep.mubr.f32.mxu0 %v5800
      %6931 = vmatmul.mubr.f32.gmra.mrb[0].mxu0 %v5797
      %v6932 = vpop.f32.mrb[0].mxu0
      %v6933 = vadd.f32 0.0, %v6932
      %v6934 = vpop.f32.mrb[0].mxu0
      %6935 = vmatprep.mubr.f32.mxu0 %v5804
      %6936 = vmatmul.mubr.f32.gmra.mrb[0].mxu0 %v5802
      %v6937 = vpop.f32.mrb[0].mxu0
      %v6938 = vadd.f32 0.0, %v6937
      %v6939 = vpop.f32.mrb[0].mxu0
      %6940 = vmatprep.mubr.f32.mxu0 %v492
      %6941 = vmatmul.mubr.f32.gmra.mrb[0].mxu0 %v492
      %v6942 = vpop.f32.mrb[0].mxu0
      %v6943 = vadd.f32 0.0, %v6942
      %v6944 = vpop.f32.mrb[0].mxu0
      %6945 = vmatprep.mubr.f32.mxu0 %v494
      %6946 = vmatmul.mubr.f32.gmra.mrb[0].mxu0 %v494
      %v6947 = vpop.f32.mrb[0].mxu0
      %v6948 = vadd.f32 0.0, %v6947
      %v6949 = vpop.f32.mrb[0].mxu0
      %6950 = vdwg.mxu0
      %v6951 = vadd.f32 %v6661, %v6793
      %v6952 = vadd.f32 %v6662, %v6798
      %v6953 = vadd.f32 %v6663, %v6803
      %v6954 = vadd.f32 %v6664, %v6808
      %v6955 = vadd.f32 %v6665, %v6813
      %v6956 = vadd.f32 %v6666, %v6818
      %v6957 = vadd.f32 %v6667, %v6823
      %v6958 = vadd.f32 %v6668, %v6828
      %v6959 = vadd.f32 %v6669, %v6833
      %v6960 = vadd.f32 %v6670, %v6838
      %v6961 = vadd.f32 %v6671, %v6843
      %v6962 = vadd.f32 %v6672, %v6848
      %v6963 = vadd.f32 %v6673, %v6853
      %v6964 = vadd.f32 %v6674, %v6858
      %v6965 = vadd.f32 %v6675, %v6863
      %v6966 = vadd.f32 %v6676, %v6868
      %v6967 = vadd.f32 %v6677, %v6873
      %v6968 = vadd.f32 %v6678, %v6878
      %v6969 = vadd.f32 %v6679, %v6883
      %v6970 = vadd.f32 %v6680, %v6888
      %v6971 = vadd.f32 %v6681, %v6893
      %v6972 = vadd.f32 %v6682, %v6898
      %v6973 = vadd.f32 %v6683, %v6903
      %v6974 = vadd.f32 %v6684, %v6908
      %v6975 = vadd.f32 %v6685, %v6913
      %v6976 = vadd.f32 %v6686, %v6918
      %v6977 = vadd.f32 %v6687, %v6923
      %v6978 = vadd.f32 %v6688, %v6928
      %v6979 = vadd.f32 %v6689, %v6933
      %v6980 = vadd.f32 %v6690, %v6938
      %v6981 = vadd.f32 %v6691, %v6943
      %v6982 = vadd.f32 %v6692, %v6948
      %s6983 = scalar_lea.vmem %s3, 2048
      %v6984 = vld [vmem:[%s6983] sm:$0xff]
      %v6985 = vld [vmem:[%s6983 + $0x8] sm:$0xff]
      %v6986 = vld [vmem:[%s6983 + $0x10] sm:$0xff]
      %v6987 = vld [vmem:[%s6983 + $0x18] sm:$0xff]
      %v6988 = vld [vmem:[%s6983 + $0x20] sm:$0xff]
      %v6989 = vld [vmem:[%s6983 + $0x28] sm:$0xff]
      %v6990 = vld [vmem:[%s6983 + $0x30] sm:$0xff]
      %v6991 = vld [vmem:[%s6983 + $0x38] sm:$0xff]
      %v6992 = vld [vmem:[%s6983 + $0x40] sm:$0xff]
      %v6993 = vld [vmem:[%s6983 + $0x48] sm:$0xff]
      %v6994 = vld [vmem:[%s6983 + $0x50] sm:$0xff]
      %v6995 = vld [vmem:[%s6983 + $0x58] sm:$0xff]
      %v6996 = vld [vmem:[%s6983 + $0x60] sm:$0xff]
      %v6997 = vld [vmem:[%s6983 + $0x68] sm:$0xff]
      %v6998 = vld [vmem:[%s6983 + $0x70] sm:$0xff]
      %v6999 = vld [vmem:[%s6983 + $0x78] sm:$0xff]
      %v7000 = vld [vmem:[%s6983 + $0x80] sm:$0xff]
      %v7001 = vld [vmem:[%s6983 + $0x88] sm:$0xff]
      %v7002 = vld [vmem:[%s6983 + $0x90] sm:$0xff]
      %v7003 = vld [vmem:[%s6983 + $0x98] sm:$0xff]
      %v7004 = vld [vmem:[%s6983 + $0xa0] sm:$0xff]
      %v7005 = vld [vmem:[%s6983 + $0xa8] sm:$0xff]
      %v7006 = vld [vmem:[%s6983 + $0xb0] sm:$0xff]
      %v7007 = vld [vmem:[%s6983 + $0xb8] sm:$0xff]
      %v7008 = vld [vmem:[%s6983 + $0xc0] sm:$0xff]
      %v7009 = vld [vmem:[%s6983 + $0xc8] sm:$0xff]
      %v7010 = vld [vmem:[%s6983 + $0xd0] sm:$0xff]
      %v7011 = vld [vmem:[%s6983 + $0xd8] sm:$0xff]
      %v7012 = vld [vmem:[%s6983 + $0xe0] sm:$0xff]
      %v7013 = vld [vmem:[%s6983 + $0xe8] sm:$0xff]
      %v7014 = vld [vmem:[%s6983 + $0xf0] sm:$0xff]
      %v7015 = vld [vmem:[%s6983 + $0xf8] sm:$0xff]
      %7016 = vmatprep.subr.mxu0 0.0
      %7017 = vmatpush1.msra.mxu0 %v6984
      %7018 = vmatprep.subr.mxu0 0.0
      %7019 = vmatpush1.msra.mxu0 %v6985
      %7020 = vmatprep.subr.mxu0 0.0
      %7021 = vmatpush1.msra.mxu0 %v6986
      %7022 = vmatprep.subr.mxu0 0.0
      %7023 = vmatpush1.msra.mxu0 %v6987
      %7024 = vmatprep.subr.mxu0 0.0
      %7025 = vmatpush1.msra.mxu0 %v6988
      %7026 = vmatprep.subr.mxu0 0.0
      %7027 = vmatpush1.msra.mxu0 %v6989
      %7028 = vmatprep.subr.mxu0 0.0
      %7029 = vmatpush1.msra.mxu0 %v6990
      %7030 = vmatprep.subr.mxu0 0.0
      %7031 = vmatpush1.msra.mxu0 %v6991
      %7032 = vmatprep.subr.mxu0 0.0
      %7033 = vmatpush1.msra.mxu0 %v6992
      %7034 = vmatprep.subr.mxu0 0.0
      %7035 = vmatpush1.msra.mxu0 %v6993
      %7036 = vmatprep.subr.mxu0 0.0
      %7037 = vmatpush1.msra.mxu0 %v6994
      %7038 = vmatprep.subr.mxu0 0.0
      %7039 = vmatpush1.msra.mxu0 %v6995
      %7040 = vmatprep.subr.mxu0 0.0
      %7041 = vmatpush1.msra.mxu0 %v6996
      %7042 = vmatprep.subr.mxu0 0.0
      %7043 = vmatpush1.msra.mxu0 %v6997
      %7044 = vmatprep.subr.mxu0 0.0
      %7045 = vmatpush1.msra.mxu0 %v6998
      %7046 = vmatprep.subr.mxu0 0.0
      %7047 = vmatpush1.msra.mxu0 %v6999
      %7048 = vmatprep.subr.mxu0 0.0
      %7049 = vmatpush1.msra.mxu0 %v7000
      %7050 = vmatprep.subr.mxu0 0.0
      %7051 = vmatpush1.msra.mxu0 %v7001
      %7052 = vmatprep.subr.mxu0 0.0
      %7053 = vmatpush1.msra.mxu0 %v7002
      %7054 = vmatprep.subr.mxu0 0.0
      %7055 = vmatpush1.msra.mxu0 %v7003
      %7056 = vmatprep.subr.mxu0 0.0
      %7057 = vmatpush1.msra.mxu0 %v7004
      %7058 = vmatprep.subr.mxu0 0.0
      %7059 = vmatpush1.msra.mxu0 %v7005
      %7060 = vmatprep.subr.mxu0 0.0
      %7061 = vmatpush1.msra.mxu0 %v7006
      %7062 = vmatprep.subr.mxu0 0.0
      %7063 = vmatpush1.msra.mxu0 %v7007
      %7064 = vmatprep.subr.mxu0 0.0
      %7065 = vmatpush1.msra.mxu0 %v7008
      %7066 = vmatprep.subr.mxu0 0.0
      %7067 = vmatpush1.msra.mxu0 %v7009
      %7068 = vmatprep.subr.mxu0 0.0
      %7069 = vmatpush1.msra.mxu0 %v7010
      %7070 = vmatprep.subr.mxu0 0.0
      %7071 = vmatpush1.msra.mxu0 %v7011
      %7072 = vmatprep.subr.mxu0 0.0
      %7073 = vmatpush1.msra.mxu0 %v7012
      %7074 = vmatprep.subr.mxu0 0.0
      %7075 = vmatpush1.msra.mxu0 %v7013
      %7076 = vmatprep.subr.mxu0 0.0
      %7077 = vmatpush1.msra.mxu0 %v7014
      %7078 = vmatprep.subr.mxu0 0.0
      %7079 = vmatpush1.msra.mxu0 %v7015
      %7080 = vmatprep.mubr.f32.mxu0 %v5016
      %7081 = vmatmul.mubr.f32.gmra.mrb[0].mxu0 %v5013
      %v7082 = vpop.f32.mrb[0].mxu0
      %v7083 = vadd.f32 0.0, %v7082
      %v7084 = vpop.f32.mrb[0].mxu0
      %7085 = vmatprep.mubr.f32.mxu0 %v5020
      %7086 = vmatmul.mubr.f32.gmra.mrb[0].mxu0 %v5018
      %v7087 = vpop.f32.mrb[0].mxu0
      %v7088 = vadd.f32 0.0, %v7087
      %v7089 = vpop.f32.mrb[0].mxu0
      %7090 = vmatprep.mubr.f32.mxu0 %v5026
      %7091 = vmatmul.mubr.f32.gmra.mrb[0].mxu0 %v5023
      %v7092 = vpop.f32.mrb[0].mxu0
      %v7093 = vadd.f32 0.0, %v7092
      %v7094 = vpop.f32.mrb[0].mxu0
      %7095 = vmatprep.mubr.f32.mxu0 %v5030
      %7096 = vmatmul.mubr.f32.gmra.mrb[0].mxu0 %v5028
      %v7097 = vpop.f32.mrb[0].mxu0
      %v7098 = vadd.f32 0.0, %v7097
      %v7099 = vpop.f32.mrb[0].mxu0
      %7100 = vmatprep.mubr.f32.mxu0 %v5036
      %7101 = vmatmul.mubr.f32.gmra.mrb[0].mxu0 %v5033
      %v7102 = vpop.f32.mrb[0].mxu0
      %v7103 = vadd.f32 0.0, %v7102
      %v7104 = vpop.f32.mrb[0].mxu0
      %7105 = vmatprep.mubr.f32.mxu0 %v5040
      %7106 = vmatmul.mubr.f32.gmra.mrb[0].mxu0 %v5038
      %v7107 = vpop.f32.mrb[0].mxu0
      %v7108 = vadd.f32 0.0, %v7107
      %v7109 = vpop.f32.mrb[0].mxu0
      %7110 = vmatprep.mubr.f32.mxu0 %v5046
      %7111 = vmatmul.mubr.f32.gmra.mrb[0].mxu0 %v5043
      %v7112 = vpop.f32.mrb[0].mxu0
      %v7113 = vadd.f32 0.0, %v7112
      %v7114 = vpop.f32.mrb[0].mxu0
      %7115 = vmatprep.mubr.f32.mxu0 %v5050
      %7116 = vmatmul.mubr.f32.gmra.mrb[0].mxu0 %v5048
      %v7117 = vpop.f32.mrb[0].mxu0
      %v7118 = vadd.f32 0.0, %v7117
      %v7119 = vpop.f32.mrb[0].mxu0
      %7120 = vmatprep.mubr.f32.mxu0 %v5056
      %7121 = vmatmul.mubr.f32.gmra.mrb[0].mxu0 %v5053
      %v7122 = vpop.f32.mrb[0].mxu0
      %v7123 = vadd.f32 0.0, %v7122
      %v7124 = vpop.f32.mrb[0].mxu0
      %7125 = vmatprep.mubr.f32.mxu0 %v5060
      %7126 = vmatmul.mubr.f32.gmra.mrb[0].mxu0 %v5058
      %v7127 = vpop.f32.mrb[0].mxu0
      %v7128 = vadd.f32 0.0, %v7127
      %v7129 = vpop.f32.mrb[0].mxu0
      %7130 = vmatprep.mubr.f32.mxu0 %v5066
      %7131 = vmatmul.mubr.f32.gmra.mrb[0].mxu0 %v5063
      %v7132 = vpop.f32.mrb[0].mxu0
      %v7133 = vadd.f32 0.0, %v7132
      %v7134 = vpop.f32.mrb[0].mxu0
      %7135 = vmatprep.mubr.f32.mxu0 %v5070
      %7136 = vmatmul.mubr.f32.gmra.mrb[0].mxu0 %v5068
      %v7137 = vpop.f32.mrb[0].mxu0
      %v7138 = vadd.f32 0.0, %v7137
      %v7139 = vpop.f32.mrb[0].mxu0
      %7140 = vmatprep.mubr.f32.mxu0 %v5076
      %7141 = vmatmul.mubr.f32.gmra.mrb[0].mxu0 %v5073
      %v7142 = vpop.f32.mrb[0].mxu0
      %v7143 = vadd.f32 0.0, %v7142
      %v7144 = vpop.f32.mrb[0].mxu0
      %7145 = vmatprep.mubr.f32.mxu0 %v5080
      %7146 = vmatmul.mubr.f32.gmra.mrb[0].mxu0 %v5078
      %v7147 = vpop.f32.mrb[0].mxu0
      %v7148 = vadd.f32 0.0, %v7147
      %v7149 = vpop.f32.mrb[0].mxu0
      %7150 = vmatprep.mubr.f32.mxu0 %v5086
      %7151 = vmatmul.mubr.f32.gmra.mrb[0].mxu0 %v5083
      %v7152 = vpop.f32.mrb[0].mxu0
      %v7153 = vadd.f32 0.0, %v7152
      %v7154 = vpop.f32.mrb[0].mxu0
      %7155 = vmatprep.mubr.f32.mxu0 %v5090
      %7156 = vmatmul.mubr.f32.gmra.mrb[0].mxu0 %v5088
      %v7157 = vpop.f32.mrb[0].mxu0
      %v7158 = vadd.f32 0.0, %v7157
      %v7159 = vpop.f32.mrb[0].mxu0
      %7160 = vmatprep.mubr.f32.mxu0 %v5096
      %7161 = vmatmul.mubr.f32.gmra.mrb[0].mxu0 %v5093
      %v7162 = vpop.f32.mrb[0].mxu0
      %v7163 = vadd.f32 0.0, %v7162
      %v7164 = vpop.f32.mrb[0].mxu0
      %7165 = vmatprep.mubr.f32.mxu0 %v5100
      %7166 = vmatmul.mubr.f32.gmra.mrb[0].mxu0 %v5098
      %v7167 = vpop.f32.mrb[0].mxu0
      %v7168 = vadd.f32 0.0, %v7167
      %v7169 = vpop.f32.mrb[0].mxu0
      %7170 = vmatprep.mubr.f32.mxu0 %v5106
      %7171 = vmatmul.mubr.f32.gmra.mrb[0].mxu0 %v5103
      %v7172 = vpop.f32.mrb[0].mxu0
      %v7173 = vadd.f32 0.0, %v7172
      %v7174 = vpop.f32.mrb[0].mxu0
      %7175 = vmatprep.mubr.f32.mxu0 %v5110
      %7176 = vmatmul.mubr.f32.gmra.mrb[0].mxu0 %v5108
      %v7177 = vpop.f32.mrb[0].mxu0
      %v7178 = vadd.f32 0.0, %v7177
      %v7179 = vpop.f32.mrb[0].mxu0
      %7180 = vmatprep.mubr.f32.mxu0 %v5116
      %7181 = vmatmul.mubr.f32.gmra.mrb[0].mxu0 %v5113
      %v7182 = vpop.f32.mrb[0].mxu0
      %v7183 = vadd.f32 0.0, %v7182
      %v7184 = vpop.f32.mrb[0].mxu0
      %7185 = vmatprep.mubr.f32.mxu0 %v5120
      %7186 = vmatmul.mubr.f32.gmra.mrb[0].mxu0 %v5118
      %v7187 = vpop.f32.mrb[0].mxu0
      %v7188 = vadd.f32 0.0, %v7187
      %v7189 = vpop.f32.mrb[0].mxu0
      %7190 = vmatprep.mubr.f32.mxu0 %v5126
      %7191 = vmatmul.mubr.f32.gmra.mrb[0].mxu0 %v5123
      %v7192 = vpop.f32.mrb[0].mxu0
      %v7193 = vadd.f32 0.0, %v7192
      %v7194 = vpop.f32.mrb[0].mxu0
      %7195 = vmatprep.mubr.f32.mxu0 %v5130
      %7196 = vmatmul.mubr.f32.gmra.mrb[0].mxu0 %v5128
      %v7197 = vpop.f32.mrb[0].mxu0
      %v7198 = vadd.f32 0.0, %v7197
      %v7199 = vpop.f32.mrb[0].mxu0
      %7200 = vmatprep.mubr.f32.mxu0 %v5136
      %7201 = vmatmul.mubr.f32.gmra.mrb[0].mxu0 %v5133
      %v7202 = vpop.f32.mrb[0].mxu0
      %v7203 = vadd.f32 0.0, %v7202
      %v7204 = vpop.f32.mrb[0].mxu0
      %7205 = vmatprep.mubr.f32.mxu0 %v5140
      %7206 = vmatmul.mubr.f32.gmra.mrb[0].mxu0 %v5138
      %v7207 = vpop.f32.mrb[0].mxu0
      %v7208 = vadd.f32 0.0, %v7207
      %v7209 = vpop.f32.mrb[0].mxu0
      %7210 = vmatprep.mubr.f32.mxu0 %v5146
      %7211 = vmatmul.mubr.f32.gmra.mrb[0].mxu0 %v5143
      %v7212 = vpop.f32.mrb[0].mxu0
      %v7213 = vadd.f32 0.0, %v7212
      %v7214 = vpop.f32.mrb[0].mxu0
      %7215 = vmatprep.mubr.f32.mxu0 %v5150
      %7216 = vmatmul.mubr.f32.gmra.mrb[0].mxu0 %v5148
      %v7217 = vpop.f32.mrb[0].mxu0
      %v7218 = vadd.f32 0.0, %v7217
      %v7219 = vpop.f32.mrb[0].mxu0
      %7220 = vmatprep.mubr.f32.mxu0 %v6104
      %7221 = vmatmul.mubr.f32.gmra.mrb[0].mxu0 %v6101
      %v7222 = vpop.f32.mrb[0].mxu0
      %v7223 = vadd.f32 0.0, %v7222
      %v7224 = vpop.f32.mrb[0].mxu0
      %7225 = vmatprep.mubr.f32.mxu0 %v6108
      %7226 = vmatmul.mubr.f32.gmra.mrb[0].mxu0 %v6106
      %v7227 = vpop.f32.mrb[0].mxu0
      %v7228 = vadd.f32 0.0, %v7227
      %v7229 = vpop.f32.mrb[0].mxu0
      %7230 = vmatprep.mubr.f32.mxu0 %v1152
      %7231 = vmatmul.mubr.f32.gmra.mrb[0].mxu0 %v1152
      %v7232 = vpop.f32.mrb[0].mxu0
      %v7233 = vadd.f32 0.0, %v7232
      %v7234 = vpop.f32.mrb[0].mxu0
      %7235 = vmatprep.mubr.f32.mxu0 %v1154
      %7236 = vmatmul.mubr.f32.gmra.mrb[0].mxu0 %v1154
      %v7237 = vpop.f32.mrb[0].mxu0
      %v7238 = vadd.f32 0.0, %v7237
      %v7239 = vpop.f32.mrb[0].mxu0
      %7240 = vdwg.mxu0
      %v7241 = vadd.f32 %v6951, %v7083
      %v7242 = vadd.f32 %v6952, %v7088
      %v7243 = vadd.f32 %v6953, %v7093
      %v7244 = vadd.f32 %v6954, %v7098
      %v7245 = vadd.f32 %v6955, %v7103
      %v7246 = vadd.f32 %v6956, %v7108
      %v7247 = vadd.f32 %v6957, %v7113
      %v7248 = vadd.f32 %v6958, %v7118
      %v7249 = vadd.f32 %v6959, %v7123
      %v7250 = vadd.f32 %v6960, %v7128
      %v7251 = vadd.f32 %v6961, %v7133
      %v7252 = vadd.f32 %v6962, %v7138
      %v7253 = vadd.f32 %v6963, %v7143
      %v7254 = vadd.f32 %v6964, %v7148
      %v7255 = vadd.f32 %v6965, %v7153
      %v7256 = vadd.f32 %v6966, %v7158
      %v7257 = vadd.f32 %v6967, %v7163
      %v7258 = vadd.f32 %v6968, %v7168
      %v7259 = vadd.f32 %v6969, %v7173
      %v7260 = vadd.f32 %v6970, %v7178
      %v7261 = vadd.f32 %v6971, %v7183
      %v7262 = vadd.f32 %v6972, %v7188
      %v7263 = vadd.f32 %v6973, %v7193
      %v7264 = vadd.f32 %v6974, %v7198
      %v7265 = vadd.f32 %v6975, %v7203
      %v7266 = vadd.f32 %v6976, %v7208
      %v7267 = vadd.f32 %v6977, %v7213
      %v7268 = vadd.f32 %v6978, %v7218
      %v7269 = vadd.f32 %v6979, %v7223
      %v7270 = vadd.f32 %v6980, %v7228
      %v7271 = vadd.f32 %v6981, %v7233
      %v7272 = vadd.f32 %v6982, %v7238
      %v7273 = vld [vmem:[%s4] sm:$0x1]
      %v7275 = vlaneseq
      %v7276 = vshrl.u32 %v7275, 7
      %v7277 = vsub.s32 0, %v7276
      %v7278 = vrot.slane %v7273, %v7277
      %v7280 = vadd.f32 %v7241, %v7278
      %v7281 = vadd.f32 %v7242, %v7278
      %v7282 = vadd.f32 %v7243, %v7278
      %v7283 = vadd.f32 %v7244, %v7278
      %v7284 = vadd.f32 %v7245, %v7278
      %v7285 = vadd.f32 %v7246, %v7278
      %v7286 = vadd.f32 %v7247, %v7278
      %v7287 = vadd.f32 %v7248, %v7278
      %v7288 = vadd.f32 %v7249, %v7278
      %v7289 = vadd.f32 %v7250, %v7278
      %v7290 = vadd.f32 %v7251, %v7278
      %v7291 = vadd.f32 %v7252, %v7278
      %v7292 = vadd.f32 %v7253, %v7278
      %v7293 = vadd.f32 %v7254, %v7278
      %v7294 = vadd.f32 %v7255, %v7278
      %v7295 = vadd.f32 %v7256, %v7278
      %v7296 = vadd.f32 %v7257, %v7278
      %v7297 = vadd.f32 %v7258, %v7278
      %v7298 = vadd.f32 %v7259, %v7278
      %v7299 = vadd.f32 %v7260, %v7278
      %v7300 = vadd.f32 %v7261, %v7278
      %v7301 = vadd.f32 %v7262, %v7278
      %v7302 = vadd.f32 %v7263, %v7278
      %v7303 = vadd.f32 %v7264, %v7278
      %v7304 = vadd.f32 %v7265, %v7278
      %v7305 = vadd.f32 %v7266, %v7278
      %v7306 = vadd.f32 %v7267, %v7278
      %v7307 = vadd.f32 %v7268, %v7278
      %v7308 = vadd.f32 %v7269, %v7278
      %v7309 = vadd.f32 %v7270, %v7278
      %v7310 = vadd.f32 %v7271, %v7278
      %v7311 = vadd.f32 %v7272, %v7278
      %vm7312 = vcmask 15360
      %7313 = vst.msk [vmem:[%s224] sm:$0xff] %vm7312, %v7280
      %7314 = vst.msk [vmem:[%s224 + $0x8] sm:$0xff] %vm7312, %v7281
      %7315 = vst.msk [vmem:[%s224 + $0x10] sm:$0xff] %vm7312, %v7282
      %7316 = vst.msk [vmem:[%s224 + $0x18] sm:$0xff] %vm7312, %v7283
      %7317 = vst.msk [vmem:[%s224 + $0x20] sm:$0xff] %vm7312, %v7284
      %7318 = vst.msk [vmem:[%s224 + $0x28] sm:$0xff] %vm7312, %v7285
      %7319 = vst.msk [vmem:[%s224 + $0x30] sm:$0xff] %vm7312, %v7286
      %7320 = vst.msk [vmem:[%s224 + $0x38] sm:$0xff] %vm7312, %v7287
      %7321 = vst.msk [vmem:[%s224 + $0x40] sm:$0xff] %vm7312, %v7288
      %7322 = vst.msk [vmem:[%s224 + $0x48] sm:$0xff] %vm7312, %v7289
      %7323 = vst.msk [vmem:[%s224 + $0x50] sm:$0xff] %vm7312, %v7290
      %7324 = vst.msk [vmem:[%s224 + $0x58] sm:$0xff] %vm7312, %v7291
      %7325 = vst.msk [vmem:[%s224 + $0x60] sm:$0xff] %vm7312, %v7292
      %7326 = vst.msk [vmem:[%s224 + $0x68] sm:$0xff] %vm7312, %v7293
      %7327 = vst.msk [vmem:[%s224 + $0x70] sm:$0xff] %vm7312, %v7294
      %7328 = vst.msk [vmem:[%s224 + $0x78] sm:$0xff] %vm7312, %v7295
      %7329 = vst.msk [vmem:[%s224 + $0x80] sm:$0xff] %vm7312, %v7296
      %7330 = vst.msk [vmem:[%s224 + $0x88] sm:$0xff] %vm7312, %v7297
      %7331 = vst.msk [vmem:[%s224 + $0x90] sm:$0xff] %vm7312, %v7298
      %7332 = vst.msk [vmem:[%s224 + $0x98] sm:$0xff] %vm7312, %v7299
      %7333 = vst.msk [vmem:[%s224 + $0xa0] sm:$0xff] %vm7312, %v7300
      %7334 = vst.msk [vmem:[%s224 + $0xa8] sm:$0xff] %vm7312, %v7301
      %7335 = vst.msk [vmem:[%s224 + $0xb0] sm:$0xff] %vm7312, %v7302
      %7336 = vst.msk [vmem:[%s224 + $0xb8] sm:$0xff] %vm7312, %v7303
      %7337 = vst.msk [vmem:[%s224 + $0xc0] sm:$0xff] %vm7312, %v7304
      %7338 = vst.msk [vmem:[%s224 + $0xc8] sm:$0xff] %vm7312, %v7305
      %7339 = vst.msk [vmem:[%s224 + $0xd0] sm:$0xff] %vm7312, %v7306
      %7340 = vst.msk [vmem:[%s224 + $0xd8] sm:$0xff] %vm7312, %v7307
      %7341 = vst.msk [vmem:[%s224 + $0xe0] sm:$0xff] %vm7312, %v7308
      %7342 = vst.msk [vmem:[%s224 + $0xe8] sm:$0xff] %vm7312, %v7309
      %7343 = vst.msk [vmem:[%s224 + $0xf0] sm:$0xff] %vm7312, %v7310
      %7344 = vst.msk [vmem:[%s224 + $0xf8] sm:$0xff] %vm7312, %v7311
      %p7345 = scmp.lt.s32.totalorder %s16, 1
      %s7346 = scalar_select %p7345, %s16, 1
      %s7347 = smul.addr %s7346, 32
      %s7348 = smul.addr %s7347, 8
      %s7349 = scalar_lea.vmem %s5, %s7348
      // Predicated region
      $region41: #{flow_head.1} parent=39 // pred_check
        %p7350 = pneg %p144
      $region42: #{flow_head.1} parent=39 // pred_check_branch
        %7352 = sbr.rel (%p7350) target = $region44
      $region43: #{flow_head.1} parent=39 // pred_region
        _
      $region44: #{flow_head.1} parent=39 // pred_fallthru
        _
    $region40: #{flow_head.1} parent=5 // pred_fallthru
      _
    %p7353 = scmp.le.s32.totalorder 2, %s11
    // Predicated region
    $region45: #{flow_head.1} parent=5 // pred_check
      %p7354 = pneg %p7353
    $region46: #{flow_head.1} parent=5 // pred_check_branch
      %7356 = sbr.rel (%p7354) target = $region48
    $region47: #{flow_head.1} parent=5 // pred_region
      %s7357 = ssub.s32 %s11, 2
      // Predicated region
      $region49: #{flow_head.1} parent=47 // pred_check
        %p7358 = pneg %p150
      $region50: #{flow_head.1} parent=47 // pred_check_branch
        %7360 = sbr.rel (%p7358) target = $region52
      $region51: #{flow_head.1} parent=47 // pred_region
        %p7361 = scmp.lt.s32.totalorder %s17, 1
        %s7362 = scalar_select %p7361, %s17, 1
        %s7363 = smul.addr %s7362, 32
        %s7364 = smul.addr %s7363, 8
        %s7365 = scalar_lea.vmem %s5, %s7364
      $region52: #{flow_head.1} parent=47 // pred_fallthru
        _
    $region48: #{flow_head.1} parent=5 // pred_fallthru
      _
  $region6: #{flow_head.1} parent=0 // loop_footer
    %s15 = sadd.s32 1, %s11
  $region7: #{flow_head.1} parent=0 // loop_footer_branch
    %10 = sbr.rel target = $region3
  $region8: #{flow_head.1} parent=0 // loop_exit
    _

</llo_original>
